<compile_context>
chip_gen: v7x
topology: tpu7x:2x2x1
jax: 0.10.0
libtpu: 0.0.40
codegen_flags: <defaults>
</compile_context>

<pallas_src>
import numpy as np
import jax
import jax.numpy as jnp
from jax import lax
from jax.experimental import pallas as pl
from jax.experimental.pallas import tpu as pltpu

INPUT_DIM = 15
L_IN = 100
EPS = 1e-5
LIN_IN = 420
LIN_OUT = 20

# static plan of the nn.Sequential (BN + ReLU folded into each conv step)
LAYER_PLAN = (
    ("conv", 3), ("conv", 3), ("pool", 3),
    ("conv", 3), ("conv", 3), ("pool", 3),
    ("conv", 3), ("conv", 1), ("conv", 1),
)
CONV_CHANNELS = (
    (INPUT_DIM, INPUT_DIM * 2),
    (INPUT_DIM * 2, INPUT_DIM * 4),
    (INPUT_DIM * 4, INPUT_DIM * 8),
    (INPUT_DIM * 8, INPUT_DIM * 16),
    (INPUT_DIM * 16, INPUT_DIM * 8),
    (INPUT_DIM * 8, INPUT_DIM * 4),
    (INPUT_DIM * 4, INPUT_DIM * 4),
)
CONV_KS = (3, 3, 3, 3, 3, 1, 1)
NUM_CONVS = len(CONV_KS)
NUM_POOLS = sum(1 for kind, _ in LAYER_PLAN if kind == "pool")

C_FIN = CONV_CHANNELS[-1][1]          # 60
L_FIN = LIN_IN // C_FIN               # 7
assert C_FIN * L_FIN == LIN_IN


def _pad8(c):
    return (c + 7) // 8 * 8


# --------------------------------- kernel -----------------------------------

def extractor_kernel(x_ref, *refs):
    """One grid step runs TN samples end-to-end: convs + pools + fused Linear."""
    conv_refs = refs[:2 * NUM_CONVS]                       # (w_kc, shift) per conv
    pm_refs = refs[2 * NUM_CONVS:2 * NUM_CONVS + NUM_POOLS]
    lw_ref = refs[-3]                                      # (L_FIN, LIN_OUT, C_FIN_pad)
    lb_ref = refs[-2]                                      # (LIN_OUT, 1)
    out_ref = refs[-1]                                     # (1, LIN_OUT, TN)

    tn = x_ref.shape[0]
    for t in range(tn):                                    # small static unroll
        y = x_ref[t]                                       # (C_pad, L)
        ci = 0
        pi = 0
        for kind, k in LAYER_PLAN:
            if kind == "conv":
                w_ref = conv_refs[2 * ci]                  # (C_out_pad, k*C_in_pad), BN folded
                s_ref = conv_refs[2 * ci + 1]              # (C_out_pad, 1)
                ci += 1
                lo = y.shape[1] - k + 1
                if k == 1:
                    xk = y
                else:
                    # stack the k taps along the contraction (sublane) axis:
                    # a single MXU matmul per conv instead of k.
                    xk = jnp.concatenate(
                        [y[:, kk:kk + lo] for kk in range(k)], axis=0)
                y = jnp.maximum(
                    jnp.dot(w_ref[...], xk, preferred_element_type=jnp.float32)
                    + s_ref[...],
                    0.0)
            else:
                # AvgPool1d(3): matmul with a hoisted (3*Lo, Lo) pooling matrix.
                pm = pm_refs[pi][...]
                pi += 1
                y = jnp.dot(y[:, :pm.shape[0]], pm,
                            preferred_element_type=jnp.float32)

        # fused Linear(420, 20):  out[o] = sum_{c,j} y[c, j] * W[o, c*L_FIN + j] + b[o]
        col = jnp.dot(lw_ref[0], y[:, 0:1], preferred_element_type=jnp.float32)
        for j in range(1, L_FIN):
            col = col + jnp.dot(lw_ref[j], y[:, j:j + 1],
                                preferred_element_type=jnp.float32)
        out_ref[0, :, t:t + 1] = col + lb_ref[...]


# ------------------------------ host wrapper ---------------------------------

def _choose_tile_n(n):
    """Samples per grid step; keep >=2 grid steps when possible (v7x has 2 TCs)."""
    tn = 1
    for cand in (2, 4, 8):
        if n % cand == 0 and n // cand >= 2:
            tn = cand
    return tn


def _pool_matrices():
    """Pooling matrices (3*Lo, Lo) for every AvgPool1d(3) in the static plan."""
    mats = []
    length = L_IN
    for kind, k in LAYER_PLAN:
        if kind == "conv":
            length = length - k + 1
        else:
            lo = length // 3
            m = np.zeros((3 * lo, lo), np.float32)
            for j in range(lo):
                m[3 * j:3 * j + 3, j] = 1.0 / 3.0
            mats.append(jnp.asarray(m))
            length = lo
    return mats


def fold_params(raw):
    """Fold eval-mode BatchNorm (running mean=0, var=1) + conv bias into the conv
    weights/shifts, stack K taps along the contraction dim, and zero-pad all channel
    dims to multiples of 8 so every in-kernel slice/concat is sublane-aligned."""
    conv_args = []
    for (w, b, gamma, beta), k in zip(raw["convs"], CONV_KS):
        c_out, c_in, _ = w.shape
        scale = gamma / jnp.sqrt(1.0 + EPS)
        shift = beta + scale * b                       # bias + BN shift
        w_f = w * scale[:, None, None]                 # BN scale folded into weights
        c_in_p, c_out_p = _pad8(c_in), _pad8(c_out)
        w_f = jnp.pad(w_f, ((0, c_out_p - c_out), (0, c_in_p - c_in), (0, 0)))
        shift = jnp.pad(shift, ((0, c_out_p - c_out),))
        # (C_out_pad, k*C_in_pad); column index = kk*C_in_pad + c  (matches in-kernel concat)
        w_kc = jnp.concatenate([w_f[:, :, kk] for kk in range(k)], axis=1)
        conv_args.append((w_kc, shift.reshape(c_out_p, 1)))

    pools = _pool_matrices()

    # Linear(420, 20): W[o, c*L_FIN + j] -> lw3[j, o, c]  (c zero-padded to C_FIN_pad)
    c_fin_p = _pad8(C_FIN)
    lw3 = raw["lin_w"].reshape(LIN_OUT, C_FIN, L_FIN).transpose(2, 0, 1)
    lw3 = jnp.pad(lw3, ((0, 0), (0, 0), (0, c_fin_p - C_FIN)))
    lb = raw["lin_b"].reshape(LIN_OUT, 1)
    return conv_args, pools, lw3, lb


def feature_extractor_forward(x, folded):
    conv_args, pools, lw3, lb = folded
    B, M, C, L = x.shape
    N = B * M
    c_pad = _pad8(C)
    xf = x.reshape(N, C, L)
    if c_pad != C:
        xf = jnp.pad(xf, ((0, 0), (0, c_pad - C), (0, 0)))

    TN = _choose_tile_n(N)
    G = N // TN

    flat_args = []
    in_specs = [pl.BlockSpec((TN, c_pad, L), lambda n: (n, 0, 0))]
    for w_kc, shift in conv_args:
        flat_args += [w_kc, shift]
        in_specs += [pl.BlockSpec(w_kc.shape, lambda n: (0, 0)),
                     pl.BlockSpec(shift.shape, lambda n: (0, 0))]
    for pm in pools:
        flat_args.append(pm)
        in_specs.append(pl.BlockSpec(pm.shape, lambda n: (0, 0)))
    flat_args += [lw3, lb]
    in_specs += [pl.BlockSpec(lw3.shape, lambda n: (0, 0, 0)),
                 pl.BlockSpec(lb.shape, lambda n: (0, 0))]

    out = pl.pallas_call(
        extractor_kernel,
        out_shape=jax.ShapeDtypeStruct((G, LIN_OUT, TN), jnp.float32),
        grid=(G,),
        in_specs=in_specs,
        out_specs=pl.BlockSpec((1, LIN_OUT, TN), lambda n: (n, 0, 0)),
        compiler_params=pltpu.CompilerParams(
            dimension_semantics=("parallel",)),   # independent steps -> megacore/TC2
    )(xf, *flat_args)

    # (G, LIN_OUT, TN) -> (N, LIN_OUT) -> (B, M, LIN_OUT)  (== torch.stack(features, 0))
    out = jnp.transpose(out, (0, 2, 1)).reshape(N, LIN_OUT)
    return out.reshape(B, M, LIN_OUT)


# --------------------------- params + pure-JAX ref ----------------------------

def init_params(key):
    convs = []
    for i, ((c_in, c_out), k) in enumerate(zip(CONV_CHANNELS, CONV_KS)):
        kw, kb, kg, kbeta = jax.random.split(jax.random.fold_in(key, i), 4)
        w = 0.1 * jax.random.normal(kw, (c_out, c_in, k), jnp.float32)
        b = 0.1 * jax.random.normal(kb, (c_out,), jnp.float32)
        gamma = 1.0 + 0.1 * jax.random.normal(kg, (c_out,), jnp.float32)
        beta = 0.1 * jax.random.normal(kbeta, (c_out,), jnp.float32)
        convs.append((w, b, gamma, beta))
    klw, klb = jax.random.split(jax.random.fold_in(key, 100), 2)
    lin_w = 0.05 * jax.random.normal(klw, (LIN_OUT, LIN_IN), jnp.float32)
    lin_b = 0.05 * jax.random.normal(klb, (LIN_OUT,), jnp.float32)
    return {"convs": convs, "lin_w": lin_w, "lin_b": lin_b}


def reference_forward(x, raw):
    """Pure-JAX reference using the RAW (unfused) parameters: Conv1d + eval-mode
    BatchNorm1d (fresh running stats: mean=0, var=1) + ReLU + AvgPool1d + Linear."""
    B, M, C, L = x.shape
    y = x.reshape(B * M, C, L)
    ci = 0
    for kind, k in LAYER_PLAN:
        if kind == "conv":
            w, b, gamma, beta = raw["convs"][ci]
            ci += 1
            lo = y.shape[2] - k + 1
            acc = jnp.zeros((y.shape[0], w.shape[0], lo), jnp.float32)
            for kk in range(k):
                acc = acc + jnp.einsum(
                    "oc,ncl->nol", w[:, :, kk], y[:, :, kk:kk + lo],
                    precision=lax.Precision.HIGHEST)
            z = acc + b[None, :, None]
            z = gamma[None, :, None] * z / jnp.sqrt(1.0 + EPS) + beta[None, :, None]
            y = jnp.maximum(z, 0.0)
        else:
            lo = y.shape[2] // 3
            y = y[:, :, :3 * lo].reshape(y.shape[0], y.shape[1], lo, 3).mean(-1)
    flat = y.reshape(y.shape[0], -1)          # channel-major == torch.flatten(out, 1)
    out = jnp.dot(flat, raw["lin_w"].T, precision=lax.Precision.HIGHEST) + raw["lin_b"]
    return out.reshape(B, M, LIN_OUT)


# ------------------------------------ main ------------------------------------

if __name__ == "__main__":
    key = jax.random.PRNGKey(0)
    kx, kp = jax.random.split(key)
    B, M = 2, 2
    x = jax.random.normal(kx, (B, M, INPUT_DIM, L_IN), jnp.float32)
    raw = init_params(kp)
    folded = fold_params(raw)

    out = feature_extractor_forward(x, folded)
    out = jax.block_until_ready(out)
    assert out.shape == (B, M, LIN_OUT), out.shape

    ref = reference_forward(x, raw)
    np.testing.assert_allclose(np.asarray(out), np.asarray(ref), rtol=1e-2, atol=1e-2)
    print("KERNEL_OK")
</pallas_src>

<mosaic_0001>
module attributes {stable_mosaic.version = 11 : i64} {
  func.func @extractor_kernel(%arg0: i32, %arg1: memref<2x16x100xf32, #tpu.memory_space<vmem>>, %arg2: memref<32x48xf32, #tpu.memory_space<vmem>>, %arg3: memref<32x1xf32, #tpu.memory_space<vmem>>, %arg4: memref<64x96xf32, #tpu.memory_space<vmem>>, %arg5: memref<64x1xf32, #tpu.memory_space<vmem>>, %arg6: memref<120x192xf32, #tpu.memory_space<vmem>>, %arg7: memref<120x1xf32, #tpu.memory_space<vmem>>, %arg8: memref<240x360xf32, #tpu.memory_space<vmem>>, %arg9: memref<240x1xf32, #tpu.memory_space<vmem>>, %arg10: memref<120x720xf32, #tpu.memory_space<vmem>>, %arg11: memref<120x1xf32, #tpu.memory_space<vmem>>, %arg12: memref<64x120xf32, #tpu.memory_space<vmem>>, %arg13: memref<64x1xf32, #tpu.memory_space<vmem>>, %arg14: memref<64x64xf32, #tpu.memory_space<vmem>>, %arg15: memref<64x1xf32, #tpu.memory_space<vmem>>, %arg16: memref<96x32xf32, #tpu.memory_space<vmem>>, %arg17: memref<27x9xf32, #tpu.memory_space<vmem>>, %arg18: memref<7x20x64xf32, #tpu.memory_space<vmem>>, %arg19: memref<20x1xf32, #tpu.memory_space<vmem>>, %arg20: memref<1x20x2xf32, #tpu.memory_space<vmem>>) attributes {dimension_semantics = [#tpu.dimension_semantics<parallel>], iteration_bounds = array<i64: 2>, scalar_prefetch = 0 : i64, scratch_operands = 0 : i64, tpu.core_type = #tpu.core_type<tc>, window_params = [{transform_indices = @transform_0, window_bounds = array<i64: 2, 16, 100>}, {pipeline_mode = #tpu.pipeline_mode<synchronous>, transform_indices = @transform_1, window_bounds = array<i64: 32, 48>}, {pipeline_mode = #tpu.pipeline_mode<synchronous>, transform_indices = @transform_2, window_bounds = array<i64: 32, 1>}, {pipeline_mode = #tpu.pipeline_mode<synchronous>, transform_indices = @transform_3, window_bounds = array<i64: 64, 96>}, {pipeline_mode = #tpu.pipeline_mode<synchronous>, transform_indices = @transform_4, window_bounds = array<i64: 64, 1>}, {pipeline_mode = #tpu.pipeline_mode<synchronous>, transform_indices = @transform_5, window_bounds = array<i64: 120, 192>}, {pipeline_mode = #tpu.pipeline_mode<synchronous>, transform_indices = @transform_6, window_bounds = array<i64: 120, 1>}, {pipeline_mode = #tpu.pipeline_mode<synchronous>, transform_indices = @transform_7, window_bounds = array<i64: 240, 360>}, {pipeline_mode = #tpu.pipeline_mode<synchronous>, transform_indices = @transform_8, window_bounds = array<i64: 240, 1>}, {pipeline_mode = #tpu.pipeline_mode<synchronous>, transform_indices = @transform_9, window_bounds = array<i64: 120, 720>}, {pipeline_mode = #tpu.pipeline_mode<synchronous>, transform_indices = @transform_10, window_bounds = array<i64: 120, 1>}, {pipeline_mode = #tpu.pipeline_mode<synchronous>, transform_indices = @transform_11, window_bounds = array<i64: 64, 120>}, {pipeline_mode = #tpu.pipeline_mode<synchronous>, transform_indices = @transform_12, window_bounds = array<i64: 64, 1>}, {pipeline_mode = #tpu.pipeline_mode<synchronous>, transform_indices = @transform_13, window_bounds = array<i64: 64, 64>}, {pipeline_mode = #tpu.pipeline_mode<synchronous>, transform_indices = @transform_14, window_bounds = array<i64: 64, 1>}, {pipeline_mode = #tpu.pipeline_mode<synchronous>, transform_indices = @transform_15, window_bounds = array<i64: 96, 32>}, {pipeline_mode = #tpu.pipeline_mode<synchronous>, transform_indices = @transform_16, window_bounds = array<i64: 27, 9>}, {pipeline_mode = #tpu.pipeline_mode<synchronous>, transform_indices = @transform_17, window_bounds = array<i64: 7, 20, 64>}, {pipeline_mode = #tpu.pipeline_mode<synchronous>, transform_indices = @transform_18, window_bounds = array<i64: 20, 1>}, {transform_indices = @transform_19, window_bounds = array<i64: 1, 20, 2>}]} {
    %c0 = arith.constant 0 : index
    %c0_0 = arith.constant 0 : index
    %c0_1 = arith.constant 0 : index
    %0 = vector.load %arg1[%c0, %c0_0, %c0_1] : memref<2x16x100xf32, #tpu.memory_space<vmem>>, vector<1x16x100xf32>
    %1 = vector.shape_cast %0 : vector<1x16x100xf32> to vector<16x100xf32>
    %2 = vector.extract_strided_slice %1 {offsets = [0, 0], sizes = [16, 98], strides = [1, 1]} : vector<16x100xf32> to vector<16x98xf32>
    %3 = vector.extract_strided_slice %1 {offsets = [0, 1], sizes = [16, 98], strides = [1, 1]} : vector<16x100xf32> to vector<16x98xf32>
    %4 = vector.extract_strided_slice %1 {offsets = [0, 2], sizes = [16, 98], strides = [1, 1]} : vector<16x100xf32> to vector<16x98xf32>
    %5 = tpu.concatenate %2, %3, %4 in 0 : vector<16x98xf32>, vector<16x98xf32>, vector<16x98xf32> -> vector<48x98xf32>
    %c0_2 = arith.constant 0 : index
    %c0_3 = arith.constant 0 : index
    %6 = vector.load %arg2[%c0_2, %c0_3] : memref<32x48xf32, #tpu.memory_space<vmem>>, vector<32x48xf32>
    %cst = arith.constant dense<0.000000e+00> : vector<32x98xf32>
    %7 = tpu.matmul %6, %5, %cst {dimension_numbers = #tpu.dot_dimension_numbers<[1], [0], [0], [1], [0, 0, 1, 1], [], []>} : vector<32x48xf32>, vector<48x98xf32>, vector<32x98xf32> -> vector<32x98xf32>
    %c0_4 = arith.constant 0 : index
    %c0_5 = arith.constant 0 : index
    %8 = vector.load %arg3[%c0_4, %c0_5] : memref<32x1xf32, #tpu.memory_space<vmem>>, vector<32x1xf32>
    %9 = vector.broadcast %8 : vector<32x1xf32> to vector<32x98xf32>
    %10 = arith.addf %7, %9 : vector<32x98xf32>
    %cst_6 = arith.constant 0.000000e+00 : f32
    %11 = vector.broadcast %cst_6 : f32 to vector<32x98xf32>
    %12 = arith.maximumf %10, %11 : vector<32x98xf32>
    %13 = vector.extract_strided_slice %12 {offsets = [0, 0], sizes = [32, 96], strides = [1, 1]} : vector<32x98xf32> to vector<32x96xf32>
    %14 = vector.extract_strided_slice %12 {offsets = [0, 1], sizes = [32, 96], strides = [1, 1]} : vector<32x98xf32> to vector<32x96xf32>
    %15 = vector.extract_strided_slice %12 {offsets = [0, 2], sizes = [32, 96], strides = [1, 1]} : vector<32x98xf32> to vector<32x96xf32>
    %16 = tpu.concatenate %13, %14, %15 in 0 : vector<32x96xf32>, vector<32x96xf32>, vector<32x96xf32> -> vector<96x96xf32>
    %c0_7 = arith.constant 0 : index
    %c0_8 = arith.constant 0 : index
    %17 = vector.load %arg4[%c0_7, %c0_8] : memref<64x96xf32, #tpu.memory_space<vmem>>, vector<64x96xf32>
    %cst_9 = arith.constant dense<0.000000e+00> : vector<64x96xf32>
    %18 = tpu.matmul %17, %16, %cst_9 {dimension_numbers = #tpu.dot_dimension_numbers<[1], [0], [0], [1], [0, 0, 1, 1], [], []>} : vector<64x96xf32>, vector<96x96xf32>, vector<64x96xf32> -> vector<64x96xf32>
    %c0_10 = arith.constant 0 : index
    %c0_11 = arith.constant 0 : index
    %19 = vector.load %arg5[%c0_10, %c0_11] : memref<64x1xf32, #tpu.memory_space<vmem>>, vector<64x1xf32>
    %20 = vector.broadcast %19 : vector<64x1xf32> to vector<64x96xf32>
    %21 = arith.addf %18, %20 : vector<64x96xf32>
    %cst_12 = arith.constant 0.000000e+00 : f32
    %22 = vector.broadcast %cst_12 : f32 to vector<64x96xf32>
    %23 = arith.maximumf %21, %22 : vector<64x96xf32>
    %c0_13 = arith.constant 0 : index
    %c0_14 = arith.constant 0 : index
    %24 = vector.load %arg16[%c0_13, %c0_14] : memref<96x32xf32, #tpu.memory_space<vmem>>, vector<96x32xf32>
    %cst_15 = arith.constant dense<0.000000e+00> : vector<64x32xf32>
    %25 = tpu.matmul %23, %24, %cst_15 {dimension_numbers = #tpu.dot_dimension_numbers<[1], [0], [0], [1], [0, 0, 1, 1], [], []>} : vector<64x96xf32>, vector<96x32xf32>, vector<64x32xf32> -> vector<64x32xf32>
    %26 = vector.extract_strided_slice %25 {offsets = [0, 0], sizes = [64, 30], strides = [1, 1]} : vector<64x32xf32> to vector<64x30xf32>
    %27 = vector.extract_strided_slice %25 {offsets = [0, 1], sizes = [64, 30], strides = [1, 1]} : vector<64x32xf32> to vector<64x30xf32>
    %28 = vector.extract_strided_slice %25 {offsets = [0, 2], sizes = [64, 30], strides = [1, 1]} : vector<64x32xf32> to vector<64x30xf32>
    %29 = tpu.concatenate %26, %27, %28 in 0 : vector<64x30xf32>, vector<64x30xf32>, vector<64x30xf32> -> vector<192x30xf32>
    %c0_16 = arith.constant 0 : index
    %c0_17 = arith.constant 0 : index
    %30 = vector.load %arg6[%c0_16, %c0_17] : memref<120x192xf32, #tpu.memory_space<vmem>>, vector<120x192xf32>
    %cst_18 = arith.constant dense<0.000000e+00> : vector<120x30xf32>
    %31 = tpu.matmul %30, %29, %cst_18 {dimension_numbers = #tpu.dot_dimension_numbers<[1], [0], [0], [1], [0, 0, 1, 1], [], []>} : vector<120x192xf32>, vector<192x30xf32>, vector<120x30xf32> -> vector<120x30xf32>
    %c0_19 = arith.constant 0 : index
    %c0_20 = arith.constant 0 : index
    %32 = vector.load %arg7[%c0_19, %c0_20] : memref<120x1xf32, #tpu.memory_space<vmem>>, vector<120x1xf32>
    %33 = vector.broadcast %32 : vector<120x1xf32> to vector<120x30xf32>
    %34 = arith.addf %31, %33 : vector<120x30xf32>
    %cst_21 = arith.constant 0.000000e+00 : f32
    %35 = vector.broadcast %cst_21 : f32 to vector<120x30xf32>
    %36 = arith.maximumf %34, %35 : vector<120x30xf32>
    %37 = vector.extract_strided_slice %36 {offsets = [0, 0], sizes = [120, 28], strides = [1, 1]} : vector<120x30xf32> to vector<120x28xf32>
    %38 = vector.extract_strided_slice %36 {offsets = [0, 1], sizes = [120, 28], strides = [1, 1]} : vector<120x30xf32> to vector<120x28xf32>
    %39 = vector.extract_strided_slice %36 {offsets = [0, 2], sizes = [120, 28], strides = [1, 1]} : vector<120x30xf32> to vector<120x28xf32>
    %40 = tpu.concatenate %37, %38, %39 in 0 : vector<120x28xf32>, vector<120x28xf32>, vector<120x28xf32> -> vector<360x28xf32>
    %c0_22 = arith.constant 0 : index
    %c0_23 = arith.constant 0 : index
    %41 = vector.load %arg8[%c0_22, %c0_23] : memref<240x360xf32, #tpu.memory_space<vmem>>, vector<240x360xf32>
    %cst_24 = arith.constant dense<0.000000e+00> : vector<240x28xf32>
    %42 = tpu.matmul %41, %40, %cst_24 {dimension_numbers = #tpu.dot_dimension_numbers<[1], [0], [0], [1], [0, 0, 1, 1], [], []>} : vector<240x360xf32>, vector<360x28xf32>, vector<240x28xf32> -> vector<240x28xf32>
    %c0_25 = arith.constant 0 : index
    %c0_26 = arith.constant 0 : index
    %43 = vector.load %arg9[%c0_25, %c0_26] : memref<240x1xf32, #tpu.memory_space<vmem>>, vector<240x1xf32>
    %44 = vector.broadcast %43 : vector<240x1xf32> to vector<240x28xf32>
    %45 = arith.addf %42, %44 : vector<240x28xf32>
    %cst_27 = arith.constant 0.000000e+00 : f32
    %46 = vector.broadcast %cst_27 : f32 to vector<240x28xf32>
    %47 = arith.maximumf %45, %46 : vector<240x28xf32>
    %c0_28 = arith.constant 0 : index
    %c0_29 = arith.constant 0 : index
    %48 = vector.load %arg17[%c0_28, %c0_29] : memref<27x9xf32, #tpu.memory_space<vmem>>, vector<27x9xf32>
    %49 = vector.extract_strided_slice %47 {offsets = [0, 0], sizes = [240, 27], strides = [1, 1]} : vector<240x28xf32> to vector<240x27xf32>
    %cst_30 = arith.constant dense<0.000000e+00> : vector<240x9xf32>
    %50 = tpu.matmul %49, %48, %cst_30 {dimension_numbers = #tpu.dot_dimension_numbers<[1], [0], [0], [1], [0, 0, 1, 1], [], []>} : vector<240x27xf32>, vector<27x9xf32>, vector<240x9xf32> -> vector<240x9xf32>
    %51 = vector.extract_strided_slice %50 {offsets = [0, 0], sizes = [240, 7], strides = [1, 1]} : vector<240x9xf32> to vector<240x7xf32>
    %52 = vector.extract_strided_slice %50 {offsets = [0, 1], sizes = [240, 7], strides = [1, 1]} : vector<240x9xf32> to vector<240x7xf32>
    %53 = vector.extract_strided_slice %50 {offsets = [0, 2], sizes = [240, 7], strides = [1, 1]} : vector<240x9xf32> to vector<240x7xf32>
    %54 = tpu.concatenate %51, %52, %53 in 0 : vector<240x7xf32>, vector<240x7xf32>, vector<240x7xf32> -> vector<720x7xf32>
    %c0_31 = arith.constant 0 : index
    %c0_32 = arith.constant 0 : index
    %55 = vector.load %arg10[%c0_31, %c0_32] : memref<120x720xf32, #tpu.memory_space<vmem>>, vector<120x720xf32>
    %cst_33 = arith.constant dense<0.000000e+00> : vector<120x7xf32>
    %56 = tpu.matmul %55, %54, %cst_33 {dimension_numbers = #tpu.dot_dimension_numbers<[1], [0], [0], [1], [0, 0, 1, 1], [], []>} : vector<120x720xf32>, vector<720x7xf32>, vector<120x7xf32> -> vector<120x7xf32>
    %c0_34 = arith.constant 0 : index
    %c0_35 = arith.constant 0 : index
    %57 = vector.load %arg11[%c0_34, %c0_35] : memref<120x1xf32, #tpu.memory_space<vmem>>, vector<120x1xf32>
    %58 = vector.broadcast %57 : vector<120x1xf32> to vector<120x7xf32>
    %59 = arith.addf %56, %58 : vector<120x7xf32>
    %cst_36 = arith.constant 0.000000e+00 : f32
    %60 = vector.broadcast %cst_36 : f32 to vector<120x7xf32>
    %61 = arith.maximumf %59, %60 : vector<120x7xf32>
    %c0_37 = arith.constant 0 : index
    %c0_38 = arith.constant 0 : index
    %62 = vector.load %arg12[%c0_37, %c0_38] : memref<64x120xf32, #tpu.memory_space<vmem>>, vector<64x120xf32>
    %cst_39 = arith.constant dense<0.000000e+00> : vector<64x7xf32>
    %63 = tpu.matmul %62, %61, %cst_39 {dimension_numbers = #tpu.dot_dimension_numbers<[1], [0], [0], [1], [0, 0, 1, 1], [], []>} : vector<64x120xf32>, vector<120x7xf32>, vector<64x7xf32> -> vector<64x7xf32>
    %c0_40 = arith.constant 0 : index
    %c0_41 = arith.constant 0 : index
    %64 = vector.load %arg13[%c0_40, %c0_41] : memref<64x1xf32, #tpu.memory_space<vmem>>, vector<64x1xf32>
    %65 = vector.broadcast %64 : vector<64x1xf32> to vector<64x7xf32>
    %66 = arith.addf %63, %65 : vector<64x7xf32>
    %cst_42 = arith.constant 0.000000e+00 : f32
    %67 = vector.broadcast %cst_42 : f32 to vector<64x7xf32>
    %68 = arith.maximumf %66, %67 : vector<64x7xf32>
    %c0_43 = arith.constant 0 : index
    %c0_44 = arith.constant 0 : index
    %69 = vector.load %arg14[%c0_43, %c0_44] : memref<64x64xf32, #tpu.memory_space<vmem>>, vector<64x64xf32>
    %cst_45 = arith.constant dense<0.000000e+00> : vector<64x7xf32>
    %70 = tpu.matmul %69, %68, %cst_45 {dimension_numbers = #tpu.dot_dimension_numbers<[1], [0], [0], [1], [0, 0, 1, 1], [], []>} : vector<64x64xf32>, vector<64x7xf32>, vector<64x7xf32> -> vector<64x7xf32>
    %c0_46 = arith.constant 0 : index
    %c0_47 = arith.constant 0 : index
    %71 = vector.load %arg15[%c0_46, %c0_47] : memref<64x1xf32, #tpu.memory_space<vmem>>, vector<64x1xf32>
    %72 = vector.broadcast %71 : vector<64x1xf32> to vector<64x7xf32>
    %73 = arith.addf %70, %72 : vector<64x7xf32>
    %cst_48 = arith.constant 0.000000e+00 : f32
    %74 = vector.broadcast %cst_48 : f32 to vector<64x7xf32>
    %75 = arith.maximumf %73, %74 : vector<64x7xf32>
    %c0_49 = arith.constant 0 : index
    %c0_50 = arith.constant 0 : index
    %c0_51 = arith.constant 0 : index
    %76 = vector.load %arg18[%c0_49, %c0_50, %c0_51] : memref<7x20x64xf32, #tpu.memory_space<vmem>>, vector<1x20x64xf32>
    %77 = vector.shape_cast %76 : vector<1x20x64xf32> to vector<20x64xf32>
    %78 = vector.extract_strided_slice %75 {offsets = [0, 0], sizes = [64, 1], strides = [1, 1]} : vector<64x7xf32> to vector<64x1xf32>
    %cst_52 = arith.constant dense<0.000000e+00> : vector<20x1xf32>
    %79 = tpu.matmul %77, %78, %cst_52 {dimension_numbers = #tpu.dot_dimension_numbers<[1], [0], [0], [1], [0, 0, 1, 1], [], []>} : vector<20x64xf32>, vector<64x1xf32>, vector<20x1xf32> -> vector<20x1xf32>
    %c1 = arith.constant 1 : index
    %c0_53 = arith.constant 0 : index
    %c0_54 = arith.constant 0 : index
    %80 = vector.load %arg18[%c1, %c0_53, %c0_54] : memref<7x20x64xf32, #tpu.memory_space<vmem>>, vector<1x20x64xf32>
    %81 = vector.shape_cast %80 : vector<1x20x64xf32> to vector<20x64xf32>
    %82 = vector.extract_strided_slice %75 {offsets = [0, 1], sizes = [64, 1], strides = [1, 1]} : vector<64x7xf32> to vector<64x1xf32>
    %cst_55 = arith.constant dense<0.000000e+00> : vector<20x1xf32>
    %83 = tpu.matmul %81, %82, %cst_55 {dimension_numbers = #tpu.dot_dimension_numbers<[1], [0], [0], [1], [0, 0, 1, 1], [], []>} : vector<20x64xf32>, vector<64x1xf32>, vector<20x1xf32> -> vector<20x1xf32>
    %84 = arith.addf %79, %83 : vector<20x1xf32>
    %c2 = arith.constant 2 : index
    %c0_56 = arith.constant 0 : index
    %c0_57 = arith.constant 0 : index
    %85 = vector.load %arg18[%c2, %c0_56, %c0_57] : memref<7x20x64xf32, #tpu.memory_space<vmem>>, vector<1x20x64xf32>
    %86 = vector.shape_cast %85 : vector<1x20x64xf32> to vector<20x64xf32>
    %87 = vector.extract_strided_slice %75 {offsets = [0, 2], sizes = [64, 1], strides = [1, 1]} : vector<64x7xf32> to vector<64x1xf32>
    %cst_58 = arith.constant dense<0.000000e+00> : vector<20x1xf32>
    %88 = tpu.matmul %86, %87, %cst_58 {dimension_numbers = #tpu.dot_dimension_numbers<[1], [0], [0], [1], [0, 0, 1, 1], [], []>} : vector<20x64xf32>, vector<64x1xf32>, vector<20x1xf32> -> vector<20x1xf32>
    %89 = arith.addf %84, %88 : vector<20x1xf32>
    %c3 = arith.constant 3 : index
    %c0_59 = arith.constant 0 : index
    %c0_60 = arith.constant 0 : index
    %90 = vector.load %arg18[%c3, %c0_59, %c0_60] : memref<7x20x64xf32, #tpu.memory_space<vmem>>, vector<1x20x64xf32>
    %91 = vector.shape_cast %90 : vector<1x20x64xf32> to vector<20x64xf32>
    %92 = vector.extract_strided_slice %75 {offsets = [0, 3], sizes = [64, 1], strides = [1, 1]} : vector<64x7xf32> to vector<64x1xf32>
    %cst_61 = arith.constant dense<0.000000e+00> : vector<20x1xf32>
    %93 = tpu.matmul %91, %92, %cst_61 {dimension_numbers = #tpu.dot_dimension_numbers<[1], [0], [0], [1], [0, 0, 1, 1], [], []>} : vector<20x64xf32>, vector<64x1xf32>, vector<20x1xf32> -> vector<20x1xf32>
    %94 = arith.addf %89, %93 : vector<20x1xf32>
    %c4 = arith.constant 4 : index
    %c0_62 = arith.constant 0 : index
    %c0_63 = arith.constant 0 : index
    %95 = vector.load %arg18[%c4, %c0_62, %c0_63] : memref<7x20x64xf32, #tpu.memory_space<vmem>>, vector<1x20x64xf32>
    %96 = vector.shape_cast %95 : vector<1x20x64xf32> to vector<20x64xf32>
    %97 = vector.extract_strided_slice %75 {offsets = [0, 4], sizes = [64, 1], strides = [1, 1]} : vector<64x7xf32> to vector<64x1xf32>
    %cst_64 = arith.constant dense<0.000000e+00> : vector<20x1xf32>
    %98 = tpu.matmul %96, %97, %cst_64 {dimension_numbers = #tpu.dot_dimension_numbers<[1], [0], [0], [1], [0, 0, 1, 1], [], []>} : vector<20x64xf32>, vector<64x1xf32>, vector<20x1xf32> -> vector<20x1xf32>
    %99 = arith.addf %94, %98 : vector<20x1xf32>
    %c5 = arith.constant 5 : index
    %c0_65 = arith.constant 0 : index
    %c0_66 = arith.constant 0 : index
    %100 = vector.load %arg18[%c5, %c0_65, %c0_66] : memref<7x20x64xf32, #tpu.memory_space<vmem>>, vector<1x20x64xf32>
    %101 = vector.shape_cast %100 : vector<1x20x64xf32> to vector<20x64xf32>
    %102 = vector.extract_strided_slice %75 {offsets = [0, 5], sizes = [64, 1], strides = [1, 1]} : vector<64x7xf32> to vector<64x1xf32>
    %cst_67 = arith.constant dense<0.000000e+00> : vector<20x1xf32>
    %103 = tpu.matmul %101, %102, %cst_67 {dimension_numbers = #tpu.dot_dimension_numbers<[1], [0], [0], [1], [0, 0, 1, 1], [], []>} : vector<20x64xf32>, vector<64x1xf32>, vector<20x1xf32> -> vector<20x1xf32>
    %104 = arith.addf %99, %103 : vector<20x1xf32>
    %c6 = arith.constant 6 : index
    %c0_68 = arith.constant 0 : index
    %c0_69 = arith.constant 0 : index
    %105 = vector.load %arg18[%c6, %c0_68, %c0_69] : memref<7x20x64xf32, #tpu.memory_space<vmem>>, vector<1x20x64xf32>
    %106 = vector.shape_cast %105 : vector<1x20x64xf32> to vector<20x64xf32>
    %107 = vector.extract_strided_slice %75 {offsets = [0, 6], sizes = [64, 1], strides = [1, 1]} : vector<64x7xf32> to vector<64x1xf32>
    %cst_70 = arith.constant dense<0.000000e+00> : vector<20x1xf32>
    %108 = tpu.matmul %106, %107, %cst_70 {dimension_numbers = #tpu.dot_dimension_numbers<[1], [0], [0], [1], [0, 0, 1, 1], [], []>} : vector<20x64xf32>, vector<64x1xf32>, vector<20x1xf32> -> vector<20x1xf32>
    %109 = arith.addf %104, %108 : vector<20x1xf32>
    %c0_71 = arith.constant 0 : index
    %c0_72 = arith.constant 0 : index
    %110 = vector.load %arg19[%c0_71, %c0_72] : memref<20x1xf32, #tpu.memory_space<vmem>>, vector<20x1xf32>
    %111 = arith.addf %109, %110 : vector<20x1xf32>
    %c0_73 = arith.constant 0 : index
    %c0_74 = arith.constant 0 : index
    %c0_75 = arith.constant 0 : index
    %112 = vector.load %arg20[%c0_73, %c0_74, %c0_75] : memref<1x20x2xf32, #tpu.memory_space<vmem>>, vector<1x20x1xf32>
    %113 = vector.shape_cast %112 : vector<1x20x1xf32> to vector<20x1xf32>
    %114 = vector.shape_cast %111 : vector<20x1xf32> to vector<1x20x1xf32>
    tpu.vector_store %arg20[%c0_73, %c0_74, %c0_75], %114 {strides = array<i32>} : memref<1x20x2xf32, #tpu.memory_space<vmem>>, vector<1x20x1xf32>,
    %c1_76 = arith.constant 1 : index
    %c0_77 = arith.constant 0 : index
    %c0_78 = arith.constant 0 : index
    %115 = vector.load %arg1[%c1_76, %c0_77, %c0_78] : memref<2x16x100xf32, #tpu.memory_space<vmem>>, vector<1x16x100xf32>
    %116 = vector.shape_cast %115 : vector<1x16x100xf32> to vector<16x100xf32>
    %117 = vector.extract_strided_slice %116 {offsets = [0, 0], sizes = [16, 98], strides = [1, 1]} : vector<16x100xf32> to vector<16x98xf32>
    %118 = vector.extract_strided_slice %116 {offsets = [0, 1], sizes = [16, 98], strides = [1, 1]} : vector<16x100xf32> to vector<16x98xf32>
    %119 = vector.extract_strided_slice %116 {offsets = [0, 2], sizes = [16, 98], strides = [1, 1]} : vector<16x100xf32> to vector<16x98xf32>
    %120 = tpu.concatenate %117, %118, %119 in 0 : vector<16x98xf32>, vector<16x98xf32>, vector<16x98xf32> -> vector<48x98xf32>
    %c0_79 = arith.constant 0 : index
    %c0_80 = arith.constant 0 : index
    %121 = vector.load %arg2[%c0_79, %c0_80] : memref<32x48xf32, #tpu.memory_space<vmem>>, vector<32x48xf32>
    %cst_81 = arith.constant dense<0.000000e+00> : vector<32x98xf32>
    %122 = tpu.matmul %121, %120, %cst_81 {dimension_numbers = #tpu.dot_dimension_numbers<[1], [0], [0], [1], [0, 0, 1, 1], [], []>} : vector<32x48xf32>, vector<48x98xf32>, vector<32x98xf32> -> vector<32x98xf32>
    %c0_82 = arith.constant 0 : index
    %c0_83 = arith.constant 0 : index
    %123 = vector.load %arg3[%c0_82, %c0_83] : memref<32x1xf32, #tpu.memory_space<vmem>>, vector<32x1xf32>
    %124 = vector.broadcast %123 : vector<32x1xf32> to vector<32x98xf32>
    %125 = arith.addf %122, %124 : vector<32x98xf32>
    %cst_84 = arith.constant 0.000000e+00 : f32
    %126 = vector.broadcast %cst_84 : f32 to vector<32x98xf32>
    %127 = arith.maximumf %125, %126 : vector<32x98xf32>
    %128 = vector.extract_strided_slice %127 {offsets = [0, 0], sizes = [32, 96], strides = [1, 1]} : vector<32x98xf32> to vector<32x96xf32>
    %129 = vector.extract_strided_slice %127 {offsets = [0, 1], sizes = [32, 96], strides = [1, 1]} : vector<32x98xf32> to vector<32x96xf32>
    %130 = vector.extract_strided_slice %127 {offsets = [0, 2], sizes = [32, 96], strides = [1, 1]} : vector<32x98xf32> to vector<32x96xf32>
    %131 = tpu.concatenate %128, %129, %130 in 0 : vector<32x96xf32>, vector<32x96xf32>, vector<32x96xf32> -> vector<96x96xf32>
    %c0_85 = arith.constant 0 : index
    %c0_86 = arith.constant 0 : index
    %132 = vector.load %arg4[%c0_85, %c0_86] : memref<64x96xf32, #tpu.memory_space<vmem>>, vector<64x96xf32>
    %cst_87 = arith.constant dense<0.000000e+00> : vector<64x96xf32>
    %133 = tpu.matmul %132, %131, %cst_87 {dimension_numbers = #tpu.dot_dimension_numbers<[1], [0], [0], [1], [0, 0, 1, 1], [], []>} : vector<64x96xf32>, vector<96x96xf32>, vector<64x96xf32> -> vector<64x96xf32>
    %c0_88 = arith.constant 0 : index
    %c0_89 = arith.constant 0 : index
    %134 = vector.load %arg5[%c0_88, %c0_89] : memref<64x1xf32, #tpu.memory_space<vmem>>, vector<64x1xf32>
    %135 = vector.broadcast %134 : vector<64x1xf32> to vector<64x96xf32>
    %136 = arith.addf %133, %135 : vector<64x96xf32>
    %cst_90 = arith.constant 0.000000e+00 : f32
    %137 = vector.broadcast %cst_90 : f32 to vector<64x96xf32>
    %138 = arith.maximumf %136, %137 : vector<64x96xf32>
    %c0_91 = arith.constant 0 : index
    %c0_92 = arith.constant 0 : index
    %139 = vector.load %arg16[%c0_91, %c0_92] : memref<96x32xf32, #tpu.memory_space<vmem>>, vector<96x32xf32>
    %cst_93 = arith.constant dense<0.000000e+00> : vector<64x32xf32>
    %140 = tpu.matmul %138, %139, %cst_93 {dimension_numbers = #tpu.dot_dimension_numbers<[1], [0], [0], [1], [0, 0, 1, 1], [], []>} : vector<64x96xf32>, vector<96x32xf32>, vector<64x32xf32> -> vector<64x32xf32>
    %141 = vector.extract_strided_slice %140 {offsets = [0, 0], sizes = [64, 30], strides = [1, 1]} : vector<64x32xf32> to vector<64x30xf32>
    %142 = vector.extract_strided_slice %140 {offsets = [0, 1], sizes = [64, 30], strides = [1, 1]} : vector<64x32xf32> to vector<64x30xf32>
    %143 = vector.extract_strided_slice %140 {offsets = [0, 2], sizes = [64, 30], strides = [1, 1]} : vector<64x32xf32> to vector<64x30xf32>
    %144 = tpu.concatenate %141, %142, %143 in 0 : vector<64x30xf32>, vector<64x30xf32>, vector<64x30xf32> -> vector<192x30xf32>
    %c0_94 = arith.constant 0 : index
    %c0_95 = arith.constant 0 : index
    %145 = vector.load %arg6[%c0_94, %c0_95] : memref<120x192xf32, #tpu.memory_space<vmem>>, vector<120x192xf32>
    %cst_96 = arith.constant dense<0.000000e+00> : vector<120x30xf32>
    %146 = tpu.matmul %145, %144, %cst_96 {dimension_numbers = #tpu.dot_dimension_numbers<[1], [0], [0], [1], [0, 0, 1, 1], [], []>} : vector<120x192xf32>, vector<192x30xf32>, vector<120x30xf32> -> vector<120x30xf32>
    %c0_97 = arith.constant 0 : index
    %c0_98 = arith.constant 0 : index
    %147 = vector.load %arg7[%c0_97, %c0_98] : memref<120x1xf32, #tpu.memory_space<vmem>>, vector<120x1xf32>
    %148 = vector.broadcast %147 : vector<120x1xf32> to vector<120x30xf32>
    %149 = arith.addf %146, %148 : vector<120x30xf32>
    %cst_99 = arith.constant 0.000000e+00 : f32
    %150 = vector.broadcast %cst_99 : f32 to vector<120x30xf32>
    %151 = arith.maximumf %149, %150 : vector<120x30xf32>
    %152 = vector.extract_strided_slice %151 {offsets = [0, 0], sizes = [120, 28], strides = [1, 1]} : vector<120x30xf32> to vector<120x28xf32>
    %153 = vector.extract_strided_slice %151 {offsets = [0, 1], sizes = [120, 28], strides = [1, 1]} : vector<120x30xf32> to vector<120x28xf32>
    %154 = vector.extract_strided_slice %151 {offsets = [0, 2], sizes = [120, 28], strides = [1, 1]} : vector<120x30xf32> to vector<120x28xf32>
    %155 = tpu.concatenate %152, %153, %154 in 0 : vector<120x28xf32>, vector<120x28xf32>, vector<120x28xf32> -> vector<360x28xf32>
    %c0_100 = arith.constant 0 : index
    %c0_101 = arith.constant 0 : index
    %156 = vector.load %arg8[%c0_100, %c0_101] : memref<240x360xf32, #tpu.memory_space<vmem>>, vector<240x360xf32>
    %cst_102 = arith.constant dense<0.000000e+00> : vector<240x28xf32>
    %157 = tpu.matmul %156, %155, %cst_102 {dimension_numbers = #tpu.dot_dimension_numbers<[1], [0], [0], [1], [0, 0, 1, 1], [], []>} : vector<240x360xf32>, vector<360x28xf32>, vector<240x28xf32> -> vector<240x28xf32>
    %c0_103 = arith.constant 0 : index
    %c0_104 = arith.constant 0 : index
    %158 = vector.load %arg9[%c0_103, %c0_104] : memref<240x1xf32, #tpu.memory_space<vmem>>, vector<240x1xf32>
    %159 = vector.broadcast %158 : vector<240x1xf32> to vector<240x28xf32>
    %160 = arith.addf %157, %159 : vector<240x28xf32>
    %cst_105 = arith.constant 0.000000e+00 : f32
    %161 = vector.broadcast %cst_105 : f32 to vector<240x28xf32>
    %162 = arith.maximumf %160, %161 : vector<240x28xf32>
    %c0_106 = arith.constant 0 : index
    %c0_107 = arith.constant 0 : index
    %163 = vector.load %arg17[%c0_106, %c0_107] : memref<27x9xf32, #tpu.memory_space<vmem>>, vector<27x9xf32>
    %164 = vector.extract_strided_slice %162 {offsets = [0, 0], sizes = [240, 27], strides = [1, 1]} : vector<240x28xf32> to vector<240x27xf32>
    %cst_108 = arith.constant dense<0.000000e+00> : vector<240x9xf32>
    %165 = tpu.matmul %164, %163, %cst_108 {dimension_numbers = #tpu.dot_dimension_numbers<[1], [0], [0], [1], [0, 0, 1, 1], [], []>} : vector<240x27xf32>, vector<27x9xf32>, vector<240x9xf32> -> vector<240x9xf32>
    %166 = vector.extract_strided_slice %165 {offsets = [0, 0], sizes = [240, 7], strides = [1, 1]} : vector<240x9xf32> to vector<240x7xf32>
    %167 = vector.extract_strided_slice %165 {offsets = [0, 1], sizes = [240, 7], strides = [1, 1]} : vector<240x9xf32> to vector<240x7xf32>
    %168 = vector.extract_strided_slice %165 {offsets = [0, 2], sizes = [240, 7], strides = [1, 1]} : vector<240x9xf32> to vector<240x7xf32>
    %169 = tpu.concatenate %166, %167, %168 in 0 : vector<240x7xf32>, vector<240x7xf32>, vector<240x7xf32> -> vector<720x7xf32>
    %c0_109 = arith.constant 0 : index
    %c0_110 = arith.constant 0 : index
    %170 = vector.load %arg10[%c0_109, %c0_110] : memref<120x720xf32, #tpu.memory_space<vmem>>, vector<120x720xf32>
    %cst_111 = arith.constant dense<0.000000e+00> : vector<120x7xf32>
    %171 = tpu.matmul %170, %169, %cst_111 {dimension_numbers = #tpu.dot_dimension_numbers<[1], [0], [0], [1], [0, 0, 1, 1], [], []>} : vector<120x720xf32>, vector<720x7xf32>, vector<120x7xf32> -> vector<120x7xf32>
    %c0_112 = arith.constant 0 : index
    %c0_113 = arith.constant 0 : index
    %172 = vector.load %arg11[%c0_112, %c0_113] : memref<120x1xf32, #tpu.memory_space<vmem>>, vector<120x1xf32>
    %173 = vector.broadcast %172 : vector<120x1xf32> to vector<120x7xf32>
    %174 = arith.addf %171, %173 : vector<120x7xf32>
    %cst_114 = arith.constant 0.000000e+00 : f32
    %175 = vector.broadcast %cst_114 : f32 to vector<120x7xf32>
    %176 = arith.maximumf %174, %175 : vector<120x7xf32>
    %c0_115 = arith.constant 0 : index
    %c0_116 = arith.constant 0 : index
    %177 = vector.load %arg12[%c0_115, %c0_116] : memref<64x120xf32, #tpu.memory_space<vmem>>, vector<64x120xf32>
    %cst_117 = arith.constant dense<0.000000e+00> : vector<64x7xf32>
    %178 = tpu.matmul %177, %176, %cst_117 {dimension_numbers = #tpu.dot_dimension_numbers<[1], [0], [0], [1], [0, 0, 1, 1], [], []>} : vector<64x120xf32>, vector<120x7xf32>, vector<64x7xf32> -> vector<64x7xf32>
    %c0_118 = arith.constant 0 : index
    %c0_119 = arith.constant 0 : index
    %179 = vector.load %arg13[%c0_118, %c0_119] : memref<64x1xf32, #tpu.memory_space<vmem>>, vector<64x1xf32>
    %180 = vector.broadcast %179 : vector<64x1xf32> to vector<64x7xf32>
    %181 = arith.addf %178, %180 : vector<64x7xf32>
    %cst_120 = arith.constant 0.000000e+00 : f32
    %182 = vector.broadcast %cst_120 : f32 to vector<64x7xf32>
    %183 = arith.maximumf %181, %182 : vector<64x7xf32>
    %c0_121 = arith.constant 0 : index
    %c0_122 = arith.constant 0 : index
    %184 = vector.load %arg14[%c0_121, %c0_122] : memref<64x64xf32, #tpu.memory_space<vmem>>, vector<64x64xf32>
    %cst_123 = arith.constant dense<0.000000e+00> : vector<64x7xf32>
    %185 = tpu.matmul %184, %183, %cst_123 {dimension_numbers = #tpu.dot_dimension_numbers<[1], [0], [0], [1], [0, 0, 1, 1], [], []>} : vector<64x64xf32>, vector<64x7xf32>, vector<64x7xf32> -> vector<64x7xf32>
    %c0_124 = arith.constant 0 : index
    %c0_125 = arith.constant 0 : index
    %186 = vector.load %arg15[%c0_124, %c0_125] : memref<64x1xf32, #tpu.memory_space<vmem>>, vector<64x1xf32>
    %187 = vector.broadcast %186 : vector<64x1xf32> to vector<64x7xf32>
    %188 = arith.addf %185, %187 : vector<64x7xf32>
    %cst_126 = arith.constant 0.000000e+00 : f32
    %189 = vector.broadcast %cst_126 : f32 to vector<64x7xf32>
    %190 = arith.maximumf %188, %189 : vector<64x7xf32>
    %c0_127 = arith.constant 0 : index
    %c0_128 = arith.constant 0 : index
    %c0_129 = arith.constant 0 : index
    %191 = vector.load %arg18[%c0_127, %c0_128, %c0_129] : memref<7x20x64xf32, #tpu.memory_space<vmem>>, vector<1x20x64xf32>
    %192 = vector.shape_cast %191 : vector<1x20x64xf32> to vector<20x64xf32>
    %193 = vector.extract_strided_slice %190 {offsets = [0, 0], sizes = [64, 1], strides = [1, 1]} : vector<64x7xf32> to vector<64x1xf32>
    %cst_130 = arith.constant dense<0.000000e+00> : vector<20x1xf32>
    %194 = tpu.matmul %192, %193, %cst_130 {dimension_numbers = #tpu.dot_dimension_numbers<[1], [0], [0], [1], [0, 0, 1, 1], [], []>} : vector<20x64xf32>, vector<64x1xf32>, vector<20x1xf32> -> vector<20x1xf32>
    %c1_131 = arith.constant 1 : index
    %c0_132 = arith.constant 0 : index
    %c0_133 = arith.constant 0 : index
    %195 = vector.load %arg18[%c1_131, %c0_132, %c0_133] : memref<7x20x64xf32, #tpu.memory_space<vmem>>, vector<1x20x64xf32>
    %196 = vector.shape_cast %195 : vector<1x20x64xf32> to vector<20x64xf32>
    %197 = vector.extract_strided_slice %190 {offsets = [0, 1], sizes = [64, 1], strides = [1, 1]} : vector<64x7xf32> to vector<64x1xf32>
    %cst_134 = arith.constant dense<0.000000e+00> : vector<20x1xf32>
    %198 = tpu.matmul %196, %197, %cst_134 {dimension_numbers = #tpu.dot_dimension_numbers<[1], [0], [0], [1], [0, 0, 1, 1], [], []>} : vector<20x64xf32>, vector<64x1xf32>, vector<20x1xf32> -> vector<20x1xf32>
    %199 = arith.addf %194, %198 : vector<20x1xf32>
    %c2_135 = arith.constant 2 : index
    %c0_136 = arith.constant 0 : index
    %c0_137 = arith.constant 0 : index
    %200 = vector.load %arg18[%c2_135, %c0_136, %c0_137] : memref<7x20x64xf32, #tpu.memory_space<vmem>>, vector<1x20x64xf32>
    %201 = vector.shape_cast %200 : vector<1x20x64xf32> to vector<20x64xf32>
    %202 = vector.extract_strided_slice %190 {offsets = [0, 2], sizes = [64, 1], strides = [1, 1]} : vector<64x7xf32> to vector<64x1xf32>
    %cst_138 = arith.constant dense<0.000000e+00> : vector<20x1xf32>
    %203 = tpu.matmul %201, %202, %cst_138 {dimension_numbers = #tpu.dot_dimension_numbers<[1], [0], [0], [1], [0, 0, 1, 1], [], []>} : vector<20x64xf32>, vector<64x1xf32>, vector<20x1xf32> -> vector<20x1xf32>
    %204 = arith.addf %199, %203 : vector<20x1xf32>
    %c3_139 = arith.constant 3 : index
    %c0_140 = arith.constant 0 : index
    %c0_141 = arith.constant 0 : index
    %205 = vector.load %arg18[%c3_139, %c0_140, %c0_141] : memref<7x20x64xf32, #tpu.memory_space<vmem>>, vector<1x20x64xf32>
    %206 = vector.shape_cast %205 : vector<1x20x64xf32> to vector<20x64xf32>
    %207 = vector.extract_strided_slice %190 {offsets = [0, 3], sizes = [64, 1], strides = [1, 1]} : vector<64x7xf32> to vector<64x1xf32>
    %cst_142 = arith.constant dense<0.000000e+00> : vector<20x1xf32>
    %208 = tpu.matmul %206, %207, %cst_142 {dimension_numbers = #tpu.dot_dimension_numbers<[1], [0], [0], [1], [0, 0, 1, 1], [], []>} : vector<20x64xf32>, vector<64x1xf32>, vector<20x1xf32> -> vector<20x1xf32>
    %209 = arith.addf %204, %208 : vector<20x1xf32>
    %c4_143 = arith.constant 4 : index
    %c0_144 = arith.constant 0 : index
    %c0_145 = arith.constant 0 : index
    %210 = vector.load %arg18[%c4_143, %c0_144, %c0_145] : memref<7x20x64xf32, #tpu.memory_space<vmem>>, vector<1x20x64xf32>
    %211 = vector.shape_cast %210 : vector<1x20x64xf32> to vector<20x64xf32>
    %212 = vector.extract_strided_slice %190 {offsets = [0, 4], sizes = [64, 1], strides = [1, 1]} : vector<64x7xf32> to vector<64x1xf32>
    %cst_146 = arith.constant dense<0.000000e+00> : vector<20x1xf32>
    %213 = tpu.matmul %211, %212, %cst_146 {dimension_numbers = #tpu.dot_dimension_numbers<[1], [0], [0], [1], [0, 0, 1, 1], [], []>} : vector<20x64xf32>, vector<64x1xf32>, vector<20x1xf32> -> vector<20x1xf32>
    %214 = arith.addf %209, %213 : vector<20x1xf32>
    %c5_147 = arith.constant 5 : index
    %c0_148 = arith.constant 0 : index
    %c0_149 = arith.constant 0 : index
    %215 = vector.load %arg18[%c5_147, %c0_148, %c0_149] : memref<7x20x64xf32, #tpu.memory_space<vmem>>, vector<1x20x64xf32>
    %216 = vector.shape_cast %215 : vector<1x20x64xf32> to vector<20x64xf32>
    %217 = vector.extract_strided_slice %190 {offsets = [0, 5], sizes = [64, 1], strides = [1, 1]} : vector<64x7xf32> to vector<64x1xf32>
    %cst_150 = arith.constant dense<0.000000e+00> : vector<20x1xf32>
    %218 = tpu.matmul %216, %217, %cst_150 {dimension_numbers = #tpu.dot_dimension_numbers<[1], [0], [0], [1], [0, 0, 1, 1], [], []>} : vector<20x64xf32>, vector<64x1xf32>, vector<20x1xf32> -> vector<20x1xf32>
    %219 = arith.addf %214, %218 : vector<20x1xf32>
    %c6_151 = arith.constant 6 : index
    %c0_152 = arith.constant 0 : index
    %c0_153 = arith.constant 0 : index
    %220 = vector.load %arg18[%c6_151, %c0_152, %c0_153] : memref<7x20x64xf32, #tpu.memory_space<vmem>>, vector<1x20x64xf32>
    %221 = vector.shape_cast %220 : vector<1x20x64xf32> to vector<20x64xf32>
    %222 = vector.extract_strided_slice %190 {offsets = [0, 6], sizes = [64, 1], strides = [1, 1]} : vector<64x7xf32> to vector<64x1xf32>
    %cst_154 = arith.constant dense<0.000000e+00> : vector<20x1xf32>
    %223 = tpu.matmul %221, %222, %cst_154 {dimension_numbers = #tpu.dot_dimension_numbers<[1], [0], [0], [1], [0, 0, 1, 1], [], []>} : vector<20x64xf32>, vector<64x1xf32>, vector<20x1xf32> -> vector<20x1xf32>
    %224 = arith.addf %219, %223 : vector<20x1xf32>
    %c0_155 = arith.constant 0 : index
    %c0_156 = arith.constant 0 : index
    %225 = vector.load %arg19[%c0_155, %c0_156] : memref<20x1xf32, #tpu.memory_space<vmem>>, vector<20x1xf32>
    %226 = arith.addf %224, %225 : vector<20x1xf32>
    %c0_157 = arith.constant 0 : index
    %c0_158 = arith.constant 0 : index
    %c1_159 = arith.constant 1 : index
    %227 = vector.load %arg20[%c0_157, %c0_158, %c1_159] : memref<1x20x2xf32, #tpu.memory_space<vmem>>, vector<1x20x1xf32>
    %228 = vector.shape_cast %227 : vector<1x20x1xf32> to vector<20x1xf32>
    %229 = vector.shape_cast %226 : vector<20x1xf32> to vector<1x20x1xf32>
    tpu.vector_store %arg20[%c0_157, %c0_158, %c1_159], %229 {strides = array<i32>} : memref<1x20x2xf32, #tpu.memory_space<vmem>>, vector<1x20x1xf32>,
    return
  }
  func.func @transform_0(%arg0: i32) -> (i32, i32, i32) {
    %c0_i32 = arith.constant 0 : i32
    %c0_i32_0 = arith.constant 0 : i32
    %c0_i32_1 = arith.constant 0 : i32
    return %arg0, %c0_i32, %c0_i32_0 : i32, i32, i32
  }
  func.func @transform_1(%arg0: i32) -> (i32, i32) {
    %c0_i32 = arith.constant 0 : i32
    %c0_i32_0 = arith.constant 0 : i32
    %c0_i32_1 = arith.constant 0 : i32
    return %c0_i32, %c0_i32_0 : i32, i32
  }
  func.func @transform_2(%arg0: i32) -> (i32, i32) {
    %c0_i32 = arith.constant 0 : i32
    %c0_i32_0 = arith.constant 0 : i32
    %c0_i32_1 = arith.constant 0 : i32
    return %c0_i32, %c0_i32_0 : i32, i32
  }
  func.func @transform_3(%arg0: i32) -> (i32, i32) {
    %c0_i32 = arith.constant 0 : i32
    %c0_i32_0 = arith.constant 0 : i32
    %c0_i32_1 = arith.constant 0 : i32
    return %c0_i32, %c0_i32_0 : i32, i32
  }
  func.func @transform_4(%arg0: i32) -> (i32, i32) {
    %c0_i32 = arith.constant 0 : i32
    %c0_i32_0 = arith.constant 0 : i32
    %c0_i32_1 = arith.constant 0 : i32
    return %c0_i32, %c0_i32_0 : i32, i32
  }
  func.func @transform_5(%arg0: i32) -> (i32, i32) {
    %c0_i32 = arith.constant 0 : i32
    %c0_i32_0 = arith.constant 0 : i32
    %c0_i32_1 = arith.constant 0 : i32
    return %c0_i32, %c0_i32_0 : i32, i32
  }
  func.func @transform_6(%arg0: i32) -> (i32, i32) {
    %c0_i32 = arith.constant 0 : i32
    %c0_i32_0 = arith.constant 0 : i32
    %c0_i32_1 = arith.constant 0 : i32
    return %c0_i32, %c0_i32_0 : i32, i32
  }
  func.func @transform_7(%arg0: i32) -> (i32, i32) {
    %c0_i32 = arith.constant 0 : i32
    %c0_i32_0 = arith.constant 0 : i32
    %c0_i32_1 = arith.constant 0 : i32
    return %c0_i32, %c0_i32_0 : i32, i32
  }
  func.func @transform_8(%arg0: i32) -> (i32, i32) {
    %c0_i32 = arith.constant 0 : i32
    %c0_i32_0 = arith.constant 0 : i32
    %c0_i32_1 = arith.constant 0 : i32
    return %c0_i32, %c0_i32_0 : i32, i32
  }
  func.func @transform_9(%arg0: i32) -> (i32, i32) {
    %c0_i32 = arith.constant 0 : i32
    %c0_i32_0 = arith.constant 0 : i32
    %c0_i32_1 = arith.constant 0 : i32
    return %c0_i32, %c0_i32_0 : i32, i32
  }
  func.func @transform_10(%arg0: i32) -> (i32, i32) {
    %c0_i32 = arith.constant 0 : i32
    %c0_i32_0 = arith.constant 0 : i32
    %c0_i32_1 = arith.constant 0 : i32
    return %c0_i32, %c0_i32_0 : i32, i32
  }
  func.func @transform_11(%arg0: i32) -> (i32, i32) {
    %c0_i32 = arith.constant 0 : i32
    %c0_i32_0 = arith.constant 0 : i32
    %c0_i32_1 = arith.constant 0 : i32
    return %c0_i32, %c0_i32_0 : i32, i32
  }
  func.func @transform_12(%arg0: i32) -> (i32, i32) {
    %c0_i32 = arith.constant 0 : i32
    %c0_i32_0 = arith.constant 0 : i32
    %c0_i32_1 = arith.constant 0 : i32
    return %c0_i32, %c0_i32_0 : i32, i32
  }
  func.func @transform_13(%arg0: i32) -> (i32, i32) {
    %c0_i32 = arith.constant 0 : i32
    %c0_i32_0 = arith.constant 0 : i32
    %c0_i32_1 = arith.constant 0 : i32
    return %c0_i32, %c0_i32_0 : i32, i32
  }
  func.func @transform_14(%arg0: i32) -> (i32, i32) {
    %c0_i32 = arith.constant 0 : i32
    %c0_i32_0 = arith.constant 0 : i32
    %c0_i32_1 = arith.constant 0 : i32
    return %c0_i32, %c0_i32_0 : i32, i32
  }
  func.func @transform_15(%arg0: i32) -> (i32, i32) {
    %c0_i32 = arith.constant 0 : i32
    %c0_i32_0 = arith.constant 0 : i32
    %c0_i32_1 = arith.constant 0 : i32
    return %c0_i32, %c0_i32_0 : i32, i32
  }
  func.func @transform_16(%arg0: i32) -> (i32, i32) {
    %c0_i32 = arith.constant 0 : i32
    %c0_i32_0 = arith.constant 0 : i32
    %c0_i32_1 = arith.constant 0 : i32
    return %c0_i32, %c0_i32_0 : i32, i32
  }
  func.func @transform_17(%arg0: i32) -> (i32, i32, i32) {
    %c0_i32 = arith.constant 0 : i32
    %c0_i32_0 = arith.constant 0 : i32
    %c0_i32_1 = arith.constant 0 : i32
    %c0_i32_2 = arith.constant 0 : i32
    return %c0_i32, %c0_i32_0, %c0_i32_1 : i32, i32, i32
  }
  func.func @transform_18(%arg0: i32) -> (i32, i32) {
    %c0_i32 = arith.constant 0 : i32
    %c0_i32_0 = arith.constant 0 : i32
    %c0_i32_1 = arith.constant 0 : i32
    return %c0_i32, %c0_i32_0 : i32, i32
  }
  func.func @transform_19(%arg0: i32) -> (i32, i32, i32) {
    %c0_i32 = arith.constant 0 : i32
    %c0_i32_0 = arith.constant 0 : i32
    %c0_i32_1 = arith.constant 0 : i32
    return %arg0, %c0_i32, %c0_i32_0 : i32, i32, i32
  }
}

</mosaic_0001>

<llo_original>
// kernel: tpu_custom_call.1
$region0: #{tpu_custom_call.1}
  #allocation0 [shape = 'u32[]', space=smem, size = 0x4, offset = 0x4, fixed_abs, tag = 'smem constant byte address 0x4 - core index']
  #allocation1 [shape = 'u32[144,128]{1,0:T(1,128)}', space=vmem, size = 0x12000, scoped, tag = 'internal scratch']
  %s0 = inlined_call_operand.hbm [shape: f32[4,16,100], index: 0, kind: input, shape index: {}]
  %s1 = inlined_call_operand.hbm [shape: f32[32,48], index: 1, kind: input, shape index: {}]
  %s2 = inlined_call_operand.vmem [shape: f32[32,1], index: 2, kind: input, shape index: {}]
  %s3 = inlined_call_operand.hbm [shape: f32[64,96], index: 3, kind: input, shape index: {}]
  %s4 = inlined_call_operand.vmem [shape: f32[64,1], index: 4, kind: input, shape index: {}]
  %s5 = inlined_call_operand.vmem [shape: f32[120,192], index: 5, kind: input, shape index: {}]
  %s6 = inlined_call_operand.vmem [shape: f32[120,1], index: 6, kind: input, shape index: {}]
  %s7 = inlined_call_operand.vmem [shape: f32[240,360], index: 7, kind: input, shape index: {}]
  %s8 = inlined_call_operand.vmem [shape: f32[240,1], index: 8, kind: input, shape index: {}]
  %s9 = inlined_call_operand.vmem [shape: f32[120,720], index: 9, kind: input, shape index: {}]
  %s10 = inlined_call_operand.vmem [shape: f32[120,1], index: 10, kind: input, shape index: {}]
  %s11 = inlined_call_operand.vmem [shape: f32[64,120], index: 11, kind: input, shape index: {}]
  %s12 = inlined_call_operand.vmem [shape: f32[64,1], index: 12, kind: input, shape index: {}]
  %s13 = inlined_call_operand.hbm [shape: f32[64,64], index: 13, kind: input, shape index: {}]
  %s14 = inlined_call_operand.vmem [shape: f32[64,1], index: 14, kind: input, shape index: {}]
  %s15 = inlined_call_operand.vmem [shape: f32[96,32], index: 15, kind: input, shape index: {}]
  %s16 = inlined_call_operand.vmem [shape: f32[27,9], index: 16, kind: input, shape index: {}]
  %s17 = inlined_call_operand.vmem [shape: f32[7,20,64], index: 17, kind: input, shape index: {}]
  %s18 = inlined_call_operand.vmem [shape: f32[20,1], index: 18, kind: input, shape index: {}]
  %s19 = inlined_call_operand.vmem [shape: f32[2,20,2], index: 19, kind: output, shape index: {}]
  %s20 = sld [smem:[#allocation0]]
  $region125: #{tpu_custom_call.1} parent=0
    _
  %s22 = ssub.s32 1, %s20
  %s23 = scalar_select 0, %s22, %s20
  $region1: #{tpu_custom_call.1} parent=0
    #allocation2 [shape = 'u8[32768]{0}', space=vmem, size = 0x8000, scoped, tag = 'input window, operand 0']
    #allocation3 [shape = 's32[2]{0}', space=sflag, size = 0x8, scoped, tag = 'scoped memory for tpu_custom_call.1']
    #allocation4 [shape = 'u8[16384]{0}', space=vmem, size = 0x4000, scoped, tag = 'input window, operand 1, single buffered']
    #allocation5 [shape = 's32[1]{0}', space=sflag, size = 0x4, scoped, tag = 'scoped memory for tpu_custom_call.1']
    #allocation6 [shape = 'u8[32768]{0}', space=vmem, size = 0x8000, scoped, tag = 'input window, operand 3, single buffered']
    #allocation7 [shape = 'u8[32768]{0}', space=vmem, size = 0x8000, scoped, tag = 'input window, operand 13, single buffered']
    #allocation8 [shape = 's32[1]{0}', space=sflag, size = 0x4, scoped, tag = 'scoped memory for tpu_custom_call.1']
    %24 = vsyncpa [#allocation3], 0
    %s25 = scalar_lea.sflag [#allocation3], 1
    %26 = vsyncpa %s25, 0
    %27 = vsyncpa [#allocation5], 0
    %28 = vsyncpa [#allocation8], 0
    loop: start=0, step=1, limit=4
    $region2: #{tpu_custom_call.1} parent=1 // loop_pre_header
      _
    $region3: #{tpu_custom_call.1} parent=1 // loop_header
      %s30 = sphi 0, %s34
      %p31 = scmp.ge.s32.totalorder %s30, 4
      %s40 = sphi 0, %s42
      %s43 = sphi 0, %s40
      %s44 = sphi 0, %s43
      %s60 = sphi 0, %s44
      %s64 = sphi 0, %s64
      %s66 = sphi 0, %s64
      %s67 = sphi 0, %s66
      %s81 = sphi 0, %s67
      %s85 = sphi 0, %s85
      %s87 = sphi 0, %s85
      %s88 = sphi 0, %s87
      %s102 = sphi 0, %s88
      %s106 = sphi 0, %s106
      %s108 = sphi 0, %s106
      %s109 = sphi 0, %s108
      %s123 = sphi 0, %s109
      %s127 = sphi 0, %s127
      %s129 = sphi 0, %s127
      %s130 = sphi 0, %s129
      %s144 = sphi 0, %s130
      %s148 = sphi 0, %s148
      %s150 = sphi 0, %s148
      %s151 = sphi 0, %s150
      %s165 = sphi 0, %s151
      %s169 = sphi 0, %s169
      %s171 = sphi 0, %s169
      %s172 = sphi 0, %s171
      %s186 = sphi 0, %s172
      %s190 = sphi 0, %s190
      %s192 = sphi 0, %s190
      %s193 = sphi 0, %s192
      %s207 = sphi 0, %s193
      %s211 = sphi 0, %s211
      %s213 = sphi 0, %s211
      %s214 = sphi 0, %s213
      %s228 = sphi 0, %s214
      %s232 = sphi 0, %s232
      %s234 = sphi 0, %s232
      %s235 = sphi 0, %s234
      %s249 = sphi 0, %s235
      %s253 = sphi 0, %s253
      %s255 = sphi 0, %s253
      %s256 = sphi 0, %s255
      %s270 = sphi 0, %s256
      %s274 = sphi 0, %s274
      %s276 = sphi 0, %s274
      %s277 = sphi 0, %s276
      %s291 = sphi 0, %s277
      %s295 = sphi 0, %s295
      %s297 = sphi 0, %s295
      %s298 = sphi 0, %s297
      %s312 = sphi 0, %s298
      %s316 = sphi 0, %s316
      %s318 = sphi 0, %s316
      %s319 = sphi 0, %s318
      %s333 = sphi 0, %s319
      %s337 = sphi 0, %s337
      %s339 = sphi 0, %s337
      %s340 = sphi 0, %s339
      %s354 = sphi 0, %s340
      %s358 = sphi 0, %s358
      %s360 = sphi 0, %s358
      %s361 = sphi 0, %s360
      %s375 = sphi 0, %s361
      %s379 = sphi 0, %s379
      %s381 = sphi 0, %s379
      %s382 = sphi 0, %s381
      %s396 = sphi 0, %s382
      %s400 = sphi 0, %s400
      %s402 = sphi 0, %s400
      %s403 = sphi 0, %s402
      %s417 = sphi 0, %s403
      %s421 = sphi 0, %s421
      %s423 = sphi 0, %s421
      %s424 = sphi 0, %s423
      %s438 = sphi 0, %s424
      %s444 = sphi 0, %s446
      %s447 = sphi 0, %s444
      %s448 = sphi 0, %s447
      %s464 = sphi 0, %s448
    $region4: #{tpu_custom_call.1} parent=1 // loop_header_branch
      %33 = sbr.rel (%p31) target = $region8
    $region5: #{tpu_custom_call.1} parent=1 // loop_body
      %s35 = ssub.s32 %s30, 1
      %s36 = ssub.s32 %s30, 2
      %s37 = sadd.s32 %s30, 1
      %s38 = ssub.s32 %s30, %s37
      %p39 = scmp.eq.s32.totalorder %s38, 0
      %s41 = sadd.s32 %s40, 1
      %s42 = scalar_select %p39, %s40, %s41
      %p45 = pneg %p39
      %p46 = scmp.eq.s32.totalorder %s30, 1
      %p47 = por %p45, %p46
      %p48 = scmp.ne.s32.totalorder %s40, %s43
      %p49 = scmp.eq.s32.totalorder %s30, 0
      %p50 = por %p48, %p49
      %p51 = scmp.ne.s32.totalorder %s40, %s43
      %p52 = scmp.eq.s32.totalorder %s35, 1
      %p53 = por %p51, %p52
      %p54 = scmp.ne.s32.totalorder %s43, %s44
      %p55 = scmp.eq.s32.totalorder %s35, 0
      %p56 = por %p54, %p55
      %p57 = scmp.ne.s32.totalorder %s43, %s44
      %p58 = scmp.eq.s32.totalorder %s36, 1
      %p59 = por %p57, %p58
      %p61 = scmp.ne.s32.totalorder %s44, %s60
      %p62 = scmp.eq.s32.totalorder %s36, 0
      %p63 = por %p61, %p62
      %s65 = sadd.s32 %s64, 1
      %p68 = scmp.eq.s32.totalorder %s30, 1
      %p69 = scmp.ne.s32.totalorder %s64, %s66
      %p70 = scmp.eq.s32.totalorder %s30, 0
      %p71 = por %p69, %p70
      %p72 = scmp.ne.s32.totalorder %s64, %s66
      %p73 = scmp.eq.s32.totalorder %s35, 1
      %p74 = por %p72, %p73
      %p75 = scmp.ne.s32.totalorder %s66, %s67
      %p76 = scmp.eq.s32.totalorder %s35, 0
      %p77 = por %p75, %p76
      %p78 = scmp.ne.s32.totalorder %s66, %s67
      %p79 = scmp.eq.s32.totalorder %s36, 1
      %p80 = por %p78, %p79
      %p82 = scmp.ne.s32.totalorder %s67, %s81
      %p83 = scmp.eq.s32.totalorder %s36, 0
      %p84 = por %p82, %p83
      %s86 = sadd.s32 %s85, 1
      %p89 = scmp.eq.s32.totalorder %s30, 1
      %p90 = scmp.ne.s32.totalorder %s85, %s87
      %p91 = scmp.eq.s32.totalorder %s30, 0
      %p92 = por %p90, %p91
      %p93 = scmp.ne.s32.totalorder %s85, %s87
      %p94 = scmp.eq.s32.totalorder %s35, 1
      %p95 = por %p93, %p94
      %p96 = scmp.ne.s32.totalorder %s87, %s88
      %p97 = scmp.eq.s32.totalorder %s35, 0
      %p98 = por %p96, %p97
      %p99 = scmp.ne.s32.totalorder %s87, %s88
      %p100 = scmp.eq.s32.totalorder %s36, 1
      %p101 = por %p99, %p100
      %p103 = scmp.ne.s32.totalorder %s88, %s102
      %p104 = scmp.eq.s32.totalorder %s36, 0
      %p105 = por %p103, %p104
      %s107 = sadd.s32 %s106, 1
      %p110 = scmp.eq.s32.totalorder %s30, 1
      %p111 = scmp.ne.s32.totalorder %s106, %s108
      %p112 = scmp.eq.s32.totalorder %s30, 0
      %p113 = por %p111, %p112
      %p114 = scmp.ne.s32.totalorder %s106, %s108
      %p115 = scmp.eq.s32.totalorder %s35, 1
      %p116 = por %p114, %p115
      %p117 = scmp.ne.s32.totalorder %s108, %s109
      %p118 = scmp.eq.s32.totalorder %s35, 0
      %p119 = por %p117, %p118
      %p120 = scmp.ne.s32.totalorder %s108, %s109
      %p121 = scmp.eq.s32.totalorder %s36, 1
      %p122 = por %p120, %p121
      %p124 = scmp.ne.s32.totalorder %s109, %s123
      %p125 = scmp.eq.s32.totalorder %s36, 0
      %p126 = por %p124, %p125
      %s128 = sadd.s32 %s127, 1
      %p131 = scmp.eq.s32.totalorder %s30, 1
      %p132 = scmp.ne.s32.totalorder %s127, %s129
      %p133 = scmp.eq.s32.totalorder %s30, 0
      %p134 = por %p132, %p133
      %p135 = scmp.ne.s32.totalorder %s127, %s129
      %p136 = scmp.eq.s32.totalorder %s35, 1
      %p137 = por %p135, %p136
      %p138 = scmp.ne.s32.totalorder %s129, %s130
      %p139 = scmp.eq.s32.totalorder %s35, 0
      %p140 = por %p138, %p139
      %p141 = scmp.ne.s32.totalorder %s129, %s130
      %p142 = scmp.eq.s32.totalorder %s36, 1
      %p143 = por %p141, %p142
      %p145 = scmp.ne.s32.totalorder %s130, %s144
      %p146 = scmp.eq.s32.totalorder %s36, 0
      %p147 = por %p145, %p146
      %s149 = sadd.s32 %s148, 1
      %p152 = scmp.eq.s32.totalorder %s30, 1
      %p153 = scmp.ne.s32.totalorder %s148, %s150
      %p154 = scmp.eq.s32.totalorder %s30, 0
      %p155 = por %p153, %p154
      %p156 = scmp.ne.s32.totalorder %s148, %s150
      %p157 = scmp.eq.s32.totalorder %s35, 1
      %p158 = por %p156, %p157
      %p159 = scmp.ne.s32.totalorder %s150, %s151
      %p160 = scmp.eq.s32.totalorder %s35, 0
      %p161 = por %p159, %p160
      %p162 = scmp.ne.s32.totalorder %s150, %s151
      %p163 = scmp.eq.s32.totalorder %s36, 1
      %p164 = por %p162, %p163
      %p166 = scmp.ne.s32.totalorder %s151, %s165
      %p167 = scmp.eq.s32.totalorder %s36, 0
      %p168 = por %p166, %p167
      %s170 = sadd.s32 %s169, 1
      %p173 = scmp.eq.s32.totalorder %s30, 1
      %p174 = scmp.ne.s32.totalorder %s169, %s171
      %p175 = scmp.eq.s32.totalorder %s30, 0
      %p176 = por %p174, %p175
      %p177 = scmp.ne.s32.totalorder %s169, %s171
      %p178 = scmp.eq.s32.totalorder %s35, 1
      %p179 = por %p177, %p178
      %p180 = scmp.ne.s32.totalorder %s171, %s172
      %p181 = scmp.eq.s32.totalorder %s35, 0
      %p182 = por %p180, %p181
      %p183 = scmp.ne.s32.totalorder %s171, %s172
      %p184 = scmp.eq.s32.totalorder %s36, 1
      %p185 = por %p183, %p184
      %p187 = scmp.ne.s32.totalorder %s172, %s186
      %p188 = scmp.eq.s32.totalorder %s36, 0
      %p189 = por %p187, %p188
      %s191 = sadd.s32 %s190, 1
      %p194 = scmp.eq.s32.totalorder %s30, 1
      %p195 = scmp.ne.s32.totalorder %s190, %s192
      %p196 = scmp.eq.s32.totalorder %s30, 0
      %p197 = por %p195, %p196
      %p198 = scmp.ne.s32.totalorder %s190, %s192
      %p199 = scmp.eq.s32.totalorder %s35, 1
      %p200 = por %p198, %p199
      %p201 = scmp.ne.s32.totalorder %s192, %s193
      %p202 = scmp.eq.s32.totalorder %s35, 0
      %p203 = por %p201, %p202
      %p204 = scmp.ne.s32.totalorder %s192, %s193
      %p205 = scmp.eq.s32.totalorder %s36, 1
      %p206 = por %p204, %p205
      %p208 = scmp.ne.s32.totalorder %s193, %s207
      %p209 = scmp.eq.s32.totalorder %s36, 0
      %p210 = por %p208, %p209
      %s212 = sadd.s32 %s211, 1
      %p215 = scmp.eq.s32.totalorder %s30, 1
      %p216 = scmp.ne.s32.totalorder %s211, %s213
      %p217 = scmp.eq.s32.totalorder %s30, 0
      %p218 = por %p216, %p217
      %p219 = scmp.ne.s32.totalorder %s211, %s213
      %p220 = scmp.eq.s32.totalorder %s35, 1
      %p221 = por %p219, %p220
      %p222 = scmp.ne.s32.totalorder %s213, %s214
      %p223 = scmp.eq.s32.totalorder %s35, 0
      %p224 = por %p222, %p223
      %p225 = scmp.ne.s32.totalorder %s213, %s214
      %p226 = scmp.eq.s32.totalorder %s36, 1
      %p227 = por %p225, %p226
      %p229 = scmp.ne.s32.totalorder %s214, %s228
      %p230 = scmp.eq.s32.totalorder %s36, 0
      %p231 = por %p229, %p230
      %s233 = sadd.s32 %s232, 1
      %p236 = scmp.eq.s32.totalorder %s30, 1
      %p237 = scmp.ne.s32.totalorder %s232, %s234
      %p238 = scmp.eq.s32.totalorder %s30, 0
      %p239 = por %p237, %p238
      %p240 = scmp.ne.s32.totalorder %s232, %s234
      %p241 = scmp.eq.s32.totalorder %s35, 1
      %p242 = por %p240, %p241
      %p243 = scmp.ne.s32.totalorder %s234, %s235
      %p244 = scmp.eq.s32.totalorder %s35, 0
      %p245 = por %p243, %p244
      %p246 = scmp.ne.s32.totalorder %s234, %s235
      %p247 = scmp.eq.s32.totalorder %s36, 1
      %p248 = por %p246, %p247
      %p250 = scmp.ne.s32.totalorder %s235, %s249
      %p251 = scmp.eq.s32.totalorder %s36, 0
      %p252 = por %p250, %p251
      %s254 = sadd.s32 %s253, 1
      %p257 = scmp.eq.s32.totalorder %s30, 1
      %p258 = scmp.ne.s32.totalorder %s253, %s255
      %p259 = scmp.eq.s32.totalorder %s30, 0
      %p260 = por %p258, %p259
      %p261 = scmp.ne.s32.totalorder %s253, %s255
      %p262 = scmp.eq.s32.totalorder %s35, 1
      %p263 = por %p261, %p262
      %p264 = scmp.ne.s32.totalorder %s255, %s256
      %p265 = scmp.eq.s32.totalorder %s35, 0
      %p266 = por %p264, %p265
      %p267 = scmp.ne.s32.totalorder %s255, %s256
      %p268 = scmp.eq.s32.totalorder %s36, 1
      %p269 = por %p267, %p268
      %p271 = scmp.ne.s32.totalorder %s256, %s270
      %p272 = scmp.eq.s32.totalorder %s36, 0
      %p273 = por %p271, %p272
      %s275 = sadd.s32 %s274, 1
      %p278 = scmp.eq.s32.totalorder %s30, 1
      %p279 = scmp.ne.s32.totalorder %s274, %s276
      %p280 = scmp.eq.s32.totalorder %s30, 0
      %p281 = por %p279, %p280
      %p282 = scmp.ne.s32.totalorder %s274, %s276
      %p283 = scmp.eq.s32.totalorder %s35, 1
      %p284 = por %p282, %p283
      %p285 = scmp.ne.s32.totalorder %s276, %s277
      %p286 = scmp.eq.s32.totalorder %s35, 0
      %p287 = por %p285, %p286
      %p288 = scmp.ne.s32.totalorder %s276, %s277
      %p289 = scmp.eq.s32.totalorder %s36, 1
      %p290 = por %p288, %p289
      %p292 = scmp.ne.s32.totalorder %s277, %s291
      %p293 = scmp.eq.s32.totalorder %s36, 0
      %p294 = por %p292, %p293
      %s296 = sadd.s32 %s295, 1
      %p299 = scmp.eq.s32.totalorder %s30, 1
      %p300 = scmp.ne.s32.totalorder %s295, %s297
      %p301 = scmp.eq.s32.totalorder %s30, 0
      %p302 = por %p300, %p301
      %p303 = scmp.ne.s32.totalorder %s295, %s297
      %p304 = scmp.eq.s32.totalorder %s35, 1
      %p305 = por %p303, %p304
      %p306 = scmp.ne.s32.totalorder %s297, %s298
      %p307 = scmp.eq.s32.totalorder %s35, 0
      %p308 = por %p306, %p307
      %p309 = scmp.ne.s32.totalorder %s297, %s298
      %p310 = scmp.eq.s32.totalorder %s36, 1
      %p311 = por %p309, %p310
      %p313 = scmp.ne.s32.totalorder %s298, %s312
      %p314 = scmp.eq.s32.totalorder %s36, 0
      %p315 = por %p313, %p314
      %s317 = sadd.s32 %s316, 1
      %p320 = scmp.eq.s32.totalorder %s30, 1
      %p321 = scmp.ne.s32.totalorder %s316, %s318
      %p322 = scmp.eq.s32.totalorder %s30, 0
      %p323 = por %p321, %p322
      %p324 = scmp.ne.s32.totalorder %s316, %s318
      %p325 = scmp.eq.s32.totalorder %s35, 1
      %p326 = por %p324, %p325
      %p327 = scmp.ne.s32.totalorder %s318, %s319
      %p328 = scmp.eq.s32.totalorder %s35, 0
      %p329 = por %p327, %p328
      %p330 = scmp.ne.s32.totalorder %s318, %s319
      %p331 = scmp.eq.s32.totalorder %s36, 1
      %p332 = por %p330, %p331
      %p334 = scmp.ne.s32.totalorder %s319, %s333
      %p335 = scmp.eq.s32.totalorder %s36, 0
      %p336 = por %p334, %p335
      %s338 = sadd.s32 %s337, 1
      %p341 = scmp.eq.s32.totalorder %s30, 1
      %p342 = scmp.ne.s32.totalorder %s337, %s339
      %p343 = scmp.eq.s32.totalorder %s30, 0
      %p344 = por %p342, %p343
      %p345 = scmp.ne.s32.totalorder %s337, %s339
      %p346 = scmp.eq.s32.totalorder %s35, 1
      %p347 = por %p345, %p346
      %p348 = scmp.ne.s32.totalorder %s339, %s340
      %p349 = scmp.eq.s32.totalorder %s35, 0
      %p350 = por %p348, %p349
      %p351 = scmp.ne.s32.totalorder %s339, %s340
      %p352 = scmp.eq.s32.totalorder %s36, 1
      %p353 = por %p351, %p352
      %p355 = scmp.ne.s32.totalorder %s340, %s354
      %p356 = scmp.eq.s32.totalorder %s36, 0
      %p357 = por %p355, %p356
      %s359 = sadd.s32 %s358, 1
      %p362 = scmp.eq.s32.totalorder %s30, 1
      %p363 = scmp.ne.s32.totalorder %s358, %s360
      %p364 = scmp.eq.s32.totalorder %s30, 0
      %p365 = por %p363, %p364
      %p366 = scmp.ne.s32.totalorder %s358, %s360
      %p367 = scmp.eq.s32.totalorder %s35, 1
      %p368 = por %p366, %p367
      %p369 = scmp.ne.s32.totalorder %s360, %s361
      %p370 = scmp.eq.s32.totalorder %s35, 0
      %p371 = por %p369, %p370
      %p372 = scmp.ne.s32.totalorder %s360, %s361
      %p373 = scmp.eq.s32.totalorder %s36, 1
      %p374 = por %p372, %p373
      %p376 = scmp.ne.s32.totalorder %s361, %s375
      %p377 = scmp.eq.s32.totalorder %s36, 0
      %p378 = por %p376, %p377
      %s380 = sadd.s32 %s379, 1
      %p383 = scmp.eq.s32.totalorder %s30, 1
      %p384 = scmp.ne.s32.totalorder %s379, %s381
      %p385 = scmp.eq.s32.totalorder %s30, 0
      %p386 = por %p384, %p385
      %p387 = scmp.ne.s32.totalorder %s379, %s381
      %p388 = scmp.eq.s32.totalorder %s35, 1
      %p389 = por %p387, %p388
      %p390 = scmp.ne.s32.totalorder %s381, %s382
      %p391 = scmp.eq.s32.totalorder %s35, 0
      %p392 = por %p390, %p391
      %p393 = scmp.ne.s32.totalorder %s381, %s382
      %p394 = scmp.eq.s32.totalorder %s36, 1
      %p395 = por %p393, %p394
      %p397 = scmp.ne.s32.totalorder %s382, %s396
      %p398 = scmp.eq.s32.totalorder %s36, 0
      %p399 = por %p397, %p398
      %s401 = sadd.s32 %s400, 1
      %p404 = scmp.eq.s32.totalorder %s30, 1
      %p405 = scmp.ne.s32.totalorder %s400, %s402
      %p406 = scmp.eq.s32.totalorder %s30, 0
      %p407 = por %p405, %p406
      %p408 = scmp.ne.s32.totalorder %s400, %s402
      %p409 = scmp.eq.s32.totalorder %s35, 1
      %p410 = por %p408, %p409
      %p411 = scmp.ne.s32.totalorder %s402, %s403
      %p412 = scmp.eq.s32.totalorder %s35, 0
      %p413 = por %p411, %p412
      %p414 = scmp.ne.s32.totalorder %s402, %s403
      %p415 = scmp.eq.s32.totalorder %s36, 1
      %p416 = por %p414, %p415
      %p418 = scmp.ne.s32.totalorder %s403, %s417
      %p419 = scmp.eq.s32.totalorder %s36, 0
      %p420 = por %p418, %p419
      %s422 = sadd.s32 %s421, 1
      %p425 = scmp.eq.s32.totalorder %s30, 1
      %p426 = scmp.ne.s32.totalorder %s421, %s423
      %p427 = scmp.eq.s32.totalorder %s30, 0
      %p428 = por %p426, %p427
      %p429 = scmp.ne.s32.totalorder %s421, %s423
      %p430 = scmp.eq.s32.totalorder %s35, 1
      %p431 = por %p429, %p430
      %p432 = scmp.ne.s32.totalorder %s423, %s424
      %p433 = scmp.eq.s32.totalorder %s35, 0
      %p434 = por %p432, %p433
      %p435 = scmp.ne.s32.totalorder %s423, %s424
      %p436 = scmp.eq.s32.totalorder %s36, 1
      %p437 = por %p435, %p436
      %p439 = scmp.ne.s32.totalorder %s424, %s438
      %p440 = scmp.eq.s32.totalorder %s36, 0
      %p441 = por %p439, %p440
      %s442 = ssub.s32 %s30, %s37
      %p443 = scmp.eq.s32.totalorder %s442, 0
      %s445 = sadd.s32 %s444, 1
      %s446 = scalar_select %p443, %s444, %s445
      %p449 = pneg %p443
      %p450 = scmp.eq.s32.totalorder %s30, 1
      %p451 = por %p449, %p450
      %p452 = scmp.ne.s32.totalorder %s444, %s447
      %p453 = scmp.eq.s32.totalorder %s30, 0
      %p454 = por %p452, %p453
      %p455 = scmp.ne.s32.totalorder %s444, %s447
      %p456 = scmp.eq.s32.totalorder %s35, 1
      %p457 = por %p455, %p456
      %p458 = scmp.ne.s32.totalorder %s447, %s448
      %p459 = scmp.eq.s32.totalorder %s35, 0
      %p460 = por %p458, %p459
      %p461 = scmp.ne.s32.totalorder %s447, %s448
      %p462 = scmp.eq.s32.totalorder %s36, 1
      %p463 = por %p461, %p462
      %p465 = scmp.ne.s32.totalorder %s448, %s464
      %p466 = scmp.eq.s32.totalorder %s36, 0
      %p467 = por %p465, %p466
      %p468 = scmp.le.s32.totalorder 1, %s30
      %p469 = scmp.lt.s32.totalorder %s30, 3
      %p470 = pnand %p468, %p469
      %p471 = pneg %p470
      // Predicated region
      $region9: #{tpu_custom_call.1} parent=5 // pred_check
        _
      $region10: #{tpu_custom_call.1} parent=5 // pred_check_branch
        %473 = sbr.rel (%p470) target = $region12
      $region11: #{tpu_custom_call.1} parent=5 // pred_region
        %s474 = ssub.s32 %s30, 1
        // Predicated region
        $region13: #{tpu_custom_call.1} parent=11 // pred_check
          %p475 = pneg %p77
        $region14: #{tpu_custom_call.1} parent=11 // pred_check_branch
          %477 = sbr.rel (%p475) target = $region16
        $region15: #{tpu_custom_call.1} parent=11 // pred_region
          %s479 = ssub.s32 512, 512
          %480 = vsyncadd [#allocation5], %s479
          %s481 = sshll.u32 [#allocation4], 4
          %s482 = int_to_ptr.vmem [resolvable:$true] %s481
          %487 = dma.hbm_to_vmem [thread:$0]  %s1, 512, %s482, [#allocation5], 128, 128, 8
        $region16: #{tpu_custom_call.1} parent=11 // pred_fallthru
          _
        // Predicated region
        $region17: #{tpu_custom_call.1} parent=11 // pred_check
          %p488 = pneg %p98
        $region18: #{tpu_custom_call.1} parent=11 // pred_check_branch
          %490 = sbr.rel (%p488) target = $region20
        $region19: #{tpu_custom_call.1} parent=11 // pred_region
          _
        $region20: #{tpu_custom_call.1} parent=11 // pred_fallthru
          _
        // Predicated region
        $region21: #{tpu_custom_call.1} parent=11 // pred_check
          %p491 = pneg %p119
        $region22: #{tpu_custom_call.1} parent=11 // pred_check_branch
          %493 = sbr.rel (%p491) target = $region24
        $region23: #{tpu_custom_call.1} parent=11 // pred_region
          %s495 = ssub.s32 1024, 1024
          %496 = vsyncadd [#allocation5], %s495
          %s497 = sshll.u32 [#allocation6], 4
          %s498 = int_to_ptr.vmem [resolvable:$true] %s497
          %503 = dma.hbm_to_vmem [thread:$0]  %s3, 1024, %s498, [#allocation5], 128, 128, 8
        $region24: #{tpu_custom_call.1} parent=11 // pred_fallthru
          _
        // Predicated region
        $region25: #{tpu_custom_call.1} parent=11 // pred_check
          %p504 = pneg %p140
        $region26: #{tpu_custom_call.1} parent=11 // pred_check_branch
          %506 = sbr.rel (%p504) target = $region28
        $region27: #{tpu_custom_call.1} parent=11 // pred_region
          _
        $region28: #{tpu_custom_call.1} parent=11 // pred_fallthru
          _
        // Predicated region
        $region29: #{tpu_custom_call.1} parent=11 // pred_check
          %p507 = pneg %p161
        $region30: #{tpu_custom_call.1} parent=11 // pred_check_branch
          %509 = sbr.rel (%p507) target = $region32
        $region31: #{tpu_custom_call.1} parent=11 // pred_region
          _
        $region32: #{tpu_custom_call.1} parent=11 // pred_fallthru
          _
        // Predicated region
        $region33: #{tpu_custom_call.1} parent=11 // pred_check
          %p510 = pneg %p182
        $region34: #{tpu_custom_call.1} parent=11 // pred_check_branch
          %512 = sbr.rel (%p510) target = $region36
        $region35: #{tpu_custom_call.1} parent=11 // pred_region
          _
        $region36: #{tpu_custom_call.1} parent=11 // pred_fallthru
          _
        // Predicated region
        $region37: #{tpu_custom_call.1} parent=11 // pred_check
          %p513 = pneg %p203
        $region38: #{tpu_custom_call.1} parent=11 // pred_check_branch
          %515 = sbr.rel (%p513) target = $region40
        $region39: #{tpu_custom_call.1} parent=11 // pred_region
          _
        $region40: #{tpu_custom_call.1} parent=11 // pred_fallthru
          _
        // Predicated region
        $region41: #{tpu_custom_call.1} parent=11 // pred_check
          %p516 = pneg %p224
        $region42: #{tpu_custom_call.1} parent=11 // pred_check_branch
          %518 = sbr.rel (%p516) target = $region44
        $region43: #{tpu_custom_call.1} parent=11 // pred_region
          _
        $region44: #{tpu_custom_call.1} parent=11 // pred_fallthru
          _
        // Predicated region
        $region45: #{tpu_custom_call.1} parent=11 // pred_check
          %p519 = pneg %p245
        $region46: #{tpu_custom_call.1} parent=11 // pred_check_branch
          %521 = sbr.rel (%p519) target = $region48
        $region47: #{tpu_custom_call.1} parent=11 // pred_region
          _
        $region48: #{tpu_custom_call.1} parent=11 // pred_fallthru
          _
        // Predicated region
        $region49: #{tpu_custom_call.1} parent=11 // pred_check
          %p522 = pneg %p266
        $region50: #{tpu_custom_call.1} parent=11 // pred_check_branch
          %524 = sbr.rel (%p522) target = $region52
        $region51: #{tpu_custom_call.1} parent=11 // pred_region
          _
        $region52: #{tpu_custom_call.1} parent=11 // pred_fallthru
          _
        // Predicated region
        $region53: #{tpu_custom_call.1} parent=11 // pred_check
          %p525 = pneg %p287
        $region54: #{tpu_custom_call.1} parent=11 // pred_check_branch
          %527 = sbr.rel (%p525) target = $region56
        $region55: #{tpu_custom_call.1} parent=11 // pred_region
          _
        $region56: #{tpu_custom_call.1} parent=11 // pred_fallthru
          _
        // Predicated region
        $region57: #{tpu_custom_call.1} parent=11 // pred_check
          %p528 = pneg %p308
        $region58: #{tpu_custom_call.1} parent=11 // pred_check_branch
          %530 = sbr.rel (%p528) target = $region60
        $region59: #{tpu_custom_call.1} parent=11 // pred_region
          _
        $region60: #{tpu_custom_call.1} parent=11 // pred_fallthru
          _
        // Predicated region
        $region61: #{tpu_custom_call.1} parent=11 // pred_check
          %p531 = pneg %p329
        $region62: #{tpu_custom_call.1} parent=11 // pred_check_branch
          %533 = sbr.rel (%p531) target = $region64
        $region63: #{tpu_custom_call.1} parent=11 // pred_region
          %s535 = ssub.s32 1024, 1024
          %536 = vsyncadd [#allocation8], %s535
          %s537 = sshll.u32 [#allocation7], 4
          %s538 = int_to_ptr.vmem [resolvable:$true] %s537
          %543 = dma.hbm_to_vmem [thread:$0]  %s13, 1024, %s538, [#allocation8], 128, 128, 8
        $region64: #{tpu_custom_call.1} parent=11 // pred_fallthru
          _
        // Predicated region
        $region65: #{tpu_custom_call.1} parent=11 // pred_check
          %p544 = pneg %p350
        $region66: #{tpu_custom_call.1} parent=11 // pred_check_branch
          %546 = sbr.rel (%p544) target = $region68
        $region67: #{tpu_custom_call.1} parent=11 // pred_region
          _
        $region68: #{tpu_custom_call.1} parent=11 // pred_fallthru
          _
        // Predicated region
        $region69: #{tpu_custom_call.1} parent=11 // pred_check
          %p547 = pneg %p371
        $region70: #{tpu_custom_call.1} parent=11 // pred_check_branch
          %549 = sbr.rel (%p547) target = $region72
        $region71: #{tpu_custom_call.1} parent=11 // pred_region
          _
        $region72: #{tpu_custom_call.1} parent=11 // pred_fallthru
          _
        // Predicated region
        $region73: #{tpu_custom_call.1} parent=11 // pred_check
          %p550 = pneg %p392
        $region74: #{tpu_custom_call.1} parent=11 // pred_check_branch
          %552 = sbr.rel (%p550) target = $region76
        $region75: #{tpu_custom_call.1} parent=11 // pred_region
          _
        $region76: #{tpu_custom_call.1} parent=11 // pred_fallthru
          _
        // Predicated region
        $region77: #{tpu_custom_call.1} parent=11 // pred_check
          %p553 = pneg %p413
        $region78: #{tpu_custom_call.1} parent=11 // pred_check_branch
          %555 = sbr.rel (%p553) target = $region80
        $region79: #{tpu_custom_call.1} parent=11 // pred_region
          _
        $region80: #{tpu_custom_call.1} parent=11 // pred_fallthru
          _
        // Predicated region
        $region81: #{tpu_custom_call.1} parent=11 // pred_check
          %p556 = pneg %p434
        $region82: #{tpu_custom_call.1} parent=11 // pred_check_branch
          %558 = sbr.rel (%p556) target = $region84
        $region83: #{tpu_custom_call.1} parent=11 // pred_region
          _
        $region84: #{tpu_custom_call.1} parent=11 // pred_fallthru
          _
      $region12: #{tpu_custom_call.1} parent=5 // pred_fallthru
        _
      %p559 = scmp.lt.s32.totalorder %s30, 2
      // Predicated region
      $region85: #{tpu_custom_call.1} parent=5 // pred_check
        %p560 = pneg %p559
      $region86: #{tpu_custom_call.1} parent=5 // pred_check_branch
        %562 = sbr.rel (%p560) target = $region88
      $region87: #{tpu_custom_call.1} parent=5 // pred_region
        // Predicated region
        $region89: #{tpu_custom_call.1} parent=87 // pred_check
          %p563 = pneg %p50
        $region90: #{tpu_custom_call.1} parent=87 // pred_check_branch
          %565 = sbr.rel (%p563) target = $region92
        $region91: #{tpu_custom_call.1} parent=87 // pred_region
          %s566 = sand.u32 %s40, 1
          %s567 = scalar_lea.sflag [#allocation3], %s566
          %s568 = sand.u32 %s40, 1
          %s569 = smul.addr %s568, 32
          %s570 = scalar_lea.vmem [#allocation2], %s569
          %s571 = smul.u32 2, %s30
          %s573 = ssub.s32 512, 512
          %574 = vsyncadd %s567, %s573
          %s575 = smul.addr %s571, 2
          %s576 = smul.addr %s575, 128
          %s577 = scalar_lea.hbm %s0, %s576
          %s578 = sshll.u32 %s570, 4
          %s579 = int_to_ptr.vmem [resolvable:$true] %s578
          %584 = dma.hbm_to_vmem [thread:$0]  %s577, 512, %s579, %s567, 128, 128, 8
        $region92: #{tpu_custom_call.1} parent=87 // pred_fallthru
          _
      $region88: #{tpu_custom_call.1} parent=5 // pred_fallthru
        _
      %p585 = scmp.le.s32.totalorder 1, %s30
      %p586 = scmp.lt.s32.totalorder %s30, 3
      %p587 = pnand %p585, %p586
      %p588 = pneg %p587
      // Predicated region
      $region93: #{tpu_custom_call.1} parent=5 // pred_check
        _
      $region94: #{tpu_custom_call.1} parent=5 // pred_check_branch
        %590 = sbr.rel (%p587) target = $region96
      $region95: #{tpu_custom_call.1} parent=5 // pred_region
        %s591 = ssub.s32 %s30, 1
        %s592 = sand.u32 %s43, 1
        %s593 = scalar_lea.sflag [#allocation3], %s592
        %s594 = sand.u32 %s43, 1
        %s595 = smul.addr %s594, 32
        %s596 = scalar_lea.vmem [#allocation2], %s595
        // Predicated region
        $region97: #{tpu_custom_call.1} parent=95 // pred_check
          %p597 = pneg %p56
        $region98: #{tpu_custom_call.1} parent=95 // pred_check_branch
          %599 = sbr.rel (%p597) target = $region100
        $region99: #{tpu_custom_call.1} parent=95 // pred_region
          %600 = dma.done %s593, 512
        $region100: #{tpu_custom_call.1} parent=95 // pred_fallthru
          _
        // Predicated region
        $region101: #{tpu_custom_call.1} parent=95 // pred_check
          %p601 = pneg %p77
        $region102: #{tpu_custom_call.1} parent=95 // pred_check_branch
          %603 = sbr.rel (%p601) target = $region104
        $region103: #{tpu_custom_call.1} parent=95 // pred_region
          %604 = dma.done [#allocation5], 512
        $region104: #{tpu_custom_call.1} parent=95 // pred_fallthru
          _
        // Predicated region
        $region105: #{tpu_custom_call.1} parent=95 // pred_check
          %p605 = pneg %p119
        $region106: #{tpu_custom_call.1} parent=95 // pred_check_branch
          %607 = sbr.rel (%p605) target = $region108
        $region107: #{tpu_custom_call.1} parent=95 // pred_region
          %608 = dma.done [#allocation5], 1024
        $region108: #{tpu_custom_call.1} parent=95 // pred_fallthru
          _
        // Predicated region
        $region109: #{tpu_custom_call.1} parent=95 // pred_check
          %p609 = pneg %p329
        $region110: #{tpu_custom_call.1} parent=95 // pred_check_branch
          %611 = sbr.rel (%p609) target = $region112
        $region111: #{tpu_custom_call.1} parent=95 // pred_region
          %612 = dma.done [#allocation8], 1024
        $region112: #{tpu_custom_call.1} parent=95 // pred_fallthru
          _
        %s613 = sand.u32 %s43, 1
        %s614 = scalar_lea.sflag [#allocation3], %s613
        %s615 = sand.u32 %s43, 1
        %s616 = smul.addr %s615, 32
        %s617 = scalar_lea.vmem [#allocation2], %s616
        %p618 = pneg %p56
        %p619 = pneg %p53
        %p620 = pneg %p77
        %p621 = pneg %p74
        %p622 = pneg %p98
        %p623 = pneg %p95
        %p624 = pneg %p119
        %p625 = pneg %p116
        %p626 = pneg %p140
        %p627 = pneg %p137
        %p628 = pneg %p161
        %p629 = pneg %p158
        %p630 = pneg %p182
        %p631 = pneg %p179
        %p632 = pneg %p203
        %p633 = pneg %p200
        %p634 = pneg %p224
        %p635 = pneg %p221
        %p636 = pneg %p245
        %p637 = pneg %p242
        %p638 = pneg %p266
        %p639 = pneg %p263
        %p640 = pneg %p287
        %p641 = pneg %p284
        %p642 = pneg %p308
        %p643 = pneg %p305
        %p644 = pneg %p329
        %p645 = pneg %p326
        %p646 = pneg %p350
        %p647 = pneg %p347
        %p648 = pneg %p371
        %p649 = pneg %p368
        %p650 = pneg %p392
        %p651 = pneg %p389
        %p652 = pneg %p413
        %p653 = pneg %p410
        %p654 = pneg %p434
        %p655 = pneg %p431
        %p656 = pneg %p460
        %p657 = pneg %p457
        %p658 = scmp.lt.s32.totalorder %s35, 1
        %s659 = scalar_select %p658, %s35, 1
        %s660 = smul.addr %s659, 3
        %s661 = smul.addr %s660, 8
        %s662 = scalar_lea.vmem %s19, %s661
        %s663 = smul.u32 2, %s35
        %p664 = scmp.lt.s32.totalorder %s35, 1
        %s665 = scalar_select %p664, %s35, 1
        %s666 = smul.addr %s665, 3
        %s667 = smul.addr %s666, 8
        %s668 = scalar_lea.vmem %s19, %s667
        %v669 = vld [vmem:[%s596] sm:$0xff]
        %v670 = vld [vmem:[%s596 + $0x8] sm:$0xff]
        %673 = vrot.lane.b32.xlu0 %v669, 127
        %v674 = vpop.permute.xlu0 %673
        %675 = vrot.lane.b32.xlu0 %v670, 127
        %v676 = vpop.permute.xlu0 %675
        %679 = vrot.lane.b32.xlu0 %v669, 126
        %v680 = vpop.permute.xlu0 %679
        %681 = vrot.lane.b32.xlu0 %v670, 126
        %v682 = vpop.permute.xlu0 %681
        %v685 = vld [vmem:[#allocation4] sm:$0xff]
        %v686 = vld [vmem:[#allocation4 + $0x8] sm:$0xff]
        %v687 = vld [vmem:[#allocation4 + $0x10] sm:$0xff]
        %v688 = vld [vmem:[#allocation4 + $0x18] sm:$0xff]
        %v689 = vld [vmem:[%s2] sm:$0xff]
        %v690 = vld [vmem:[%s2 + $0x8] sm:$0xff]
        %v691 = vld [vmem:[%s2 + $0x10] sm:$0xff]
        %v692 = vld [vmem:[%s2 + $0x18] sm:$0xff]
        %694 = vset.pattern.permute.xlu0 0
        %695 = vperm.xlu0 %694, %v689
        %v696 = vpop.permute.xlu0 %695
        %699 = vset.pattern.permute.xlu0 0
        %700 = vperm.xlu0 %699, %v690
        %v701 = vpop.permute.xlu0 %700
        %704 = vset.pattern.permute.xlu0 0
        %705 = vperm.xlu0 %704, %v691
        %v706 = vpop.permute.xlu0 %705
        %709 = vset.pattern.permute.xlu0 0
        %710 = vperm.xlu0 %709, %v692
        %v711 = vpop.permute.xlu0 %710
        %vm713 = vcmask 392192
        %v715 = vsel %vm713, %v685, 0
        %v718 = vsel %vm713, %v686, 0
        %v721 = vsel %vm713, %v687, 0
        %v724 = vsel %vm713, %v688, 0
        %726 = vmatprep.subr.mxu0 0.0
        %727 = vmatpush1.msra.mxu0 %v669
        %728 = vmatprep.subr.mxu0 0.0
        %729 = vmatpush1.msra.mxu0 %v670
        %730 = vmatprep.subr.mxu0 0.0
        %731 = vmatpush1.msra.mxu0 %v674
        %732 = vmatprep.subr.mxu0 0.0
        %733 = vmatpush1.msra.mxu0 %v676
        %734 = vmatprep.subr.mxu0 0.0
        %735 = vmatpush1.msra.mxu0 %v680
        %736 = vmatprep.subr.mxu0 0.0
        %737 = vmatpush1.msra.mxu0 %v682
        %738 = vmatprep.subr.mxu0 0.0
        %739 = vmatpush1.msra.mxu0 0.0
        %740 = vmatprep.subr.mxu0 0.0
        %741 = vmatpush1.msra.mxu0 0.0
        %742 = vmatprep.subr.mxu0 0.0
        %743 = vmatpush1.msra.mxu0 0.0
        %744 = vmatprep.subr.mxu0 0.0
        %745 = vmatpush1.msra.mxu0 0.0
        %746 = vmatprep.subr.mxu0 0.0
        %747 = vmatpush1.msra.mxu0 0.0
        %748 = vmatprep.subr.mxu0 0.0
        %749 = vmatpush1.msra.mxu0 0.0
        %750 = vmatprep.subr.mxu0 0.0
        %751 = vmatpush1.msra.mxu0 0.0
        %752 = vmatprep.subr.mxu0 0.0
        %753 = vmatpush1.msra.mxu0 0.0
        %754 = vmatprep.subr.mxu0 0.0
        %755 = vmatpush1.msra.mxu0 0.0
        %756 = vmatprep.subr.mxu0 0.0
        %757 = vmatpush1.msra.mxu0 0.0
        %758 = vmatprep.subr.mxu0 0.0
        %759 = vmatpush1.msra.mxu0 0.0
        %760 = vmatprep.subr.mxu0 0.0
        %761 = vmatpush1.msra.mxu0 0.0
        %762 = vmatprep.subr.mxu0 0.0
        %763 = vmatpush1.msra.mxu0 0.0
        %764 = vmatprep.subr.mxu0 0.0
        %765 = vmatpush1.msra.mxu0 0.0
        %766 = vmatprep.subr.mxu0 0.0
        %767 = vmatpush1.msra.mxu0 0.0
        %768 = vmatprep.subr.mxu0 0.0
        %769 = vmatpush1.msra.mxu0 0.0
        %770 = vmatprep.subr.mxu0 0.0
        %771 = vmatpush1.msra.mxu0 0.0
        %772 = vmatprep.subr.mxu0 0.0
        %773 = vmatpush1.msra.mxu0 0.0
        %774 = vmatprep.subr.mxu0 0.0
        %775 = vmatpush1.msra.mxu0 0.0
        %776 = vmatprep.subr.mxu0 0.0
        %777 = vmatpush1.msra.mxu0 0.0
        %778 = vmatprep.subr.mxu0 0.0
        %779 = vmatpush1.msra.mxu0 0.0
        %780 = vmatprep.subr.mxu0 0.0
        %781 = vmatpush1.msra.mxu0 0.0
        %782 = vmatprep.subr.mxu0 0.0
        %783 = vmatpush1.msra.mxu0 0.0
        %784 = vmatprep.subr.mxu0 0.0
        %785 = vmatpush1.msra.mxu0 0.0
        %786 = vmatprep.subr.mxu0 0.0
        %787 = vmatpush1.msra.mxu0 0.0
        %788 = vmatprep.subr.mxu0 0.0
        %789 = vmatpush1.msra.mxu0 0.0
        %790 = vmatprep.mubr.f32.mxu0 0.0
        %791 = vmatmul.mubr.f32.gmra.mrb[0].mxu0 %v715
        %v792 = vpop.f32.mrb[0].mxu0
        %v793 = vadd.f32 %v696, %v792
        %v794 = vpop.f32.mrb[0].mxu0
        %795 = vmatprep.mubr.f32.mxu0 0.0
        %796 = vmatmul.mubr.f32.gmra.mrb[0].mxu0 %v718
        %v797 = vpop.f32.mrb[0].mxu0
        %v798 = vadd.f32 %v701, %v797
        %v799 = vpop.f32.mrb[0].mxu0
        %800 = vmatprep.mubr.f32.mxu0 0.0
        %801 = vmatmul.mubr.f32.gmra.mrb[0].mxu0 %v721
        %v802 = vpop.f32.mrb[0].mxu0
        %v803 = vadd.f32 %v706, %v802
        %v804 = vpop.f32.mrb[0].mxu0
        %805 = vmatprep.mubr.f32.mxu0 0.0
        %806 = vmatmul.mubr.f32.gmra.mrb[0].mxu0 %v724
        %v807 = vpop.f32.mrb[0].mxu0
        %v808 = vadd.f32 %v711, %v807
        %v809 = vpop.f32.mrb[0].mxu0
        %810 = vdwg.mxu0
        %v811 = vmax.f32 %v793, 0.0
        %v812 = vmax.f32 %v798, 0.0
        %v813 = vmax.f32 %v803, 0.0
        %v814 = vmax.f32 %v808, 0.0
        %819 = vrot.lane.b32.xlu0 %v811, 127
        %v820 = vpop.permute.xlu0 %819
        %821 = vrot.lane.b32.xlu0 %v812, 127
        %v822 = vpop.permute.xlu0 %821
        %823 = vrot.lane.b32.xlu0 %v813, 127
        %v824 = vpop.permute.xlu0 %823
        %825 = vrot.lane.b32.xlu0 %v814, 127
        %v826 = vpop.permute.xlu0 %825
        %831 = vrot.lane.b32.xlu0 %v811, 126
        %v832 = vpop.permute.xlu0 %831
        %833 = vrot.lane.b32.xlu0 %v812, 126
        %v834 = vpop.permute.xlu0 %833
        %835 = vrot.lane.b32.xlu0 %v813, 126
        %v836 = vpop.permute.xlu0 %835
        %837 = vrot.lane.b32.xlu0 %v814, 126
        %v838 = vpop.permute.xlu0 %837
        %v843 = vld [vmem:[#allocation6] sm:$0xff]
        %v844 = vld [vmem:[#allocation6 + $0x8] sm:$0xff]
        %v845 = vld [vmem:[#allocation6 + $0x10] sm:$0xff]
        %v846 = vld [vmem:[#allocation6 + $0x18] sm:$0xff]
        %v847 = vld [vmem:[#allocation6 + $0x20] sm:$0xff]
        %v848 = vld [vmem:[#allocation6 + $0x28] sm:$0xff]
        %v849 = vld [vmem:[#allocation6 + $0x30] sm:$0xff]
        %v850 = vld [vmem:[#allocation6 + $0x38] sm:$0xff]
        %v851 = vld [vmem:[%s4] sm:$0xff]
        %v852 = vld [vmem:[%s4 + $0x8] sm:$0xff]
        %v853 = vld [vmem:[%s4 + $0x10] sm:$0xff]
        %v854 = vld [vmem:[%s4 + $0x18] sm:$0xff]
        %v855 = vld [vmem:[%s4 + $0x20] sm:$0xff]
        %v856 = vld [vmem:[%s4 + $0x28] sm:$0xff]
        %v857 = vld [vmem:[%s4 + $0x30] sm:$0xff]
        %v858 = vld [vmem:[%s4 + $0x38] sm:$0xff]
        %860 = vset.pattern.permute.xlu0 0
        %861 = vperm.xlu0 %860, %v851
        %v862 = vpop.permute.xlu0 %861
        %865 = vset.pattern.permute.xlu0 0
        %866 = vperm.xlu0 %865, %v852
        %v867 = vpop.permute.xlu0 %866
        %870 = vset.pattern.permute.xlu0 0
        %871 = vperm.xlu0 %870, %v853
        %v872 = vpop.permute.xlu0 %871
        %875 = vset.pattern.permute.xlu0 0
        %876 = vperm.xlu0 %875, %v854
        %v877 = vpop.permute.xlu0 %876
        %880 = vset.pattern.permute.xlu0 0
        %881 = vperm.xlu0 %880, %v855
        %v882 = vpop.permute.xlu0 %881
        %885 = vset.pattern.permute.xlu0 0
        %886 = vperm.xlu0 %885, %v856
        %v887 = vpop.permute.xlu0 %886
        %890 = vset.pattern.permute.xlu0 0
        %891 = vperm.xlu0 %890, %v857
        %v892 = vpop.permute.xlu0 %891
        %895 = vset.pattern.permute.xlu0 0
        %896 = vperm.xlu0 %895, %v858
        %v897 = vpop.permute.xlu0 %896
        %vm899 = vcmask 785408
        %v901 = vsel %vm899, %v843, 0
        %v904 = vsel %vm899, %v844, 0
        %v907 = vsel %vm899, %v845, 0
        %v910 = vsel %vm899, %v846, 0
        %v913 = vsel %vm899, %v847, 0
        %v916 = vsel %vm899, %v848, 0
        %v919 = vsel %vm899, %v849, 0
        %v922 = vsel %vm899, %v850, 0
        %924 = vmatprep.subr.mxu0 0.0
        %925 = vmatpush1.msra.mxu0 %v811
        %926 = vmatprep.subr.mxu0 0.0
        %927 = vmatpush1.msra.mxu0 %v812
        %928 = vmatprep.subr.mxu0 0.0
        %929 = vmatpush1.msra.mxu0 %v813
        %930 = vmatprep.subr.mxu0 0.0
        %931 = vmatpush1.msra.mxu0 %v814
        %932 = vmatprep.subr.mxu0 0.0
        %933 = vmatpush1.msra.mxu0 %v820
        %934 = vmatprep.subr.mxu0 0.0
        %935 = vmatpush1.msra.mxu0 %v822
        %936 = vmatprep.subr.mxu0 0.0
        %937 = vmatpush1.msra.mxu0 %v824
        %938 = vmatprep.subr.mxu0 0.0
        %939 = vmatpush1.msra.mxu0 %v826
        %940 = vmatprep.subr.mxu0 0.0
        %941 = vmatpush1.msra.mxu0 %v832
        %942 = vmatprep.subr.mxu0 0.0
        %943 = vmatpush1.msra.mxu0 %v834
        %944 = vmatprep.subr.mxu0 0.0
        %945 = vmatpush1.msra.mxu0 %v836
        %946 = vmatprep.subr.mxu0 0.0
        %947 = vmatpush1.msra.mxu0 %v838
        %948 = vmatprep.subr.mxu0 0.0
        %949 = vmatpush1.msra.mxu0 0.0
        %950 = vmatprep.subr.mxu0 0.0
        %951 = vmatpush1.msra.mxu0 0.0
        %952 = vmatprep.subr.mxu0 0.0
        %953 = vmatpush1.msra.mxu0 0.0
        %954 = vmatprep.subr.mxu0 0.0
        %955 = vmatpush1.msra.mxu0 0.0
        %956 = vmatprep.subr.mxu0 0.0
        %957 = vmatpush1.msra.mxu0 0.0
        %958 = vmatprep.subr.mxu0 0.0
        %959 = vmatpush1.msra.mxu0 0.0
        %960 = vmatprep.subr.mxu0 0.0
        %961 = vmatpush1.msra.mxu0 0.0
        %962 = vmatprep.subr.mxu0 0.0
        %963 = vmatpush1.msra.mxu0 0.0
        %964 = vmatprep.subr.mxu0 0.0
        %965 = vmatpush1.msra.mxu0 0.0
        %966 = vmatprep.subr.mxu0 0.0
        %967 = vmatpush1.msra.mxu0 0.0
        %968 = vmatprep.subr.mxu0 0.0
        %969 = vmatpush1.msra.mxu0 0.0
        %970 = vmatprep.subr.mxu0 0.0
        %971 = vmatpush1.msra.mxu0 0.0
        %972 = vmatprep.subr.mxu0 0.0
        %973 = vmatpush1.msra.mxu0 0.0
        %974 = vmatprep.subr.mxu0 0.0
        %975 = vmatpush1.msra.mxu0 0.0
        %976 = vmatprep.subr.mxu0 0.0
        %977 = vmatpush1.msra.mxu0 0.0
        %978 = vmatprep.subr.mxu0 0.0
        %979 = vmatpush1.msra.mxu0 0.0
        %980 = vmatprep.subr.mxu0 0.0
        %981 = vmatpush1.msra.mxu0 0.0
        %982 = vmatprep.subr.mxu0 0.0
        %983 = vmatpush1.msra.mxu0 0.0
        %984 = vmatprep.subr.mxu0 0.0
        %985 = vmatpush1.msra.mxu0 0.0
        %986 = vmatprep.subr.mxu0 0.0
        %987 = vmatpush1.msra.mxu0 0.0
        %988 = vmatprep.mubr.f32.mxu0 0.0
        %989 = vmatmul.mubr.f32.gmra.mrb[0].mxu0 %v901
        %v990 = vpop.f32.mrb[0].mxu0
        %v991 = vadd.f32 %v862, %v990
        %v992 = vpop.f32.mrb[0].mxu0
        %993 = vmatprep.mubr.f32.mxu0 0.0
        %994 = vmatmul.mubr.f32.gmra.mrb[0].mxu0 %v904
        %v995 = vpop.f32.mrb[0].mxu0
        %v996 = vadd.f32 %v867, %v995
        %v997 = vpop.f32.mrb[0].mxu0
        %998 = vmatprep.mubr.f32.mxu0 0.0
        %999 = vmatmul.mubr.f32.gmra.mrb[0].mxu0 %v907
        %v1000 = vpop.f32.mrb[0].mxu0
        %v1001 = vadd.f32 %v872, %v1000
        %v1002 = vpop.f32.mrb[0].mxu0
        %1003 = vmatprep.mubr.f32.mxu0 0.0
        %1004 = vmatmul.mubr.f32.gmra.mrb[0].mxu0 %v910
        %v1005 = vpop.f32.mrb[0].mxu0
        %v1006 = vadd.f32 %v877, %v1005
        %v1007 = vpop.f32.mrb[0].mxu0
        %1008 = vmatprep.mubr.f32.mxu0 0.0
        %1009 = vmatmul.mubr.f32.gmra.mrb[0].mxu0 %v913
        %v1010 = vpop.f32.mrb[0].mxu0
        %v1011 = vadd.f32 %v882, %v1010
        %v1012 = vpop.f32.mrb[0].mxu0
        %1013 = vmatprep.mubr.f32.mxu0 0.0
        %1014 = vmatmul.mubr.f32.gmra.mrb[0].mxu0 %v916
        %v1015 = vpop.f32.mrb[0].mxu0
        %v1016 = vadd.f32 %v887, %v1015
        %v1017 = vpop.f32.mrb[0].mxu0
        %1018 = vmatprep.mubr.f32.mxu0 0.0
        %1019 = vmatmul.mubr.f32.gmra.mrb[0].mxu0 %v919
        %v1020 = vpop.f32.mrb[0].mxu0
        %v1021 = vadd.f32 %v892, %v1020
        %v1022 = vpop.f32.mrb[0].mxu0
        %1023 = vmatprep.mubr.f32.mxu0 0.0
        %1024 = vmatmul.mubr.f32.gmra.mrb[0].mxu0 %v922
        %v1025 = vpop.f32.mrb[0].mxu0
        %v1026 = vadd.f32 %v897, %v1025
        %v1027 = vpop.f32.mrb[0].mxu0
        %1028 = vdwg.mxu0
        %v1029 = vmax.f32 %v991, 0.0
        %v1030 = vmax.f32 %v996, 0.0
        %v1031 = vmax.f32 %v1001, 0.0
        %v1032 = vmax.f32 %v1006, 0.0
        %v1033 = vmax.f32 %v1011, 0.0
        %v1034 = vmax.f32 %v1016, 0.0
        %v1035 = vmax.f32 %v1021, 0.0
        %v1036 = vmax.f32 %v1026, 0.0
        %v1037 = vld [vmem:[%s15] sm:$0xff]
        %v1038 = vld [vmem:[%s15 + $0x8] sm:$0xff]
        %v1039 = vld [vmem:[%s15 + $0x10] sm:$0xff]
        %v1040 = vld [vmem:[%s15 + $0x18] sm:$0xff]
        %v1041 = vld [vmem:[%s15 + $0x20] sm:$0xff]
        %v1042 = vld [vmem:[%s15 + $0x28] sm:$0xff]
        %v1043 = vld [vmem:[%s15 + $0x30] sm:$0xff]
        %v1044 = vld [vmem:[%s15 + $0x38] sm:$0xff]
        %v1045 = vld [vmem:[%s15 + $0x40] sm:$0xff]
        %v1046 = vld [vmem:[%s15 + $0x48] sm:$0xff]
        %v1047 = vld [vmem:[%s15 + $0x50] sm:$0xff]
        %v1048 = vld [vmem:[%s15 + $0x58] sm:$0xff]
        %v1050 = vsel %vm899, %v1029, 0
        %v1053 = vsel %vm899, %v1030, 0
        %v1056 = vsel %vm899, %v1031, 0
        %v1059 = vsel %vm899, %v1032, 0
        %v1062 = vsel %vm899, %v1033, 0
        %v1065 = vsel %vm899, %v1034, 0
        %v1068 = vsel %vm899, %v1035, 0
        %v1071 = vsel %vm899, %v1036, 0
        %1073 = vmatprep.subr.mxu0 0.0
        %1074 = vmatpush1.msra.mxu0 %v1037
        %1075 = vmatprep.subr.mxu0 0.0
        %1076 = vmatpush1.msra.mxu0 %v1038
        %1077 = vmatprep.subr.mxu0 0.0
        %1078 = vmatpush1.msra.mxu0 %v1039
        %1079 = vmatprep.subr.mxu0 0.0
        %1080 = vmatpush1.msra.mxu0 %v1040
        %1081 = vmatprep.subr.mxu0 0.0
        %1082 = vmatpush1.msra.mxu0 %v1041
        %1083 = vmatprep.subr.mxu0 0.0
        %1084 = vmatpush1.msra.mxu0 %v1042
        %1085 = vmatprep.subr.mxu0 0.0
        %1086 = vmatpush1.msra.mxu0 %v1043
        %1087 = vmatprep.subr.mxu0 0.0
        %1088 = vmatpush1.msra.mxu0 %v1044
        %1089 = vmatprep.subr.mxu0 0.0
        %1090 = vmatpush1.msra.mxu0 %v1045
        %1091 = vmatprep.subr.mxu0 0.0
        %1092 = vmatpush1.msra.mxu0 %v1046
        %1093 = vmatprep.subr.mxu0 0.0
        %1094 = vmatpush1.msra.mxu0 %v1047
        %1095 = vmatprep.subr.mxu0 0.0
        %1096 = vmatpush1.msra.mxu0 %v1048
        %1097 = vmatprep.subr.mxu0 0.0
        %1098 = vmatpush1.msra.mxu0 0.0
        %1099 = vmatprep.subr.mxu0 0.0
        %1100 = vmatpush1.msra.mxu0 0.0
        %1101 = vmatprep.subr.mxu0 0.0
        %1102 = vmatpush1.msra.mxu0 0.0
        %1103 = vmatprep.subr.mxu0 0.0
        %1104 = vmatpush1.msra.mxu0 0.0
        %1105 = vmatprep.subr.mxu0 0.0
        %1106 = vmatpush1.msra.mxu0 0.0
        %1107 = vmatprep.subr.mxu0 0.0
        %1108 = vmatpush1.msra.mxu0 0.0
        %1109 = vmatprep.subr.mxu0 0.0
        %1110 = vmatpush1.msra.mxu0 0.0
        %1111 = vmatprep.subr.mxu0 0.0
        %1112 = vmatpush1.msra.mxu0 0.0
        %1113 = vmatprep.subr.mxu0 0.0
        %1114 = vmatpush1.msra.mxu0 0.0
        %1115 = vmatprep.subr.mxu0 0.0
        %1116 = vmatpush1.msra.mxu0 0.0
        %1117 = vmatprep.subr.mxu0 0.0
        %1118 = vmatpush1.msra.mxu0 0.0
        %1119 = vmatprep.subr.mxu0 0.0
        %1120 = vmatpush1.msra.mxu0 0.0
        %1121 = vmatprep.subr.mxu0 0.0
        %1122 = vmatpush1.msra.mxu0 0.0
        %1123 = vmatprep.subr.mxu0 0.0
        %1124 = vmatpush1.msra.mxu0 0.0
        %1125 = vmatprep.subr.mxu0 0.0
        %1126 = vmatpush1.msra.mxu0 0.0
        %1127 = vmatprep.subr.mxu0 0.0
        %1128 = vmatpush1.msra.mxu0 0.0
        %1129 = vmatprep.subr.mxu0 0.0
        %1130 = vmatpush1.msra.mxu0 0.0
        %1131 = vmatprep.subr.mxu0 0.0
        %1132 = vmatpush1.msra.mxu0 0.0
        %1133 = vmatprep.subr.mxu0 0.0
        %1134 = vmatpush1.msra.mxu0 0.0
        %1135 = vmatprep.subr.mxu0 0.0
        %1136 = vmatpush1.msra.mxu0 0.0
        %1137 = vmatprep.mubr.f32.mxu0 0.0
        %1138 = vmatmul.mubr.f32.gmra.mrb[0].mxu0 %v1050
        %v1139 = vpop.f32.mrb[0].mxu0
        %v1140 = vadd.f32 0.0, %v1139
        %v1141 = vpop.f32.mrb[0].mxu0
        %1142 = vmatprep.mubr.f32.mxu0 0.0
        %1143 = vmatmul.mubr.f32.gmra.mrb[0].mxu0 %v1053
        %v1144 = vpop.f32.mrb[0].mxu0
        %v1145 = vadd.f32 0.0, %v1144
        %v1146 = vpop.f32.mrb[0].mxu0
        %1147 = vmatprep.mubr.f32.mxu0 0.0
        %1148 = vmatmul.mubr.f32.gmra.mrb[0].mxu0 %v1056
        %v1149 = vpop.f32.mrb[0].mxu0
        %v1150 = vadd.f32 0.0, %v1149
        %v1151 = vpop.f32.mrb[0].mxu0
        %1152 = vmatprep.mubr.f32.mxu0 0.0
        %1153 = vmatmul.mubr.f32.gmra.mrb[0].mxu0 %v1059
        %v1154 = vpop.f32.mrb[0].mxu0
        %v1155 = vadd.f32 0.0, %v1154
        %v1156 = vpop.f32.mrb[0].mxu0
        %1157 = vmatprep.mubr.f32.mxu0 0.0
        %1158 = vmatmul.mubr.f32.gmra.mrb[0].mxu0 %v1062
        %v1159 = vpop.f32.mrb[0].mxu0
        %v1160 = vadd.f32 0.0, %v1159
        %v1161 = vpop.f32.mrb[0].mxu0
        %1162 = vmatprep.mubr.f32.mxu0 0.0
        %1163 = vmatmul.mubr.f32.gmra.mrb[0].mxu0 %v1065
        %v1164 = vpop.f32.mrb[0].mxu0
        %v1165 = vadd.f32 0.0, %v1164
        %v1166 = vpop.f32.mrb[0].mxu0
        %1167 = vmatprep.mubr.f32.mxu0 0.0
        %1168 = vmatmul.mubr.f32.gmra.mrb[0].mxu0 %v1068
        %v1169 = vpop.f32.mrb[0].mxu0
        %v1170 = vadd.f32 0.0, %v1169
        %v1171 = vpop.f32.mrb[0].mxu0
        %1172 = vmatprep.mubr.f32.mxu0 0.0
        %1173 = vmatmul.mubr.f32.gmra.mrb[0].mxu0 %v1071
        %v1174 = vpop.f32.mrb[0].mxu0
        %v1175 = vadd.f32 0.0, %v1174
        %v1176 = vpop.f32.mrb[0].mxu0
        %1177 = vdwg.mxu0
        %1186 = vrot.lane.b32.xlu0 %v1140, 127
        %v1187 = vpop.permute.xlu0 %1186
        %1188 = vrot.lane.b32.xlu0 %v1145, 127
        %v1189 = vpop.permute.xlu0 %1188
        %1190 = vrot.lane.b32.xlu0 %v1150, 127
        %v1191 = vpop.permute.xlu0 %1190
        %1192 = vrot.lane.b32.xlu0 %v1155, 127
        %v1193 = vpop.permute.xlu0 %1192
        %1194 = vrot.lane.b32.xlu0 %v1160, 127
        %v1195 = vpop.permute.xlu0 %1194
        %1196 = vrot.lane.b32.xlu0 %v1165, 127
        %v1197 = vpop.permute.xlu0 %1196
        %1198 = vrot.lane.b32.xlu0 %v1170, 127
        %v1199 = vpop.permute.xlu0 %1198
        %1200 = vrot.lane.b32.xlu0 %v1175, 127
        %v1201 = vpop.permute.xlu0 %1200
        %1210 = vrot.lane.b32.xlu0 %v1140, 126
        %v1211 = vpop.permute.xlu0 %1210
        %1212 = vrot.lane.b32.xlu0 %v1145, 126
        %v1213 = vpop.permute.xlu0 %1212
        %1214 = vrot.lane.b32.xlu0 %v1150, 126
        %v1215 = vpop.permute.xlu0 %1214
        %1216 = vrot.lane.b32.xlu0 %v1155, 126
        %v1217 = vpop.permute.xlu0 %1216
        %1218 = vrot.lane.b32.xlu0 %v1160, 126
        %v1219 = vpop.permute.xlu0 %1218
        %1220 = vrot.lane.b32.xlu0 %v1165, 126
        %v1221 = vpop.permute.xlu0 %1220
        %1222 = vrot.lane.b32.xlu0 %v1170, 126
        %v1223 = vpop.permute.xlu0 %1222
        %1224 = vrot.lane.b32.xlu0 %v1175, 126
        %v1225 = vpop.permute.xlu0 %1224
        %v1234 = vld [vmem:[%s5] sm:$0xff]
        %v1235 = vld [vmem:[%s5 + $0x8] sm:$0xff]
        %v1236 = vld [vmem:[%s5 + $0x10] sm:$0xff]
        %v1237 = vld [vmem:[%s5 + $0x18] sm:$0xff]
        %v1238 = vld [vmem:[%s5 + $0x20] sm:$0xff]
        %v1239 = vld [vmem:[%s5 + $0x28] sm:$0xff]
        %v1240 = vld [vmem:[%s5 + $0x30] sm:$0xff]
        %v1241 = vld [vmem:[%s5 + $0x38] sm:$0xff]
        %v1242 = vld [vmem:[%s5 + $0x40] sm:$0xff]
        %v1243 = vld [vmem:[%s5 + $0x48] sm:$0xff]
        %v1244 = vld [vmem:[%s5 + $0x50] sm:$0xff]
        %v1245 = vld [vmem:[%s5 + $0x58] sm:$0xff]
        %v1246 = vld [vmem:[%s5 + $0x60] sm:$0xff]
        %v1247 = vld [vmem:[%s5 + $0x68] sm:$0xff]
        %v1248 = vld [vmem:[%s5 + $0x70] sm:$0xff]
        %v1249 = vld [vmem:[%s5 + $0x78] sm:$0xff]
        %v1250 = vld [vmem:[%s5 + $0x80] sm:$0xff]
        %v1251 = vld [vmem:[%s5 + $0x88] sm:$0xff]
        %v1252 = vld [vmem:[%s5 + $0x90] sm:$0xff]
        %v1253 = vld [vmem:[%s5 + $0x98] sm:$0xff]
        %v1254 = vld [vmem:[%s5 + $0xa0] sm:$0xff]
        %v1255 = vld [vmem:[%s5 + $0xa8] sm:$0xff]
        %v1256 = vld [vmem:[%s5 + $0xb0] sm:$0xff]
        %v1257 = vld [vmem:[%s5 + $0xb8] sm:$0xff]
        %v1258 = vld [vmem:[%s5 + $0xc0] sm:$0xff]
        %v1259 = vld [vmem:[%s5 + $0xc8] sm:$0xff]
        %v1260 = vld [vmem:[%s5 + $0xd0] sm:$0xff]
        %v1261 = vld [vmem:[%s5 + $0xd8] sm:$0xff]
        %v1262 = vld [vmem:[%s5 + $0xe0] sm:$0xff]
        %v1263 = vld [vmem:[%s5 + $0xe8] sm:$0xff]
        %v1264 = vld [vmem:[%s6] sm:$0xff]
        %v1265 = vld [vmem:[%s6 + $0x8] sm:$0xff]
        %v1266 = vld [vmem:[%s6 + $0x10] sm:$0xff]
        %v1267 = vld [vmem:[%s6 + $0x18] sm:$0xff]
        %v1268 = vld [vmem:[%s6 + $0x20] sm:$0xff]
        %v1269 = vld [vmem:[%s6 + $0x28] sm:$0xff]
        %v1270 = vld [vmem:[%s6 + $0x30] sm:$0xff]
        %v1271 = vld [vmem:[%s6 + $0x38] sm:$0xff]
        %v1272 = vld [vmem:[%s6 + $0x40] sm:$0xff]
        %v1273 = vld [vmem:[%s6 + $0x48] sm:$0xff]
        %v1274 = vld [vmem:[%s6 + $0x50] sm:$0xff]
        %v1275 = vld [vmem:[%s6 + $0x58] sm:$0xff]
        %v1276 = vld [vmem:[%s6 + $0x60] sm:$0xff]
        %v1277 = vld [vmem:[%s6 + $0x68] sm:$0xff]
        %v1278 = vld [vmem:[%s6 + $0x70] sm:$0xff]
        %1280 = vset.pattern.permute.xlu0 0
        %1281 = vperm.xlu0 %1280, %v1264
        %v1282 = vpop.permute.xlu0 %1281
        %1285 = vset.pattern.permute.xlu0 0
        %1286 = vperm.xlu0 %1285, %v1265
        %v1287 = vpop.permute.xlu0 %1286
        %1290 = vset.pattern.permute.xlu0 0
        %1291 = vperm.xlu0 %1290, %v1266
        %v1292 = vpop.permute.xlu0 %1291
        %1295 = vset.pattern.permute.xlu0 0
        %1296 = vperm.xlu0 %1295, %v1267
        %v1297 = vpop.permute.xlu0 %1296
        %1300 = vset.pattern.permute.xlu0 0
        %1301 = vperm.xlu0 %1300, %v1268
        %v1302 = vpop.permute.xlu0 %1301
        %1305 = vset.pattern.permute.xlu0 0
        %1306 = vperm.xlu0 %1305, %v1269
        %v1307 = vpop.permute.xlu0 %1306
        %1310 = vset.pattern.permute.xlu0 0
        %1311 = vperm.xlu0 %1310, %v1270
        %v1312 = vpop.permute.xlu0 %1311
        %1315 = vset.pattern.permute.xlu0 0
        %1316 = vperm.xlu0 %1315, %v1271
        %v1317 = vpop.permute.xlu0 %1316
        %1320 = vset.pattern.permute.xlu0 0
        %1321 = vperm.xlu0 %1320, %v1272
        %v1322 = vpop.permute.xlu0 %1321
        %1325 = vset.pattern.permute.xlu0 0
        %1326 = vperm.xlu0 %1325, %v1273
        %v1327 = vpop.permute.xlu0 %1326
        %1330 = vset.pattern.permute.xlu0 0
        %1331 = vperm.xlu0 %1330, %v1274
        %v1332 = vpop.permute.xlu0 %1331
        %1335 = vset.pattern.permute.xlu0 0
        %1336 = vperm.xlu0 %1335, %v1275
        %v1337 = vpop.permute.xlu0 %1336
        %1340 = vset.pattern.permute.xlu0 0
        %1341 = vperm.xlu0 %1340, %v1276
        %v1342 = vpop.permute.xlu0 %1341
        %1345 = vset.pattern.permute.xlu0 0
        %1346 = vperm.xlu0 %1345, %v1277
        %v1347 = vpop.permute.xlu0 %1346
        %1350 = vset.pattern.permute.xlu0 0
        %1351 = vperm.xlu0 %1350, %v1278
        %v1352 = vpop.permute.xlu0 %1351
        %vm1354 = vcmask 523264
        %v1356 = vsel %vm1354, %v1235, 0
        %v1359 = vsel %vm1354, %v1237, 0
        %v1362 = vsel %vm1354, %v1239, 0
        %v1365 = vsel %vm1354, %v1241, 0
        %v1368 = vsel %vm1354, %v1243, 0
        %v1371 = vsel %vm1354, %v1245, 0
        %v1374 = vsel %vm1354, %v1247, 0
        %v1377 = vsel %vm1354, %v1249, 0
        %v1380 = vsel %vm1354, %v1251, 0
        %v1383 = vsel %vm1354, %v1253, 0
        %v1386 = vsel %vm1354, %v1255, 0
        %v1389 = vsel %vm1354, %v1257, 0
        %v1392 = vsel %vm1354, %v1259, 0
        %v1395 = vsel %vm1354, %v1261, 0
        %v1398 = vsel %vm1354, %v1263, 0
        %1400 = vmatprep.subr.mxu0 0.0
        %1401 = vmatpush1.msra.mxu0 %v1140
        %1402 = vmatprep.subr.mxu0 0.0
        %1403 = vmatpush1.msra.mxu0 %v1145
        %1404 = vmatprep.subr.mxu0 0.0
        %1405 = vmatpush1.msra.mxu0 %v1150
        %1406 = vmatprep.subr.mxu0 0.0
        %1407 = vmatpush1.msra.mxu0 %v1155
        %1408 = vmatprep.subr.mxu0 0.0
        %1409 = vmatpush1.msra.mxu0 %v1160
        %1410 = vmatprep.subr.mxu0 0.0
        %1411 = vmatpush1.msra.mxu0 %v1165
        %1412 = vmatprep.subr.mxu0 0.0
        %1413 = vmatpush1.msra.mxu0 %v1170
        %1414 = vmatprep.subr.mxu0 0.0
        %1415 = vmatpush1.msra.mxu0 %v1175
        %1416 = vmatprep.subr.mxu0 0.0
        %1417 = vmatpush1.msra.mxu0 %v1187
        %1418 = vmatprep.subr.mxu0 0.0
        %1419 = vmatpush1.msra.mxu0 %v1189
        %1420 = vmatprep.subr.mxu0 0.0
        %1421 = vmatpush1.msra.mxu0 %v1191
        %1422 = vmatprep.subr.mxu0 0.0
        %1423 = vmatpush1.msra.mxu0 %v1193
        %1424 = vmatprep.subr.mxu0 0.0
        %1425 = vmatpush1.msra.mxu0 %v1195
        %1426 = vmatprep.subr.mxu0 0.0
        %1427 = vmatpush1.msra.mxu0 %v1197
        %1428 = vmatprep.subr.mxu0 0.0
        %1429 = vmatpush1.msra.mxu0 %v1199
        %1430 = vmatprep.subr.mxu0 0.0
        %1431 = vmatpush1.msra.mxu0 %v1201
        %1432 = vmatprep.subr.mxu0 0.0
        %1433 = vmatpush1.msra.mxu0 %v1211
        %1434 = vmatprep.subr.mxu0 0.0
        %1435 = vmatpush1.msra.mxu0 %v1213
        %1436 = vmatprep.subr.mxu0 0.0
        %1437 = vmatpush1.msra.mxu0 %v1215
        %1438 = vmatprep.subr.mxu0 0.0
        %1439 = vmatpush1.msra.mxu0 %v1217
        %1440 = vmatprep.subr.mxu0 0.0
        %1441 = vmatpush1.msra.mxu0 %v1219
        %1442 = vmatprep.subr.mxu0 0.0
        %1443 = vmatpush1.msra.mxu0 %v1221
        %1444 = vmatprep.subr.mxu0 0.0
        %1445 = vmatpush1.msra.mxu0 %v1223
        %1446 = vmatprep.subr.mxu0 0.0
        %1447 = vmatpush1.msra.mxu0 %v1225
        %1448 = vmatprep.subr.mxu0 0.0
        %1449 = vmatpush1.msra.mxu0 0.0
        %1450 = vmatprep.subr.mxu0 0.0
        %1451 = vmatpush1.msra.mxu0 0.0
        %1452 = vmatprep.subr.mxu0 0.0
        %1453 = vmatpush1.msra.mxu0 0.0
        %1454 = vmatprep.subr.mxu0 0.0
        %1455 = vmatpush1.msra.mxu0 0.0
        %1456 = vmatprep.subr.mxu0 0.0
        %1457 = vmatpush1.msra.mxu0 0.0
        %1458 = vmatprep.subr.mxu0 0.0
        %1459 = vmatpush1.msra.mxu0 0.0
        %1460 = vmatprep.subr.mxu0 0.0
        %1461 = vmatpush1.msra.mxu0 0.0
        %1462 = vmatprep.subr.mxu0 0.0
        %1463 = vmatpush1.msra.mxu0 0.0
        %1464 = vmatprep.mubr.f32.mxu0 %v1356
        %1465 = vmatmul.mubr.f32.gmra.mrb[0].mxu0 %v1234
        %v1466 = vpop.f32.mrb[0].mxu0
        %v1467 = vadd.f32 %v1282, %v1466
        %v1468 = vpop.f32.mrb[0].mxu0
        %1469 = vmatprep.mubr.f32.mxu0 %v1359
        %1470 = vmatmul.mubr.f32.gmra.mrb[0].mxu0 %v1236
        %v1471 = vpop.f32.mrb[0].mxu0
        %v1472 = vadd.f32 %v1287, %v1471
        %v1473 = vpop.f32.mrb[0].mxu0
        %1474 = vmatprep.mubr.f32.mxu0 %v1362
        %1475 = vmatmul.mubr.f32.gmra.mrb[0].mxu0 %v1238
        %v1476 = vpop.f32.mrb[0].mxu0
        %v1477 = vadd.f32 %v1292, %v1476
        %v1478 = vpop.f32.mrb[0].mxu0
        %1479 = vmatprep.mubr.f32.mxu0 %v1365
        %1480 = vmatmul.mubr.f32.gmra.mrb[0].mxu0 %v1240
        %v1481 = vpop.f32.mrb[0].mxu0
        %v1482 = vadd.f32 %v1297, %v1481
        %v1483 = vpop.f32.mrb[0].mxu0
        %1484 = vmatprep.mubr.f32.mxu0 %v1368
        %1485 = vmatmul.mubr.f32.gmra.mrb[0].mxu0 %v1242
        %v1486 = vpop.f32.mrb[0].mxu0
        %v1487 = vadd.f32 %v1302, %v1486
        %v1488 = vpop.f32.mrb[0].mxu0
        %1489 = vmatprep.mubr.f32.mxu0 %v1371
        %1490 = vmatmul.mubr.f32.gmra.mrb[0].mxu0 %v1244
        %v1491 = vpop.f32.mrb[0].mxu0
        %v1492 = vadd.f32 %v1307, %v1491
        %v1493 = vpop.f32.mrb[0].mxu0
        %1494 = vmatprep.mubr.f32.mxu0 %v1374
        %1495 = vmatmul.mubr.f32.gmra.mrb[0].mxu0 %v1246
        %v1496 = vpop.f32.mrb[0].mxu0
        %v1497 = vadd.f32 %v1312, %v1496
        %v1498 = vpop.f32.mrb[0].mxu0
        %1499 = vmatprep.mubr.f32.mxu0 %v1377
        %1500 = vmatmul.mubr.f32.gmra.mrb[0].mxu0 %v1248
        %v1501 = vpop.f32.mrb[0].mxu0
        %v1502 = vadd.f32 %v1317, %v1501
        %v1503 = vpop.f32.mrb[0].mxu0
        %1504 = vmatprep.mubr.f32.mxu0 %v1380
        %1505 = vmatmul.mubr.f32.gmra.mrb[0].mxu0 %v1250
        %v1506 = vpop.f32.mrb[0].mxu0
        %v1507 = vadd.f32 %v1322, %v1506
        %v1508 = vpop.f32.mrb[0].mxu0
        %1509 = vmatprep.mubr.f32.mxu0 %v1383
        %1510 = vmatmul.mubr.f32.gmra.mrb[0].mxu0 %v1252
        %v1511 = vpop.f32.mrb[0].mxu0
        %v1512 = vadd.f32 %v1327, %v1511
        %v1513 = vpop.f32.mrb[0].mxu0
        %1514 = vmatprep.mubr.f32.mxu0 %v1386
        %1515 = vmatmul.mubr.f32.gmra.mrb[0].mxu0 %v1254
        %v1516 = vpop.f32.mrb[0].mxu0
        %v1517 = vadd.f32 %v1332, %v1516
        %v1518 = vpop.f32.mrb[0].mxu0
        %1519 = vmatprep.mubr.f32.mxu0 %v1389
        %1520 = vmatmul.mubr.f32.gmra.mrb[0].mxu0 %v1256
        %v1521 = vpop.f32.mrb[0].mxu0
        %v1522 = vadd.f32 %v1337, %v1521
        %v1523 = vpop.f32.mrb[0].mxu0
        %1524 = vmatprep.mubr.f32.mxu0 %v1392
        %1525 = vmatmul.mubr.f32.gmra.mrb[0].mxu0 %v1258
        %v1526 = vpop.f32.mrb[0].mxu0
        %v1527 = vadd.f32 %v1342, %v1526
        %v1528 = vpop.f32.mrb[0].mxu0
        %1529 = vmatprep.mubr.f32.mxu0 %v1395
        %1530 = vmatmul.mubr.f32.gmra.mrb[0].mxu0 %v1260
        %v1531 = vpop.f32.mrb[0].mxu0
        %v1532 = vadd.f32 %v1347, %v1531
        %v1533 = vpop.f32.mrb[0].mxu0
        %1534 = vmatprep.mubr.f32.mxu0 %v1398
        %1535 = vmatmul.mubr.f32.gmra.mrb[0].mxu0 %v1262
        %v1536 = vpop.f32.mrb[0].mxu0
        %v1537 = vadd.f32 %v1352, %v1536
        %v1538 = vpop.f32.mrb[0].mxu0
        %1539 = vdwg.mxu0
        %v1540 = vmax.f32 %v1467, 0.0
        %v1541 = vmax.f32 %v1472, 0.0
        %v1542 = vmax.f32 %v1477, 0.0
        %v1543 = vmax.f32 %v1482, 0.0
        %v1544 = vmax.f32 %v1487, 0.0
        %v1545 = vmax.f32 %v1492, 0.0
        %v1546 = vmax.f32 %v1497, 0.0
        %v1547 = vmax.f32 %v1502, 0.0
        %v1548 = vmax.f32 %v1507, 0.0
        %v1549 = vmax.f32 %v1512, 0.0
        %v1550 = vmax.f32 %v1517, 0.0
        %v1551 = vmax.f32 %v1522, 0.0
        %v1552 = vmax.f32 %v1527, 0.0
        %v1553 = vmax.f32 %v1532, 0.0
        %v1554 = vmax.f32 %v1537, 0.0
        %1570 = vrot.lane.b32.xlu0 %v1540, 127
        %v1571 = vpop.permute.xlu0 %1570
        %1572 = vrot.lane.b32.xlu0 %v1541, 127
        %v1573 = vpop.permute.xlu0 %1572
        %1574 = vrot.lane.b32.xlu0 %v1542, 127
        %v1575 = vpop.permute.xlu0 %1574
        %1576 = vrot.lane.b32.xlu0 %v1543, 127
        %v1577 = vpop.permute.xlu0 %1576
        %1578 = vrot.lane.b32.xlu0 %v1544, 127
        %v1579 = vpop.permute.xlu0 %1578
        %1580 = vrot.lane.b32.xlu0 %v1545, 127
        %v1581 = vpop.permute.xlu0 %1580
        %1582 = vrot.lane.b32.xlu0 %v1546, 127
        %v1583 = vpop.permute.xlu0 %1582
        %1584 = vrot.lane.b32.xlu0 %v1547, 127
        %v1585 = vpop.permute.xlu0 %1584
        %1586 = vrot.lane.b32.xlu0 %v1548, 127
        %v1587 = vpop.permute.xlu0 %1586
        %1588 = vrot.lane.b32.xlu0 %v1549, 127
        %v1589 = vpop.permute.xlu0 %1588
        %1590 = vrot.lane.b32.xlu0 %v1550, 127
        %v1591 = vpop.permute.xlu0 %1590
        %1592 = vrot.lane.b32.xlu0 %v1551, 127
        %v1593 = vpop.permute.xlu0 %1592
        %1594 = vrot.lane.b32.xlu0 %v1552, 127
        %v1595 = vpop.permute.xlu0 %1594
        %1596 = vrot.lane.b32.xlu0 %v1553, 127
        %v1597 = vpop.permute.xlu0 %1596
        %1598 = vrot.lane.b32.xlu0 %v1554, 127
        %v1599 = vpop.permute.xlu0 %1598
        %1615 = vrot.lane.b32.xlu0 %v1540, 126
        %v1616 = vpop.permute.xlu0 %1615
        %1617 = vrot.lane.b32.xlu0 %v1541, 126
        %v1618 = vpop.permute.xlu0 %1617
        %1619 = vrot.lane.b32.xlu0 %v1542, 126
        %v1620 = vpop.permute.xlu0 %1619
        %1621 = vrot.lane.b32.xlu0 %v1543, 126
        %v1622 = vpop.permute.xlu0 %1621
        %1623 = vrot.lane.b32.xlu0 %v1544, 126
        %v1624 = vpop.permute.xlu0 %1623
        %1625 = vrot.lane.b32.xlu0 %v1545, 126
        %v1626 = vpop.permute.xlu0 %1625
        %1627 = vrot.lane.b32.xlu0 %v1546, 126
        %v1628 = vpop.permute.xlu0 %1627
        %1629 = vrot.lane.b32.xlu0 %v1547, 126
        %v1630 = vpop.permute.xlu0 %1629
        %1631 = vrot.lane.b32.xlu0 %v1548, 126
        %v1632 = vpop.permute.xlu0 %1631
        %1633 = vrot.lane.b32.xlu0 %v1549, 126
        %v1634 = vpop.permute.xlu0 %1633
        %1635 = vrot.lane.b32.xlu0 %v1550, 126
        %v1636 = vpop.permute.xlu0 %1635
        %1637 = vrot.lane.b32.xlu0 %v1551, 126
        %v1638 = vpop.permute.xlu0 %1637
        %1639 = vrot.lane.b32.xlu0 %v1552, 126
        %v1640 = vpop.permute.xlu0 %1639
        %1641 = vrot.lane.b32.xlu0 %v1553, 126
        %v1642 = vpop.permute.xlu0 %1641
        %1643 = vrot.lane.b32.xlu0 %v1554, 126
        %v1644 = vpop.permute.xlu0 %1643
        %v1660 = vld [vmem:[%s7] sm:$0xff]
        %v1661 = vld [vmem:[%s7 + $0x8] sm:$0xff]
        %v1662 = vld [vmem:[%s7 + $0x10] sm:$0xff]
        %v1663 = vld [vmem:[%s7 + $0x18] sm:$0xff]
        %v1664 = vld [vmem:[%s7 + $0x20] sm:$0xff]
        %v1665 = vld [vmem:[%s7 + $0x28] sm:$0xff]
        %v1666 = vld [vmem:[%s7 + $0x30] sm:$0xff]
        %v1667 = vld [vmem:[%s7 + $0x38] sm:$0xff]
        %v1668 = vld [vmem:[%s7 + $0x40] sm:$0xff]
        %v1669 = vld [vmem:[%s7 + $0x48] sm:$0xff]
        %v1670 = vld [vmem:[%s7 + $0x50] sm:$0xff]
        %v1671 = vld [vmem:[%s7 + $0x58] sm:$0xff]
        %v1672 = vld [vmem:[%s7 + $0x60] sm:$0xff]
        %v1673 = vld [vmem:[%s7 + $0x68] sm:$0xff]
        %v1674 = vld [vmem:[%s7 + $0x70] sm:$0xff]
        %v1675 = vld [vmem:[%s7 + $0x78] sm:$0xff]
        %v1676 = vld [vmem:[%s7 + $0x80] sm:$0xff]
        %v1677 = vld [vmem:[%s7 + $0x88] sm:$0xff]
        %v1678 = vld [vmem:[%s7 + $0x90] sm:$0xff]
        %v1679 = vld [vmem:[%s7 + $0x98] sm:$0xff]
        %v1680 = vld [vmem:[%s7 + $0xa0] sm:$0xff]
        %v1681 = vld [vmem:[%s7 + $0xa8] sm:$0xff]
        %v1682 = vld [vmem:[%s7 + $0xb0] sm:$0xff]
        %v1683 = vld [vmem:[%s7 + $0xb8] sm:$0xff]
        %v1684 = vld [vmem:[%s7 + $0xc0] sm:$0xff]
        %v1685 = vld [vmem:[%s7 + $0xc8] sm:$0xff]
        %v1686 = vld [vmem:[%s7 + $0xd0] sm:$0xff]
        %v1687 = vld [vmem:[%s7 + $0xd8] sm:$0xff]
        %v1688 = vld [vmem:[%s7 + $0xe0] sm:$0xff]
        %v1689 = vld [vmem:[%s7 + $0xe8] sm:$0xff]
        %v1690 = vld [vmem:[%s7 + $0xf0] sm:$0xff]
        %v1691 = vld [vmem:[%s7 + $0xf8] sm:$0xff]
        %v1692 = vld [vmem:[%s7 + $0x100] sm:$0xff]
        %v1693 = vld [vmem:[%s7 + $0x108] sm:$0xff]
        %v1694 = vld [vmem:[%s7 + $0x110] sm:$0xff]
        %v1695 = vld [vmem:[%s7 + $0x118] sm:$0xff]
        %v1696 = vld [vmem:[%s7 + $0x120] sm:$0xff]
        %v1697 = vld [vmem:[%s7 + $0x128] sm:$0xff]
        %v1698 = vld [vmem:[%s7 + $0x130] sm:$0xff]
        %v1699 = vld [vmem:[%s7 + $0x138] sm:$0xff]
        %v1700 = vld [vmem:[%s7 + $0x140] sm:$0xff]
        %v1701 = vld [vmem:[%s7 + $0x148] sm:$0xff]
        %v1702 = vld [vmem:[%s7 + $0x150] sm:$0xff]
        %v1703 = vld [vmem:[%s7 + $0x158] sm:$0xff]
        %v1704 = vld [vmem:[%s7 + $0x160] sm:$0xff]
        %v1705 = vld [vmem:[%s7 + $0x168] sm:$0xff]
        %v1706 = vld [vmem:[%s7 + $0x170] sm:$0xff]
        %v1707 = vld [vmem:[%s7 + $0x178] sm:$0xff]
        %v1708 = vld [vmem:[%s7 + $0x180] sm:$0xff]
        %v1709 = vld [vmem:[%s7 + $0x188] sm:$0xff]
        %v1710 = vld [vmem:[%s7 + $0x190] sm:$0xff]
        %v1711 = vld [vmem:[%s7 + $0x198] sm:$0xff]
        %v1712 = vld [vmem:[%s7 + $0x1a0] sm:$0xff]
        %v1713 = vld [vmem:[%s7 + $0x1a8] sm:$0xff]
        %v1714 = vld [vmem:[%s7 + $0x1b0] sm:$0xff]
        %v1715 = vld [vmem:[%s7 + $0x1b8] sm:$0xff]
        %v1716 = vld [vmem:[%s7 + $0x1c0] sm:$0xff]
        %v1717 = vld [vmem:[%s7 + $0x1c8] sm:$0xff]
        %v1718 = vld [vmem:[%s7 + $0x1d0] sm:$0xff]
        %v1719 = vld [vmem:[%s7 + $0x1d8] sm:$0xff]
        %v1720 = vld [vmem:[%s7 + $0x1e0] sm:$0xff]
        %v1721 = vld [vmem:[%s7 + $0x1e8] sm:$0xff]
        %v1722 = vld [vmem:[%s7 + $0x1f0] sm:$0xff]
        %v1723 = vld [vmem:[%s7 + $0x1f8] sm:$0xff]
        %v1724 = vld [vmem:[%s7 + $0x200] sm:$0xff]
        %v1725 = vld [vmem:[%s7 + $0x208] sm:$0xff]
        %v1726 = vld [vmem:[%s7 + $0x210] sm:$0xff]
        %v1727 = vld [vmem:[%s7 + $0x218] sm:$0xff]
        %v1728 = vld [vmem:[%s7 + $0x220] sm:$0xff]
        %v1729 = vld [vmem:[%s7 + $0x228] sm:$0xff]
        %v1730 = vld [vmem:[%s7 + $0x230] sm:$0xff]
        %v1731 = vld [vmem:[%s7 + $0x238] sm:$0xff]
        %v1732 = vld [vmem:[%s7 + $0x240] sm:$0xff]
        %v1733 = vld [vmem:[%s7 + $0x248] sm:$0xff]
        %v1734 = vld [vmem:[%s7 + $0x250] sm:$0xff]
        %v1735 = vld [vmem:[%s7 + $0x258] sm:$0xff]
        %v1736 = vld [vmem:[%s7 + $0x260] sm:$0xff]
        %v1737 = vld [vmem:[%s7 + $0x268] sm:$0xff]
        %v1738 = vld [vmem:[%s7 + $0x270] sm:$0xff]
        %v1739 = vld [vmem:[%s7 + $0x278] sm:$0xff]
        %v1740 = vld [vmem:[%s7 + $0x280] sm:$0xff]
        %v1741 = vld [vmem:[%s7 + $0x288] sm:$0xff]
        %v1742 = vld [vmem:[%s7 + $0x290] sm:$0xff]
        %v1743 = vld [vmem:[%s7 + $0x298] sm:$0xff]
        %v1744 = vld [vmem:[%s7 + $0x2a0] sm:$0xff]
        %v1745 = vld [vmem:[%s7 + $0x2a8] sm:$0xff]
        %v1746 = vld [vmem:[%s7 + $0x2b0] sm:$0xff]
        %v1747 = vld [vmem:[%s7 + $0x2b8] sm:$0xff]
        %v1748 = vld [vmem:[%s7 + $0x2c0] sm:$0xff]
        %v1749 = vld [vmem:[%s7 + $0x2c8] sm:$0xff]
        %v1750 = vld [vmem:[%s8] sm:$0xff]
        %v1751 = vld [vmem:[%s8 + $0x8] sm:$0xff]
        %v1752 = vld [vmem:[%s8 + $0x10] sm:$0xff]
        %v1753 = vld [vmem:[%s8 + $0x18] sm:$0xff]
        %v1754 = vld [vmem:[%s8 + $0x20] sm:$0xff]
        %v1755 = vld [vmem:[%s8 + $0x28] sm:$0xff]
        %v1756 = vld [vmem:[%s8 + $0x30] sm:$0xff]
        %v1757 = vld [vmem:[%s8 + $0x38] sm:$0xff]
        %v1758 = vld [vmem:[%s8 + $0x40] sm:$0xff]
        %v1759 = vld [vmem:[%s8 + $0x48] sm:$0xff]
        %v1760 = vld [vmem:[%s8 + $0x50] sm:$0xff]
        %v1761 = vld [vmem:[%s8 + $0x58] sm:$0xff]
        %v1762 = vld [vmem:[%s8 + $0x60] sm:$0xff]
        %v1763 = vld [vmem:[%s8 + $0x68] sm:$0xff]
        %v1764 = vld [vmem:[%s8 + $0x70] sm:$0xff]
        %v1765 = vld [vmem:[%s8 + $0x78] sm:$0xff]
        %v1766 = vld [vmem:[%s8 + $0x80] sm:$0xff]
        %v1767 = vld [vmem:[%s8 + $0x88] sm:$0xff]
        %v1768 = vld [vmem:[%s8 + $0x90] sm:$0xff]
        %v1769 = vld [vmem:[%s8 + $0x98] sm:$0xff]
        %v1770 = vld [vmem:[%s8 + $0xa0] sm:$0xff]
        %v1771 = vld [vmem:[%s8 + $0xa8] sm:$0xff]
        %v1772 = vld [vmem:[%s8 + $0xb0] sm:$0xff]
        %v1773 = vld [vmem:[%s8 + $0xb8] sm:$0xff]
        %v1774 = vld [vmem:[%s8 + $0xc0] sm:$0xff]
        %v1775 = vld [vmem:[%s8 + $0xc8] sm:$0xff]
        %v1776 = vld [vmem:[%s8 + $0xd0] sm:$0xff]
        %v1777 = vld [vmem:[%s8 + $0xd8] sm:$0xff]
        %v1778 = vld [vmem:[%s8 + $0xe0] sm:$0xff]
        %v1779 = vld [vmem:[%s8 + $0xe8] sm:$0xff]
        %1781 = vset.pattern.permute.xlu0 0
        %1782 = vperm.xlu0 %1781, %v1750
        %v1783 = vpop.permute.xlu0 %1782
        %1786 = vset.pattern.permute.xlu0 0
        %1787 = vperm.xlu0 %1786, %v1751
        %v1788 = vpop.permute.xlu0 %1787
        %1791 = vset.pattern.permute.xlu0 0
        %1792 = vperm.xlu0 %1791, %v1752
        %v1793 = vpop.permute.xlu0 %1792
        %1796 = vset.pattern.permute.xlu0 0
        %1797 = vperm.xlu0 %1796, %v1753
        %v1798 = vpop.permute.xlu0 %1797
        %1801 = vset.pattern.permute.xlu0 0
        %1802 = vperm.xlu0 %1801, %v1754
        %v1803 = vpop.permute.xlu0 %1802
        %1806 = vset.pattern.permute.xlu0 0
        %1807 = vperm.xlu0 %1806, %v1755
        %v1808 = vpop.permute.xlu0 %1807
        %1811 = vset.pattern.permute.xlu0 0
        %1812 = vperm.xlu0 %1811, %v1756
        %v1813 = vpop.permute.xlu0 %1812
        %1816 = vset.pattern.permute.xlu0 0
        %1817 = vperm.xlu0 %1816, %v1757
        %v1818 = vpop.permute.xlu0 %1817
        %1821 = vset.pattern.permute.xlu0 0
        %1822 = vperm.xlu0 %1821, %v1758
        %v1823 = vpop.permute.xlu0 %1822
        %1826 = vset.pattern.permute.xlu0 0
        %1827 = vperm.xlu0 %1826, %v1759
        %v1828 = vpop.permute.xlu0 %1827
        %1831 = vset.pattern.permute.xlu0 0
        %1832 = vperm.xlu0 %1831, %v1760
        %v1833 = vpop.permute.xlu0 %1832
        %1836 = vset.pattern.permute.xlu0 0
        %1837 = vperm.xlu0 %1836, %v1761
        %v1838 = vpop.permute.xlu0 %1837
        %1841 = vset.pattern.permute.xlu0 0
        %1842 = vperm.xlu0 %1841, %v1762
        %v1843 = vpop.permute.xlu0 %1842
        %1846 = vset.pattern.permute.xlu0 0
        %1847 = vperm.xlu0 %1846, %v1763
        %v1848 = vpop.permute.xlu0 %1847
        %1851 = vset.pattern.permute.xlu0 0
        %1852 = vperm.xlu0 %1851, %v1764
        %v1853 = vpop.permute.xlu0 %1852
        %1856 = vset.pattern.permute.xlu0 0
        %1857 = vperm.xlu0 %1856, %v1765
        %v1858 = vpop.permute.xlu0 %1857
        %1861 = vset.pattern.permute.xlu0 0
        %1862 = vperm.xlu0 %1861, %v1766
        %v1863 = vpop.permute.xlu0 %1862
        %1866 = vset.pattern.permute.xlu0 0
        %1867 = vperm.xlu0 %1866, %v1767
        %v1868 = vpop.permute.xlu0 %1867
        %1871 = vset.pattern.permute.xlu0 0
        %1872 = vperm.xlu0 %1871, %v1768
        %v1873 = vpop.permute.xlu0 %1872
        %1876 = vset.pattern.permute.xlu0 0
        %1877 = vperm.xlu0 %1876, %v1769
        %v1878 = vpop.permute.xlu0 %1877
        %1881 = vset.pattern.permute.xlu0 0
        %1882 = vperm.xlu0 %1881, %v1770
        %v1883 = vpop.permute.xlu0 %1882
        %1886 = vset.pattern.permute.xlu0 0
        %1887 = vperm.xlu0 %1886, %v1771
        %v1888 = vpop.permute.xlu0 %1887
        %1891 = vset.pattern.permute.xlu0 0
        %1892 = vperm.xlu0 %1891, %v1772
        %v1893 = vpop.permute.xlu0 %1892
        %1896 = vset.pattern.permute.xlu0 0
        %1897 = vperm.xlu0 %1896, %v1773
        %v1898 = vpop.permute.xlu0 %1897
        %1901 = vset.pattern.permute.xlu0 0
        %1902 = vperm.xlu0 %1901, %v1774
        %v1903 = vpop.permute.xlu0 %1902
        %1906 = vset.pattern.permute.xlu0 0
        %1907 = vperm.xlu0 %1906, %v1775
        %v1908 = vpop.permute.xlu0 %1907
        %1911 = vset.pattern.permute.xlu0 0
        %1912 = vperm.xlu0 %1911, %v1776
        %v1913 = vpop.permute.xlu0 %1912
        %1916 = vset.pattern.permute.xlu0 0
        %1917 = vperm.xlu0 %1916, %v1777
        %v1918 = vpop.permute.xlu0 %1917
        %1921 = vset.pattern.permute.xlu0 0
        %1922 = vperm.xlu0 %1921, %v1778
        %v1923 = vpop.permute.xlu0 %1922
        %1926 = vset.pattern.permute.xlu0 0
        %1927 = vperm.xlu0 %1926, %v1779
        %v1928 = vpop.permute.xlu0 %1927
        %vm1930 = vcmask 850944
        %v1932 = vsel %vm1930, %v1662, 0
        %v1935 = vsel %vm1930, %v1665, 0
        %v1938 = vsel %vm1930, %v1668, 0
        %v1941 = vsel %vm1930, %v1671, 0
        %v1944 = vsel %vm1930, %v1674, 0
        %v1947 = vsel %vm1930, %v1677, 0
        %v1950 = vsel %vm1930, %v1680, 0
        %v1953 = vsel %vm1930, %v1683, 0
        %v1956 = vsel %vm1930, %v1686, 0
        %v1959 = vsel %vm1930, %v1689, 0
        %v1962 = vsel %vm1930, %v1692, 0
        %v1965 = vsel %vm1930, %v1695, 0
        %v1968 = vsel %vm1930, %v1698, 0
        %v1971 = vsel %vm1930, %v1701, 0
        %v1974 = vsel %vm1930, %v1704, 0
        %v1977 = vsel %vm1930, %v1707, 0
        %v1980 = vsel %vm1930, %v1710, 0
        %v1983 = vsel %vm1930, %v1713, 0
        %v1986 = vsel %vm1930, %v1716, 0
        %v1989 = vsel %vm1930, %v1719, 0
        %v1992 = vsel %vm1930, %v1722, 0
        %v1995 = vsel %vm1930, %v1725, 0
        %v1998 = vsel %vm1930, %v1728, 0
        %v2001 = vsel %vm1930, %v1731, 0
        %v2004 = vsel %vm1930, %v1734, 0
        %v2007 = vsel %vm1930, %v1737, 0
        %v2010 = vsel %vm1930, %v1740, 0
        %v2013 = vsel %vm1930, %v1743, 0
        %v2016 = vsel %vm1930, %v1746, 0
        %v2019 = vsel %vm1930, %v1749, 0
        %2021 = vmatprep.subr.mxu0 0.0
        %2022 = vmatpush1.msra.mxu0 %v1540
        %2023 = vmatprep.subr.mxu0 0.0
        %2024 = vmatpush1.msra.mxu0 %v1541
        %2025 = vmatprep.subr.mxu0 0.0
        %2026 = vmatpush1.msra.mxu0 %v1542
        %2027 = vmatprep.subr.mxu0 0.0
        %2028 = vmatpush1.msra.mxu0 %v1543
        %2029 = vmatprep.subr.mxu0 0.0
        %2030 = vmatpush1.msra.mxu0 %v1544
        %2031 = vmatprep.subr.mxu0 0.0
        %2032 = vmatpush1.msra.mxu0 %v1545
        %2033 = vmatprep.subr.mxu0 0.0
        %2034 = vmatpush1.msra.mxu0 %v1546
        %2035 = vmatprep.subr.mxu0 0.0
        %2036 = vmatpush1.msra.mxu0 %v1547
        %2037 = vmatprep.subr.mxu0 0.0
        %2038 = vmatpush1.msra.mxu0 %v1548
        %2039 = vmatprep.subr.mxu0 0.0
        %2040 = vmatpush1.msra.mxu0 %v1549
        %2041 = vmatprep.subr.mxu0 0.0
        %2042 = vmatpush1.msra.mxu0 %v1550
        %2043 = vmatprep.subr.mxu0 0.0
        %2044 = vmatpush1.msra.mxu0 %v1551
        %2045 = vmatprep.subr.mxu0 0.0
        %2046 = vmatpush1.msra.mxu0 %v1552
        %2047 = vmatprep.subr.mxu0 0.0
        %2048 = vmatpush1.msra.mxu0 %v1553
        %2049 = vmatprep.subr.mxu0 0.0
        %2050 = vmatpush1.msra.mxu0 %v1554
        %2051 = vmatprep.subr.mxu0 0.0
        %2052 = vmatpush1.msra.mxu0 %v1571
        %2053 = vmatprep.subr.mxu0 0.0
        %2054 = vmatpush1.msra.mxu0 %v1573
        %2055 = vmatprep.subr.mxu0 0.0
        %2056 = vmatpush1.msra.mxu0 %v1575
        %2057 = vmatprep.subr.mxu0 0.0
        %2058 = vmatpush1.msra.mxu0 %v1577
        %2059 = vmatprep.subr.mxu0 0.0
        %2060 = vmatpush1.msra.mxu0 %v1579
        %2061 = vmatprep.subr.mxu0 0.0
        %2062 = vmatpush1.msra.mxu0 %v1581
        %2063 = vmatprep.subr.mxu0 0.0
        %2064 = vmatpush1.msra.mxu0 %v1583
        %2065 = vmatprep.subr.mxu0 0.0
        %2066 = vmatpush1.msra.mxu0 %v1585
        %2067 = vmatprep.subr.mxu0 0.0
        %2068 = vmatpush1.msra.mxu0 %v1587
        %2069 = vmatprep.subr.mxu0 0.0
        %2070 = vmatpush1.msra.mxu0 %v1589
        %2071 = vmatprep.subr.mxu0 0.0
        %2072 = vmatpush1.msra.mxu0 %v1591
        %2073 = vmatprep.subr.mxu0 0.0
        %2074 = vmatpush1.msra.mxu0 %v1593
        %2075 = vmatprep.subr.mxu0 0.0
        %2076 = vmatpush1.msra.mxu0 %v1595
        %2077 = vmatprep.subr.mxu0 0.0
        %2078 = vmatpush1.msra.mxu0 %v1597
        %2079 = vmatprep.subr.mxu0 0.0
        %2080 = vmatpush1.msra.mxu0 %v1599
        %2081 = vmatprep.subr.mxu0 0.0
        %2082 = vmatpush1.msra.mxu0 %v1616
        %2083 = vmatprep.subr.mxu0 0.0
        %2084 = vmatpush1.msra.mxu0 %v1618
        %2085 = vmatprep.mubr.f32.mxu0 %v1661
        %2086 = vmatmul.mubr.f32.gmra.mrb[0].mxu0 %v1660
        %v2087 = vpop.f32.mrb[0].mxu0
        %v2088 = vadd.f32 %v1783, %v2087
        %v2089 = vpop.f32.mrb[0].mxu0
        %2090 = vmatprep.mubr.f32.mxu0 %v1664
        %2091 = vmatmul.mubr.f32.gmra.mrb[0].mxu0 %v1663
        %v2092 = vpop.f32.mrb[0].mxu0
        %v2093 = vadd.f32 %v1788, %v2092
        %v2094 = vpop.f32.mrb[0].mxu0
        %2095 = vmatprep.mubr.f32.mxu0 %v1667
        %2096 = vmatmul.mubr.f32.gmra.mrb[0].mxu0 %v1666
        %v2097 = vpop.f32.mrb[0].mxu0
        %v2098 = vadd.f32 %v1793, %v2097
        %v2099 = vpop.f32.mrb[0].mxu0
        %2100 = vmatprep.mubr.f32.mxu0 %v1670
        %2101 = vmatmul.mubr.f32.gmra.mrb[0].mxu0 %v1669
        %v2102 = vpop.f32.mrb[0].mxu0
        %v2103 = vadd.f32 %v1798, %v2102
        %v2104 = vpop.f32.mrb[0].mxu0
        %2105 = vmatprep.mubr.f32.mxu0 %v1673
        %2106 = vmatmul.mubr.f32.gmra.mrb[0].mxu0 %v1672
        %v2107 = vpop.f32.mrb[0].mxu0
        %v2108 = vadd.f32 %v1803, %v2107
        %v2109 = vpop.f32.mrb[0].mxu0
        %2110 = vmatprep.mubr.f32.mxu0 %v1676
        %2111 = vmatmul.mubr.f32.gmra.mrb[0].mxu0 %v1675
        %v2112 = vpop.f32.mrb[0].mxu0
        %v2113 = vadd.f32 %v1808, %v2112
        %v2114 = vpop.f32.mrb[0].mxu0
        %2115 = vmatprep.mubr.f32.mxu0 %v1679
        %2116 = vmatmul.mubr.f32.gmra.mrb[0].mxu0 %v1678
        %v2117 = vpop.f32.mrb[0].mxu0
        %v2118 = vadd.f32 %v1813, %v2117
        %v2119 = vpop.f32.mrb[0].mxu0
        %2120 = vmatprep.mubr.f32.mxu0 %v1682
        %2121 = vmatmul.mubr.f32.gmra.mrb[0].mxu0 %v1681
        %v2122 = vpop.f32.mrb[0].mxu0
        %v2123 = vadd.f32 %v1818, %v2122
        %v2124 = vpop.f32.mrb[0].mxu0
        %2125 = vmatprep.mubr.f32.mxu0 %v1685
        %2126 = vmatmul.mubr.f32.gmra.mrb[0].mxu0 %v1684
        %v2127 = vpop.f32.mrb[0].mxu0
        %v2128 = vadd.f32 %v1823, %v2127
        %v2129 = vpop.f32.mrb[0].mxu0
        %2130 = vmatprep.mubr.f32.mxu0 %v1688
        %2131 = vmatmul.mubr.f32.gmra.mrb[0].mxu0 %v1687
        %v2132 = vpop.f32.mrb[0].mxu0
        %v2133 = vadd.f32 %v1828, %v2132
        %v2134 = vpop.f32.mrb[0].mxu0
        %2135 = vmatprep.mubr.f32.mxu0 %v1691
        %2136 = vmatmul.mubr.f32.gmra.mrb[0].mxu0 %v1690
        %v2137 = vpop.f32.mrb[0].mxu0
        %v2138 = vadd.f32 %v1833, %v2137
        %v2139 = vpop.f32.mrb[0].mxu0
        %2140 = vmatprep.mubr.f32.mxu0 %v1694
        %2141 = vmatmul.mubr.f32.gmra.mrb[0].mxu0 %v1693
        %v2142 = vpop.f32.mrb[0].mxu0
        %v2143 = vadd.f32 %v1838, %v2142
        %v2144 = vpop.f32.mrb[0].mxu0
        %2145 = vmatprep.mubr.f32.mxu0 %v1697
        %2146 = vmatmul.mubr.f32.gmra.mrb[0].mxu0 %v1696
        %v2147 = vpop.f32.mrb[0].mxu0
        %v2148 = vadd.f32 %v1843, %v2147
        %v2149 = vpop.f32.mrb[0].mxu0
        %2150 = vmatprep.mubr.f32.mxu0 %v1700
        %2151 = vmatmul.mubr.f32.gmra.mrb[0].mxu0 %v1699
        %v2152 = vpop.f32.mrb[0].mxu0
        %v2153 = vadd.f32 %v1848, %v2152
        %v2154 = vpop.f32.mrb[0].mxu0
        %2155 = vmatprep.mubr.f32.mxu0 %v1703
        %2156 = vmatmul.mubr.f32.gmra.mrb[0].mxu0 %v1702
        %v2157 = vpop.f32.mrb[0].mxu0
        %v2158 = vadd.f32 %v1853, %v2157
        %v2159 = vpop.f32.mrb[0].mxu0
        %2160 = vmatprep.mubr.f32.mxu0 %v1706
        %2161 = vmatmul.mubr.f32.gmra.mrb[0].mxu0 %v1705
        %v2162 = vpop.f32.mrb[0].mxu0
        %v2163 = vadd.f32 %v1858, %v2162
        %v2164 = vpop.f32.mrb[0].mxu0
        %2165 = vmatprep.mubr.f32.mxu0 %v1709
        %2166 = vmatmul.mubr.f32.gmra.mrb[0].mxu0 %v1708
        %v2167 = vpop.f32.mrb[0].mxu0
        %v2168 = vadd.f32 %v1863, %v2167
        %v2169 = vpop.f32.mrb[0].mxu0
        %2170 = vmatprep.mubr.f32.mxu0 %v1712
        %2171 = vmatmul.mubr.f32.gmra.mrb[0].mxu0 %v1711
        %v2172 = vpop.f32.mrb[0].mxu0
        %v2173 = vadd.f32 %v1868, %v2172
        %v2174 = vpop.f32.mrb[0].mxu0
        %2175 = vmatprep.mubr.f32.mxu0 %v1715
        %2176 = vmatmul.mubr.f32.gmra.mrb[0].mxu0 %v1714
        %v2177 = vpop.f32.mrb[0].mxu0
        %v2178 = vadd.f32 %v1873, %v2177
        %v2179 = vpop.f32.mrb[0].mxu0
        %2180 = vmatprep.mubr.f32.mxu0 %v1718
        %2181 = vmatmul.mubr.f32.gmra.mrb[0].mxu0 %v1717
        %v2182 = vpop.f32.mrb[0].mxu0
        %v2183 = vadd.f32 %v1878, %v2182
        %v2184 = vpop.f32.mrb[0].mxu0
        %2185 = vmatprep.mubr.f32.mxu0 %v1721
        %2186 = vmatmul.mubr.f32.gmra.mrb[0].mxu0 %v1720
        %v2187 = vpop.f32.mrb[0].mxu0
        %v2188 = vadd.f32 %v1883, %v2187
        %v2189 = vpop.f32.mrb[0].mxu0
        %2190 = vmatprep.mubr.f32.mxu0 %v1724
        %2191 = vmatmul.mubr.f32.gmra.mrb[0].mxu0 %v1723
        %v2192 = vpop.f32.mrb[0].mxu0
        %v2193 = vadd.f32 %v1888, %v2192
        %v2194 = vpop.f32.mrb[0].mxu0
        %2195 = vmatprep.mubr.f32.mxu0 %v1727
        %2196 = vmatmul.mubr.f32.gmra.mrb[0].mxu0 %v1726
        %v2197 = vpop.f32.mrb[0].mxu0
        %v2198 = vadd.f32 %v1893, %v2197
        %v2199 = vpop.f32.mrb[0].mxu0
        %2200 = vmatprep.mubr.f32.mxu0 %v1730
        %2201 = vmatmul.mubr.f32.gmra.mrb[0].mxu0 %v1729
        %v2202 = vpop.f32.mrb[0].mxu0
        %v2203 = vadd.f32 %v1898, %v2202
        %v2204 = vpop.f32.mrb[0].mxu0
        %2205 = vmatprep.mubr.f32.mxu0 %v1733
        %2206 = vmatmul.mubr.f32.gmra.mrb[0].mxu0 %v1732
        %v2207 = vpop.f32.mrb[0].mxu0
        %v2208 = vadd.f32 %v1903, %v2207
        %v2209 = vpop.f32.mrb[0].mxu0
        %2210 = vmatprep.mubr.f32.mxu0 %v1736
        %2211 = vmatmul.mubr.f32.gmra.mrb[0].mxu0 %v1735
        %v2212 = vpop.f32.mrb[0].mxu0
        %v2213 = vadd.f32 %v1908, %v2212
        %v2214 = vpop.f32.mrb[0].mxu0
        %2215 = vmatprep.mubr.f32.mxu0 %v1739
        %2216 = vmatmul.mubr.f32.gmra.mrb[0].mxu0 %v1738
        %v2217 = vpop.f32.mrb[0].mxu0
        %v2218 = vadd.f32 %v1913, %v2217
        %v2219 = vpop.f32.mrb[0].mxu0
        %2220 = vmatprep.mubr.f32.mxu0 %v1742
        %2221 = vmatmul.mubr.f32.gmra.mrb[0].mxu0 %v1741
        %v2222 = vpop.f32.mrb[0].mxu0
        %v2223 = vadd.f32 %v1918, %v2222
        %v2224 = vpop.f32.mrb[0].mxu0
        %2225 = vmatprep.mubr.f32.mxu0 %v1745
        %2226 = vmatmul.mubr.f32.gmra.mrb[0].mxu0 %v1744
        %v2227 = vpop.f32.mrb[0].mxu0
        %v2228 = vadd.f32 %v1923, %v2227
        %v2229 = vpop.f32.mrb[0].mxu0
        %2230 = vmatprep.mubr.f32.mxu0 %v1748
        %2231 = vmatmul.mubr.f32.gmra.mrb[0].mxu0 %v1747
        %v2232 = vpop.f32.mrb[0].mxu0
        %v2233 = vadd.f32 %v1928, %v2232
        %v2234 = vpop.f32.mrb[0].mxu0
        %2235 = vdwg.mxu0
        %2236 = vmatprep.subr.mxu0 0.0
        %2237 = vmatpush1.msra.mxu0 %v1620
        %2238 = vmatprep.subr.mxu0 0.0
        %2239 = vmatpush1.msra.mxu0 %v1622
        %2240 = vmatprep.subr.mxu0 0.0
        %2241 = vmatpush1.msra.mxu0 %v1624
        %2242 = vmatprep.subr.mxu0 0.0
        %2243 = vmatpush1.msra.mxu0 %v1626
        %2244 = vmatprep.subr.mxu0 0.0
        %2245 = vmatpush1.msra.mxu0 %v1628
        %2246 = vmatprep.subr.mxu0 0.0
        %2247 = vmatpush1.msra.mxu0 %v1630
        %2248 = vmatprep.subr.mxu0 0.0
        %2249 = vmatpush1.msra.mxu0 %v1632
        %2250 = vmatprep.subr.mxu0 0.0
        %2251 = vmatpush1.msra.mxu0 %v1634
        %2252 = vmatprep.subr.mxu0 0.0
        %2253 = vmatpush1.msra.mxu0 %v1636
        %2254 = vmatprep.subr.mxu0 0.0
        %2255 = vmatpush1.msra.mxu0 %v1638
        %2256 = vmatprep.subr.mxu0 0.0
        %2257 = vmatpush1.msra.mxu0 %v1640
        %2258 = vmatprep.subr.mxu0 0.0
        %2259 = vmatpush1.msra.mxu0 %v1642
        %2260 = vmatprep.subr.mxu0 0.0
        %2261 = vmatpush1.msra.mxu0 %v1644
        %2262 = vmatprep.subr.mxu0 0.0
        %2263 = vmatpush1.msra.mxu0 0.0
        %2264 = vmatprep.subr.mxu0 0.0
        %2265 = vmatpush1.msra.mxu0 0.0
        %2266 = vmatprep.subr.mxu0 0.0
        %2267 = vmatpush1.msra.mxu0 0.0
        %2268 = vmatprep.subr.mxu0 0.0
        %2269 = vmatpush1.msra.mxu0 0.0
        %2270 = vmatprep.subr.mxu0 0.0
        %2271 = vmatpush1.msra.mxu0 0.0
        %2272 = vmatprep.subr.mxu0 0.0
        %2273 = vmatpush1.msra.mxu0 0.0
        %2274 = vmatprep.subr.mxu0 0.0
        %2275 = vmatpush1.msra.mxu0 0.0
        %2276 = vmatprep.subr.mxu0 0.0
        %2277 = vmatpush1.msra.mxu0 0.0
        %2278 = vmatprep.subr.mxu0 0.0
        %2279 = vmatpush1.msra.mxu0 0.0
        %2280 = vmatprep.subr.mxu0 0.0
        %2281 = vmatpush1.msra.mxu0 0.0
        %2282 = vmatprep.subr.mxu0 0.0
        %2283 = vmatpush1.msra.mxu0 0.0
        %2284 = vmatprep.subr.mxu0 0.0
        %2285 = vmatpush1.msra.mxu0 0.0
        %2286 = vmatprep.subr.mxu0 0.0
        %2287 = vmatpush1.msra.mxu0 0.0
        %2288 = vmatprep.subr.mxu0 0.0
        %2289 = vmatpush1.msra.mxu0 0.0
        %2290 = vmatprep.subr.mxu0 0.0
        %2291 = vmatpush1.msra.mxu0 0.0
        %2292 = vmatprep.subr.mxu0 0.0
        %2293 = vmatpush1.msra.mxu0 0.0
        %2294 = vmatprep.subr.mxu0 0.0
        %2295 = vmatpush1.msra.mxu0 0.0
        %2296 = vmatprep.subr.mxu0 0.0
        %2297 = vmatpush1.msra.mxu0 0.0
        %2298 = vmatprep.subr.mxu0 0.0
        %2299 = vmatpush1.msra.mxu0 0.0
        %2300 = vmatprep.mubr.f32.mxu0 0.0
        %2301 = vmatmul.mubr.f32.gmra.mrb[0].mxu0 %v1932
        %v2302 = vpop.f32.mrb[0].mxu0
        %v2303 = vadd.f32 %v2088, %v2302
        %v2304 = vpop.f32.mrb[0].mxu0
        %2305 = vmatprep.mubr.f32.mxu0 0.0
        %2306 = vmatmul.mubr.f32.gmra.mrb[0].mxu0 %v1935
        %v2307 = vpop.f32.mrb[0].mxu0
        %v2308 = vadd.f32 %v2093, %v2307
        %v2309 = vpop.f32.mrb[0].mxu0
        %2310 = vmatprep.mubr.f32.mxu0 0.0
        %2311 = vmatmul.mubr.f32.gmra.mrb[0].mxu0 %v1938
        %v2312 = vpop.f32.mrb[0].mxu0
        %v2313 = vadd.f32 %v2098, %v2312
        %v2314 = vpop.f32.mrb[0].mxu0
        %2315 = vmatprep.mubr.f32.mxu0 0.0
        %2316 = vmatmul.mubr.f32.gmra.mrb[0].mxu0 %v1941
        %v2317 = vpop.f32.mrb[0].mxu0
        %v2318 = vadd.f32 %v2103, %v2317
        %v2319 = vpop.f32.mrb[0].mxu0
        %2320 = vmatprep.mubr.f32.mxu0 0.0
        %2321 = vmatmul.mubr.f32.gmra.mrb[0].mxu0 %v1944
        %v2322 = vpop.f32.mrb[0].mxu0
        %v2323 = vadd.f32 %v2108, %v2322
        %v2324 = vpop.f32.mrb[0].mxu0
        %2325 = vmatprep.mubr.f32.mxu0 0.0
        %2326 = vmatmul.mubr.f32.gmra.mrb[0].mxu0 %v1947
        %v2327 = vpop.f32.mrb[0].mxu0
        %v2328 = vadd.f32 %v2113, %v2327
        %v2329 = vpop.f32.mrb[0].mxu0
        %2330 = vmatprep.mubr.f32.mxu0 0.0
        %2331 = vmatmul.mubr.f32.gmra.mrb[0].mxu0 %v1950
        %v2332 = vpop.f32.mrb[0].mxu0
        %v2333 = vadd.f32 %v2118, %v2332
        %v2334 = vpop.f32.mrb[0].mxu0
        %2335 = vmatprep.mubr.f32.mxu0 0.0
        %2336 = vmatmul.mubr.f32.gmra.mrb[0].mxu0 %v1953
        %v2337 = vpop.f32.mrb[0].mxu0
        %v2338 = vadd.f32 %v2123, %v2337
        %v2339 = vpop.f32.mrb[0].mxu0
        %2340 = vmatprep.mubr.f32.mxu0 0.0
        %2341 = vmatmul.mubr.f32.gmra.mrb[0].mxu0 %v1956
        %v2342 = vpop.f32.mrb[0].mxu0
        %v2343 = vadd.f32 %v2128, %v2342
        %v2344 = vpop.f32.mrb[0].mxu0
        %2345 = vmatprep.mubr.f32.mxu0 0.0
        %2346 = vmatmul.mubr.f32.gmra.mrb[0].mxu0 %v1959
        %v2347 = vpop.f32.mrb[0].mxu0
        %v2348 = vadd.f32 %v2133, %v2347
        %v2349 = vpop.f32.mrb[0].mxu0
        %2350 = vmatprep.mubr.f32.mxu0 0.0
        %2351 = vmatmul.mubr.f32.gmra.mrb[0].mxu0 %v1962
        %v2352 = vpop.f32.mrb[0].mxu0
        %v2353 = vadd.f32 %v2138, %v2352
        %v2354 = vpop.f32.mrb[0].mxu0
        %2355 = vmatprep.mubr.f32.mxu0 0.0
        %2356 = vmatmul.mubr.f32.gmra.mrb[0].mxu0 %v1965
        %v2357 = vpop.f32.mrb[0].mxu0
        %v2358 = vadd.f32 %v2143, %v2357
        %v2359 = vpop.f32.mrb[0].mxu0
        %2360 = vmatprep.mubr.f32.mxu0 0.0
        %2361 = vmatmul.mubr.f32.gmra.mrb[0].mxu0 %v1968
        %v2362 = vpop.f32.mrb[0].mxu0
        %v2363 = vadd.f32 %v2148, %v2362
        %v2364 = vpop.f32.mrb[0].mxu0
        %2365 = vmatprep.mubr.f32.mxu0 0.0
        %2366 = vmatmul.mubr.f32.gmra.mrb[0].mxu0 %v1971
        %v2367 = vpop.f32.mrb[0].mxu0
        %v2368 = vadd.f32 %v2153, %v2367
        %v2369 = vpop.f32.mrb[0].mxu0
        %2370 = vmatprep.mubr.f32.mxu0 0.0
        %2371 = vmatmul.mubr.f32.gmra.mrb[0].mxu0 %v1974
        %v2372 = vpop.f32.mrb[0].mxu0
        %v2373 = vadd.f32 %v2158, %v2372
        %v2374 = vpop.f32.mrb[0].mxu0
        %2375 = vmatprep.mubr.f32.mxu0 0.0
        %2376 = vmatmul.mubr.f32.gmra.mrb[0].mxu0 %v1977
        %v2377 = vpop.f32.mrb[0].mxu0
        %v2378 = vadd.f32 %v2163, %v2377
        %v2379 = vpop.f32.mrb[0].mxu0
        %2380 = vmatprep.mubr.f32.mxu0 0.0
        %2381 = vmatmul.mubr.f32.gmra.mrb[0].mxu0 %v1980
        %v2382 = vpop.f32.mrb[0].mxu0
        %v2383 = vadd.f32 %v2168, %v2382
        %v2384 = vpop.f32.mrb[0].mxu0
        %2385 = vmatprep.mubr.f32.mxu0 0.0
        %2386 = vmatmul.mubr.f32.gmra.mrb[0].mxu0 %v1983
        %v2387 = vpop.f32.mrb[0].mxu0
        %v2388 = vadd.f32 %v2173, %v2387
        %v2389 = vpop.f32.mrb[0].mxu0
        %2390 = vmatprep.mubr.f32.mxu0 0.0
        %2391 = vmatmul.mubr.f32.gmra.mrb[0].mxu0 %v1986
        %v2392 = vpop.f32.mrb[0].mxu0
        %v2393 = vadd.f32 %v2178, %v2392
        %v2394 = vpop.f32.mrb[0].mxu0
        %2395 = vmatprep.mubr.f32.mxu0 0.0
        %2396 = vmatmul.mubr.f32.gmra.mrb[0].mxu0 %v1989
        %v2397 = vpop.f32.mrb[0].mxu0
        %v2398 = vadd.f32 %v2183, %v2397
        %v2399 = vpop.f32.mrb[0].mxu0
        %2400 = vmatprep.mubr.f32.mxu0 0.0
        %2401 = vmatmul.mubr.f32.gmra.mrb[0].mxu0 %v1992
        %v2402 = vpop.f32.mrb[0].mxu0
        %v2403 = vadd.f32 %v2188, %v2402
        %v2404 = vpop.f32.mrb[0].mxu0
        %2405 = vmatprep.mubr.f32.mxu0 0.0
        %2406 = vmatmul.mubr.f32.gmra.mrb[0].mxu0 %v1995
        %v2407 = vpop.f32.mrb[0].mxu0
        %v2408 = vadd.f32 %v2193, %v2407
        %v2409 = vpop.f32.mrb[0].mxu0
        %2410 = vmatprep.mubr.f32.mxu0 0.0
        %2411 = vmatmul.mubr.f32.gmra.mrb[0].mxu0 %v1998
        %v2412 = vpop.f32.mrb[0].mxu0
        %v2413 = vadd.f32 %v2198, %v2412
        %v2414 = vpop.f32.mrb[0].mxu0
        %2415 = vmatprep.mubr.f32.mxu0 0.0
        %2416 = vmatmul.mubr.f32.gmra.mrb[0].mxu0 %v2001
        %v2417 = vpop.f32.mrb[0].mxu0
        %v2418 = vadd.f32 %v2203, %v2417
        %v2419 = vpop.f32.mrb[0].mxu0
        %2420 = vmatprep.mubr.f32.mxu0 0.0
        %2421 = vmatmul.mubr.f32.gmra.mrb[0].mxu0 %v2004
        %v2422 = vpop.f32.mrb[0].mxu0
        %v2423 = vadd.f32 %v2208, %v2422
        %v2424 = vpop.f32.mrb[0].mxu0
        %2425 = vmatprep.mubr.f32.mxu0 0.0
        %2426 = vmatmul.mubr.f32.gmra.mrb[0].mxu0 %v2007
        %v2427 = vpop.f32.mrb[0].mxu0
        %v2428 = vadd.f32 %v2213, %v2427
        %v2429 = vpop.f32.mrb[0].mxu0
        %2430 = vmatprep.mubr.f32.mxu0 0.0
        %2431 = vmatmul.mubr.f32.gmra.mrb[0].mxu0 %v2010
        %v2432 = vpop.f32.mrb[0].mxu0
        %v2433 = vadd.f32 %v2218, %v2432
        %v2434 = vpop.f32.mrb[0].mxu0
        %2435 = vmatprep.mubr.f32.mxu0 0.0
        %2436 = vmatmul.mubr.f32.gmra.mrb[0].mxu0 %v2013
        %v2437 = vpop.f32.mrb[0].mxu0
        %v2438 = vadd.f32 %v2223, %v2437
        %v2439 = vpop.f32.mrb[0].mxu0
        %2440 = vmatprep.mubr.f32.mxu0 0.0
        %2441 = vmatmul.mubr.f32.gmra.mrb[0].mxu0 %v2016
        %v2442 = vpop.f32.mrb[0].mxu0
        %v2443 = vadd.f32 %v2228, %v2442
        %v2444 = vpop.f32.mrb[0].mxu0
        %2445 = vmatprep.mubr.f32.mxu0 0.0
        %2446 = vmatmul.mubr.f32.gmra.mrb[0].mxu0 %v2019
        %v2447 = vpop.f32.mrb[0].mxu0
        %v2448 = vadd.f32 %v2233, %v2447
        %v2449 = vpop.f32.mrb[0].mxu0
        %2450 = vdwg.mxu0
        %v2451 = vmax.f32 %v2303, 0.0
        %v2452 = vmax.f32 %v2308, 0.0
        %v2453 = vmax.f32 %v2313, 0.0
        %v2454 = vmax.f32 %v2318, 0.0
        %v2455 = vmax.f32 %v2323, 0.0
        %v2456 = vmax.f32 %v2328, 0.0
        %v2457 = vmax.f32 %v2333, 0.0
        %v2458 = vmax.f32 %v2338, 0.0
        %v2459 = vmax.f32 %v2343, 0.0
        %v2460 = vmax.f32 %v2348, 0.0
        %v2461 = vmax.f32 %v2353, 0.0
        %v2462 = vmax.f32 %v2358, 0.0
        %v2463 = vmax.f32 %v2363, 0.0
        %v2464 = vmax.f32 %v2368, 0.0
        %v2465 = vmax.f32 %v2373, 0.0
        %v2466 = vmax.f32 %v2378, 0.0
        %v2467 = vmax.f32 %v2383, 0.0
        %v2468 = vmax.f32 %v2388, 0.0
        %v2469 = vmax.f32 %v2393, 0.0
        %v2470 = vmax.f32 %v2398, 0.0
        %v2471 = vmax.f32 %v2403, 0.0
        %v2472 = vmax.f32 %v2408, 0.0
        %v2473 = vmax.f32 %v2413, 0.0
        %v2474 = vmax.f32 %v2418, 0.0
        %v2475 = vmax.f32 %v2423, 0.0
        %v2476 = vmax.f32 %v2428, 0.0
        %v2477 = vmax.f32 %v2433, 0.0
        %v2478 = vmax.f32 %v2438, 0.0
        %v2479 = vmax.f32 %v2443, 0.0
        %v2480 = vmax.f32 %v2448, 0.0
        %v2481 = vld [vmem:[%s16] sm:$0xff]
        %v2482 = vld [vmem:[%s16 + $0x8] sm:$0xff]
        %v2483 = vld [vmem:[%s16 + $0x10] sm:$0xff]
        %v2484 = vld [vmem:[%s16 + $0x18] sm:$0x7]
        %vm2485 = vcmask 220160
        %v2487 = vsel %vm2485, %v2451, 0
        %v2490 = vsel %vm2485, %v2452, 0
        %v2493 = vsel %vm2485, %v2453, 0
        %v2496 = vsel %vm2485, %v2454, 0
        %v2499 = vsel %vm2485, %v2455, 0
        %v2502 = vsel %vm2485, %v2456, 0
        %v2505 = vsel %vm2485, %v2457, 0
        %v2508 = vsel %vm2485, %v2458, 0
        %v2511 = vsel %vm2485, %v2459, 0
        %v2514 = vsel %vm2485, %v2460, 0
        %v2517 = vsel %vm2485, %v2461, 0
        %v2520 = vsel %vm2485, %v2462, 0
        %v2523 = vsel %vm2485, %v2463, 0
        %v2526 = vsel %vm2485, %v2464, 0
        %v2529 = vsel %vm2485, %v2465, 0
        %v2532 = vsel %vm2485, %v2466, 0
        %v2535 = vsel %vm2485, %v2467, 0
        %v2538 = vsel %vm2485, %v2468, 0
        %v2541 = vsel %vm2485, %v2469, 0
        %v2544 = vsel %vm2485, %v2470, 0
        %v2547 = vsel %vm2485, %v2471, 0
        %v2550 = vsel %vm2485, %v2472, 0
        %v2553 = vsel %vm2485, %v2473, 0
        %v2556 = vsel %vm2485, %v2474, 0
        %v2559 = vsel %vm2485, %v2475, 0
        %v2562 = vsel %vm2485, %v2476, 0
        %v2565 = vsel %vm2485, %v2477, 0
        %v2568 = vsel %vm2485, %v2478, 0
        %v2571 = vsel %vm2485, %v2479, 0
        %v2574 = vsel %vm2485, %v2480, 0
        %vm2576 = vcmask 1042432
        %v2578 = vsel %vm2576, %v2484, 0
        %2580 = vmatprep.subr.mxu0 0.0
        %2581 = vmatpush1.msra.mxu0 %v2481
        %2582 = vmatprep.subr.mxu0 0.0
        %2583 = vmatpush1.msra.mxu0 %v2482
        %2584 = vmatprep.subr.mxu0 0.0
        %2585 = vmatpush1.msra.mxu0 %v2483
        %2586 = vmatprep.subr.mxu0 0.0
        %2587 = vmatpush1.msra.mxu0 %v2578
        %2588 = vmatprep.subr.mxu0 0.0
        %2589 = vmatpush1.msra.mxu0 0.0
        %2590 = vmatprep.subr.mxu0 0.0
        %2591 = vmatpush1.msra.mxu0 0.0
        %2592 = vmatprep.subr.mxu0 0.0
        %2593 = vmatpush1.msra.mxu0 0.0
        %2594 = vmatprep.subr.mxu0 0.0
        %2595 = vmatpush1.msra.mxu0 0.0
        %2596 = vmatprep.subr.mxu0 0.0
        %2597 = vmatpush1.msra.mxu0 0.0
        %2598 = vmatprep.subr.mxu0 0.0
        %2599 = vmatpush1.msra.mxu0 0.0
        %2600 = vmatprep.subr.mxu0 0.0
        %2601 = vmatpush1.msra.mxu0 0.0
        %2602 = vmatprep.subr.mxu0 0.0
        %2603 = vmatpush1.msra.mxu0 0.0
        %2604 = vmatprep.subr.mxu0 0.0
        %2605 = vmatpush1.msra.mxu0 0.0
        %2606 = vmatprep.subr.mxu0 0.0
        %2607 = vmatpush1.msra.mxu0 0.0
        %2608 = vmatprep.subr.mxu0 0.0
        %2609 = vmatpush1.msra.mxu0 0.0
        %2610 = vmatprep.subr.mxu0 0.0
        %2611 = vmatpush1.msra.mxu0 0.0
        %2612 = vmatprep.subr.mxu0 0.0
        %2613 = vmatpush1.msra.mxu0 0.0
        %2614 = vmatprep.subr.mxu0 0.0
        %2615 = vmatpush1.msra.mxu0 0.0
        %2616 = vmatprep.subr.mxu0 0.0
        %2617 = vmatpush1.msra.mxu0 0.0
        %2618 = vmatprep.subr.mxu0 0.0
        %2619 = vmatpush1.msra.mxu0 0.0
        %2620 = vmatprep.subr.mxu0 0.0
        %2621 = vmatpush1.msra.mxu0 0.0
        %2622 = vmatprep.subr.mxu0 0.0
        %2623 = vmatpush1.msra.mxu0 0.0
        %2624 = vmatprep.subr.mxu0 0.0
        %2625 = vmatpush1.msra.mxu0 0.0
        %2626 = vmatprep.subr.mxu0 0.0
        %2627 = vmatpush1.msra.mxu0 0.0
        %2628 = vmatprep.subr.mxu0 0.0
        %2629 = vmatpush1.msra.mxu0 0.0
        %2630 = vmatprep.subr.mxu0 0.0
        %2631 = vmatpush1.msra.mxu0 0.0
        %2632 = vmatprep.subr.mxu0 0.0
        %2633 = vmatpush1.msra.mxu0 0.0
        %2634 = vmatprep.subr.mxu0 0.0
        %2635 = vmatpush1.msra.mxu0 0.0
        %2636 = vmatprep.subr.mxu0 0.0
        %2637 = vmatpush1.msra.mxu0 0.0
        %2638 = vmatprep.subr.mxu0 0.0
        %2639 = vmatpush1.msra.mxu0 0.0
        %2640 = vmatprep.subr.mxu0 0.0
        %2641 = vmatpush1.msra.mxu0 0.0
        %2642 = vmatprep.subr.mxu0 0.0
        %2643 = vmatpush1.msra.mxu0 0.0
        %2644 = vmatprep.mubr.f32.mxu0 0.0
        %2645 = vmatmul.mubr.f32.gmra.mrb[0].mxu0 %v2487
        %v2646 = vpop.f32.mrb[0].mxu0
        %v2647 = vadd.f32 0.0, %v2646
        %v2648 = vpop.f32.mrb[0].mxu0
        %2649 = vmatprep.mubr.f32.mxu0 0.0
        %2650 = vmatmul.mubr.f32.gmra.mrb[0].mxu0 %v2490
        %v2651 = vpop.f32.mrb[0].mxu0
        %v2652 = vadd.f32 0.0, %v2651
        %v2653 = vpop.f32.mrb[0].mxu0
        %2654 = vmatprep.mubr.f32.mxu0 0.0
        %2655 = vmatmul.mubr.f32.gmra.mrb[0].mxu0 %v2493
        %v2656 = vpop.f32.mrb[0].mxu0
        %v2657 = vadd.f32 0.0, %v2656
        %v2658 = vpop.f32.mrb[0].mxu0
        %2659 = vmatprep.mubr.f32.mxu0 0.0
        %2660 = vmatmul.mubr.f32.gmra.mrb[0].mxu0 %v2496
        %v2661 = vpop.f32.mrb[0].mxu0
        %v2662 = vadd.f32 0.0, %v2661
        %v2663 = vpop.f32.mrb[0].mxu0
        %2664 = vmatprep.mubr.f32.mxu0 0.0
        %2665 = vmatmul.mubr.f32.gmra.mrb[0].mxu0 %v2499
        %v2666 = vpop.f32.mrb[0].mxu0
        %v2667 = vadd.f32 0.0, %v2666
        %v2668 = vpop.f32.mrb[0].mxu0
        %2669 = vmatprep.mubr.f32.mxu0 0.0
        %2670 = vmatmul.mubr.f32.gmra.mrb[0].mxu0 %v2502
        %v2671 = vpop.f32.mrb[0].mxu0
        %v2672 = vadd.f32 0.0, %v2671
        %v2673 = vpop.f32.mrb[0].mxu0
        %2674 = vmatprep.mubr.f32.mxu0 0.0
        %2675 = vmatmul.mubr.f32.gmra.mrb[0].mxu0 %v2505
        %v2676 = vpop.f32.mrb[0].mxu0
        %v2677 = vadd.f32 0.0, %v2676
        %v2678 = vpop.f32.mrb[0].mxu0
        %2679 = vmatprep.mubr.f32.mxu0 0.0
        %2680 = vmatmul.mubr.f32.gmra.mrb[0].mxu0 %v2508
        %v2681 = vpop.f32.mrb[0].mxu0
        %v2682 = vadd.f32 0.0, %v2681
        %v2683 = vpop.f32.mrb[0].mxu0
        %2684 = vmatprep.mubr.f32.mxu0 0.0
        %2685 = vmatmul.mubr.f32.gmra.mrb[0].mxu0 %v2511
        %v2686 = vpop.f32.mrb[0].mxu0
        %v2687 = vadd.f32 0.0, %v2686
        %v2688 = vpop.f32.mrb[0].mxu0
        %2689 = vmatprep.mubr.f32.mxu0 0.0
        %2690 = vmatmul.mubr.f32.gmra.mrb[0].mxu0 %v2514
        %v2691 = vpop.f32.mrb[0].mxu0
        %v2692 = vadd.f32 0.0, %v2691
        %v2693 = vpop.f32.mrb[0].mxu0
        %2694 = vmatprep.mubr.f32.mxu0 0.0
        %2695 = vmatmul.mubr.f32.gmra.mrb[0].mxu0 %v2517
        %v2696 = vpop.f32.mrb[0].mxu0
        %v2697 = vadd.f32 0.0, %v2696
        %v2698 = vpop.f32.mrb[0].mxu0
        %2699 = vmatprep.mubr.f32.mxu0 0.0
        %2700 = vmatmul.mubr.f32.gmra.mrb[0].mxu0 %v2520
        %v2701 = vpop.f32.mrb[0].mxu0
        %v2702 = vadd.f32 0.0, %v2701
        %v2703 = vpop.f32.mrb[0].mxu0
        %2704 = vmatprep.mubr.f32.mxu0 0.0
        %2705 = vmatmul.mubr.f32.gmra.mrb[0].mxu0 %v2523
        %v2706 = vpop.f32.mrb[0].mxu0
        %v2707 = vadd.f32 0.0, %v2706
        %v2708 = vpop.f32.mrb[0].mxu0
        %2709 = vmatprep.mubr.f32.mxu0 0.0
        %2710 = vmatmul.mubr.f32.gmra.mrb[0].mxu0 %v2526
        %v2711 = vpop.f32.mrb[0].mxu0
        %v2712 = vadd.f32 0.0, %v2711
        %v2713 = vpop.f32.mrb[0].mxu0
        %2714 = vmatprep.mubr.f32.mxu0 0.0
        %2715 = vmatmul.mubr.f32.gmra.mrb[0].mxu0 %v2529
        %v2716 = vpop.f32.mrb[0].mxu0
        %v2717 = vadd.f32 0.0, %v2716
        %v2718 = vpop.f32.mrb[0].mxu0
        %2719 = vmatprep.mubr.f32.mxu0 0.0
        %2720 = vmatmul.mubr.f32.gmra.mrb[0].mxu0 %v2532
        %v2721 = vpop.f32.mrb[0].mxu0
        %v2722 = vadd.f32 0.0, %v2721
        %v2723 = vpop.f32.mrb[0].mxu0
        %2724 = vmatprep.mubr.f32.mxu0 0.0
        %2725 = vmatmul.mubr.f32.gmra.mrb[0].mxu0 %v2535
        %v2726 = vpop.f32.mrb[0].mxu0
        %v2727 = vadd.f32 0.0, %v2726
        %v2728 = vpop.f32.mrb[0].mxu0
        %2729 = vmatprep.mubr.f32.mxu0 0.0
        %2730 = vmatmul.mubr.f32.gmra.mrb[0].mxu0 %v2538
        %v2731 = vpop.f32.mrb[0].mxu0
        %v2732 = vadd.f32 0.0, %v2731
        %v2733 = vpop.f32.mrb[0].mxu0
        %2734 = vmatprep.mubr.f32.mxu0 0.0
        %2735 = vmatmul.mubr.f32.gmra.mrb[0].mxu0 %v2541
        %v2736 = vpop.f32.mrb[0].mxu0
        %v2737 = vadd.f32 0.0, %v2736
        %v2738 = vpop.f32.mrb[0].mxu0
        %2739 = vmatprep.mubr.f32.mxu0 0.0
        %2740 = vmatmul.mubr.f32.gmra.mrb[0].mxu0 %v2544
        %v2741 = vpop.f32.mrb[0].mxu0
        %v2742 = vadd.f32 0.0, %v2741
        %v2743 = vpop.f32.mrb[0].mxu0
        %2744 = vmatprep.mubr.f32.mxu0 0.0
        %2745 = vmatmul.mubr.f32.gmra.mrb[0].mxu0 %v2547
        %v2746 = vpop.f32.mrb[0].mxu0
        %v2747 = vadd.f32 0.0, %v2746
        %v2748 = vpop.f32.mrb[0].mxu0
        %2749 = vmatprep.mubr.f32.mxu0 0.0
        %2750 = vmatmul.mubr.f32.gmra.mrb[0].mxu0 %v2550
        %v2751 = vpop.f32.mrb[0].mxu0
        %v2752 = vadd.f32 0.0, %v2751
        %v2753 = vpop.f32.mrb[0].mxu0
        %2754 = vmatprep.mubr.f32.mxu0 0.0
        %2755 = vmatmul.mubr.f32.gmra.mrb[0].mxu0 %v2553
        %v2756 = vpop.f32.mrb[0].mxu0
        %v2757 = vadd.f32 0.0, %v2756
        %v2758 = vpop.f32.mrb[0].mxu0
        %2759 = vmatprep.mubr.f32.mxu0 0.0
        %2760 = vmatmul.mubr.f32.gmra.mrb[0].mxu0 %v2556
        %v2761 = vpop.f32.mrb[0].mxu0
        %v2762 = vadd.f32 0.0, %v2761
        %v2763 = vpop.f32.mrb[0].mxu0
        %2764 = vmatprep.mubr.f32.mxu0 0.0
        %2765 = vmatmul.mubr.f32.gmra.mrb[0].mxu0 %v2559
        %v2766 = vpop.f32.mrb[0].mxu0
        %v2767 = vadd.f32 0.0, %v2766
        %v2768 = vpop.f32.mrb[0].mxu0
        %2769 = vmatprep.mubr.f32.mxu0 0.0
        %2770 = vmatmul.mubr.f32.gmra.mrb[0].mxu0 %v2562
        %v2771 = vpop.f32.mrb[0].mxu0
        %v2772 = vadd.f32 0.0, %v2771
        %v2773 = vpop.f32.mrb[0].mxu0
        %2774 = vmatprep.mubr.f32.mxu0 0.0
        %2775 = vmatmul.mubr.f32.gmra.mrb[0].mxu0 %v2565
        %v2776 = vpop.f32.mrb[0].mxu0
        %v2777 = vadd.f32 0.0, %v2776
        %v2778 = vpop.f32.mrb[0].mxu0
        %2779 = vmatprep.mubr.f32.mxu0 0.0
        %2780 = vmatmul.mubr.f32.gmra.mrb[0].mxu0 %v2568
        %v2781 = vpop.f32.mrb[0].mxu0
        %v2782 = vadd.f32 0.0, %v2781
        %v2783 = vpop.f32.mrb[0].mxu0
        %2784 = vmatprep.mubr.f32.mxu0 0.0
        %2785 = vmatmul.mubr.f32.gmra.mrb[0].mxu0 %v2571
        %v2786 = vpop.f32.mrb[0].mxu0
        %v2787 = vadd.f32 0.0, %v2786
        %v2788 = vpop.f32.mrb[0].mxu0
        %2789 = vmatprep.mubr.f32.mxu0 0.0
        %2790 = vmatmul.mubr.f32.gmra.mrb[0].mxu0 %v2574
        %v2791 = vpop.f32.mrb[0].mxu0
        %v2792 = vadd.f32 0.0, %v2791
        %v2793 = vpop.f32.mrb[0].mxu0
        %2794 = vdwg.mxu0
        %2825 = vrot.lane.b32.xlu0 %v2647, 127
        %v2826 = vpop.permute.xlu0 %2825
        %2827 = vrot.lane.b32.xlu0 %v2652, 127
        %v2828 = vpop.permute.xlu0 %2827
        %2829 = vrot.lane.b32.xlu0 %v2657, 127
        %v2830 = vpop.permute.xlu0 %2829
        %2831 = vrot.lane.b32.xlu0 %v2662, 127
        %v2832 = vpop.permute.xlu0 %2831
        %2833 = vrot.lane.b32.xlu0 %v2667, 127
        %v2834 = vpop.permute.xlu0 %2833
        %2835 = vrot.lane.b32.xlu0 %v2672, 127
        %v2836 = vpop.permute.xlu0 %2835
        %2837 = vrot.lane.b32.xlu0 %v2677, 127
        %v2838 = vpop.permute.xlu0 %2837
        %2839 = vrot.lane.b32.xlu0 %v2682, 127
        %v2840 = vpop.permute.xlu0 %2839
        %2841 = vrot.lane.b32.xlu0 %v2687, 127
        %v2842 = vpop.permute.xlu0 %2841
        %2843 = vrot.lane.b32.xlu0 %v2692, 127
        %v2844 = vpop.permute.xlu0 %2843
        %2845 = vrot.lane.b32.xlu0 %v2697, 127
        %v2846 = vpop.permute.xlu0 %2845
        %2847 = vrot.lane.b32.xlu0 %v2702, 127
        %v2848 = vpop.permute.xlu0 %2847
        %2849 = vrot.lane.b32.xlu0 %v2707, 127
        %v2850 = vpop.permute.xlu0 %2849
        %2851 = vrot.lane.b32.xlu0 %v2712, 127
        %v2852 = vpop.permute.xlu0 %2851
        %2853 = vrot.lane.b32.xlu0 %v2717, 127
        %v2854 = vpop.permute.xlu0 %2853
        %2855 = vrot.lane.b32.xlu0 %v2722, 127
        %v2856 = vpop.permute.xlu0 %2855
        %2857 = vrot.lane.b32.xlu0 %v2727, 127
        %v2858 = vpop.permute.xlu0 %2857
        %2859 = vrot.lane.b32.xlu0 %v2732, 127
        %v2860 = vpop.permute.xlu0 %2859
        %2861 = vrot.lane.b32.xlu0 %v2737, 127
        %v2862 = vpop.permute.xlu0 %2861
        %2863 = vrot.lane.b32.xlu0 %v2742, 127
        %v2864 = vpop.permute.xlu0 %2863
        %2865 = vrot.lane.b32.xlu0 %v2747, 127
        %v2866 = vpop.permute.xlu0 %2865
        %2867 = vrot.lane.b32.xlu0 %v2752, 127
        %v2868 = vpop.permute.xlu0 %2867
        %2869 = vrot.lane.b32.xlu0 %v2757, 127
        %v2870 = vpop.permute.xlu0 %2869
        %2871 = vrot.lane.b32.xlu0 %v2762, 127
        %v2872 = vpop.permute.xlu0 %2871
        %2873 = vrot.lane.b32.xlu0 %v2767, 127
        %v2874 = vpop.permute.xlu0 %2873
        %2875 = vrot.lane.b32.xlu0 %v2772, 127
        %v2876 = vpop.permute.xlu0 %2875
        %2877 = vrot.lane.b32.xlu0 %v2777, 127
        %v2878 = vpop.permute.xlu0 %2877
        %2879 = vrot.lane.b32.xlu0 %v2782, 127
        %v2880 = vpop.permute.xlu0 %2879
        %2881 = vrot.lane.b32.xlu0 %v2787, 127
        %v2882 = vpop.permute.xlu0 %2881
        %2883 = vrot.lane.b32.xlu0 %v2792, 127
        %v2884 = vpop.permute.xlu0 %2883
        %2915 = vrot.lane.b32.xlu0 %v2647, 126
        %v2916 = vpop.permute.xlu0 %2915
        %2917 = vrot.lane.b32.xlu0 %v2652, 126
        %v2918 = vpop.permute.xlu0 %2917
        %2919 = vrot.lane.b32.xlu0 %v2657, 126
        %v2920 = vpop.permute.xlu0 %2919
        %2921 = vrot.lane.b32.xlu0 %v2662, 126
        %v2922 = vpop.permute.xlu0 %2921
        %2923 = vrot.lane.b32.xlu0 %v2667, 126
        %v2924 = vpop.permute.xlu0 %2923
        %2925 = vrot.lane.b32.xlu0 %v2672, 126
        %v2926 = vpop.permute.xlu0 %2925
        %2927 = vrot.lane.b32.xlu0 %v2677, 126
        %v2928 = vpop.permute.xlu0 %2927
        %2929 = vrot.lane.b32.xlu0 %v2682, 126
        %v2930 = vpop.permute.xlu0 %2929
        %2931 = vrot.lane.b32.xlu0 %v2687, 126
        %v2932 = vpop.permute.xlu0 %2931
        %2933 = vrot.lane.b32.xlu0 %v2692, 126
        %v2934 = vpop.permute.xlu0 %2933
        %2935 = vrot.lane.b32.xlu0 %v2697, 126
        %v2936 = vpop.permute.xlu0 %2935
        %2937 = vrot.lane.b32.xlu0 %v2702, 126
        %v2938 = vpop.permute.xlu0 %2937
        %2939 = vrot.lane.b32.xlu0 %v2707, 126
        %v2940 = vpop.permute.xlu0 %2939
        %2941 = vrot.lane.b32.xlu0 %v2712, 126
        %v2942 = vpop.permute.xlu0 %2941
        %2943 = vrot.lane.b32.xlu0 %v2717, 126
        %v2944 = vpop.permute.xlu0 %2943
        %2945 = vrot.lane.b32.xlu0 %v2722, 126
        %v2946 = vpop.permute.xlu0 %2945
        %2947 = vrot.lane.b32.xlu0 %v2727, 126
        %v2948 = vpop.permute.xlu0 %2947
        %2949 = vrot.lane.b32.xlu0 %v2732, 126
        %v2950 = vpop.permute.xlu0 %2949
        %2951 = vrot.lane.b32.xlu0 %v2737, 126
        %v2952 = vpop.permute.xlu0 %2951
        %2953 = vrot.lane.b32.xlu0 %v2742, 126
        %v2954 = vpop.permute.xlu0 %2953
        %2955 = vrot.lane.b32.xlu0 %v2747, 126
        %v2956 = vpop.permute.xlu0 %2955
        %2957 = vrot.lane.b32.xlu0 %v2752, 126
        %v2958 = vpop.permute.xlu0 %2957
        %2959 = vrot.lane.b32.xlu0 %v2757, 126
        %v2960 = vpop.permute.xlu0 %2959
        %2961 = vrot.lane.b32.xlu0 %v2762, 126
        %v2962 = vpop.permute.xlu0 %2961
        %2963 = vrot.lane.b32.xlu0 %v2767, 126
        %v2964 = vpop.permute.xlu0 %2963
        %2965 = vrot.lane.b32.xlu0 %v2772, 126
        %v2966 = vpop.permute.xlu0 %2965
        %2967 = vrot.lane.b32.xlu0 %v2777, 126
        %v2968 = vpop.permute.xlu0 %2967
        %2969 = vrot.lane.b32.xlu0 %v2782, 126
        %v2970 = vpop.permute.xlu0 %2969
        %2971 = vrot.lane.b32.xlu0 %v2787, 126
        %v2972 = vpop.permute.xlu0 %2971
        %2973 = vrot.lane.b32.xlu0 %v2792, 126
        %v2974 = vpop.permute.xlu0 %2973
        %v3005 = vld [vmem:[%s9] sm:$0xff]
        %v3006 = vld [vmem:[%s9 + $0x8] sm:$0xff]
        %v3007 = vld [vmem:[%s9 + $0x10] sm:$0xff]
        %v3008 = vld [vmem:[%s9 + $0x18] sm:$0xff]
        %v3009 = vld [vmem:[%s9 + $0x20] sm:$0xff]
        %v3010 = vld [vmem:[%s9 + $0x28] sm:$0xff]
        %v3011 = vld [vmem:[%s9 + $0x30] sm:$0xff]
        %v3012 = vld [vmem:[%s9 + $0x38] sm:$0xff]
        %v3013 = vld [vmem:[%s9 + $0x40] sm:$0xff]
        %v3014 = vld [vmem:[%s9 + $0x48] sm:$0xff]
        %v3015 = vld [vmem:[%s9 + $0x50] sm:$0xff]
        %v3016 = vld [vmem:[%s9 + $0x58] sm:$0xff]
        %v3017 = vld [vmem:[%s9 + $0x60] sm:$0xff]
        %v3018 = vld [vmem:[%s9 + $0x68] sm:$0xff]
        %v3019 = vld [vmem:[%s9 + $0x70] sm:$0xff]
        %v3020 = vld [vmem:[%s9 + $0x78] sm:$0xff]
        %v3021 = vld [vmem:[%s9 + $0x80] sm:$0xff]
        %v3022 = vld [vmem:[%s9 + $0x88] sm:$0xff]
        %v3023 = vld [vmem:[%s9 + $0x90] sm:$0xff]
        %v3024 = vld [vmem:[%s9 + $0x98] sm:$0xff]
        %v3025 = vld [vmem:[%s9 + $0xa0] sm:$0xff]
        %v3026 = vld [vmem:[%s9 + $0xa8] sm:$0xff]
        %v3027 = vld [vmem:[%s9 + $0xb0] sm:$0xff]
        %v3028 = vld [vmem:[%s9 + $0xb8] sm:$0xff]
        %v3029 = vld [vmem:[%s9 + $0xc0] sm:$0xff]
        %v3030 = vld [vmem:[%s9 + $0xc8] sm:$0xff]
        %v3031 = vld [vmem:[%s9 + $0xd0] sm:$0xff]
        %v3032 = vld [vmem:[%s9 + $0xd8] sm:$0xff]
        %v3033 = vld [vmem:[%s9 + $0xe0] sm:$0xff]
        %v3034 = vld [vmem:[%s9 + $0xe8] sm:$0xff]
        %v3035 = vld [vmem:[%s9 + $0xf0] sm:$0xff]
        %v3036 = vld [vmem:[%s9 + $0xf8] sm:$0xff]
        %v3037 = vld [vmem:[%s9 + $0x100] sm:$0xff]
        %v3038 = vld [vmem:[%s9 + $0x108] sm:$0xff]
        %v3039 = vld [vmem:[%s9 + $0x110] sm:$0xff]
        %v3040 = vld [vmem:[%s9 + $0x118] sm:$0xff]
        %v3041 = vld [vmem:[%s9 + $0x120] sm:$0xff]
        %v3042 = vld [vmem:[%s9 + $0x128] sm:$0xff]
        %v3043 = vld [vmem:[%s9 + $0x130] sm:$0xff]
        %v3044 = vld [vmem:[%s9 + $0x138] sm:$0xff]
        %v3045 = vld [vmem:[%s9 + $0x140] sm:$0xff]
        %v3046 = vld [vmem:[%s9 + $0x148] sm:$0xff]
        %v3047 = vld [vmem:[%s9 + $0x150] sm:$0xff]
        %v3048 = vld [vmem:[%s9 + $0x158] sm:$0xff]
        %v3049 = vld [vmem:[%s9 + $0x160] sm:$0xff]
        %v3050 = vld [vmem:[%s9 + $0x168] sm:$0xff]
        %v3051 = vld [vmem:[%s9 + $0x170] sm:$0xff]
        %v3052 = vld [vmem:[%s9 + $0x178] sm:$0xff]
        %v3053 = vld [vmem:[%s9 + $0x180] sm:$0xff]
        %v3054 = vld [vmem:[%s9 + $0x188] sm:$0xff]
        %v3055 = vld [vmem:[%s9 + $0x190] sm:$0xff]
        %v3056 = vld [vmem:[%s9 + $0x198] sm:$0xff]
        %v3057 = vld [vmem:[%s9 + $0x1a0] sm:$0xff]
        %v3058 = vld [vmem:[%s9 + $0x1a8] sm:$0xff]
        %v3059 = vld [vmem:[%s9 + $0x1b0] sm:$0xff]
        %v3060 = vld [vmem:[%s9 + $0x1b8] sm:$0xff]
        %v3061 = vld [vmem:[%s9 + $0x1c0] sm:$0xff]
        %v3062 = vld [vmem:[%s9 + $0x1c8] sm:$0xff]
        %v3063 = vld [vmem:[%s9 + $0x1d0] sm:$0xff]
        %v3064 = vld [vmem:[%s9 + $0x1d8] sm:$0xff]
        %v3065 = vld [vmem:[%s9 + $0x1e0] sm:$0xff]
        %v3066 = vld [vmem:[%s9 + $0x1e8] sm:$0xff]
        %v3067 = vld [vmem:[%s9 + $0x1f0] sm:$0xff]
        %v3068 = vld [vmem:[%s9 + $0x1f8] sm:$0xff]
        %v3069 = vld [vmem:[%s9 + $0x200] sm:$0xff]
        %v3070 = vld [vmem:[%s9 + $0x208] sm:$0xff]
        %v3071 = vld [vmem:[%s9 + $0x210] sm:$0xff]
        %v3072 = vld [vmem:[%s9 + $0x218] sm:$0xff]
        %v3073 = vld [vmem:[%s9 + $0x220] sm:$0xff]
        %v3074 = vld [vmem:[%s9 + $0x228] sm:$0xff]
        %v3075 = vld [vmem:[%s9 + $0x230] sm:$0xff]
        %v3076 = vld [vmem:[%s9 + $0x238] sm:$0xff]
        %v3077 = vld [vmem:[%s9 + $0x240] sm:$0xff]
        %v3078 = vld [vmem:[%s9 + $0x248] sm:$0xff]
        %v3079 = vld [vmem:[%s9 + $0x250] sm:$0xff]
        %v3080 = vld [vmem:[%s9 + $0x258] sm:$0xff]
        %v3081 = vld [vmem:[%s9 + $0x260] sm:$0xff]
        %v3082 = vld [vmem:[%s9 + $0x268] sm:$0xff]
        %v3083 = vld [vmem:[%s9 + $0x270] sm:$0xff]
        %v3084 = vld [vmem:[%s9 + $0x278] sm:$0xff]
        %v3085 = vld [vmem:[%s9 + $0x280] sm:$0xff]
        %v3086 = vld [vmem:[%s9 + $0x288] sm:$0xff]
        %v3087 = vld [vmem:[%s9 + $0x290] sm:$0xff]
        %v3088 = vld [vmem:[%s9 + $0x298] sm:$0xff]
        %v3089 = vld [vmem:[%s9 + $0x2a0] sm:$0xff]
        %v3090 = vld [vmem:[%s9 + $0x2a8] sm:$0xff]
        %v3091 = vld [vmem:[%s9 + $0x2b0] sm:$0xff]
        %v3092 = vld [vmem:[%s9 + $0x2b8] sm:$0xff]
        %v3093 = vld [vmem:[%s9 + $0x2c0] sm:$0xff]
        %v3094 = vld [vmem:[%s9 + $0x2c8] sm:$0xff]
        %v3095 = vld [vmem:[%s10] sm:$0xff]
        %v3096 = vld [vmem:[%s10 + $0x8] sm:$0xff]
        %v3097 = vld [vmem:[%s10 + $0x10] sm:$0xff]
        %v3098 = vld [vmem:[%s10 + $0x18] sm:$0xff]
        %v3099 = vld [vmem:[%s10 + $0x20] sm:$0xff]
        %v3100 = vld [vmem:[%s10 + $0x28] sm:$0xff]
        %v3101 = vld [vmem:[%s10 + $0x30] sm:$0xff]
        %v3102 = vld [vmem:[%s10 + $0x38] sm:$0xff]
        %v3103 = vld [vmem:[%s10 + $0x40] sm:$0xff]
        %v3104 = vld [vmem:[%s10 + $0x48] sm:$0xff]
        %v3105 = vld [vmem:[%s10 + $0x50] sm:$0xff]
        %v3106 = vld [vmem:[%s10 + $0x58] sm:$0xff]
        %v3107 = vld [vmem:[%s10 + $0x60] sm:$0xff]
        %v3108 = vld [vmem:[%s10 + $0x68] sm:$0xff]
        %v3109 = vld [vmem:[%s10 + $0x70] sm:$0xff]
        %3111 = vset.pattern.permute.xlu0 0
        %3112 = vperm.xlu0 %3111, %v3095
        %v3113 = vpop.permute.xlu0 %3112
        %3116 = vset.pattern.permute.xlu0 0
        %3117 = vperm.xlu0 %3116, %v3096
        %v3118 = vpop.permute.xlu0 %3117
        %3121 = vset.pattern.permute.xlu0 0
        %3122 = vperm.xlu0 %3121, %v3097
        %v3123 = vpop.permute.xlu0 %3122
        %3126 = vset.pattern.permute.xlu0 0
        %3127 = vperm.xlu0 %3126, %v3098
        %v3128 = vpop.permute.xlu0 %3127
        %3131 = vset.pattern.permute.xlu0 0
        %3132 = vperm.xlu0 %3131, %v3099
        %v3133 = vpop.permute.xlu0 %3132
        %3136 = vset.pattern.permute.xlu0 0
        %3137 = vperm.xlu0 %3136, %v3100
        %v3138 = vpop.permute.xlu0 %3137
        %3141 = vset.pattern.permute.xlu0 0
        %3142 = vperm.xlu0 %3141, %v3101
        %v3143 = vpop.permute.xlu0 %3142
        %3146 = vset.pattern.permute.xlu0 0
        %3147 = vperm.xlu0 %3146, %v3102
        %v3148 = vpop.permute.xlu0 %3147
        %3151 = vset.pattern.permute.xlu0 0
        %3152 = vperm.xlu0 %3151, %v3103
        %v3153 = vpop.permute.xlu0 %3152
        %3156 = vset.pattern.permute.xlu0 0
        %3157 = vperm.xlu0 %3156, %v3104
        %v3158 = vpop.permute.xlu0 %3157
        %3161 = vset.pattern.permute.xlu0 0
        %3162 = vperm.xlu0 %3161, %v3105
        %v3163 = vpop.permute.xlu0 %3162
        %3166 = vset.pattern.permute.xlu0 0
        %3167 = vperm.xlu0 %3166, %v3106
        %v3168 = vpop.permute.xlu0 %3167
        %3171 = vset.pattern.permute.xlu0 0
        %3172 = vperm.xlu0 %3171, %v3107
        %v3173 = vpop.permute.xlu0 %3172
        %3176 = vset.pattern.permute.xlu0 0
        %3177 = vperm.xlu0 %3176, %v3108
        %v3178 = vpop.permute.xlu0 %3177
        %3181 = vset.pattern.permute.xlu0 0
        %3182 = vperm.xlu0 %3181, %v3109
        %v3183 = vpop.permute.xlu0 %3182
        %vm3185 = vcmask 654336
        %v3187 = vsel %vm3185, %v3010, 0
        %v3190 = vsel %vm3185, %v3016, 0
        %v3193 = vsel %vm3185, %v3022, 0
        %v3196 = vsel %vm3185, %v3028, 0
        %v3199 = vsel %vm3185, %v3034, 0
        %v3202 = vsel %vm3185, %v3040, 0
        %v3205 = vsel %vm3185, %v3046, 0
        %v3208 = vsel %vm3185, %v3052, 0
        %v3211 = vsel %vm3185, %v3058, 0
        %v3214 = vsel %vm3185, %v3064, 0
        %v3217 = vsel %vm3185, %v3070, 0
        %v3220 = vsel %vm3185, %v3076, 0
        %v3223 = vsel %vm3185, %v3082, 0
        %v3226 = vsel %vm3185, %v3088, 0
        %v3229 = vsel %vm3185, %v3094, 0
        %3231 = vmatprep.subr.mxu0 0.0
        %3232 = vmatpush1.msra.mxu0 %v2647
        %3233 = vmatprep.subr.mxu0 0.0
        %3234 = vmatpush1.msra.mxu0 %v2652
        %3235 = vmatprep.subr.mxu0 0.0
        %3236 = vmatpush1.msra.mxu0 %v2657
        %3237 = vmatprep.subr.mxu0 0.0
        %3238 = vmatpush1.msra.mxu0 %v2662
        %3239 = vmatprep.subr.mxu0 0.0
        %3240 = vmatpush1.msra.mxu0 %v2667
        %3241 = vmatprep.subr.mxu0 0.0
        %3242 = vmatpush1.msra.mxu0 %v2672
        %3243 = vmatprep.subr.mxu0 0.0
        %3244 = vmatpush1.msra.mxu0 %v2677
        %3245 = vmatprep.subr.mxu0 0.0
        %3246 = vmatpush1.msra.mxu0 %v2682
        %3247 = vmatprep.subr.mxu0 0.0
        %3248 = vmatpush1.msra.mxu0 %v2687
        %3249 = vmatprep.subr.mxu0 0.0
        %3250 = vmatpush1.msra.mxu0 %v2692
        %3251 = vmatprep.subr.mxu0 0.0
        %3252 = vmatpush1.msra.mxu0 %v2697
        %3253 = vmatprep.subr.mxu0 0.0
        %3254 = vmatpush1.msra.mxu0 %v2702
        %3255 = vmatprep.subr.mxu0 0.0
        %3256 = vmatpush1.msra.mxu0 %v2707
        %3257 = vmatprep.subr.mxu0 0.0
        %3258 = vmatpush1.msra.mxu0 %v2712
        %3259 = vmatprep.subr.mxu0 0.0
        %3260 = vmatpush1.msra.mxu0 %v2717
        %3261 = vmatprep.subr.mxu0 0.0
        %3262 = vmatpush1.msra.mxu0 %v2722
        %3263 = vmatprep.subr.mxu0 0.0
        %3264 = vmatpush1.msra.mxu0 %v2727
        %3265 = vmatprep.subr.mxu0 0.0
        %3266 = vmatpush1.msra.mxu0 %v2732
        %3267 = vmatprep.subr.mxu0 0.0
        %3268 = vmatpush1.msra.mxu0 %v2737
        %3269 = vmatprep.subr.mxu0 0.0
        %3270 = vmatpush1.msra.mxu0 %v2742
        %3271 = vmatprep.subr.mxu0 0.0
        %3272 = vmatpush1.msra.mxu0 %v2747
        %3273 = vmatprep.subr.mxu0 0.0
        %3274 = vmatpush1.msra.mxu0 %v2752
        %3275 = vmatprep.subr.mxu0 0.0
        %3276 = vmatpush1.msra.mxu0 %v2757
        %3277 = vmatprep.subr.mxu0 0.0
        %3278 = vmatpush1.msra.mxu0 %v2762
        %3279 = vmatprep.subr.mxu0 0.0
        %3280 = vmatpush1.msra.mxu0 %v2767
        %3281 = vmatprep.subr.mxu0 0.0
        %3282 = vmatpush1.msra.mxu0 %v2772
        %3283 = vmatprep.subr.mxu0 0.0
        %3284 = vmatpush1.msra.mxu0 %v2777
        %3285 = vmatprep.subr.mxu0 0.0
        %3286 = vmatpush1.msra.mxu0 %v2782
        %3287 = vmatprep.subr.mxu0 0.0
        %3288 = vmatpush1.msra.mxu0 %v2787
        %3289 = vmatprep.subr.mxu0 0.0
        %3290 = vmatpush1.msra.mxu0 %v2792
        %3291 = vmatprep.subr.mxu0 0.0
        %3292 = vmatpush1.msra.mxu0 %v2826
        %3293 = vmatprep.subr.mxu0 0.0
        %3294 = vmatpush1.msra.mxu0 %v2828
        %3295 = vmatprep.mubr.f32.mxu0 %v3006
        %3296 = vmatmul.mubr.f32.gmra.mrb[0].mxu0 %v3005
        %v3297 = vpop.f32.mrb[0].mxu0
        %v3298 = vadd.f32 %v3113, %v3297
        %v3299 = vpop.f32.mrb[0].mxu0
        %3300 = vmatprep.mubr.f32.mxu0 %v3012
        %3301 = vmatmul.mubr.f32.gmra.mrb[0].mxu0 %v3011
        %v3302 = vpop.f32.mrb[0].mxu0
        %v3303 = vadd.f32 %v3118, %v3302
        %v3304 = vpop.f32.mrb[0].mxu0
        %3305 = vmatprep.mubr.f32.mxu0 %v3018
        %3306 = vmatmul.mubr.f32.gmra.mrb[0].mxu0 %v3017
        %v3307 = vpop.f32.mrb[0].mxu0
        %v3308 = vadd.f32 %v3123, %v3307
        %v3309 = vpop.f32.mrb[0].mxu0
        %3310 = vmatprep.mubr.f32.mxu0 %v3024
        %3311 = vmatmul.mubr.f32.gmra.mrb[0].mxu0 %v3023
        %v3312 = vpop.f32.mrb[0].mxu0
        %v3313 = vadd.f32 %v3128, %v3312
        %v3314 = vpop.f32.mrb[0].mxu0
        %3315 = vmatprep.mubr.f32.mxu0 %v3030
        %3316 = vmatmul.mubr.f32.gmra.mrb[0].mxu0 %v3029
        %v3317 = vpop.f32.mrb[0].mxu0
        %v3318 = vadd.f32 %v3133, %v3317
        %v3319 = vpop.f32.mrb[0].mxu0
        %3320 = vmatprep.mubr.f32.mxu0 %v3036
        %3321 = vmatmul.mubr.f32.gmra.mrb[0].mxu0 %v3035
        %v3322 = vpop.f32.mrb[0].mxu0
        %v3323 = vadd.f32 %v3138, %v3322
        %v3324 = vpop.f32.mrb[0].mxu0
        %3325 = vmatprep.mubr.f32.mxu0 %v3042
        %3326 = vmatmul.mubr.f32.gmra.mrb[0].mxu0 %v3041
        %v3327 = vpop.f32.mrb[0].mxu0
        %v3328 = vadd.f32 %v3143, %v3327
        %v3329 = vpop.f32.mrb[0].mxu0
        %3330 = vmatprep.mubr.f32.mxu0 %v3048
        %3331 = vmatmul.mubr.f32.gmra.mrb[0].mxu0 %v3047
        %v3332 = vpop.f32.mrb[0].mxu0
        %v3333 = vadd.f32 %v3148, %v3332
        %v3334 = vpop.f32.mrb[0].mxu0
        %3335 = vmatprep.mubr.f32.mxu0 %v3054
        %3336 = vmatmul.mubr.f32.gmra.mrb[0].mxu0 %v3053
        %v3337 = vpop.f32.mrb[0].mxu0
        %v3338 = vadd.f32 %v3153, %v3337
        %v3339 = vpop.f32.mrb[0].mxu0
        %3340 = vmatprep.mubr.f32.mxu0 %v3060
        %3341 = vmatmul.mubr.f32.gmra.mrb[0].mxu0 %v3059
        %v3342 = vpop.f32.mrb[0].mxu0
        %v3343 = vadd.f32 %v3158, %v3342
        %v3344 = vpop.f32.mrb[0].mxu0
        %3345 = vmatprep.mubr.f32.mxu0 %v3066
        %3346 = vmatmul.mubr.f32.gmra.mrb[0].mxu0 %v3065
        %v3347 = vpop.f32.mrb[0].mxu0
        %v3348 = vadd.f32 %v3163, %v3347
        %v3349 = vpop.f32.mrb[0].mxu0
        %3350 = vmatprep.mubr.f32.mxu0 %v3072
        %3351 = vmatmul.mubr.f32.gmra.mrb[0].mxu0 %v3071
        %v3352 = vpop.f32.mrb[0].mxu0
        %v3353 = vadd.f32 %v3168, %v3352
        %v3354 = vpop.f32.mrb[0].mxu0
        %3355 = vmatprep.mubr.f32.mxu0 %v3078
        %3356 = vmatmul.mubr.f32.gmra.mrb[0].mxu0 %v3077
        %v3357 = vpop.f32.mrb[0].mxu0
        %v3358 = vadd.f32 %v3173, %v3357
        %v3359 = vpop.f32.mrb[0].mxu0
        %3360 = vmatprep.mubr.f32.mxu0 %v3084
        %3361 = vmatmul.mubr.f32.gmra.mrb[0].mxu0 %v3083
        %v3362 = vpop.f32.mrb[0].mxu0
        %v3363 = vadd.f32 %v3178, %v3362
        %v3364 = vpop.f32.mrb[0].mxu0
        %3365 = vmatprep.mubr.f32.mxu0 %v3090
        %3366 = vmatmul.mubr.f32.gmra.mrb[0].mxu0 %v3089
        %v3367 = vpop.f32.mrb[0].mxu0
        %v3368 = vadd.f32 %v3183, %v3367
        %v3369 = vpop.f32.mrb[0].mxu0
        %3370 = vdwg.mxu0
        %3371 = vmatprep.subr.mxu0 0.0
        %3372 = vmatpush1.msra.mxu0 %v2830
        %3373 = vmatprep.subr.mxu0 0.0
        %3374 = vmatpush1.msra.mxu0 %v2832
        %3375 = vmatprep.subr.mxu0 0.0
        %3376 = vmatpush1.msra.mxu0 %v2834
        %3377 = vmatprep.subr.mxu0 0.0
        %3378 = vmatpush1.msra.mxu0 %v2836
        %3379 = vmatprep.subr.mxu0 0.0
        %3380 = vmatpush1.msra.mxu0 %v2838
        %3381 = vmatprep.subr.mxu0 0.0
        %3382 = vmatpush1.msra.mxu0 %v2840
        %3383 = vmatprep.subr.mxu0 0.0
        %3384 = vmatpush1.msra.mxu0 %v2842
        %3385 = vmatprep.subr.mxu0 0.0
        %3386 = vmatpush1.msra.mxu0 %v2844
        %3387 = vmatprep.subr.mxu0 0.0
        %3388 = vmatpush1.msra.mxu0 %v2846
        %3389 = vmatprep.subr.mxu0 0.0
        %3390 = vmatpush1.msra.mxu0 %v2848
        %3391 = vmatprep.subr.mxu0 0.0
        %3392 = vmatpush1.msra.mxu0 %v2850
        %3393 = vmatprep.subr.mxu0 0.0
        %3394 = vmatpush1.msra.mxu0 %v2852
        %3395 = vmatprep.subr.mxu0 0.0
        %3396 = vmatpush1.msra.mxu0 %v2854
        %3397 = vmatprep.subr.mxu0 0.0
        %3398 = vmatpush1.msra.mxu0 %v2856
        %3399 = vmatprep.subr.mxu0 0.0
        %3400 = vmatpush1.msra.mxu0 %v2858
        %3401 = vmatprep.subr.mxu0 0.0
        %3402 = vmatpush1.msra.mxu0 %v2860
        %3403 = vmatprep.subr.mxu0 0.0
        %3404 = vmatpush1.msra.mxu0 %v2862
        %3405 = vmatprep.subr.mxu0 0.0
        %3406 = vmatpush1.msra.mxu0 %v2864
        %3407 = vmatprep.subr.mxu0 0.0
        %3408 = vmatpush1.msra.mxu0 %v2866
        %3409 = vmatprep.subr.mxu0 0.0
        %3410 = vmatpush1.msra.mxu0 %v2868
        %3411 = vmatprep.subr.mxu0 0.0
        %3412 = vmatpush1.msra.mxu0 %v2870
        %3413 = vmatprep.subr.mxu0 0.0
        %3414 = vmatpush1.msra.mxu0 %v2872
        %3415 = vmatprep.subr.mxu0 0.0
        %3416 = vmatpush1.msra.mxu0 %v2874
        %3417 = vmatprep.subr.mxu0 0.0
        %3418 = vmatpush1.msra.mxu0 %v2876
        %3419 = vmatprep.subr.mxu0 0.0
        %3420 = vmatpush1.msra.mxu0 %v2878
        %3421 = vmatprep.subr.mxu0 0.0
        %3422 = vmatpush1.msra.mxu0 %v2880
        %3423 = vmatprep.subr.mxu0 0.0
        %3424 = vmatpush1.msra.mxu0 %v2882
        %3425 = vmatprep.subr.mxu0 0.0
        %3426 = vmatpush1.msra.mxu0 %v2884
        %3427 = vmatprep.subr.mxu0 0.0
        %3428 = vmatpush1.msra.mxu0 %v2916
        %3429 = vmatprep.subr.mxu0 0.0
        %3430 = vmatpush1.msra.mxu0 %v2918
        %3431 = vmatprep.subr.mxu0 0.0
        %3432 = vmatpush1.msra.mxu0 %v2920
        %3433 = vmatprep.subr.mxu0 0.0
        %3434 = vmatpush1.msra.mxu0 %v2922
        %3435 = vmatprep.mubr.f32.mxu0 %v3008
        %3436 = vmatmul.mubr.f32.gmra.mrb[0].mxu0 %v3007
        %v3437 = vpop.f32.mrb[0].mxu0
        %v3438 = vadd.f32 %v3298, %v3437
        %v3439 = vpop.f32.mrb[0].mxu0
        %3440 = vmatprep.mubr.f32.mxu0 %v3014
        %3441 = vmatmul.mubr.f32.gmra.mrb[0].mxu0 %v3013
        %v3442 = vpop.f32.mrb[0].mxu0
        %v3443 = vadd.f32 %v3303, %v3442
        %v3444 = vpop.f32.mrb[0].mxu0
        %3445 = vmatprep.mubr.f32.mxu0 %v3020
        %3446 = vmatmul.mubr.f32.gmra.mrb[0].mxu0 %v3019
        %v3447 = vpop.f32.mrb[0].mxu0
        %v3448 = vadd.f32 %v3308, %v3447
        %v3449 = vpop.f32.mrb[0].mxu0
        %3450 = vmatprep.mubr.f32.mxu0 %v3026
        %3451 = vmatmul.mubr.f32.gmra.mrb[0].mxu0 %v3025
        %v3452 = vpop.f32.mrb[0].mxu0
        %v3453 = vadd.f32 %v3313, %v3452
        %v3454 = vpop.f32.mrb[0].mxu0
        %3455 = vmatprep.mubr.f32.mxu0 %v3032
        %3456 = vmatmul.mubr.f32.gmra.mrb[0].mxu0 %v3031
        %v3457 = vpop.f32.mrb[0].mxu0
        %v3458 = vadd.f32 %v3318, %v3457
        %v3459 = vpop.f32.mrb[0].mxu0
        %3460 = vmatprep.mubr.f32.mxu0 %v3038
        %3461 = vmatmul.mubr.f32.gmra.mrb[0].mxu0 %v3037
        %v3462 = vpop.f32.mrb[0].mxu0
        %v3463 = vadd.f32 %v3323, %v3462
        %v3464 = vpop.f32.mrb[0].mxu0
        %3465 = vmatprep.mubr.f32.mxu0 %v3044
        %3466 = vmatmul.mubr.f32.gmra.mrb[0].mxu0 %v3043
        %v3467 = vpop.f32.mrb[0].mxu0
        %v3468 = vadd.f32 %v3328, %v3467
        %v3469 = vpop.f32.mrb[0].mxu0
        %3470 = vmatprep.mubr.f32.mxu0 %v3050
        %3471 = vmatmul.mubr.f32.gmra.mrb[0].mxu0 %v3049
        %v3472 = vpop.f32.mrb[0].mxu0
        %v3473 = vadd.f32 %v3333, %v3472
        %v3474 = vpop.f32.mrb[0].mxu0
        %3475 = vmatprep.mubr.f32.mxu0 %v3056
        %3476 = vmatmul.mubr.f32.gmra.mrb[0].mxu0 %v3055
        %v3477 = vpop.f32.mrb[0].mxu0
        %v3478 = vadd.f32 %v3338, %v3477
        %v3479 = vpop.f32.mrb[0].mxu0
        %3480 = vmatprep.mubr.f32.mxu0 %v3062
        %3481 = vmatmul.mubr.f32.gmra.mrb[0].mxu0 %v3061
        %v3482 = vpop.f32.mrb[0].mxu0
        %v3483 = vadd.f32 %v3343, %v3482
        %v3484 = vpop.f32.mrb[0].mxu0
        %3485 = vmatprep.mubr.f32.mxu0 %v3068
        %3486 = vmatmul.mubr.f32.gmra.mrb[0].mxu0 %v3067
        %v3487 = vpop.f32.mrb[0].mxu0
        %v3488 = vadd.f32 %v3348, %v3487
        %v3489 = vpop.f32.mrb[0].mxu0
        %3490 = vmatprep.mubr.f32.mxu0 %v3074
        %3491 = vmatmul.mubr.f32.gmra.mrb[0].mxu0 %v3073
        %v3492 = vpop.f32.mrb[0].mxu0
        %v3493 = vadd.f32 %v3353, %v3492
        %v3494 = vpop.f32.mrb[0].mxu0
        %3495 = vmatprep.mubr.f32.mxu0 %v3080
        %3496 = vmatmul.mubr.f32.gmra.mrb[0].mxu0 %v3079
        %v3497 = vpop.f32.mrb[0].mxu0
        %v3498 = vadd.f32 %v3358, %v3497
        %v3499 = vpop.f32.mrb[0].mxu0
        %3500 = vmatprep.mubr.f32.mxu0 %v3086
        %3501 = vmatmul.mubr.f32.gmra.mrb[0].mxu0 %v3085
        %v3502 = vpop.f32.mrb[0].mxu0
        %v3503 = vadd.f32 %v3363, %v3502
        %v3504 = vpop.f32.mrb[0].mxu0
        %3505 = vmatprep.mubr.f32.mxu0 %v3092
        %3506 = vmatmul.mubr.f32.gmra.mrb[0].mxu0 %v3091
        %v3507 = vpop.f32.mrb[0].mxu0
        %v3508 = vadd.f32 %v3368, %v3507
        %v3509 = vpop.f32.mrb[0].mxu0
        %3510 = vdwg.mxu0
        %3511 = vmatprep.subr.mxu0 0.0
        %3512 = vmatpush1.msra.mxu0 %v2924
        %3513 = vmatprep.subr.mxu0 0.0
        %3514 = vmatpush1.msra.mxu0 %v2926
        %3515 = vmatprep.subr.mxu0 0.0
        %3516 = vmatpush1.msra.mxu0 %v2928
        %3517 = vmatprep.subr.mxu0 0.0
        %3518 = vmatpush1.msra.mxu0 %v2930
        %3519 = vmatprep.subr.mxu0 0.0
        %3520 = vmatpush1.msra.mxu0 %v2932
        %3521 = vmatprep.subr.mxu0 0.0
        %3522 = vmatpush1.msra.mxu0 %v2934
        %3523 = vmatprep.subr.mxu0 0.0
        %3524 = vmatpush1.msra.mxu0 %v2936
        %3525 = vmatprep.subr.mxu0 0.0
        %3526 = vmatpush1.msra.mxu0 %v2938
        %3527 = vmatprep.subr.mxu0 0.0
        %3528 = vmatpush1.msra.mxu0 %v2940
        %3529 = vmatprep.subr.mxu0 0.0
        %3530 = vmatpush1.msra.mxu0 %v2942
        %3531 = vmatprep.subr.mxu0 0.0
        %3532 = vmatpush1.msra.mxu0 %v2944
        %3533 = vmatprep.subr.mxu0 0.0
        %3534 = vmatpush1.msra.mxu0 %v2946
        %3535 = vmatprep.subr.mxu0 0.0
        %3536 = vmatpush1.msra.mxu0 %v2948
        %3537 = vmatprep.subr.mxu0 0.0
        %3538 = vmatpush1.msra.mxu0 %v2950
        %3539 = vmatprep.subr.mxu0 0.0
        %3540 = vmatpush1.msra.mxu0 %v2952
        %3541 = vmatprep.subr.mxu0 0.0
        %3542 = vmatpush1.msra.mxu0 %v2954
        %3543 = vmatprep.subr.mxu0 0.0
        %3544 = vmatpush1.msra.mxu0 %v2956
        %3545 = vmatprep.subr.mxu0 0.0
        %3546 = vmatpush1.msra.mxu0 %v2958
        %3547 = vmatprep.subr.mxu0 0.0
        %3548 = vmatpush1.msra.mxu0 %v2960
        %3549 = vmatprep.subr.mxu0 0.0
        %3550 = vmatpush1.msra.mxu0 %v2962
        %3551 = vmatprep.subr.mxu0 0.0
        %3552 = vmatpush1.msra.mxu0 %v2964
        %3553 = vmatprep.subr.mxu0 0.0
        %3554 = vmatpush1.msra.mxu0 %v2966
        %3555 = vmatprep.subr.mxu0 0.0
        %3556 = vmatpush1.msra.mxu0 %v2968
        %3557 = vmatprep.subr.mxu0 0.0
        %3558 = vmatpush1.msra.mxu0 %v2970
        %3559 = vmatprep.subr.mxu0 0.0
        %3560 = vmatpush1.msra.mxu0 %v2972
        %3561 = vmatprep.subr.mxu0 0.0
        %3562 = vmatpush1.msra.mxu0 %v2974
        %3563 = vmatprep.subr.mxu0 0.0
        %3564 = vmatpush1.msra.mxu0 0.0
        %3565 = vmatprep.subr.mxu0 0.0
        %3566 = vmatpush1.msra.mxu0 0.0
        %3567 = vmatprep.subr.mxu0 0.0
        %3568 = vmatpush1.msra.mxu0 0.0
        %3569 = vmatprep.subr.mxu0 0.0
        %3570 = vmatpush1.msra.mxu0 0.0
        %3571 = vmatprep.subr.mxu0 0.0
        %3572 = vmatpush1.msra.mxu0 0.0
        %3573 = vmatprep.subr.mxu0 0.0
        %3574 = vmatpush1.msra.mxu0 0.0
        %3575 = vmatprep.mubr.f32.mxu0 %v3187
        %3576 = vmatmul.mubr.f32.gmra.mrb[0].mxu0 %v3009
        %v3577 = vpop.f32.mrb[0].mxu0
        %v3578 = vadd.f32 %v3438, %v3577
        %v3579 = vpop.f32.mrb[0].mxu0
        %3580 = vmatprep.mubr.f32.mxu0 %v3190
        %3581 = vmatmul.mubr.f32.gmra.mrb[0].mxu0 %v3015
        %v3582 = vpop.f32.mrb[0].mxu0
        %v3583 = vadd.f32 %v3443, %v3582
        %v3584 = vpop.f32.mrb[0].mxu0
        %3585 = vmatprep.mubr.f32.mxu0 %v3193
        %3586 = vmatmul.mubr.f32.gmra.mrb[0].mxu0 %v3021
        %v3587 = vpop.f32.mrb[0].mxu0
        %v3588 = vadd.f32 %v3448, %v3587
        %v3589 = vpop.f32.mrb[0].mxu0
        %3590 = vmatprep.mubr.f32.mxu0 %v3196
        %3591 = vmatmul.mubr.f32.gmra.mrb[0].mxu0 %v3027
        %v3592 = vpop.f32.mrb[0].mxu0
        %v3593 = vadd.f32 %v3453, %v3592
        %v3594 = vpop.f32.mrb[0].mxu0
        %3595 = vmatprep.mubr.f32.mxu0 %v3199
        %3596 = vmatmul.mubr.f32.gmra.mrb[0].mxu0 %v3033
        %v3597 = vpop.f32.mrb[0].mxu0
        %v3598 = vadd.f32 %v3458, %v3597
        %v3599 = vpop.f32.mrb[0].mxu0
        %3600 = vmatprep.mubr.f32.mxu0 %v3202
        %3601 = vmatmul.mubr.f32.gmra.mrb[0].mxu0 %v3039
        %v3602 = vpop.f32.mrb[0].mxu0
        %v3603 = vadd.f32 %v3463, %v3602
        %v3604 = vpop.f32.mrb[0].mxu0
        %3605 = vmatprep.mubr.f32.mxu0 %v3205
        %3606 = vmatmul.mubr.f32.gmra.mrb[0].mxu0 %v3045
        %v3607 = vpop.f32.mrb[0].mxu0
        %v3608 = vadd.f32 %v3468, %v3607
        %v3609 = vpop.f32.mrb[0].mxu0
        %3610 = vmatprep.mubr.f32.mxu0 %v3208
        %3611 = vmatmul.mubr.f32.gmra.mrb[0].mxu0 %v3051
        %v3612 = vpop.f32.mrb[0].mxu0
        %v3613 = vadd.f32 %v3473, %v3612
        %v3614 = vpop.f32.mrb[0].mxu0
        %3615 = vmatprep.mubr.f32.mxu0 %v3211
        %3616 = vmatmul.mubr.f32.gmra.mrb[0].mxu0 %v3057
        %v3617 = vpop.f32.mrb[0].mxu0
        %v3618 = vadd.f32 %v3478, %v3617
        %v3619 = vpop.f32.mrb[0].mxu0
        %3620 = vmatprep.mubr.f32.mxu0 %v3214
        %3621 = vmatmul.mubr.f32.gmra.mrb[0].mxu0 %v3063
        %v3622 = vpop.f32.mrb[0].mxu0
        %v3623 = vadd.f32 %v3483, %v3622
        %v3624 = vpop.f32.mrb[0].mxu0
        %3625 = vmatprep.mubr.f32.mxu0 %v3217
        %3626 = vmatmul.mubr.f32.gmra.mrb[0].mxu0 %v3069
        %v3627 = vpop.f32.mrb[0].mxu0
        %v3628 = vadd.f32 %v3488, %v3627
        %v3629 = vpop.f32.mrb[0].mxu0
        %3630 = vmatprep.mubr.f32.mxu0 %v3220
        %3631 = vmatmul.mubr.f32.gmra.mrb[0].mxu0 %v3075
        %v3632 = vpop.f32.mrb[0].mxu0
        %v3633 = vadd.f32 %v3493, %v3632
        %v3634 = vpop.f32.mrb[0].mxu0
        %3635 = vmatprep.mubr.f32.mxu0 %v3223
        %3636 = vmatmul.mubr.f32.gmra.mrb[0].mxu0 %v3081
        %v3637 = vpop.f32.mrb[0].mxu0
        %v3638 = vadd.f32 %v3498, %v3637
        %v3639 = vpop.f32.mrb[0].mxu0
        %3640 = vmatprep.mubr.f32.mxu0 %v3226
        %3641 = vmatmul.mubr.f32.gmra.mrb[0].mxu0 %v3087
        %v3642 = vpop.f32.mrb[0].mxu0
        %v3643 = vadd.f32 %v3503, %v3642
        %v3644 = vpop.f32.mrb[0].mxu0
        %3645 = vmatprep.mubr.f32.mxu0 %v3229
        %3646 = vmatmul.mubr.f32.gmra.mrb[0].mxu0 %v3093
        %v3647 = vpop.f32.mrb[0].mxu0
        %v3648 = vadd.f32 %v3508, %v3647
        %v3649 = vpop.f32.mrb[0].mxu0
        %3650 = vdwg.mxu0
        %v3651 = vmax.f32 %v3578, 0.0
        %v3652 = vmax.f32 %v3583, 0.0
        %v3653 = vmax.f32 %v3588, 0.0
        %v3654 = vmax.f32 %v3593, 0.0
        %v3655 = vmax.f32 %v3598, 0.0
        %v3656 = vmax.f32 %v3603, 0.0
        %v3657 = vmax.f32 %v3608, 0.0
        %v3658 = vmax.f32 %v3613, 0.0
        %v3659 = vmax.f32 %v3618, 0.0
        %v3660 = vmax.f32 %v3623, 0.0
        %v3661 = vmax.f32 %v3628, 0.0
        %v3662 = vmax.f32 %v3633, 0.0
        %v3663 = vmax.f32 %v3638, 0.0
        %v3664 = vmax.f32 %v3643, 0.0
        %v3665 = vmax.f32 %v3648, 0.0
        %v3666 = vld [vmem:[%s11] sm:$0xff]
        %v3667 = vld [vmem:[%s11 + $0x8] sm:$0xff]
        %v3668 = vld [vmem:[%s11 + $0x10] sm:$0xff]
        %v3669 = vld [vmem:[%s11 + $0x18] sm:$0xff]
        %v3670 = vld [vmem:[%s11 + $0x20] sm:$0xff]
        %v3671 = vld [vmem:[%s11 + $0x28] sm:$0xff]
        %v3672 = vld [vmem:[%s11 + $0x30] sm:$0xff]
        %v3673 = vld [vmem:[%s11 + $0x38] sm:$0xff]
        %v3674 = vld [vmem:[%s12] sm:$0xff]
        %v3675 = vld [vmem:[%s12 + $0x8] sm:$0xff]
        %v3676 = vld [vmem:[%s12 + $0x10] sm:$0xff]
        %v3677 = vld [vmem:[%s12 + $0x18] sm:$0xff]
        %v3678 = vld [vmem:[%s12 + $0x20] sm:$0xff]
        %v3679 = vld [vmem:[%s12 + $0x28] sm:$0xff]
        %v3680 = vld [vmem:[%s12 + $0x30] sm:$0xff]
        %v3681 = vld [vmem:[%s12 + $0x38] sm:$0xff]
        %3683 = vset.pattern.permute.xlu0 0
        %3684 = vperm.xlu0 %3683, %v3674
        %v3685 = vpop.permute.xlu0 %3684
        %3688 = vset.pattern.permute.xlu0 0
        %3689 = vperm.xlu0 %3688, %v3675
        %v3690 = vpop.permute.xlu0 %3689
        %3693 = vset.pattern.permute.xlu0 0
        %3694 = vperm.xlu0 %3693, %v3676
        %v3695 = vpop.permute.xlu0 %3694
        %3698 = vset.pattern.permute.xlu0 0
        %3699 = vperm.xlu0 %3698, %v3677
        %v3700 = vpop.permute.xlu0 %3699
        %3703 = vset.pattern.permute.xlu0 0
        %3704 = vperm.xlu0 %3703, %v3678
        %v3705 = vpop.permute.xlu0 %3704
        %3708 = vset.pattern.permute.xlu0 0
        %3709 = vperm.xlu0 %3708, %v3679
        %v3710 = vpop.permute.xlu0 %3709
        %3713 = vset.pattern.permute.xlu0 0
        %3714 = vperm.xlu0 %3713, %v3680
        %v3715 = vpop.permute.xlu0 %3714
        %3718 = vset.pattern.permute.xlu0 0
        %3719 = vperm.xlu0 %3718, %v3681
        %v3720 = vpop.permute.xlu0 %3719
        %vm3722 = vcmask 982016
        %v3724 = vsel %vm3722, %v3666, 0
        %v3727 = vsel %vm3722, %v3667, 0
        %v3730 = vsel %vm3722, %v3668, 0
        %v3733 = vsel %vm3722, %v3669, 0
        %v3736 = vsel %vm3722, %v3670, 0
        %v3739 = vsel %vm3722, %v3671, 0
        %v3742 = vsel %vm3722, %v3672, 0
        %v3745 = vsel %vm3722, %v3673, 0
        %3747 = vmatprep.subr.mxu0 0.0
        %3748 = vmatpush1.msra.mxu0 %v3651
        %3749 = vmatprep.subr.mxu0 0.0
        %3750 = vmatpush1.msra.mxu0 %v3652
        %3751 = vmatprep.subr.mxu0 0.0
        %3752 = vmatpush1.msra.mxu0 %v3653
        %3753 = vmatprep.subr.mxu0 0.0
        %3754 = vmatpush1.msra.mxu0 %v3654
        %3755 = vmatprep.subr.mxu0 0.0
        %3756 = vmatpush1.msra.mxu0 %v3655
        %3757 = vmatprep.subr.mxu0 0.0
        %3758 = vmatpush1.msra.mxu0 %v3656
        %3759 = vmatprep.subr.mxu0 0.0
        %3760 = vmatpush1.msra.mxu0 %v3657
        %3761 = vmatprep.subr.mxu0 0.0
        %3762 = vmatpush1.msra.mxu0 %v3658
        %3763 = vmatprep.subr.mxu0 0.0
        %3764 = vmatpush1.msra.mxu0 %v3659
        %3765 = vmatprep.subr.mxu0 0.0
        %3766 = vmatpush1.msra.mxu0 %v3660
        %3767 = vmatprep.subr.mxu0 0.0
        %3768 = vmatpush1.msra.mxu0 %v3661
        %3769 = vmatprep.subr.mxu0 0.0
        %3770 = vmatpush1.msra.mxu0 %v3662
        %3771 = vmatprep.subr.mxu0 0.0
        %3772 = vmatpush1.msra.mxu0 %v3663
        %3773 = vmatprep.subr.mxu0 0.0
        %3774 = vmatpush1.msra.mxu0 %v3664
        %3775 = vmatprep.subr.mxu0 0.0
        %3776 = vmatpush1.msra.mxu0 %v3665
        %3777 = vmatprep.subr.mxu0 0.0
        %3778 = vmatpush1.msra.mxu0 0.0
        %3779 = vmatprep.subr.mxu0 0.0
        %3780 = vmatpush1.msra.mxu0 0.0
        %3781 = vmatprep.subr.mxu0 0.0
        %3782 = vmatpush1.msra.mxu0 0.0
        %3783 = vmatprep.subr.mxu0 0.0
        %3784 = vmatpush1.msra.mxu0 0.0
        %3785 = vmatprep.subr.mxu0 0.0
        %3786 = vmatpush1.msra.mxu0 0.0
        %3787 = vmatprep.subr.mxu0 0.0
        %3788 = vmatpush1.msra.mxu0 0.0
        %3789 = vmatprep.subr.mxu0 0.0
        %3790 = vmatpush1.msra.mxu0 0.0
        %3791 = vmatprep.subr.mxu0 0.0
        %3792 = vmatpush1.msra.mxu0 0.0
        %3793 = vmatprep.subr.mxu0 0.0
        %3794 = vmatpush1.msra.mxu0 0.0
        %3795 = vmatprep.subr.mxu0 0.0
        %3796 = vmatpush1.msra.mxu0 0.0
        %3797 = vmatprep.subr.mxu0 0.0
        %3798 = vmatpush1.msra.mxu0 0.0
        %3799 = vmatprep.subr.mxu0 0.0
        %3800 = vmatpush1.msra.mxu0 0.0
        %3801 = vmatprep.subr.mxu0 0.0
        %3802 = vmatpush1.msra.mxu0 0.0
        %3803 = vmatprep.subr.mxu0 0.0
        %3804 = vmatpush1.msra.mxu0 0.0
        %3805 = vmatprep.subr.mxu0 0.0
        %3806 = vmatpush1.msra.mxu0 0.0
        %3807 = vmatprep.subr.mxu0 0.0
        %3808 = vmatpush1.msra.mxu0 0.0
        %3809 = vmatprep.subr.mxu0 0.0
        %3810 = vmatpush1.msra.mxu0 0.0
        %3811 = vmatprep.mubr.f32.mxu0 0.0
        %3812 = vmatmul.mubr.f32.gmra.mrb[0].mxu0 %v3724
        %v3813 = vpop.f32.mrb[0].mxu0
        %v3814 = vadd.f32 %v3685, %v3813
        %v3815 = vpop.f32.mrb[0].mxu0
        %3816 = vmatprep.mubr.f32.mxu0 0.0
        %3817 = vmatmul.mubr.f32.gmra.mrb[0].mxu0 %v3727
        %v3818 = vpop.f32.mrb[0].mxu0
        %v3819 = vadd.f32 %v3690, %v3818
        %v3820 = vpop.f32.mrb[0].mxu0
        %3821 = vmatprep.mubr.f32.mxu0 0.0
        %3822 = vmatmul.mubr.f32.gmra.mrb[0].mxu0 %v3730
        %v3823 = vpop.f32.mrb[0].mxu0
        %v3824 = vadd.f32 %v3695, %v3823
        %v3825 = vpop.f32.mrb[0].mxu0
        %3826 = vmatprep.mubr.f32.mxu0 0.0
        %3827 = vmatmul.mubr.f32.gmra.mrb[0].mxu0 %v3733
        %v3828 = vpop.f32.mrb[0].mxu0
        %v3829 = vadd.f32 %v3700, %v3828
        %v3830 = vpop.f32.mrb[0].mxu0
        %3831 = vmatprep.mubr.f32.mxu0 0.0
        %3832 = vmatmul.mubr.f32.gmra.mrb[0].mxu0 %v3736
        %v3833 = vpop.f32.mrb[0].mxu0
        %v3834 = vadd.f32 %v3705, %v3833
        %v3835 = vpop.f32.mrb[0].mxu0
        %3836 = vmatprep.mubr.f32.mxu0 0.0
        %3837 = vmatmul.mubr.f32.gmra.mrb[0].mxu0 %v3739
        %v3838 = vpop.f32.mrb[0].mxu0
        %v3839 = vadd.f32 %v3710, %v3838
        %v3840 = vpop.f32.mrb[0].mxu0
        %3841 = vmatprep.mubr.f32.mxu0 0.0
        %3842 = vmatmul.mubr.f32.gmra.mrb[0].mxu0 %v3742
        %v3843 = vpop.f32.mrb[0].mxu0
        %v3844 = vadd.f32 %v3715, %v3843
        %v3845 = vpop.f32.mrb[0].mxu0
        %3846 = vmatprep.mubr.f32.mxu0 0.0
        %3847 = vmatmul.mubr.f32.gmra.mrb[0].mxu0 %v3745
        %v3848 = vpop.f32.mrb[0].mxu0
        %v3849 = vadd.f32 %v3720, %v3848
        %v3850 = vpop.f32.mrb[0].mxu0
        %3851 = vdwg.mxu0
        %v3852 = vmax.f32 %v3814, 0.0
        %v3853 = vmax.f32 %v3819, 0.0
        %v3854 = vmax.f32 %v3824, 0.0
        %v3855 = vmax.f32 %v3829, 0.0
        %v3856 = vmax.f32 %v3834, 0.0
        %v3857 = vmax.f32 %v3839, 0.0
        %v3858 = vmax.f32 %v3844, 0.0
        %v3859 = vmax.f32 %v3849, 0.0
        %v3860 = vld [vmem:[#allocation7] sm:$0xff]
        %v3861 = vld [vmem:[#allocation7 + $0x8] sm:$0xff]
        %v3862 = vld [vmem:[#allocation7 + $0x10] sm:$0xff]
        %v3863 = vld [vmem:[#allocation7 + $0x18] sm:$0xff]
        %v3864 = vld [vmem:[#allocation7 + $0x20] sm:$0xff]
        %v3865 = vld [vmem:[#allocation7 + $0x28] sm:$0xff]
        %v3866 = vld [vmem:[#allocation7 + $0x30] sm:$0xff]
        %v3867 = vld [vmem:[#allocation7 + $0x38] sm:$0xff]
        %v3868 = vld [vmem:[%s14] sm:$0xff]
        %v3869 = vld [vmem:[%s14 + $0x8] sm:$0xff]
        %v3870 = vld [vmem:[%s14 + $0x10] sm:$0xff]
        %v3871 = vld [vmem:[%s14 + $0x18] sm:$0xff]
        %v3872 = vld [vmem:[%s14 + $0x20] sm:$0xff]
        %v3873 = vld [vmem:[%s14 + $0x28] sm:$0xff]
        %v3874 = vld [vmem:[%s14 + $0x30] sm:$0xff]
        %v3875 = vld [vmem:[%s14 + $0x38] sm:$0xff]
        %3877 = vset.pattern.permute.xlu0 0
        %3878 = vperm.xlu0 %3877, %v3868
        %v3879 = vpop.permute.xlu0 %3878
        %3882 = vset.pattern.permute.xlu0 0
        %3883 = vperm.xlu0 %3882, %v3869
        %v3884 = vpop.permute.xlu0 %3883
        %3887 = vset.pattern.permute.xlu0 0
        %3888 = vperm.xlu0 %3887, %v3870
        %v3889 = vpop.permute.xlu0 %3888
        %3892 = vset.pattern.permute.xlu0 0
        %3893 = vperm.xlu0 %3892, %v3871
        %v3894 = vpop.permute.xlu0 %3893
        %3897 = vset.pattern.permute.xlu0 0
        %3898 = vperm.xlu0 %3897, %v3872
        %v3899 = vpop.permute.xlu0 %3898
        %3902 = vset.pattern.permute.xlu0 0
        %3903 = vperm.xlu0 %3902, %v3873
        %v3904 = vpop.permute.xlu0 %3903
        %3907 = vset.pattern.permute.xlu0 0
        %3908 = vperm.xlu0 %3907, %v3874
        %v3909 = vpop.permute.xlu0 %3908
        %3912 = vset.pattern.permute.xlu0 0
        %3913 = vperm.xlu0 %3912, %v3875
        %v3914 = vpop.permute.xlu0 %3913
        %v3917 = vsel %vm1354, %v3860, 0
        %v3920 = vsel %vm1354, %v3861, 0
        %v3923 = vsel %vm1354, %v3862, 0
        %v3926 = vsel %vm1354, %v3863, 0
        %v3929 = vsel %vm1354, %v3864, 0
        %v3932 = vsel %vm1354, %v3865, 0
        %v3935 = vsel %vm1354, %v3866, 0
        %v3938 = vsel %vm1354, %v3867, 0
        %3940 = vmatprep.subr.mxu0 0.0
        %3941 = vmatpush1.msra.mxu0 %v3852
        %3942 = vmatprep.subr.mxu0 0.0
        %3943 = vmatpush1.msra.mxu0 %v3853
        %3944 = vmatprep.subr.mxu0 0.0
        %3945 = vmatpush1.msra.mxu0 %v3854
        %3946 = vmatprep.subr.mxu0 0.0
        %3947 = vmatpush1.msra.mxu0 %v3855
        %3948 = vmatprep.subr.mxu0 0.0
        %3949 = vmatpush1.msra.mxu0 %v3856
        %3950 = vmatprep.subr.mxu0 0.0
        %3951 = vmatpush1.msra.mxu0 %v3857
        %3952 = vmatprep.subr.mxu0 0.0
        %3953 = vmatpush1.msra.mxu0 %v3858
        %3954 = vmatprep.subr.mxu0 0.0
        %3955 = vmatpush1.msra.mxu0 %v3859
        %3956 = vmatprep.subr.mxu0 0.0
        %3957 = vmatpush1.msra.mxu0 0.0
        %3958 = vmatprep.subr.mxu0 0.0
        %3959 = vmatpush1.msra.mxu0 0.0
        %3960 = vmatprep.subr.mxu0 0.0
        %3961 = vmatpush1.msra.mxu0 0.0
        %3962 = vmatprep.subr.mxu0 0.0
        %3963 = vmatpush1.msra.mxu0 0.0
        %3964 = vmatprep.subr.mxu0 0.0
        %3965 = vmatpush1.msra.mxu0 0.0
        %3966 = vmatprep.subr.mxu0 0.0
        %3967 = vmatpush1.msra.mxu0 0.0
        %3968 = vmatprep.subr.mxu0 0.0
        %3969 = vmatpush1.msra.mxu0 0.0
        %3970 = vmatprep.subr.mxu0 0.0
        %3971 = vmatpush1.msra.mxu0 0.0
        %3972 = vmatprep.subr.mxu0 0.0
        %3973 = vmatpush1.msra.mxu0 0.0
        %3974 = vmatprep.subr.mxu0 0.0
        %3975 = vmatpush1.msra.mxu0 0.0
        %3976 = vmatprep.subr.mxu0 0.0
        %3977 = vmatpush1.msra.mxu0 0.0
        %3978 = vmatprep.subr.mxu0 0.0
        %3979 = vmatpush1.msra.mxu0 0.0
        %3980 = vmatprep.subr.mxu0 0.0
        %3981 = vmatpush1.msra.mxu0 0.0
        %3982 = vmatprep.subr.mxu0 0.0
        %3983 = vmatpush1.msra.mxu0 0.0
        %3984 = vmatprep.subr.mxu0 0.0
        %3985 = vmatpush1.msra.mxu0 0.0
        %3986 = vmatprep.subr.mxu0 0.0
        %3987 = vmatpush1.msra.mxu0 0.0
        %3988 = vmatprep.subr.mxu0 0.0
        %3989 = vmatpush1.msra.mxu0 0.0
        %3990 = vmatprep.subr.mxu0 0.0
        %3991 = vmatpush1.msra.mxu0 0.0
        %3992 = vmatprep.subr.mxu0 0.0
        %3993 = vmatpush1.msra.mxu0 0.0
        %3994 = vmatprep.subr.mxu0 0.0
        %3995 = vmatpush1.msra.mxu0 0.0
        %3996 = vmatprep.subr.mxu0 0.0
        %3997 = vmatpush1.msra.mxu0 0.0
        %3998 = vmatprep.subr.mxu0 0.0
        %3999 = vmatpush1.msra.mxu0 0.0
        %4000 = vmatprep.subr.mxu0 0.0
        %4001 = vmatpush1.msra.mxu0 0.0
        %4002 = vmatprep.subr.mxu0 0.0
        %4003 = vmatpush1.msra.mxu0 0.0
        %4004 = vmatprep.mubr.f32.mxu0 0.0
        %4005 = vmatmul.mubr.f32.gmra.mrb[0].mxu0 %v3917
        %v4006 = vpop.f32.mrb[0].mxu0
        %v4007 = vadd.f32 %v3879, %v4006
        %v4008 = vpop.f32.mrb[0].mxu0
        %4009 = vmatprep.mubr.f32.mxu0 0.0
        %4010 = vmatmul.mubr.f32.gmra.mrb[0].mxu0 %v3920
        %v4011 = vpop.f32.mrb[0].mxu0
        %v4012 = vadd.f32 %v3884, %v4011
        %v4013 = vpop.f32.mrb[0].mxu0
        %4014 = vmatprep.mubr.f32.mxu0 0.0
        %4015 = vmatmul.mubr.f32.gmra.mrb[0].mxu0 %v3923
        %v4016 = vpop.f32.mrb[0].mxu0
        %v4017 = vadd.f32 %v3889, %v4016
        %v4018 = vpop.f32.mrb[0].mxu0
        %4019 = vmatprep.mubr.f32.mxu0 0.0
        %4020 = vmatmul.mubr.f32.gmra.mrb[0].mxu0 %v3926
        %v4021 = vpop.f32.mrb[0].mxu0
        %v4022 = vadd.f32 %v3894, %v4021
        %v4023 = vpop.f32.mrb[0].mxu0
        %4024 = vmatprep.mubr.f32.mxu0 0.0
        %4025 = vmatmul.mubr.f32.gmra.mrb[0].mxu0 %v3929
        %v4026 = vpop.f32.mrb[0].mxu0
        %v4027 = vadd.f32 %v3899, %v4026
        %v4028 = vpop.f32.mrb[0].mxu0
        %4029 = vmatprep.mubr.f32.mxu0 0.0
        %4030 = vmatmul.mubr.f32.gmra.mrb[0].mxu0 %v3932
        %v4031 = vpop.f32.mrb[0].mxu0
        %v4032 = vadd.f32 %v3904, %v4031
        %v4033 = vpop.f32.mrb[0].mxu0
        %4034 = vmatprep.mubr.f32.mxu0 0.0
        %4035 = vmatmul.mubr.f32.gmra.mrb[0].mxu0 %v3935
        %v4036 = vpop.f32.mrb[0].mxu0
        %v4037 = vadd.f32 %v3909, %v4036
        %v4038 = vpop.f32.mrb[0].mxu0
        %4039 = vmatprep.mubr.f32.mxu0 0.0
        %4040 = vmatmul.mubr.f32.gmra.mrb[0].mxu0 %v3938
        %v4041 = vpop.f32.mrb[0].mxu0
        %v4042 = vadd.f32 %v3914, %v4041
        %v4043 = vpop.f32.mrb[0].mxu0
        %4044 = vdwg.mxu0
        %v4045 = vmax.f32 %v4007, 0.0
        %v4046 = vmax.f32 %v4012, 0.0
        %v4047 = vmax.f32 %v4017, 0.0
        %v4048 = vmax.f32 %v4022, 0.0
        %v4049 = vmax.f32 %v4027, 0.0
        %v4050 = vmax.f32 %v4032, 0.0
        %v4051 = vmax.f32 %v4037, 0.0
        %v4052 = vmax.f32 %v4042, 0.0
        %v4053 = vld [vmem:[%s17] sm:$0xff]
        %v4054 = vld [vmem:[%s17 + $0x8] sm:$0xff]
        %v4055 = vld [vmem:[%s17 + $0x10] sm:$0xf]
        %s4056 = scalar_lea.vmem %s17, 24
        %v4057 = vld [vmem:[%s4056] sm:$0xff]
        %v4058 = vld [vmem:[%s4056 + $0x8] sm:$0xff]
        %v4059 = vld [vmem:[%s4056 + $0x10] sm:$0xf]
        %4068 = vrot.lane.b32.xlu0 %v4045, 127
        %v4069 = vpop.permute.xlu0 %4068
        %4070 = vrot.lane.b32.xlu0 %v4046, 127
        %v4071 = vpop.permute.xlu0 %4070
        %4072 = vrot.lane.b32.xlu0 %v4047, 127
        %v4073 = vpop.permute.xlu0 %4072
        %4074 = vrot.lane.b32.xlu0 %v4048, 127
        %v4075 = vpop.permute.xlu0 %4074
        %4076 = vrot.lane.b32.xlu0 %v4049, 127
        %v4077 = vpop.permute.xlu0 %4076
        %4078 = vrot.lane.b32.xlu0 %v4050, 127
        %v4079 = vpop.permute.xlu0 %4078
        %4080 = vrot.lane.b32.xlu0 %v4051, 127
        %v4081 = vpop.permute.xlu0 %4080
        %4082 = vrot.lane.b32.xlu0 %v4052, 127
        %v4083 = vpop.permute.xlu0 %4082
        %v4093 = vsel %vm1354, %v4057, 0
        %v4096 = vsel %vm1354, %v4058, 0
        %v4099 = vsel %vm1354, %v4059, 0
        %4101 = vmatprep.subr.mxu0 0.0
        %4102 = vmatpush1.msra.mxu0 %v4069
        %4103 = vmatprep.subr.mxu0 0.0
        %4104 = vmatpush1.msra.mxu0 %v4071
        %4105 = vmatprep.subr.mxu0 0.0
        %4106 = vmatpush1.msra.mxu0 %v4073
        %4107 = vmatprep.subr.mxu0 0.0
        %4108 = vmatpush1.msra.mxu0 %v4075
        %4109 = vmatprep.subr.mxu0 0.0
        %4110 = vmatpush1.msra.mxu0 %v4077
        %4111 = vmatprep.subr.mxu0 0.0
        %4112 = vmatpush1.msra.mxu0 %v4079
        %4113 = vmatprep.subr.mxu0 0.0
        %4114 = vmatpush1.msra.mxu0 %v4081
        %4115 = vmatprep.subr.mxu0 0.0
        %4116 = vmatpush1.msra.mxu0 %v4083
        %4117 = vmatprep.subr.mxu0 0.0
        %4118 = vmatpush1.msra.mxu0 0.0
        %4119 = vmatprep.subr.mxu0 0.0
        %4120 = vmatpush1.msra.mxu0 0.0
        %4121 = vmatprep.subr.mxu0 0.0
        %4122 = vmatpush1.msra.mxu0 0.0
        %4123 = vmatprep.subr.mxu0 0.0
        %4124 = vmatpush1.msra.mxu0 0.0
        %4125 = vmatprep.subr.mxu0 0.0
        %4126 = vmatpush1.msra.mxu0 0.0
        %4127 = vmatprep.subr.mxu0 0.0
        %4128 = vmatpush1.msra.mxu0 0.0
        %4129 = vmatprep.subr.mxu0 0.0
        %4130 = vmatpush1.msra.mxu0 0.0
        %4131 = vmatprep.subr.mxu0 0.0
        %4132 = vmatpush1.msra.mxu0 0.0
        %4133 = vmatprep.subr.mxu0 0.0
        %4134 = vmatpush1.msra.mxu0 0.0
        %4135 = vmatprep.subr.mxu0 0.0
        %4136 = vmatpush1.msra.mxu0 0.0
        %4137 = vmatprep.subr.mxu0 0.0
        %4138 = vmatpush1.msra.mxu0 0.0
        %4139 = vmatprep.subr.mxu0 0.0
        %4140 = vmatpush1.msra.mxu0 0.0
        %4141 = vmatprep.subr.mxu0 0.0
        %4142 = vmatpush1.msra.mxu0 0.0
        %4143 = vmatprep.subr.mxu0 0.0
        %4144 = vmatpush1.msra.mxu0 0.0
        %4145 = vmatprep.subr.mxu0 0.0
        %4146 = vmatpush1.msra.mxu0 0.0
        %4147 = vmatprep.subr.mxu0 0.0
        %4148 = vmatpush1.msra.mxu0 0.0
        %4149 = vmatprep.subr.mxu0 0.0
        %4150 = vmatpush1.msra.mxu0 0.0
        %4151 = vmatprep.subr.mxu0 0.0
        %4152 = vmatpush1.msra.mxu0 0.0
        %4153 = vmatprep.subr.mxu0 0.0
        %4154 = vmatpush1.msra.mxu0 0.0
        %4155 = vmatprep.subr.mxu0 0.0
        %4156 = vmatpush1.msra.mxu0 0.0
        %4157 = vmatprep.subr.mxu0 0.0
        %4158 = vmatpush1.msra.mxu0 0.0
        %4159 = vmatprep.subr.mxu0 0.0
        %4160 = vmatpush1.msra.mxu0 0.0
        %4161 = vmatprep.subr.mxu0 0.0
        %4162 = vmatpush1.msra.mxu0 0.0
        %4163 = vmatprep.subr.mxu0 0.0
        %4164 = vmatpush1.msra.mxu0 0.0
        %4165 = vmatprep.mubr.f32.mxu0 0.0
        %4166 = vmatmul.mubr.f32.gmra.mrb[0].mxu0 %v4093
        %v4167 = vpop.f32.mrb[0].mxu0
        %v4168 = vadd.f32 0.0, %v4167
        %v4169 = vpop.f32.mrb[0].mxu0
        %4170 = vmatprep.mubr.f32.mxu0 0.0
        %4171 = vmatmul.mubr.f32.gmra.mrb[0].mxu0 %v4096
        %v4172 = vpop.f32.mrb[0].mxu0
        %v4173 = vadd.f32 0.0, %v4172
        %v4174 = vpop.f32.mrb[0].mxu0
        %4175 = vmatprep.mubr.f32.mxu0 0.0
        %4176 = vmatmul.mubr.f32.gmra.mrb[0].mxu0 %v4099
        %v4177 = vpop.f32.mrb[0].mxu0
        %v4178 = vadd.f32 0.0, %v4177
        %v4179 = vpop.f32.mrb[0].mxu0
        %4180 = vdwg.mxu0
        %v4182 = vsel %vm1354, %v4053, 0
        %v4185 = vsel %vm1354, %v4054, 0
        %v4188 = vsel %vm1354, %v4055, 0
        %4190 = vmatprep.subr.mxu0 0.0
        %4191 = vmatpush1.msra.mxu0 %v4045
        %4192 = vmatprep.subr.mxu0 0.0
        %4193 = vmatpush1.msra.mxu0 %v4046
        %4194 = vmatprep.subr.mxu0 0.0
        %4195 = vmatpush1.msra.mxu0 %v4047
        %4196 = vmatprep.subr.mxu0 0.0
        %4197 = vmatpush1.msra.mxu0 %v4048
        %4198 = vmatprep.subr.mxu0 0.0
        %4199 = vmatpush1.msra.mxu0 %v4049
        %4200 = vmatprep.subr.mxu0 0.0
        %4201 = vmatpush1.msra.mxu0 %v4050
        %4202 = vmatprep.subr.mxu0 0.0
        %4203 = vmatpush1.msra.mxu0 %v4051
        %4204 = vmatprep.subr.mxu0 0.0
        %4205 = vmatpush1.msra.mxu0 %v4052
        %4206 = vmatprep.subr.mxu0 0.0
        %4207 = vmatpush1.msra.mxu0 0.0
        %4208 = vmatprep.subr.mxu0 0.0
        %4209 = vmatpush1.msra.mxu0 0.0
        %4210 = vmatprep.subr.mxu0 0.0
        %4211 = vmatpush1.msra.mxu0 0.0
        %4212 = vmatprep.subr.mxu0 0.0
        %4213 = vmatpush1.msra.mxu0 0.0
        %4214 = vmatprep.subr.mxu0 0.0
        %4215 = vmatpush1.msra.mxu0 0.0
        %4216 = vmatprep.subr.mxu0 0.0
        %4217 = vmatpush1.msra.mxu0 0.0
        %4218 = vmatprep.subr.mxu0 0.0
        %4219 = vmatpush1.msra.mxu0 0.0
        %4220 = vmatprep.subr.mxu0 0.0
        %4221 = vmatpush1.msra.mxu0 0.0
        %4222 = vmatprep.subr.mxu0 0.0
        %4223 = vmatpush1.msra.mxu0 0.0
        %4224 = vmatprep.subr.mxu0 0.0
        %4225 = vmatpush1.msra.mxu0 0.0
        %4226 = vmatprep.subr.mxu0 0.0
        %4227 = vmatpush1.msra.mxu0 0.0
        %4228 = vmatprep.subr.mxu0 0.0
        %4229 = vmatpush1.msra.mxu0 0.0
        %4230 = vmatprep.subr.mxu0 0.0
        %4231 = vmatpush1.msra.mxu0 0.0
        %4232 = vmatprep.subr.mxu0 0.0
        %4233 = vmatpush1.msra.mxu0 0.0
        %4234 = vmatprep.subr.mxu0 0.0
        %4235 = vmatpush1.msra.mxu0 0.0
        %4236 = vmatprep.subr.mxu0 0.0
        %4237 = vmatpush1.msra.mxu0 0.0
        %4238 = vmatprep.subr.mxu0 0.0
        %4239 = vmatpush1.msra.mxu0 0.0
        %4240 = vmatprep.subr.mxu0 0.0
        %4241 = vmatpush1.msra.mxu0 0.0
        %4242 = vmatprep.subr.mxu0 0.0
        %4243 = vmatpush1.msra.mxu0 0.0
        %4244 = vmatprep.subr.mxu0 0.0
        %4245 = vmatpush1.msra.mxu0 0.0
        %4246 = vmatprep.subr.mxu0 0.0
        %4247 = vmatpush1.msra.mxu0 0.0
        %4248 = vmatprep.subr.mxu0 0.0
        %4249 = vmatpush1.msra.mxu0 0.0
        %4250 = vmatprep.subr.mxu0 0.0
        %4251 = vmatpush1.msra.mxu0 0.0
        %4252 = vmatprep.subr.mxu0 0.0
        %4253 = vmatpush1.msra.mxu0 0.0
        %4254 = vmatprep.mubr.f32.mxu0 0.0
        %4255 = vmatmul.mubr.f32.gmra.mrb[0].mxu0 %v4182
        %v4256 = vpop.f32.mrb[0].mxu0
        %v4257 = vadd.f32 %v4168, %v4256
        %v4258 = vpop.f32.mrb[0].mxu0
        %4259 = vmatprep.mubr.f32.mxu0 0.0
        %4260 = vmatmul.mubr.f32.gmra.mrb[0].mxu0 %v4185
        %v4261 = vpop.f32.mrb[0].mxu0
        %v4262 = vadd.f32 %v4173, %v4261
        %v4263 = vpop.f32.mrb[0].mxu0
        %4264 = vmatprep.mubr.f32.mxu0 0.0
        %4265 = vmatmul.mubr.f32.gmra.mrb[0].mxu0 %v4188
        %v4266 = vpop.f32.mrb[0].mxu0
        %v4267 = vadd.f32 %v4178, %v4266
        %v4268 = vpop.f32.mrb[0].mxu0
        %4269 = vdwg.mxu0
        %s4270 = scalar_lea.vmem %s17, 48
        %v4271 = vld [vmem:[%s4270] sm:$0xff]
        %v4272 = vld [vmem:[%s4270 + $0x8] sm:$0xff]
        %v4273 = vld [vmem:[%s4270 + $0x10] sm:$0xf]
        %4274 = vrot.lane.b32.xlu0 %v4045, 126
        %v4275 = vpop.permute.xlu0 %4274
        %4276 = vrot.lane.b32.xlu0 %v4046, 126
        %v4277 = vpop.permute.xlu0 %4276
        %4278 = vrot.lane.b32.xlu0 %v4047, 126
        %v4279 = vpop.permute.xlu0 %4278
        %4280 = vrot.lane.b32.xlu0 %v4048, 126
        %v4281 = vpop.permute.xlu0 %4280
        %4282 = vrot.lane.b32.xlu0 %v4049, 126
        %v4283 = vpop.permute.xlu0 %4282
        %4284 = vrot.lane.b32.xlu0 %v4050, 126
        %v4285 = vpop.permute.xlu0 %4284
        %4286 = vrot.lane.b32.xlu0 %v4051, 126
        %v4287 = vpop.permute.xlu0 %4286
        %4288 = vrot.lane.b32.xlu0 %v4052, 126
        %v4289 = vpop.permute.xlu0 %4288
        %v4299 = vsel %vm1354, %v4271, 0
        %v4302 = vsel %vm1354, %v4272, 0
        %v4305 = vsel %vm1354, %v4273, 0
        %4307 = vmatprep.subr.mxu0 0.0
        %4308 = vmatpush1.msra.mxu0 %v4275
        %4309 = vmatprep.subr.mxu0 0.0
        %4310 = vmatpush1.msra.mxu0 %v4277
        %4311 = vmatprep.subr.mxu0 0.0
        %4312 = vmatpush1.msra.mxu0 %v4279
        %4313 = vmatprep.subr.mxu0 0.0
        %4314 = vmatpush1.msra.mxu0 %v4281
        %4315 = vmatprep.subr.mxu0 0.0
        %4316 = vmatpush1.msra.mxu0 %v4283
        %4317 = vmatprep.subr.mxu0 0.0
        %4318 = vmatpush1.msra.mxu0 %v4285
        %4319 = vmatprep.subr.mxu0 0.0
        %4320 = vmatpush1.msra.mxu0 %v4287
        %4321 = vmatprep.subr.mxu0 0.0
        %4322 = vmatpush1.msra.mxu0 %v4289
        %4323 = vmatprep.subr.mxu0 0.0
        %4324 = vmatpush1.msra.mxu0 0.0
        %4325 = vmatprep.subr.mxu0 0.0
        %4326 = vmatpush1.msra.mxu0 0.0
        %4327 = vmatprep.subr.mxu0 0.0
        %4328 = vmatpush1.msra.mxu0 0.0
        %4329 = vmatprep.subr.mxu0 0.0
        %4330 = vmatpush1.msra.mxu0 0.0
        %4331 = vmatprep.subr.mxu0 0.0
        %4332 = vmatpush1.msra.mxu0 0.0
        %4333 = vmatprep.subr.mxu0 0.0
        %4334 = vmatpush1.msra.mxu0 0.0
        %4335 = vmatprep.subr.mxu0 0.0
        %4336 = vmatpush1.msra.mxu0 0.0
        %4337 = vmatprep.subr.mxu0 0.0
        %4338 = vmatpush1.msra.mxu0 0.0
        %4339 = vmatprep.subr.mxu0 0.0
        %4340 = vmatpush1.msra.mxu0 0.0
        %4341 = vmatprep.subr.mxu0 0.0
        %4342 = vmatpush1.msra.mxu0 0.0
        %4343 = vmatprep.subr.mxu0 0.0
        %4344 = vmatpush1.msra.mxu0 0.0
        %4345 = vmatprep.subr.mxu0 0.0
        %4346 = vmatpush1.msra.mxu0 0.0
        %4347 = vmatprep.subr.mxu0 0.0
        %4348 = vmatpush1.msra.mxu0 0.0
        %4349 = vmatprep.subr.mxu0 0.0
        %4350 = vmatpush1.msra.mxu0 0.0
        %4351 = vmatprep.subr.mxu0 0.0
        %4352 = vmatpush1.msra.mxu0 0.0
        %4353 = vmatprep.subr.mxu0 0.0
        %4354 = vmatpush1.msra.mxu0 0.0
        %4355 = vmatprep.subr.mxu0 0.0
        %4356 = vmatpush1.msra.mxu0 0.0
        %4357 = vmatprep.subr.mxu0 0.0
        %4358 = vmatpush1.msra.mxu0 0.0
        %4359 = vmatprep.subr.mxu0 0.0
        %4360 = vmatpush1.msra.mxu0 0.0
        %4361 = vmatprep.subr.mxu0 0.0
        %4362 = vmatpush1.msra.mxu0 0.0
        %4363 = vmatprep.subr.mxu0 0.0
        %4364 = vmatpush1.msra.mxu0 0.0
        %4365 = vmatprep.subr.mxu0 0.0
        %4366 = vmatpush1.msra.mxu0 0.0
        %4367 = vmatprep.subr.mxu0 0.0
        %4368 = vmatpush1.msra.mxu0 0.0
        %4369 = vmatprep.subr.mxu0 0.0
        %4370 = vmatpush1.msra.mxu0 0.0
        %4371 = vmatprep.mubr.f32.mxu0 0.0
        %4372 = vmatmul.mubr.f32.gmra.mrb[0].mxu0 %v4299
        %v4373 = vpop.f32.mrb[0].mxu0
        %v4374 = vadd.f32 0.0, %v4373
        %v4375 = vpop.f32.mrb[0].mxu0
        %4376 = vmatprep.mubr.f32.mxu0 0.0
        %4377 = vmatmul.mubr.f32.gmra.mrb[0].mxu0 %v4302
        %v4378 = vpop.f32.mrb[0].mxu0
        %v4379 = vadd.f32 0.0, %v4378
        %v4380 = vpop.f32.mrb[0].mxu0
        %4381 = vmatprep.mubr.f32.mxu0 0.0
        %4382 = vmatmul.mubr.f32.gmra.mrb[0].mxu0 %v4305
        %v4383 = vpop.f32.mrb[0].mxu0
        %v4384 = vadd.f32 0.0, %v4383
        %v4385 = vpop.f32.mrb[0].mxu0
        %4386 = vdwg.mxu0
        %v4387 = vadd.f32 %v4257, %v4374
        %v4388 = vadd.f32 %v4262, %v4379
        %v4389 = vadd.f32 %v4267, %v4384
        %s4390 = scalar_lea.vmem %s17, 72
        %v4391 = vld [vmem:[%s4390] sm:$0xff]
        %v4392 = vld [vmem:[%s4390 + $0x8] sm:$0xff]
        %v4393 = vld [vmem:[%s4390 + $0x10] sm:$0xf]
        %4394 = vrot.lane.b32.xlu0 %v4045, 125
        %v4395 = vpop.permute.xlu0 %4394
        %4396 = vrot.lane.b32.xlu0 %v4046, 125
        %v4397 = vpop.permute.xlu0 %4396
        %4398 = vrot.lane.b32.xlu0 %v4047, 125
        %v4399 = vpop.permute.xlu0 %4398
        %4400 = vrot.lane.b32.xlu0 %v4048, 125
        %v4401 = vpop.permute.xlu0 %4400
        %4402 = vrot.lane.b32.xlu0 %v4049, 125
        %v4403 = vpop.permute.xlu0 %4402
        %4404 = vrot.lane.b32.xlu0 %v4050, 125
        %v4405 = vpop.permute.xlu0 %4404
        %4406 = vrot.lane.b32.xlu0 %v4051, 125
        %v4407 = vpop.permute.xlu0 %4406
        %4408 = vrot.lane.b32.xlu0 %v4052, 125
        %v4409 = vpop.permute.xlu0 %4408
        %v4419 = vsel %vm1354, %v4391, 0
        %v4422 = vsel %vm1354, %v4392, 0
        %v4425 = vsel %vm1354, %v4393, 0
        %4427 = vmatprep.subr.mxu0 0.0
        %4428 = vmatpush1.msra.mxu0 %v4395
        %4429 = vmatprep.subr.mxu0 0.0
        %4430 = vmatpush1.msra.mxu0 %v4397
        %4431 = vmatprep.subr.mxu0 0.0
        %4432 = vmatpush1.msra.mxu0 %v4399
        %4433 = vmatprep.subr.mxu0 0.0
        %4434 = vmatpush1.msra.mxu0 %v4401
        %4435 = vmatprep.subr.mxu0 0.0
        %4436 = vmatpush1.msra.mxu0 %v4403
        %4437 = vmatprep.subr.mxu0 0.0
        %4438 = vmatpush1.msra.mxu0 %v4405
        %4439 = vmatprep.subr.mxu0 0.0
        %4440 = vmatpush1.msra.mxu0 %v4407
        %4441 = vmatprep.subr.mxu0 0.0
        %4442 = vmatpush1.msra.mxu0 %v4409
        %4443 = vmatprep.subr.mxu0 0.0
        %4444 = vmatpush1.msra.mxu0 0.0
        %4445 = vmatprep.subr.mxu0 0.0
        %4446 = vmatpush1.msra.mxu0 0.0
        %4447 = vmatprep.subr.mxu0 0.0
        %4448 = vmatpush1.msra.mxu0 0.0
        %4449 = vmatprep.subr.mxu0 0.0
        %4450 = vmatpush1.msra.mxu0 0.0
        %4451 = vmatprep.subr.mxu0 0.0
        %4452 = vmatpush1.msra.mxu0 0.0
        %4453 = vmatprep.subr.mxu0 0.0
        %4454 = vmatpush1.msra.mxu0 0.0
        %4455 = vmatprep.subr.mxu0 0.0
        %4456 = vmatpush1.msra.mxu0 0.0
        %4457 = vmatprep.subr.mxu0 0.0
        %4458 = vmatpush1.msra.mxu0 0.0
        %4459 = vmatprep.subr.mxu0 0.0
        %4460 = vmatpush1.msra.mxu0 0.0
        %4461 = vmatprep.subr.mxu0 0.0
        %4462 = vmatpush1.msra.mxu0 0.0
        %4463 = vmatprep.subr.mxu0 0.0
        %4464 = vmatpush1.msra.mxu0 0.0
        %4465 = vmatprep.subr.mxu0 0.0
        %4466 = vmatpush1.msra.mxu0 0.0
        %4467 = vmatprep.subr.mxu0 0.0
        %4468 = vmatpush1.msra.mxu0 0.0
        %4469 = vmatprep.subr.mxu0 0.0
        %4470 = vmatpush1.msra.mxu0 0.0
        %4471 = vmatprep.subr.mxu0 0.0
        %4472 = vmatpush1.msra.mxu0 0.0
        %4473 = vmatprep.subr.mxu0 0.0
        %4474 = vmatpush1.msra.mxu0 0.0
        %4475 = vmatprep.subr.mxu0 0.0
        %4476 = vmatpush1.msra.mxu0 0.0
        %4477 = vmatprep.subr.mxu0 0.0
        %4478 = vmatpush1.msra.mxu0 0.0
        %4479 = vmatprep.subr.mxu0 0.0
        %4480 = vmatpush1.msra.mxu0 0.0
        %4481 = vmatprep.subr.mxu0 0.0
        %4482 = vmatpush1.msra.mxu0 0.0
        %4483 = vmatprep.subr.mxu0 0.0
        %4484 = vmatpush1.msra.mxu0 0.0
        %4485 = vmatprep.subr.mxu0 0.0
        %4486 = vmatpush1.msra.mxu0 0.0
        %4487 = vmatprep.subr.mxu0 0.0
        %4488 = vmatpush1.msra.mxu0 0.0
        %4489 = vmatprep.subr.mxu0 0.0
        %4490 = vmatpush1.msra.mxu0 0.0
        %4491 = vmatprep.mubr.f32.mxu0 0.0
        %4492 = vmatmul.mubr.f32.gmra.mrb[0].mxu0 %v4419
        %v4493 = vpop.f32.mrb[0].mxu0
        %v4494 = vadd.f32 0.0, %v4493
        %v4495 = vpop.f32.mrb[0].mxu0
        %4496 = vmatprep.mubr.f32.mxu0 0.0
        %4497 = vmatmul.mubr.f32.gmra.mrb[0].mxu0 %v4422
        %v4498 = vpop.f32.mrb[0].mxu0
        %v4499 = vadd.f32 0.0, %v4498
        %v4500 = vpop.f32.mrb[0].mxu0
        %4501 = vmatprep.mubr.f32.mxu0 0.0
        %4502 = vmatmul.mubr.f32.gmra.mrb[0].mxu0 %v4425
        %v4503 = vpop.f32.mrb[0].mxu0
        %v4504 = vadd.f32 0.0, %v4503
        %v4505 = vpop.f32.mrb[0].mxu0
        %4506 = vdwg.mxu0
        %v4507 = vadd.f32 %v4387, %v4494
        %v4508 = vadd.f32 %v4388, %v4499
        %v4509 = vadd.f32 %v4389, %v4504
        %s4510 = scalar_lea.vmem %s17, 96
        %v4511 = vld [vmem:[%s4510] sm:$0xff]
        %v4512 = vld [vmem:[%s4510 + $0x8] sm:$0xff]
        %v4513 = vld [vmem:[%s4510 + $0x10] sm:$0xf]
        %4514 = vrot.lane.b32.xlu0 %v4045, 124
        %v4515 = vpop.permute.xlu0 %4514
        %4516 = vrot.lane.b32.xlu0 %v4046, 124
        %v4517 = vpop.permute.xlu0 %4516
        %4518 = vrot.lane.b32.xlu0 %v4047, 124
        %v4519 = vpop.permute.xlu0 %4518
        %4520 = vrot.lane.b32.xlu0 %v4048, 124
        %v4521 = vpop.permute.xlu0 %4520
        %4522 = vrot.lane.b32.xlu0 %v4049, 124
        %v4523 = vpop.permute.xlu0 %4522
        %4524 = vrot.lane.b32.xlu0 %v4050, 124
        %v4525 = vpop.permute.xlu0 %4524
        %4526 = vrot.lane.b32.xlu0 %v4051, 124
        %v4527 = vpop.permute.xlu0 %4526
        %4528 = vrot.lane.b32.xlu0 %v4052, 124
        %v4529 = vpop.permute.xlu0 %4528
        %v4539 = vsel %vm1354, %v4511, 0
        %v4542 = vsel %vm1354, %v4512, 0
        %v4545 = vsel %vm1354, %v4513, 0
        %4547 = vmatprep.subr.mxu0 0.0
        %4548 = vmatpush1.msra.mxu0 %v4515
        %4549 = vmatprep.subr.mxu0 0.0
        %4550 = vmatpush1.msra.mxu0 %v4517
        %4551 = vmatprep.subr.mxu0 0.0
        %4552 = vmatpush1.msra.mxu0 %v4519
        %4553 = vmatprep.subr.mxu0 0.0
        %4554 = vmatpush1.msra.mxu0 %v4521
        %4555 = vmatprep.subr.mxu0 0.0
        %4556 = vmatpush1.msra.mxu0 %v4523
        %4557 = vmatprep.subr.mxu0 0.0
        %4558 = vmatpush1.msra.mxu0 %v4525
        %4559 = vmatprep.subr.mxu0 0.0
        %4560 = vmatpush1.msra.mxu0 %v4527
        %4561 = vmatprep.subr.mxu0 0.0
        %4562 = vmatpush1.msra.mxu0 %v4529
        %4563 = vmatprep.subr.mxu0 0.0
        %4564 = vmatpush1.msra.mxu0 0.0
        %4565 = vmatprep.subr.mxu0 0.0
        %4566 = vmatpush1.msra.mxu0 0.0
        %4567 = vmatprep.subr.mxu0 0.0
        %4568 = vmatpush1.msra.mxu0 0.0
        %4569 = vmatprep.subr.mxu0 0.0
        %4570 = vmatpush1.msra.mxu0 0.0
        %4571 = vmatprep.subr.mxu0 0.0
        %4572 = vmatpush1.msra.mxu0 0.0
        %4573 = vmatprep.subr.mxu0 0.0
        %4574 = vmatpush1.msra.mxu0 0.0
        %4575 = vmatprep.subr.mxu0 0.0
        %4576 = vmatpush1.msra.mxu0 0.0
        %4577 = vmatprep.subr.mxu0 0.0
        %4578 = vmatpush1.msra.mxu0 0.0
        %4579 = vmatprep.subr.mxu0 0.0
        %4580 = vmatpush1.msra.mxu0 0.0
        %4581 = vmatprep.subr.mxu0 0.0
        %4582 = vmatpush1.msra.mxu0 0.0
        %4583 = vmatprep.subr.mxu0 0.0
        %4584 = vmatpush1.msra.mxu0 0.0
        %4585 = vmatprep.subr.mxu0 0.0
        %4586 = vmatpush1.msra.mxu0 0.0
        %4587 = vmatprep.subr.mxu0 0.0
        %4588 = vmatpush1.msra.mxu0 0.0
        %4589 = vmatprep.subr.mxu0 0.0
        %4590 = vmatpush1.msra.mxu0 0.0
        %4591 = vmatprep.subr.mxu0 0.0
        %4592 = vmatpush1.msra.mxu0 0.0
        %4593 = vmatprep.subr.mxu0 0.0
        %4594 = vmatpush1.msra.mxu0 0.0
        %4595 = vmatprep.subr.mxu0 0.0
        %4596 = vmatpush1.msra.mxu0 0.0
        %4597 = vmatprep.subr.mxu0 0.0
        %4598 = vmatpush1.msra.mxu0 0.0
        %4599 = vmatprep.subr.mxu0 0.0
        %4600 = vmatpush1.msra.mxu0 0.0
        %4601 = vmatprep.subr.mxu0 0.0
        %4602 = vmatpush1.msra.mxu0 0.0
        %4603 = vmatprep.subr.mxu0 0.0
        %4604 = vmatpush1.msra.mxu0 0.0
        %4605 = vmatprep.subr.mxu0 0.0
        %4606 = vmatpush1.msra.mxu0 0.0
        %4607 = vmatprep.subr.mxu0 0.0
        %4608 = vmatpush1.msra.mxu0 0.0
        %4609 = vmatprep.subr.mxu0 0.0
        %4610 = vmatpush1.msra.mxu0 0.0
        %4611 = vmatprep.mubr.f32.mxu0 0.0
        %4612 = vmatmul.mubr.f32.gmra.mrb[0].mxu0 %v4539
        %v4613 = vpop.f32.mrb[0].mxu0
        %v4614 = vadd.f32 0.0, %v4613
        %v4615 = vpop.f32.mrb[0].mxu0
        %4616 = vmatprep.mubr.f32.mxu0 0.0
        %4617 = vmatmul.mubr.f32.gmra.mrb[0].mxu0 %v4542
        %v4618 = vpop.f32.mrb[0].mxu0
        %v4619 = vadd.f32 0.0, %v4618
        %v4620 = vpop.f32.mrb[0].mxu0
        %4621 = vmatprep.mubr.f32.mxu0 0.0
        %4622 = vmatmul.mubr.f32.gmra.mrb[0].mxu0 %v4545
        %v4623 = vpop.f32.mrb[0].mxu0
        %v4624 = vadd.f32 0.0, %v4623
        %v4625 = vpop.f32.mrb[0].mxu0
        %4626 = vdwg.mxu0
        %v4627 = vadd.f32 %v4507, %v4614
        %v4628 = vadd.f32 %v4508, %v4619
        %v4629 = vadd.f32 %v4509, %v4624
        %s4630 = scalar_lea.vmem %s17, 120
        %v4631 = vld [vmem:[%s4630] sm:$0xff]
        %v4632 = vld [vmem:[%s4630 + $0x8] sm:$0xff]
        %v4633 = vld [vmem:[%s4630 + $0x10] sm:$0xf]
        %4634 = vrot.lane.b32.xlu0 %v4045, 123
        %v4635 = vpop.permute.xlu0 %4634
        %4636 = vrot.lane.b32.xlu0 %v4046, 123
        %v4637 = vpop.permute.xlu0 %4636
        %4638 = vrot.lane.b32.xlu0 %v4047, 123
        %v4639 = vpop.permute.xlu0 %4638
        %4640 = vrot.lane.b32.xlu0 %v4048, 123
        %v4641 = vpop.permute.xlu0 %4640
        %4642 = vrot.lane.b32.xlu0 %v4049, 123
        %v4643 = vpop.permute.xlu0 %4642
        %4644 = vrot.lane.b32.xlu0 %v4050, 123
        %v4645 = vpop.permute.xlu0 %4644
        %4646 = vrot.lane.b32.xlu0 %v4051, 123
        %v4647 = vpop.permute.xlu0 %4646
        %4648 = vrot.lane.b32.xlu0 %v4052, 123
        %v4649 = vpop.permute.xlu0 %4648
        %v4659 = vsel %vm1354, %v4631, 0
        %v4662 = vsel %vm1354, %v4632, 0
        %v4665 = vsel %vm1354, %v4633, 0
        %4667 = vmatprep.subr.mxu0 0.0
        %4668 = vmatpush1.msra.mxu0 %v4635
        %4669 = vmatprep.subr.mxu0 0.0
        %4670 = vmatpush1.msra.mxu0 %v4637
        %4671 = vmatprep.subr.mxu0 0.0
        %4672 = vmatpush1.msra.mxu0 %v4639
        %4673 = vmatprep.subr.mxu0 0.0
        %4674 = vmatpush1.msra.mxu0 %v4641
        %4675 = vmatprep.subr.mxu0 0.0
        %4676 = vmatpush1.msra.mxu0 %v4643
        %4677 = vmatprep.subr.mxu0 0.0
        %4678 = vmatpush1.msra.mxu0 %v4645
        %4679 = vmatprep.subr.mxu0 0.0
        %4680 = vmatpush1.msra.mxu0 %v4647
        %4681 = vmatprep.subr.mxu0 0.0
        %4682 = vmatpush1.msra.mxu0 %v4649
        %4683 = vmatprep.subr.mxu0 0.0
        %4684 = vmatpush1.msra.mxu0 0.0
        %4685 = vmatprep.subr.mxu0 0.0
        %4686 = vmatpush1.msra.mxu0 0.0
        %4687 = vmatprep.subr.mxu0 0.0
        %4688 = vmatpush1.msra.mxu0 0.0
        %4689 = vmatprep.subr.mxu0 0.0
        %4690 = vmatpush1.msra.mxu0 0.0
        %4691 = vmatprep.subr.mxu0 0.0
        %4692 = vmatpush1.msra.mxu0 0.0
        %4693 = vmatprep.subr.mxu0 0.0
        %4694 = vmatpush1.msra.mxu0 0.0
        %4695 = vmatprep.subr.mxu0 0.0
        %4696 = vmatpush1.msra.mxu0 0.0
        %4697 = vmatprep.subr.mxu0 0.0
        %4698 = vmatpush1.msra.mxu0 0.0
        %4699 = vmatprep.subr.mxu0 0.0
        %4700 = vmatpush1.msra.mxu0 0.0
        %4701 = vmatprep.subr.mxu0 0.0
        %4702 = vmatpush1.msra.mxu0 0.0
        %4703 = vmatprep.subr.mxu0 0.0
        %4704 = vmatpush1.msra.mxu0 0.0
        %4705 = vmatprep.subr.mxu0 0.0
        %4706 = vmatpush1.msra.mxu0 0.0
        %4707 = vmatprep.subr.mxu0 0.0
        %4708 = vmatpush1.msra.mxu0 0.0
        %4709 = vmatprep.subr.mxu0 0.0
        %4710 = vmatpush1.msra.mxu0 0.0
        %4711 = vmatprep.subr.mxu0 0.0
        %4712 = vmatpush1.msra.mxu0 0.0
        %4713 = vmatprep.subr.mxu0 0.0
        %4714 = vmatpush1.msra.mxu0 0.0
        %4715 = vmatprep.subr.mxu0 0.0
        %4716 = vmatpush1.msra.mxu0 0.0
        %4717 = vmatprep.subr.mxu0 0.0
        %4718 = vmatpush1.msra.mxu0 0.0
        %4719 = vmatprep.subr.mxu0 0.0
        %4720 = vmatpush1.msra.mxu0 0.0
        %4721 = vmatprep.subr.mxu0 0.0
        %4722 = vmatpush1.msra.mxu0 0.0
        %4723 = vmatprep.subr.mxu0 0.0
        %4724 = vmatpush1.msra.mxu0 0.0
        %4725 = vmatprep.subr.mxu0 0.0
        %4726 = vmatpush1.msra.mxu0 0.0
        %4727 = vmatprep.subr.mxu0 0.0
        %4728 = vmatpush1.msra.mxu0 0.0
        %4729 = vmatprep.subr.mxu0 0.0
        %4730 = vmatpush1.msra.mxu0 0.0
        %4731 = vmatprep.mubr.f32.mxu0 0.0
        %4732 = vmatmul.mubr.f32.gmra.mrb[0].mxu0 %v4659
        %v4733 = vpop.f32.mrb[0].mxu0
        %v4734 = vadd.f32 0.0, %v4733
        %v4735 = vpop.f32.mrb[0].mxu0
        %4736 = vmatprep.mubr.f32.mxu0 0.0
        %4737 = vmatmul.mubr.f32.gmra.mrb[0].mxu0 %v4662
        %v4738 = vpop.f32.mrb[0].mxu0
        %v4739 = vadd.f32 0.0, %v4738
        %v4740 = vpop.f32.mrb[0].mxu0
        %4741 = vmatprep.mubr.f32.mxu0 0.0
        %4742 = vmatmul.mubr.f32.gmra.mrb[0].mxu0 %v4665
        %v4743 = vpop.f32.mrb[0].mxu0
        %v4744 = vadd.f32 0.0, %v4743
        %v4745 = vpop.f32.mrb[0].mxu0
        %4746 = vdwg.mxu0
        %v4747 = vadd.f32 %v4627, %v4734
        %v4748 = vadd.f32 %v4628, %v4739
        %v4749 = vadd.f32 %v4629, %v4744
        %s4750 = scalar_lea.vmem %s17, 144
        %v4751 = vld [vmem:[%s4750] sm:$0xff]
        %v4752 = vld [vmem:[%s4750 + $0x8] sm:$0xff]
        %v4753 = vld [vmem:[%s4750 + $0x10] sm:$0xf]
        %4754 = vrot.lane.b32.xlu0 %v4045, 122
        %v4755 = vpop.permute.xlu0 %4754
        %4756 = vrot.lane.b32.xlu0 %v4046, 122
        %v4757 = vpop.permute.xlu0 %4756
        %4758 = vrot.lane.b32.xlu0 %v4047, 122
        %v4759 = vpop.permute.xlu0 %4758
        %4760 = vrot.lane.b32.xlu0 %v4048, 122
        %v4761 = vpop.permute.xlu0 %4760
        %4762 = vrot.lane.b32.xlu0 %v4049, 122
        %v4763 = vpop.permute.xlu0 %4762
        %4764 = vrot.lane.b32.xlu0 %v4050, 122
        %v4765 = vpop.permute.xlu0 %4764
        %4766 = vrot.lane.b32.xlu0 %v4051, 122
        %v4767 = vpop.permute.xlu0 %4766
        %4768 = vrot.lane.b32.xlu0 %v4052, 122
        %v4769 = vpop.permute.xlu0 %4768
        %v4779 = vsel %vm1354, %v4751, 0
        %v4782 = vsel %vm1354, %v4752, 0
        %v4785 = vsel %vm1354, %v4753, 0
        %4787 = vmatprep.subr.mxu0 0.0
        %4788 = vmatpush1.msra.mxu0 %v4755
        %4789 = vmatprep.subr.mxu0 0.0
        %4790 = vmatpush1.msra.mxu0 %v4757
        %4791 = vmatprep.subr.mxu0 0.0
        %4792 = vmatpush1.msra.mxu0 %v4759
        %4793 = vmatprep.subr.mxu0 0.0
        %4794 = vmatpush1.msra.mxu0 %v4761
        %4795 = vmatprep.subr.mxu0 0.0
        %4796 = vmatpush1.msra.mxu0 %v4763
        %4797 = vmatprep.subr.mxu0 0.0
        %4798 = vmatpush1.msra.mxu0 %v4765
        %4799 = vmatprep.subr.mxu0 0.0
        %4800 = vmatpush1.msra.mxu0 %v4767
        %4801 = vmatprep.subr.mxu0 0.0
        %4802 = vmatpush1.msra.mxu0 %v4769
        %4803 = vmatprep.subr.mxu0 0.0
        %4804 = vmatpush1.msra.mxu0 0.0
        %4805 = vmatprep.subr.mxu0 0.0
        %4806 = vmatpush1.msra.mxu0 0.0
        %4807 = vmatprep.subr.mxu0 0.0
        %4808 = vmatpush1.msra.mxu0 0.0
        %4809 = vmatprep.subr.mxu0 0.0
        %4810 = vmatpush1.msra.mxu0 0.0
        %4811 = vmatprep.subr.mxu0 0.0
        %4812 = vmatpush1.msra.mxu0 0.0
        %4813 = vmatprep.subr.mxu0 0.0
        %4814 = vmatpush1.msra.mxu0 0.0
        %4815 = vmatprep.subr.mxu0 0.0
        %4816 = vmatpush1.msra.mxu0 0.0
        %4817 = vmatprep.subr.mxu0 0.0
        %4818 = vmatpush1.msra.mxu0 0.0
        %4819 = vmatprep.subr.mxu0 0.0
        %4820 = vmatpush1.msra.mxu0 0.0
        %4821 = vmatprep.subr.mxu0 0.0
        %4822 = vmatpush1.msra.mxu0 0.0
        %4823 = vmatprep.subr.mxu0 0.0
        %4824 = vmatpush1.msra.mxu0 0.0
        %4825 = vmatprep.subr.mxu0 0.0
        %4826 = vmatpush1.msra.mxu0 0.0
        %4827 = vmatprep.subr.mxu0 0.0
        %4828 = vmatpush1.msra.mxu0 0.0
        %4829 = vmatprep.subr.mxu0 0.0
        %4830 = vmatpush1.msra.mxu0 0.0
        %4831 = vmatprep.subr.mxu0 0.0
        %4832 = vmatpush1.msra.mxu0 0.0
        %4833 = vmatprep.subr.mxu0 0.0
        %4834 = vmatpush1.msra.mxu0 0.0
        %4835 = vmatprep.subr.mxu0 0.0
        %4836 = vmatpush1.msra.mxu0 0.0
        %4837 = vmatprep.subr.mxu0 0.0
        %4838 = vmatpush1.msra.mxu0 0.0
        %4839 = vmatprep.subr.mxu0 0.0
        %4840 = vmatpush1.msra.mxu0 0.0
        %4841 = vmatprep.subr.mxu0 0.0
        %4842 = vmatpush1.msra.mxu0 0.0
        %4843 = vmatprep.subr.mxu0 0.0
        %4844 = vmatpush1.msra.mxu0 0.0
        %4845 = vmatprep.subr.mxu0 0.0
        %4846 = vmatpush1.msra.mxu0 0.0
        %4847 = vmatprep.subr.mxu0 0.0
        %4848 = vmatpush1.msra.mxu0 0.0
        %4849 = vmatprep.subr.mxu0 0.0
        %4850 = vmatpush1.msra.mxu0 0.0
        %4851 = vmatprep.mubr.f32.mxu0 0.0
        %4852 = vmatmul.mubr.f32.gmra.mrb[0].mxu0 %v4779
        %v4853 = vpop.f32.mrb[0].mxu0
        %v4854 = vadd.f32 0.0, %v4853
        %v4855 = vpop.f32.mrb[0].mxu0
        %4856 = vmatprep.mubr.f32.mxu0 0.0
        %4857 = vmatmul.mubr.f32.gmra.mrb[0].mxu0 %v4782
        %v4858 = vpop.f32.mrb[0].mxu0
        %v4859 = vadd.f32 0.0, %v4858
        %v4860 = vpop.f32.mrb[0].mxu0
        %4861 = vmatprep.mubr.f32.mxu0 0.0
        %4862 = vmatmul.mubr.f32.gmra.mrb[0].mxu0 %v4785
        %v4863 = vpop.f32.mrb[0].mxu0
        %v4864 = vadd.f32 0.0, %v4863
        %v4865 = vpop.f32.mrb[0].mxu0
        %4866 = vdwg.mxu0
        %v4867 = vadd.f32 %v4747, %v4854
        %v4868 = vadd.f32 %v4748, %v4859
        %v4869 = vadd.f32 %v4749, %v4864
        %v4870 = vld [vmem:[%s18] sm:$0xff]
        %v4871 = vld [vmem:[%s18 + $0x8] sm:$0xff]
        %v4872 = vld [vmem:[%s18 + $0x10] sm:$0xf]
        %v4873 = vadd.f32 %v4867, %v4870
        %v4874 = vadd.f32 %v4868, %v4871
        %v4875 = vadd.f32 %v4869, %v4872
        %vm4876 = vcmask 7168
        %4877 = vst.msk [vmem:[%s668] sm:$0xff] %vm4876, %v4873
        %4878 = vst.msk [vmem:[%s668 + $0x8] sm:$0xff] %vm4876, %v4874
        %vm4879 = vcmask 3072
        %4880 = vst.msk [vmem:[%s668 + $0x10] sm:$0xf] %vm4879, %v4875
        %s4881 = scalar_lea.vmem %s596, 16 [#allocation2]
        %v4882 = vld [vmem:[%s4881] sm:$0xff]
        %v4883 = vld [vmem:[%s4881 + $0x8] sm:$0xff]
        %4886 = vrot.lane.b32.xlu0 %v4882, 127
        %v4887 = vpop.permute.xlu0 %4886
        %4888 = vrot.lane.b32.xlu0 %v4883, 127
        %v4889 = vpop.permute.xlu0 %4888
        %4892 = vrot.lane.b32.xlu0 %v4882, 126
        %v4893 = vpop.permute.xlu0 %4892
        %4894 = vrot.lane.b32.xlu0 %v4883, 126
        %v4895 = vpop.permute.xlu0 %4894
        %v4898 = vld [vmem:[#allocation4] sm:$0xff]
        %v4899 = vld [vmem:[#allocation4 + $0x8] sm:$0xff]
        %v4900 = vld [vmem:[#allocation4 + $0x10] sm:$0xff]
        %v4901 = vld [vmem:[#allocation4 + $0x18] sm:$0xff]
        %v4902 = vld [vmem:[%s2] sm:$0xff]
        %v4903 = vld [vmem:[%s2 + $0x8] sm:$0xff]
        %v4904 = vld [vmem:[%s2 + $0x10] sm:$0xff]
        %v4905 = vld [vmem:[%s2 + $0x18] sm:$0xff]
        %4907 = vset.pattern.permute.xlu0 0
        %4908 = vperm.xlu0 %4907, %v4902
        %v4909 = vpop.permute.xlu0 %4908
        %4912 = vset.pattern.permute.xlu0 0
        %4913 = vperm.xlu0 %4912, %v4903
        %v4914 = vpop.permute.xlu0 %4913
        %4917 = vset.pattern.permute.xlu0 0
        %4918 = vperm.xlu0 %4917, %v4904
        %v4919 = vpop.permute.xlu0 %4918
        %4922 = vset.pattern.permute.xlu0 0
        %4923 = vperm.xlu0 %4922, %v4905
        %v4924 = vpop.permute.xlu0 %4923
        %v4927 = vsel %vm713, %v4898, 0
        %v4930 = vsel %vm713, %v4899, 0
        %v4933 = vsel %vm713, %v4900, 0
        %v4936 = vsel %vm713, %v4901, 0
        %4938 = vmatprep.subr.mxu0 0.0
        %4939 = vmatpush1.msra.mxu0 %v4882
        %4940 = vmatprep.subr.mxu0 0.0
        %4941 = vmatpush1.msra.mxu0 %v4883
        %4942 = vmatprep.subr.mxu0 0.0
        %4943 = vmatpush1.msra.mxu0 %v4887
        %4944 = vmatprep.subr.mxu0 0.0
        %4945 = vmatpush1.msra.mxu0 %v4889
        %4946 = vmatprep.subr.mxu0 0.0
        %4947 = vmatpush1.msra.mxu0 %v4893
        %4948 = vmatprep.subr.mxu0 0.0
        %4949 = vmatpush1.msra.mxu0 %v4895
        %4950 = vmatprep.subr.mxu0 0.0
        %4951 = vmatpush1.msra.mxu0 0.0
        %4952 = vmatprep.subr.mxu0 0.0
        %4953 = vmatpush1.msra.mxu0 0.0
        %4954 = vmatprep.subr.mxu0 0.0
        %4955 = vmatpush1.msra.mxu0 0.0
        %4956 = vmatprep.subr.mxu0 0.0
        %4957 = vmatpush1.msra.mxu0 0.0
        %4958 = vmatprep.subr.mxu0 0.0
        %4959 = vmatpush1.msra.mxu0 0.0
        %4960 = vmatprep.subr.mxu0 0.0
        %4961 = vmatpush1.msra.mxu0 0.0
        %4962 = vmatprep.subr.mxu0 0.0
        %4963 = vmatpush1.msra.mxu0 0.0
        %4964 = vmatprep.subr.mxu0 0.0
        %4965 = vmatpush1.msra.mxu0 0.0
        %4966 = vmatprep.subr.mxu0 0.0
        %4967 = vmatpush1.msra.mxu0 0.0
        %4968 = vmatprep.subr.mxu0 0.0
        %4969 = vmatpush1.msra.mxu0 0.0
        %4970 = vmatprep.subr.mxu0 0.0
        %4971 = vmatpush1.msra.mxu0 0.0
        %4972 = vmatprep.subr.mxu0 0.0
        %4973 = vmatpush1.msra.mxu0 0.0
        %4974 = vmatprep.subr.mxu0 0.0
        %4975 = vmatpush1.msra.mxu0 0.0
        %4976 = vmatprep.subr.mxu0 0.0
        %4977 = vmatpush1.msra.mxu0 0.0
        %4978 = vmatprep.subr.mxu0 0.0
        %4979 = vmatpush1.msra.mxu0 0.0
        %4980 = vmatprep.subr.mxu0 0.0
        %4981 = vmatpush1.msra.mxu0 0.0
        %4982 = vmatprep.subr.mxu0 0.0
        %4983 = vmatpush1.msra.mxu0 0.0
        %4984 = vmatprep.subr.mxu0 0.0
        %4985 = vmatpush1.msra.mxu0 0.0
        %4986 = vmatprep.subr.mxu0 0.0
        %4987 = vmatpush1.msra.mxu0 0.0
        %4988 = vmatprep.subr.mxu0 0.0
        %4989 = vmatpush1.msra.mxu0 0.0
        %4990 = vmatprep.subr.mxu0 0.0
        %4991 = vmatpush1.msra.mxu0 0.0
        %4992 = vmatprep.subr.mxu0 0.0
        %4993 = vmatpush1.msra.mxu0 0.0
        %4994 = vmatprep.subr.mxu0 0.0
        %4995 = vmatpush1.msra.mxu0 0.0
        %4996 = vmatprep.subr.mxu0 0.0
        %4997 = vmatpush1.msra.mxu0 0.0
        %4998 = vmatprep.subr.mxu0 0.0
        %4999 = vmatpush1.msra.mxu0 0.0
        %5000 = vmatprep.subr.mxu0 0.0
        %5001 = vmatpush1.msra.mxu0 0.0
        %5002 = vmatprep.mubr.f32.mxu0 0.0
        %5003 = vmatmul.mubr.f32.gmra.mrb[0].mxu0 %v4927
        %v5004 = vpop.f32.mrb[0].mxu0
        %v5005 = vadd.f32 %v4909, %v5004
        %v5006 = vpop.f32.mrb[0].mxu0
        %5007 = vmatprep.mubr.f32.mxu0 0.0
        %5008 = vmatmul.mubr.f32.gmra.mrb[0].mxu0 %v4930
        %v5009 = vpop.f32.mrb[0].mxu0
        %v5010 = vadd.f32 %v4914, %v5009
        %v5011 = vpop.f32.mrb[0].mxu0
        %5012 = vmatprep.mubr.f32.mxu0 0.0
        %5013 = vmatmul.mubr.f32.gmra.mrb[0].mxu0 %v4933
        %v5014 = vpop.f32.mrb[0].mxu0
        %v5015 = vadd.f32 %v4919, %v5014
        %v5016 = vpop.f32.mrb[0].mxu0
        %5017 = vmatprep.mubr.f32.mxu0 0.0
        %5018 = vmatmul.mubr.f32.gmra.mrb[0].mxu0 %v4936
        %v5019 = vpop.f32.mrb[0].mxu0
        %v5020 = vadd.f32 %v4924, %v5019
        %v5021 = vpop.f32.mrb[0].mxu0
        %5022 = vdwg.mxu0
        %v5023 = vmax.f32 %v5005, 0.0
        %v5024 = vmax.f32 %v5010, 0.0
        %v5025 = vmax.f32 %v5015, 0.0
        %v5026 = vmax.f32 %v5020, 0.0
        %5031 = vrot.lane.b32.xlu0 %v5023, 127
        %v5032 = vpop.permute.xlu0 %5031
        %5033 = vrot.lane.b32.xlu0 %v5024, 127
        %v5034 = vpop.permute.xlu0 %5033
        %5035 = vrot.lane.b32.xlu0 %v5025, 127
        %v5036 = vpop.permute.xlu0 %5035
        %5037 = vrot.lane.b32.xlu0 %v5026, 127
        %v5038 = vpop.permute.xlu0 %5037
        %5043 = vrot.lane.b32.xlu0 %v5023, 126
        %v5044 = vpop.permute.xlu0 %5043
        %5045 = vrot.lane.b32.xlu0 %v5024, 126
        %v5046 = vpop.permute.xlu0 %5045
        %5047 = vrot.lane.b32.xlu0 %v5025, 126
        %v5048 = vpop.permute.xlu0 %5047
        %5049 = vrot.lane.b32.xlu0 %v5026, 126
        %v5050 = vpop.permute.xlu0 %5049
        %v5055 = vld [vmem:[#allocation6] sm:$0xff]
        %v5056 = vld [vmem:[#allocation6 + $0x8] sm:$0xff]
        %v5057 = vld [vmem:[#allocation6 + $0x10] sm:$0xff]
        %v5058 = vld [vmem:[#allocation6 + $0x18] sm:$0xff]
        %v5059 = vld [vmem:[#allocation6 + $0x20] sm:$0xff]
        %v5060 = vld [vmem:[#allocation6 + $0x28] sm:$0xff]
        %v5061 = vld [vmem:[#allocation6 + $0x30] sm:$0xff]
        %v5062 = vld [vmem:[#allocation6 + $0x38] sm:$0xff]
        %v5063 = vld [vmem:[%s4] sm:$0xff]
        %v5064 = vld [vmem:[%s4 + $0x8] sm:$0xff]
        %v5065 = vld [vmem:[%s4 + $0x10] sm:$0xff]
        %v5066 = vld [vmem:[%s4 + $0x18] sm:$0xff]
        %v5067 = vld [vmem:[%s4 + $0x20] sm:$0xff]
        %v5068 = vld [vmem:[%s4 + $0x28] sm:$0xff]
        %v5069 = vld [vmem:[%s4 + $0x30] sm:$0xff]
        %v5070 = vld [vmem:[%s4 + $0x38] sm:$0xff]
        %5072 = vset.pattern.permute.xlu0 0
        %5073 = vperm.xlu0 %5072, %v5063
        %v5074 = vpop.permute.xlu0 %5073
        %5077 = vset.pattern.permute.xlu0 0
        %5078 = vperm.xlu0 %5077, %v5064
        %v5079 = vpop.permute.xlu0 %5078
        %5082 = vset.pattern.permute.xlu0 0
        %5083 = vperm.xlu0 %5082, %v5065
        %v5084 = vpop.permute.xlu0 %5083
        %5087 = vset.pattern.permute.xlu0 0
        %5088 = vperm.xlu0 %5087, %v5066
        %v5089 = vpop.permute.xlu0 %5088
        %5092 = vset.pattern.permute.xlu0 0
        %5093 = vperm.xlu0 %5092, %v5067
        %v5094 = vpop.permute.xlu0 %5093
        %5097 = vset.pattern.permute.xlu0 0
        %5098 = vperm.xlu0 %5097, %v5068
        %v5099 = vpop.permute.xlu0 %5098
        %5102 = vset.pattern.permute.xlu0 0
        %5103 = vperm.xlu0 %5102, %v5069
        %v5104 = vpop.permute.xlu0 %5103
        %5107 = vset.pattern.permute.xlu0 0
        %5108 = vperm.xlu0 %5107, %v5070
        %v5109 = vpop.permute.xlu0 %5108
        %v5112 = vsel %vm899, %v5055, 0
        %v5115 = vsel %vm899, %v5056, 0
        %v5118 = vsel %vm899, %v5057, 0
        %v5121 = vsel %vm899, %v5058, 0
        %v5124 = vsel %vm899, %v5059, 0
        %v5127 = vsel %vm899, %v5060, 0
        %v5130 = vsel %vm899, %v5061, 0
        %v5133 = vsel %vm899, %v5062, 0
        %5135 = vmatprep.subr.mxu0 0.0
        %5136 = vmatpush1.msra.mxu0 %v5023
        %5137 = vmatprep.subr.mxu0 0.0
        %5138 = vmatpush1.msra.mxu0 %v5024
        %5139 = vmatprep.subr.mxu0 0.0
        %5140 = vmatpush1.msra.mxu0 %v5025
        %5141 = vmatprep.subr.mxu0 0.0
        %5142 = vmatpush1.msra.mxu0 %v5026
        %5143 = vmatprep.subr.mxu0 0.0
        %5144 = vmatpush1.msra.mxu0 %v5032
        %5145 = vmatprep.subr.mxu0 0.0
        %5146 = vmatpush1.msra.mxu0 %v5034
        %5147 = vmatprep.subr.mxu0 0.0
        %5148 = vmatpush1.msra.mxu0 %v5036
        %5149 = vmatprep.subr.mxu0 0.0
        %5150 = vmatpush1.msra.mxu0 %v5038
        %5151 = vmatprep.subr.mxu0 0.0
        %5152 = vmatpush1.msra.mxu0 %v5044
        %5153 = vmatprep.subr.mxu0 0.0
        %5154 = vmatpush1.msra.mxu0 %v5046
        %5155 = vmatprep.subr.mxu0 0.0
        %5156 = vmatpush1.msra.mxu0 %v5048
        %5157 = vmatprep.subr.mxu0 0.0
        %5158 = vmatpush1.msra.mxu0 %v5050
        %5159 = vmatprep.subr.mxu0 0.0
        %5160 = vmatpush1.msra.mxu0 0.0
        %5161 = vmatprep.subr.mxu0 0.0
        %5162 = vmatpush1.msra.mxu0 0.0
        %5163 = vmatprep.subr.mxu0 0.0
        %5164 = vmatpush1.msra.mxu0 0.0
        %5165 = vmatprep.subr.mxu0 0.0
        %5166 = vmatpush1.msra.mxu0 0.0
        %5167 = vmatprep.subr.mxu0 0.0
        %5168 = vmatpush1.msra.mxu0 0.0
        %5169 = vmatprep.subr.mxu0 0.0
        %5170 = vmatpush1.msra.mxu0 0.0
        %5171 = vmatprep.subr.mxu0 0.0
        %5172 = vmatpush1.msra.mxu0 0.0
        %5173 = vmatprep.subr.mxu0 0.0
        %5174 = vmatpush1.msra.mxu0 0.0
        %5175 = vmatprep.subr.mxu0 0.0
        %5176 = vmatpush1.msra.mxu0 0.0
        %5177 = vmatprep.subr.mxu0 0.0
        %5178 = vmatpush1.msra.mxu0 0.0
        %5179 = vmatprep.subr.mxu0 0.0
        %5180 = vmatpush1.msra.mxu0 0.0
        %5181 = vmatprep.subr.mxu0 0.0
        %5182 = vmatpush1.msra.mxu0 0.0
        %5183 = vmatprep.subr.mxu0 0.0
        %5184 = vmatpush1.msra.mxu0 0.0
        %5185 = vmatprep.subr.mxu0 0.0
        %5186 = vmatpush1.msra.mxu0 0.0
        %5187 = vmatprep.subr.mxu0 0.0
        %5188 = vmatpush1.msra.mxu0 0.0
        %5189 = vmatprep.subr.mxu0 0.0
        %5190 = vmatpush1.msra.mxu0 0.0
        %5191 = vmatprep.subr.mxu0 0.0
        %5192 = vmatpush1.msra.mxu0 0.0
        %5193 = vmatprep.subr.mxu0 0.0
        %5194 = vmatpush1.msra.mxu0 0.0
        %5195 = vmatprep.subr.mxu0 0.0
        %5196 = vmatpush1.msra.mxu0 0.0
        %5197 = vmatprep.subr.mxu0 0.0
        %5198 = vmatpush1.msra.mxu0 0.0
        %5199 = vmatprep.mubr.f32.mxu0 0.0
        %5200 = vmatmul.mubr.f32.gmra.mrb[0].mxu0 %v5112
        %v5201 = vpop.f32.mrb[0].mxu0
        %v5202 = vadd.f32 %v5074, %v5201
        %v5203 = vpop.f32.mrb[0].mxu0
        %5204 = vmatprep.mubr.f32.mxu0 0.0
        %5205 = vmatmul.mubr.f32.gmra.mrb[0].mxu0 %v5115
        %v5206 = vpop.f32.mrb[0].mxu0
        %v5207 = vadd.f32 %v5079, %v5206
        %v5208 = vpop.f32.mrb[0].mxu0
        %5209 = vmatprep.mubr.f32.mxu0 0.0
        %5210 = vmatmul.mubr.f32.gmra.mrb[0].mxu0 %v5118
        %v5211 = vpop.f32.mrb[0].mxu0
        %v5212 = vadd.f32 %v5084, %v5211
        %v5213 = vpop.f32.mrb[0].mxu0
        %5214 = vmatprep.mubr.f32.mxu0 0.0
        %5215 = vmatmul.mubr.f32.gmra.mrb[0].mxu0 %v5121
        %v5216 = vpop.f32.mrb[0].mxu0
        %v5217 = vadd.f32 %v5089, %v5216
        %v5218 = vpop.f32.mrb[0].mxu0
        %5219 = vmatprep.mubr.f32.mxu0 0.0
        %5220 = vmatmul.mubr.f32.gmra.mrb[0].mxu0 %v5124
        %v5221 = vpop.f32.mrb[0].mxu0
        %v5222 = vadd.f32 %v5094, %v5221
        %v5223 = vpop.f32.mrb[0].mxu0
        %5224 = vmatprep.mubr.f32.mxu0 0.0
        %5225 = vmatmul.mubr.f32.gmra.mrb[0].mxu0 %v5127
        %v5226 = vpop.f32.mrb[0].mxu0
        %v5227 = vadd.f32 %v5099, %v5226
        %v5228 = vpop.f32.mrb[0].mxu0
        %5229 = vmatprep.mubr.f32.mxu0 0.0
        %5230 = vmatmul.mubr.f32.gmra.mrb[0].mxu0 %v5130
        %v5231 = vpop.f32.mrb[0].mxu0
        %v5232 = vadd.f32 %v5104, %v5231
        %v5233 = vpop.f32.mrb[0].mxu0
        %5234 = vmatprep.mubr.f32.mxu0 0.0
        %5235 = vmatmul.mubr.f32.gmra.mrb[0].mxu0 %v5133
        %v5236 = vpop.f32.mrb[0].mxu0
        %v5237 = vadd.f32 %v5109, %v5236
        %v5238 = vpop.f32.mrb[0].mxu0
        %5239 = vdwg.mxu0
        %v5240 = vmax.f32 %v5202, 0.0
        %v5241 = vmax.f32 %v5207, 0.0
        %v5242 = vmax.f32 %v5212, 0.0
        %v5243 = vmax.f32 %v5217, 0.0
        %v5244 = vmax.f32 %v5222, 0.0
        %v5245 = vmax.f32 %v5227, 0.0
        %v5246 = vmax.f32 %v5232, 0.0
        %v5247 = vmax.f32 %v5237, 0.0
        %v5248 = vld [vmem:[%s15] sm:$0xff]
        %v5249 = vld [vmem:[%s15 + $0x8] sm:$0xff]
        %v5250 = vld [vmem:[%s15 + $0x10] sm:$0xff]
        %v5251 = vld [vmem:[%s15 + $0x18] sm:$0xff]
        %v5252 = vld [vmem:[%s15 + $0x20] sm:$0xff]
        %v5253 = vld [vmem:[%s15 + $0x28] sm:$0xff]
        %v5254 = vld [vmem:[%s15 + $0x30] sm:$0xff]
        %v5255 = vld [vmem:[%s15 + $0x38] sm:$0xff]
        %v5256 = vld [vmem:[%s15 + $0x40] sm:$0xff]
        %v5257 = vld [vmem:[%s15 + $0x48] sm:$0xff]
        %v5258 = vld [vmem:[%s15 + $0x50] sm:$0xff]
        %v5259 = vld [vmem:[%s15 + $0x58] sm:$0xff]
        %v5261 = vsel %vm899, %v5240, 0
        %v5264 = vsel %vm899, %v5241, 0
        %v5267 = vsel %vm899, %v5242, 0
        %v5270 = vsel %vm899, %v5243, 0
        %v5273 = vsel %vm899, %v5244, 0
        %v5276 = vsel %vm899, %v5245, 0
        %v5279 = vsel %vm899, %v5246, 0
        %v5282 = vsel %vm899, %v5247, 0
        %5284 = vmatprep.subr.mxu0 0.0
        %5285 = vmatpush1.msra.mxu0 %v5248
        %5286 = vmatprep.subr.mxu0 0.0
        %5287 = vmatpush1.msra.mxu0 %v5249
        %5288 = vmatprep.subr.mxu0 0.0
        %5289 = vmatpush1.msra.mxu0 %v5250
        %5290 = vmatprep.subr.mxu0 0.0
        %5291 = vmatpush1.msra.mxu0 %v5251
        %5292 = vmatprep.subr.mxu0 0.0
        %5293 = vmatpush1.msra.mxu0 %v5252
        %5294 = vmatprep.subr.mxu0 0.0
        %5295 = vmatpush1.msra.mxu0 %v5253
        %5296 = vmatprep.subr.mxu0 0.0
        %5297 = vmatpush1.msra.mxu0 %v5254
        %5298 = vmatprep.subr.mxu0 0.0
        %5299 = vmatpush1.msra.mxu0 %v5255
        %5300 = vmatprep.subr.mxu0 0.0
        %5301 = vmatpush1.msra.mxu0 %v5256
        %5302 = vmatprep.subr.mxu0 0.0
        %5303 = vmatpush1.msra.mxu0 %v5257
        %5304 = vmatprep.subr.mxu0 0.0
        %5305 = vmatpush1.msra.mxu0 %v5258
        %5306 = vmatprep.subr.mxu0 0.0
        %5307 = vmatpush1.msra.mxu0 %v5259
        %5308 = vmatprep.subr.mxu0 0.0
        %5309 = vmatpush1.msra.mxu0 0.0
        %5310 = vmatprep.subr.mxu0 0.0
        %5311 = vmatpush1.msra.mxu0 0.0
        %5312 = vmatprep.subr.mxu0 0.0
        %5313 = vmatpush1.msra.mxu0 0.0
        %5314 = vmatprep.subr.mxu0 0.0
        %5315 = vmatpush1.msra.mxu0 0.0
        %5316 = vmatprep.subr.mxu0 0.0
        %5317 = vmatpush1.msra.mxu0 0.0
        %5318 = vmatprep.subr.mxu0 0.0
        %5319 = vmatpush1.msra.mxu0 0.0
        %5320 = vmatprep.subr.mxu0 0.0
        %5321 = vmatpush1.msra.mxu0 0.0
        %5322 = vmatprep.subr.mxu0 0.0
        %5323 = vmatpush1.msra.mxu0 0.0
        %5324 = vmatprep.subr.mxu0 0.0
        %5325 = vmatpush1.msra.mxu0 0.0
        %5326 = vmatprep.subr.mxu0 0.0
        %5327 = vmatpush1.msra.mxu0 0.0
        %5328 = vmatprep.subr.mxu0 0.0
        %5329 = vmatpush1.msra.mxu0 0.0
        %5330 = vmatprep.subr.mxu0 0.0
        %5331 = vmatpush1.msra.mxu0 0.0
        %5332 = vmatprep.subr.mxu0 0.0
        %5333 = vmatpush1.msra.mxu0 0.0
        %5334 = vmatprep.subr.mxu0 0.0
        %5335 = vmatpush1.msra.mxu0 0.0
        %5336 = vmatprep.subr.mxu0 0.0
        %5337 = vmatpush1.msra.mxu0 0.0
        %5338 = vmatprep.subr.mxu0 0.0
        %5339 = vmatpush1.msra.mxu0 0.0
        %5340 = vmatprep.subr.mxu0 0.0
        %5341 = vmatpush1.msra.mxu0 0.0
        %5342 = vmatprep.subr.mxu0 0.0
        %5343 = vmatpush1.msra.mxu0 0.0
        %5344 = vmatprep.subr.mxu0 0.0
        %5345 = vmatpush1.msra.mxu0 0.0
        %5346 = vmatprep.subr.mxu0 0.0
        %5347 = vmatpush1.msra.mxu0 0.0
        %5348 = vmatprep.mubr.f32.mxu0 0.0
        %5349 = vmatmul.mubr.f32.gmra.mrb[0].mxu0 %v5261
        %v5350 = vpop.f32.mrb[0].mxu0
        %v5351 = vadd.f32 0.0, %v5350
        %v5352 = vpop.f32.mrb[0].mxu0
        %5353 = vmatprep.mubr.f32.mxu0 0.0
        %5354 = vmatmul.mubr.f32.gmra.mrb[0].mxu0 %v5264
        %v5355 = vpop.f32.mrb[0].mxu0
        %v5356 = vadd.f32 0.0, %v5355
        %v5357 = vpop.f32.mrb[0].mxu0
        %5358 = vmatprep.mubr.f32.mxu0 0.0
        %5359 = vmatmul.mubr.f32.gmra.mrb[0].mxu0 %v5267
        %v5360 = vpop.f32.mrb[0].mxu0
        %v5361 = vadd.f32 0.0, %v5360
        %v5362 = vpop.f32.mrb[0].mxu0
        %5363 = vmatprep.mubr.f32.mxu0 0.0
        %5364 = vmatmul.mubr.f32.gmra.mrb[0].mxu0 %v5270
        %v5365 = vpop.f32.mrb[0].mxu0
        %v5366 = vadd.f32 0.0, %v5365
        %v5367 = vpop.f32.mrb[0].mxu0
        %5368 = vmatprep.mubr.f32.mxu0 0.0
        %5369 = vmatmul.mubr.f32.gmra.mrb[0].mxu0 %v5273
        %v5370 = vpop.f32.mrb[0].mxu0
        %v5371 = vadd.f32 0.0, %v5370
        %v5372 = vpop.f32.mrb[0].mxu0
        %5373 = vmatprep.mubr.f32.mxu0 0.0
        %5374 = vmatmul.mubr.f32.gmra.mrb[0].mxu0 %v5276
        %v5375 = vpop.f32.mrb[0].mxu0
        %v5376 = vadd.f32 0.0, %v5375
        %v5377 = vpop.f32.mrb[0].mxu0
        %5378 = vmatprep.mubr.f32.mxu0 0.0
        %5379 = vmatmul.mubr.f32.gmra.mrb[0].mxu0 %v5279
        %v5380 = vpop.f32.mrb[0].mxu0
        %v5381 = vadd.f32 0.0, %v5380
        %v5382 = vpop.f32.mrb[0].mxu0
        %5383 = vmatprep.mubr.f32.mxu0 0.0
        %5384 = vmatmul.mubr.f32.gmra.mrb[0].mxu0 %v5282
        %v5385 = vpop.f32.mrb[0].mxu0
        %v5386 = vadd.f32 0.0, %v5385
        %v5387 = vpop.f32.mrb[0].mxu0
        %5388 = vdwg.mxu0
        %5397 = vrot.lane.b32.xlu0 %v5351, 127
        %v5398 = vpop.permute.xlu0 %5397
        %5399 = vrot.lane.b32.xlu0 %v5356, 127
        %v5400 = vpop.permute.xlu0 %5399
        %5401 = vrot.lane.b32.xlu0 %v5361, 127
        %v5402 = vpop.permute.xlu0 %5401
        %5403 = vrot.lane.b32.xlu0 %v5366, 127
        %v5404 = vpop.permute.xlu0 %5403
        %5405 = vrot.lane.b32.xlu0 %v5371, 127
        %v5406 = vpop.permute.xlu0 %5405
        %5407 = vrot.lane.b32.xlu0 %v5376, 127
        %v5408 = vpop.permute.xlu0 %5407
        %5409 = vrot.lane.b32.xlu0 %v5381, 127
        %v5410 = vpop.permute.xlu0 %5409
        %5411 = vrot.lane.b32.xlu0 %v5386, 127
        %v5412 = vpop.permute.xlu0 %5411
        %5421 = vrot.lane.b32.xlu0 %v5351, 126
        %v5422 = vpop.permute.xlu0 %5421
        %5423 = vrot.lane.b32.xlu0 %v5356, 126
        %v5424 = vpop.permute.xlu0 %5423
        %5425 = vrot.lane.b32.xlu0 %v5361, 126
        %v5426 = vpop.permute.xlu0 %5425
        %5427 = vrot.lane.b32.xlu0 %v5366, 126
        %v5428 = vpop.permute.xlu0 %5427
        %5429 = vrot.lane.b32.xlu0 %v5371, 126
        %v5430 = vpop.permute.xlu0 %5429
        %5431 = vrot.lane.b32.xlu0 %v5376, 126
        %v5432 = vpop.permute.xlu0 %5431
        %5433 = vrot.lane.b32.xlu0 %v5381, 126
        %v5434 = vpop.permute.xlu0 %5433
        %5435 = vrot.lane.b32.xlu0 %v5386, 126
        %v5436 = vpop.permute.xlu0 %5435
        %v5445 = vld [vmem:[%s5] sm:$0xff]
        %v5446 = vld [vmem:[%s5 + $0x8] sm:$0xff]
        %v5447 = vld [vmem:[%s5 + $0x10] sm:$0xff]
        %v5448 = vld [vmem:[%s5 + $0x18] sm:$0xff]
        %v5449 = vld [vmem:[%s5 + $0x20] sm:$0xff]
        %v5450 = vld [vmem:[%s5 + $0x28] sm:$0xff]
        %v5451 = vld [vmem:[%s5 + $0x30] sm:$0xff]
        %v5452 = vld [vmem:[%s5 + $0x38] sm:$0xff]
        %v5453 = vld [vmem:[%s5 + $0x40] sm:$0xff]
        %v5454 = vld [vmem:[%s5 + $0x48] sm:$0xff]
        %v5455 = vld [vmem:[%s5 + $0x50] sm:$0xff]
        %v5456 = vld [vmem:[%s5 + $0x58] sm:$0xff]
        %v5457 = vld [vmem:[%s5 + $0x60] sm:$0xff]
        %v5458 = vld [vmem:[%s5 + $0x68] sm:$0xff]
        %v5459 = vld [vmem:[%s5 + $0x70] sm:$0xff]
        %v5460 = vld [vmem:[%s5 + $0x78] sm:$0xff]
        %v5461 = vld [vmem:[%s5 + $0x80] sm:$0xff]
        %v5462 = vld [vmem:[%s5 + $0x88] sm:$0xff]
        %v5463 = vld [vmem:[%s5 + $0x90] sm:$0xff]
        %v5464 = vld [vmem:[%s5 + $0x98] sm:$0xff]
        %v5465 = vld [vmem:[%s5 + $0xa0] sm:$0xff]
        %v5466 = vld [vmem:[%s5 + $0xa8] sm:$0xff]
        %v5467 = vld [vmem:[%s5 + $0xb0] sm:$0xff]
        %v5468 = vld [vmem:[%s5 + $0xb8] sm:$0xff]
        %v5469 = vld [vmem:[%s5 + $0xc0] sm:$0xff]
        %v5470 = vld [vmem:[%s5 + $0xc8] sm:$0xff]
        %v5471 = vld [vmem:[%s5 + $0xd0] sm:$0xff]
        %v5472 = vld [vmem:[%s5 + $0xd8] sm:$0xff]
        %v5473 = vld [vmem:[%s5 + $0xe0] sm:$0xff]
        %v5474 = vld [vmem:[%s5 + $0xe8] sm:$0xff]
        %v5475 = vld [vmem:[%s6] sm:$0xff]
        %v5476 = vld [vmem:[%s6 + $0x8] sm:$0xff]
        %v5477 = vld [vmem:[%s6 + $0x10] sm:$0xff]
        %v5478 = vld [vmem:[%s6 + $0x18] sm:$0xff]
        %v5479 = vld [vmem:[%s6 + $0x20] sm:$0xff]
        %v5480 = vld [vmem:[%s6 + $0x28] sm:$0xff]
        %v5481 = vld [vmem:[%s6 + $0x30] sm:$0xff]
        %v5482 = vld [vmem:[%s6 + $0x38] sm:$0xff]
        %v5483 = vld [vmem:[%s6 + $0x40] sm:$0xff]
        %v5484 = vld [vmem:[%s6 + $0x48] sm:$0xff]
        %v5485 = vld [vmem:[%s6 + $0x50] sm:$0xff]
        %v5486 = vld [vmem:[%s6 + $0x58] sm:$0xff]
        %v5487 = vld [vmem:[%s6 + $0x60] sm:$0xff]
        %v5488 = vld [vmem:[%s6 + $0x68] sm:$0xff]
        %v5489 = vld [vmem:[%s6 + $0x70] sm:$0xff]
        %5491 = vset.pattern.permute.xlu0 0
        %5492 = vperm.xlu0 %5491, %v5475
        %v5493 = vpop.permute.xlu0 %5492
        %5496 = vset.pattern.permute.xlu0 0
        %5497 = vperm.xlu0 %5496, %v5476
        %v5498 = vpop.permute.xlu0 %5497
        %5501 = vset.pattern.permute.xlu0 0
        %5502 = vperm.xlu0 %5501, %v5477
        %v5503 = vpop.permute.xlu0 %5502
        %5506 = vset.pattern.permute.xlu0 0
        %5507 = vperm.xlu0 %5506, %v5478
        %v5508 = vpop.permute.xlu0 %5507
        %5511 = vset.pattern.permute.xlu0 0
        %5512 = vperm.xlu0 %5511, %v5479
        %v5513 = vpop.permute.xlu0 %5512
        %5516 = vset.pattern.permute.xlu0 0
        %5517 = vperm.xlu0 %5516, %v5480
        %v5518 = vpop.permute.xlu0 %5517
        %5521 = vset.pattern.permute.xlu0 0
        %5522 = vperm.xlu0 %5521, %v5481
        %v5523 = vpop.permute.xlu0 %5522
        %5526 = vset.pattern.permute.xlu0 0
        %5527 = vperm.xlu0 %5526, %v5482
        %v5528 = vpop.permute.xlu0 %5527
        %5531 = vset.pattern.permute.xlu0 0
        %5532 = vperm.xlu0 %5531, %v5483
        %v5533 = vpop.permute.xlu0 %5532
        %5536 = vset.pattern.permute.xlu0 0
        %5537 = vperm.xlu0 %5536, %v5484
        %v5538 = vpop.permute.xlu0 %5537
        %5541 = vset.pattern.permute.xlu0 0
        %5542 = vperm.xlu0 %5541, %v5485
        %v5543 = vpop.permute.xlu0 %5542
        %5546 = vset.pattern.permute.xlu0 0
        %5547 = vperm.xlu0 %5546, %v5486
        %v5548 = vpop.permute.xlu0 %5547
        %5551 = vset.pattern.permute.xlu0 0
        %5552 = vperm.xlu0 %5551, %v5487
        %v5553 = vpop.permute.xlu0 %5552
        %5556 = vset.pattern.permute.xlu0 0
        %5557 = vperm.xlu0 %5556, %v5488
        %v5558 = vpop.permute.xlu0 %5557
        %5561 = vset.pattern.permute.xlu0 0
        %5562 = vperm.xlu0 %5561, %v5489
        %v5563 = vpop.permute.xlu0 %5562
        %v5566 = vsel %vm1354, %v5446, 0
        %v5569 = vsel %vm1354, %v5448, 0
        %v5572 = vsel %vm1354, %v5450, 0
        %v5575 = vsel %vm1354, %v5452, 0
        %v5578 = vsel %vm1354, %v5454, 0
        %v5581 = vsel %vm1354, %v5456, 0
        %v5584 = vsel %vm1354, %v5458, 0
        %v5587 = vsel %vm1354, %v5460, 0
        %v5590 = vsel %vm1354, %v5462, 0
        %v5593 = vsel %vm1354, %v5464, 0
        %v5596 = vsel %vm1354, %v5466, 0
        %v5599 = vsel %vm1354, %v5468, 0
        %v5602 = vsel %vm1354, %v5470, 0
        %v5605 = vsel %vm1354, %v5472, 0
        %v5608 = vsel %vm1354, %v5474, 0
        %5610 = vmatprep.subr.mxu0 0.0
        %5611 = vmatpush1.msra.mxu0 %v5351
        %5612 = vmatprep.subr.mxu0 0.0
        %5613 = vmatpush1.msra.mxu0 %v5356
        %5614 = vmatprep.subr.mxu0 0.0
        %5615 = vmatpush1.msra.mxu0 %v5361
        %5616 = vmatprep.subr.mxu0 0.0
        %5617 = vmatpush1.msra.mxu0 %v5366
        %5618 = vmatprep.subr.mxu0 0.0
        %5619 = vmatpush1.msra.mxu0 %v5371
        %5620 = vmatprep.subr.mxu0 0.0
        %5621 = vmatpush1.msra.mxu0 %v5376
        %5622 = vmatprep.subr.mxu0 0.0
        %5623 = vmatpush1.msra.mxu0 %v5381
        %5624 = vmatprep.subr.mxu0 0.0
        %5625 = vmatpush1.msra.mxu0 %v5386
        %5626 = vmatprep.subr.mxu0 0.0
        %5627 = vmatpush1.msra.mxu0 %v5398
        %5628 = vmatprep.subr.mxu0 0.0
        %5629 = vmatpush1.msra.mxu0 %v5400
        %5630 = vmatprep.subr.mxu0 0.0
        %5631 = vmatpush1.msra.mxu0 %v5402
        %5632 = vmatprep.subr.mxu0 0.0
        %5633 = vmatpush1.msra.mxu0 %v5404
        %5634 = vmatprep.subr.mxu0 0.0
        %5635 = vmatpush1.msra.mxu0 %v5406
        %5636 = vmatprep.subr.mxu0 0.0
        %5637 = vmatpush1.msra.mxu0 %v5408
        %5638 = vmatprep.subr.mxu0 0.0
        %5639 = vmatpush1.msra.mxu0 %v5410
        %5640 = vmatprep.subr.mxu0 0.0
        %5641 = vmatpush1.msra.mxu0 %v5412
        %5642 = vmatprep.subr.mxu0 0.0
        %5643 = vmatpush1.msra.mxu0 %v5422
        %5644 = vmatprep.subr.mxu0 0.0
        %5645 = vmatpush1.msra.mxu0 %v5424
        %5646 = vmatprep.subr.mxu0 0.0
        %5647 = vmatpush1.msra.mxu0 %v5426
        %5648 = vmatprep.subr.mxu0 0.0
        %5649 = vmatpush1.msra.mxu0 %v5428
        %5650 = vmatprep.subr.mxu0 0.0
        %5651 = vmatpush1.msra.mxu0 %v5430
        %5652 = vmatprep.subr.mxu0 0.0
        %5653 = vmatpush1.msra.mxu0 %v5432
        %5654 = vmatprep.subr.mxu0 0.0
        %5655 = vmatpush1.msra.mxu0 %v5434
        %5656 = vmatprep.subr.mxu0 0.0
        %5657 = vmatpush1.msra.mxu0 %v5436
        %5658 = vmatprep.subr.mxu0 0.0
        %5659 = vmatpush1.msra.mxu0 0.0
        %5660 = vmatprep.subr.mxu0 0.0
        %5661 = vmatpush1.msra.mxu0 0.0
        %5662 = vmatprep.subr.mxu0 0.0
        %5663 = vmatpush1.msra.mxu0 0.0
        %5664 = vmatprep.subr.mxu0 0.0
        %5665 = vmatpush1.msra.mxu0 0.0
        %5666 = vmatprep.subr.mxu0 0.0
        %5667 = vmatpush1.msra.mxu0 0.0
        %5668 = vmatprep.subr.mxu0 0.0
        %5669 = vmatpush1.msra.mxu0 0.0
        %5670 = vmatprep.subr.mxu0 0.0
        %5671 = vmatpush1.msra.mxu0 0.0
        %5672 = vmatprep.subr.mxu0 0.0
        %5673 = vmatpush1.msra.mxu0 0.0
        %5674 = vmatprep.mubr.f32.mxu0 %v5566
        %5675 = vmatmul.mubr.f32.gmra.mrb[0].mxu0 %v5445
        %v5676 = vpop.f32.mrb[0].mxu0
        %v5677 = vadd.f32 %v5493, %v5676
        %v5678 = vpop.f32.mrb[0].mxu0
        %5679 = vmatprep.mubr.f32.mxu0 %v5569
        %5680 = vmatmul.mubr.f32.gmra.mrb[0].mxu0 %v5447
        %v5681 = vpop.f32.mrb[0].mxu0
        %v5682 = vadd.f32 %v5498, %v5681
        %v5683 = vpop.f32.mrb[0].mxu0
        %5684 = vmatprep.mubr.f32.mxu0 %v5572
        %5685 = vmatmul.mubr.f32.gmra.mrb[0].mxu0 %v5449
        %v5686 = vpop.f32.mrb[0].mxu0
        %v5687 = vadd.f32 %v5503, %v5686
        %v5688 = vpop.f32.mrb[0].mxu0
        %5689 = vmatprep.mubr.f32.mxu0 %v5575
        %5690 = vmatmul.mubr.f32.gmra.mrb[0].mxu0 %v5451
        %v5691 = vpop.f32.mrb[0].mxu0
        %v5692 = vadd.f32 %v5508, %v5691
        %v5693 = vpop.f32.mrb[0].mxu0
        %5694 = vmatprep.mubr.f32.mxu0 %v5578
        %5695 = vmatmul.mubr.f32.gmra.mrb[0].mxu0 %v5453
        %v5696 = vpop.f32.mrb[0].mxu0
        %v5697 = vadd.f32 %v5513, %v5696
        %v5698 = vpop.f32.mrb[0].mxu0
        %5699 = vmatprep.mubr.f32.mxu0 %v5581
        %5700 = vmatmul.mubr.f32.gmra.mrb[0].mxu0 %v5455
        %v5701 = vpop.f32.mrb[0].mxu0
        %v5702 = vadd.f32 %v5518, %v5701
        %v5703 = vpop.f32.mrb[0].mxu0
        %5704 = vmatprep.mubr.f32.mxu0 %v5584
        %5705 = vmatmul.mubr.f32.gmra.mrb[0].mxu0 %v5457
        %v5706 = vpop.f32.mrb[0].mxu0
        %v5707 = vadd.f32 %v5523, %v5706
        %v5708 = vpop.f32.mrb[0].mxu0
        %5709 = vmatprep.mubr.f32.mxu0 %v5587
        %5710 = vmatmul.mubr.f32.gmra.mrb[0].mxu0 %v5459
        %v5711 = vpop.f32.mrb[0].mxu0
        %v5712 = vadd.f32 %v5528, %v5711
        %v5713 = vpop.f32.mrb[0].mxu0
        %5714 = vmatprep.mubr.f32.mxu0 %v5590
        %5715 = vmatmul.mubr.f32.gmra.mrb[0].mxu0 %v5461
        %v5716 = vpop.f32.mrb[0].mxu0
        %v5717 = vadd.f32 %v5533, %v5716
        %v5718 = vpop.f32.mrb[0].mxu0
        %5719 = vmatprep.mubr.f32.mxu0 %v5593
        %5720 = vmatmul.mubr.f32.gmra.mrb[0].mxu0 %v5463
        %v5721 = vpop.f32.mrb[0].mxu0
        %v5722 = vadd.f32 %v5538, %v5721
        %v5723 = vpop.f32.mrb[0].mxu0
        %5724 = vmatprep.mubr.f32.mxu0 %v5596
        %5725 = vmatmul.mubr.f32.gmra.mrb[0].mxu0 %v5465
        %v5726 = vpop.f32.mrb[0].mxu0
        %v5727 = vadd.f32 %v5543, %v5726
        %v5728 = vpop.f32.mrb[0].mxu0
        %5729 = vmatprep.mubr.f32.mxu0 %v5599
        %5730 = vmatmul.mubr.f32.gmra.mrb[0].mxu0 %v5467
        %v5731 = vpop.f32.mrb[0].mxu0
        %v5732 = vadd.f32 %v5548, %v5731
        %v5733 = vpop.f32.mrb[0].mxu0
        %5734 = vmatprep.mubr.f32.mxu0 %v5602
        %5735 = vmatmul.mubr.f32.gmra.mrb[0].mxu0 %v5469
        %v5736 = vpop.f32.mrb[0].mxu0
        %v5737 = vadd.f32 %v5553, %v5736
        %v5738 = vpop.f32.mrb[0].mxu0
        %5739 = vmatprep.mubr.f32.mxu0 %v5605
        %5740 = vmatmul.mubr.f32.gmra.mrb[0].mxu0 %v5471
        %v5741 = vpop.f32.mrb[0].mxu0
        %v5742 = vadd.f32 %v5558, %v5741
        %v5743 = vpop.f32.mrb[0].mxu0
        %5744 = vmatprep.mubr.f32.mxu0 %v5608
        %5745 = vmatmul.mubr.f32.gmra.mrb[0].mxu0 %v5473
        %v5746 = vpop.f32.mrb[0].mxu0
        %v5747 = vadd.f32 %v5563, %v5746
        %v5748 = vpop.f32.mrb[0].mxu0
        %5749 = vdwg.mxu0
        %v5750 = vmax.f32 %v5677, 0.0
        %v5751 = vmax.f32 %v5682, 0.0
        %v5752 = vmax.f32 %v5687, 0.0
        %v5753 = vmax.f32 %v5692, 0.0
        %v5754 = vmax.f32 %v5697, 0.0
        %v5755 = vmax.f32 %v5702, 0.0
        %v5756 = vmax.f32 %v5707, 0.0
        %v5757 = vmax.f32 %v5712, 0.0
        %v5758 = vmax.f32 %v5717, 0.0
        %v5759 = vmax.f32 %v5722, 0.0
        %v5760 = vmax.f32 %v5727, 0.0
        %v5761 = vmax.f32 %v5732, 0.0
        %v5762 = vmax.f32 %v5737, 0.0
        %v5763 = vmax.f32 %v5742, 0.0
        %v5764 = vmax.f32 %v5747, 0.0
        %5780 = vrot.lane.b32.xlu0 %v5750, 127
        %v5781 = vpop.permute.xlu0 %5780
        %5782 = vrot.lane.b32.xlu0 %v5751, 127
        %v5783 = vpop.permute.xlu0 %5782
        %5784 = vrot.lane.b32.xlu0 %v5752, 127
        %v5785 = vpop.permute.xlu0 %5784
        %5786 = vrot.lane.b32.xlu0 %v5753, 127
        %v5787 = vpop.permute.xlu0 %5786
        %5788 = vrot.lane.b32.xlu0 %v5754, 127
        %v5789 = vpop.permute.xlu0 %5788
        %5790 = vrot.lane.b32.xlu0 %v5755, 127
        %v5791 = vpop.permute.xlu0 %5790
        %5792 = vrot.lane.b32.xlu0 %v5756, 127
        %v5793 = vpop.permute.xlu0 %5792
        %5794 = vrot.lane.b32.xlu0 %v5757, 127
        %v5795 = vpop.permute.xlu0 %5794
        %5796 = vrot.lane.b32.xlu0 %v5758, 127
        %v5797 = vpop.permute.xlu0 %5796
        %5798 = vrot.lane.b32.xlu0 %v5759, 127
        %v5799 = vpop.permute.xlu0 %5798
        %5800 = vrot.lane.b32.xlu0 %v5760, 127
        %v5801 = vpop.permute.xlu0 %5800
        %5802 = vrot.lane.b32.xlu0 %v5761, 127
        %v5803 = vpop.permute.xlu0 %5802
        %5804 = vrot.lane.b32.xlu0 %v5762, 127
        %v5805 = vpop.permute.xlu0 %5804
        %5806 = vrot.lane.b32.xlu0 %v5763, 127
        %v5807 = vpop.permute.xlu0 %5806
        %5808 = vrot.lane.b32.xlu0 %v5764, 127
        %v5809 = vpop.permute.xlu0 %5808
        %5825 = vrot.lane.b32.xlu0 %v5750, 126
        %v5826 = vpop.permute.xlu0 %5825
        %5827 = vrot.lane.b32.xlu0 %v5751, 126
        %v5828 = vpop.permute.xlu0 %5827
        %5829 = vrot.lane.b32.xlu0 %v5752, 126
        %v5830 = vpop.permute.xlu0 %5829
        %5831 = vrot.lane.b32.xlu0 %v5753, 126
        %v5832 = vpop.permute.xlu0 %5831
        %5833 = vrot.lane.b32.xlu0 %v5754, 126
        %v5834 = vpop.permute.xlu0 %5833
        %5835 = vrot.lane.b32.xlu0 %v5755, 126
        %v5836 = vpop.permute.xlu0 %5835
        %5837 = vrot.lane.b32.xlu0 %v5756, 126
        %v5838 = vpop.permute.xlu0 %5837
        %5839 = vrot.lane.b32.xlu0 %v5757, 126
        %v5840 = vpop.permute.xlu0 %5839
        %5841 = vrot.lane.b32.xlu0 %v5758, 126
        %v5842 = vpop.permute.xlu0 %5841
        %5843 = vrot.lane.b32.xlu0 %v5759, 126
        %v5844 = vpop.permute.xlu0 %5843
        %5845 = vrot.lane.b32.xlu0 %v5760, 126
        %v5846 = vpop.permute.xlu0 %5845
        %5847 = vrot.lane.b32.xlu0 %v5761, 126
        %v5848 = vpop.permute.xlu0 %5847
        %5849 = vrot.lane.b32.xlu0 %v5762, 126
        %v5850 = vpop.permute.xlu0 %5849
        %5851 = vrot.lane.b32.xlu0 %v5763, 126
        %v5852 = vpop.permute.xlu0 %5851
        %5853 = vrot.lane.b32.xlu0 %v5764, 126
        %v5854 = vpop.permute.xlu0 %5853
        %v5870 = vld [vmem:[%s7] sm:$0xff]
        %v5871 = vld [vmem:[%s7 + $0x8] sm:$0xff]
        %v5872 = vld [vmem:[%s7 + $0x10] sm:$0xff]
        %v5873 = vld [vmem:[%s7 + $0x18] sm:$0xff]
        %v5874 = vld [vmem:[%s7 + $0x20] sm:$0xff]
        %v5875 = vld [vmem:[%s7 + $0x28] sm:$0xff]
        %v5876 = vld [vmem:[%s7 + $0x30] sm:$0xff]
        %v5877 = vld [vmem:[%s7 + $0x38] sm:$0xff]
        %v5878 = vld [vmem:[%s7 + $0x40] sm:$0xff]
        %v5879 = vld [vmem:[%s7 + $0x48] sm:$0xff]
        %v5880 = vld [vmem:[%s7 + $0x50] sm:$0xff]
        %v5881 = vld [vmem:[%s7 + $0x58] sm:$0xff]
        %v5882 = vld [vmem:[%s7 + $0x60] sm:$0xff]
        %v5883 = vld [vmem:[%s7 + $0x68] sm:$0xff]
        %v5884 = vld [vmem:[%s7 + $0x70] sm:$0xff]
        %v5885 = vld [vmem:[%s7 + $0x78] sm:$0xff]
        %v5886 = vld [vmem:[%s7 + $0x80] sm:$0xff]
        %v5887 = vld [vmem:[%s7 + $0x88] sm:$0xff]
        %v5888 = vld [vmem:[%s7 + $0x90] sm:$0xff]
        %v5889 = vld [vmem:[%s7 + $0x98] sm:$0xff]
        %v5890 = vld [vmem:[%s7 + $0xa0] sm:$0xff]
        %v5891 = vld [vmem:[%s7 + $0xa8] sm:$0xff]
        %v5892 = vld [vmem:[%s7 + $0xb0] sm:$0xff]
        %v5893 = vld [vmem:[%s7 + $0xb8] sm:$0xff]
        %v5894 = vld [vmem:[%s7 + $0xc0] sm:$0xff]
        %v5895 = vld [vmem:[%s7 + $0xc8] sm:$0xff]
        %v5896 = vld [vmem:[%s7 + $0xd0] sm:$0xff]
        %v5897 = vld [vmem:[%s7 + $0xd8] sm:$0xff]
        %v5898 = vld [vmem:[%s7 + $0xe0] sm:$0xff]
        %v5899 = vld [vmem:[%s7 + $0xe8] sm:$0xff]
        %v5900 = vld [vmem:[%s7 + $0xf0] sm:$0xff]
        %v5901 = vld [vmem:[%s7 + $0xf8] sm:$0xff]
        %v5902 = vld [vmem:[%s7 + $0x100] sm:$0xff]
        %v5903 = vld [vmem:[%s7 + $0x108] sm:$0xff]
        %v5904 = vld [vmem:[%s7 + $0x110] sm:$0xff]
        %v5905 = vld [vmem:[%s7 + $0x118] sm:$0xff]
        %v5906 = vld [vmem:[%s7 + $0x120] sm:$0xff]
        %v5907 = vld [vmem:[%s7 + $0x128] sm:$0xff]
        %v5908 = vld [vmem:[%s7 + $0x130] sm:$0xff]
        %v5909 = vld [vmem:[%s7 + $0x138] sm:$0xff]
        %v5910 = vld [vmem:[%s7 + $0x140] sm:$0xff]
        %v5911 = vld [vmem:[%s7 + $0x148] sm:$0xff]
        %v5912 = vld [vmem:[%s7 + $0x150] sm:$0xff]
        %v5913 = vld [vmem:[%s7 + $0x158] sm:$0xff]
        %v5914 = vld [vmem:[%s7 + $0x160] sm:$0xff]
        %v5915 = vld [vmem:[%s7 + $0x168] sm:$0xff]
        %v5916 = vld [vmem:[%s7 + $0x170] sm:$0xff]
        %v5917 = vld [vmem:[%s7 + $0x178] sm:$0xff]
        %v5918 = vld [vmem:[%s7 + $0x180] sm:$0xff]
        %v5919 = vld [vmem:[%s7 + $0x188] sm:$0xff]
        %v5920 = vld [vmem:[%s7 + $0x190] sm:$0xff]
        %v5921 = vld [vmem:[%s7 + $0x198] sm:$0xff]
        %v5922 = vld [vmem:[%s7 + $0x1a0] sm:$0xff]
        %v5923 = vld [vmem:[%s7 + $0x1a8] sm:$0xff]
        %v5924 = vld [vmem:[%s7 + $0x1b0] sm:$0xff]
        %v5925 = vld [vmem:[%s7 + $0x1b8] sm:$0xff]
        %v5926 = vld [vmem:[%s7 + $0x1c0] sm:$0xff]
        %v5927 = vld [vmem:[%s7 + $0x1c8] sm:$0xff]
        %v5928 = vld [vmem:[%s7 + $0x1d0] sm:$0xff]
        %v5929 = vld [vmem:[%s7 + $0x1d8] sm:$0xff]
        %v5930 = vld [vmem:[%s7 + $0x1e0] sm:$0xff]
        %v5931 = vld [vmem:[%s7 + $0x1e8] sm:$0xff]
        %v5932 = vld [vmem:[%s7 + $0x1f0] sm:$0xff]
        %v5933 = vld [vmem:[%s7 + $0x1f8] sm:$0xff]
        %v5934 = vld [vmem:[%s7 + $0x200] sm:$0xff]
        %v5935 = vld [vmem:[%s7 + $0x208] sm:$0xff]
        %v5936 = vld [vmem:[%s7 + $0x210] sm:$0xff]
        %v5937 = vld [vmem:[%s7 + $0x218] sm:$0xff]
        %v5938 = vld [vmem:[%s7 + $0x220] sm:$0xff]
        %v5939 = vld [vmem:[%s7 + $0x228] sm:$0xff]
        %v5940 = vld [vmem:[%s7 + $0x230] sm:$0xff]
        %v5941 = vld [vmem:[%s7 + $0x238] sm:$0xff]
        %v5942 = vld [vmem:[%s7 + $0x240] sm:$0xff]
        %v5943 = vld [vmem:[%s7 + $0x248] sm:$0xff]
        %v5944 = vld [vmem:[%s7 + $0x250] sm:$0xff]
        %v5945 = vld [vmem:[%s7 + $0x258] sm:$0xff]
        %v5946 = vld [vmem:[%s7 + $0x260] sm:$0xff]
        %v5947 = vld [vmem:[%s7 + $0x268] sm:$0xff]
        %v5948 = vld [vmem:[%s7 + $0x270] sm:$0xff]
        %v5949 = vld [vmem:[%s7 + $0x278] sm:$0xff]
        %v5950 = vld [vmem:[%s7 + $0x280] sm:$0xff]
        %v5951 = vld [vmem:[%s7 + $0x288] sm:$0xff]
        %v5952 = vld [vmem:[%s7 + $0x290] sm:$0xff]
        %v5953 = vld [vmem:[%s7 + $0x298] sm:$0xff]
        %v5954 = vld [vmem:[%s7 + $0x2a0] sm:$0xff]
        %v5955 = vld [vmem:[%s7 + $0x2a8] sm:$0xff]
        %v5956 = vld [vmem:[%s7 + $0x2b0] sm:$0xff]
        %v5957 = vld [vmem:[%s7 + $0x2b8] sm:$0xff]
        %v5958 = vld [vmem:[%s7 + $0x2c0] sm:$0xff]
        %v5959 = vld [vmem:[%s7 + $0x2c8] sm:$0xff]
        %v5960 = vld [vmem:[%s8] sm:$0xff]
        %v5961 = vld [vmem:[%s8 + $0x8] sm:$0xff]
        %v5962 = vld [vmem:[%s8 + $0x10] sm:$0xff]
        %v5963 = vld [vmem:[%s8 + $0x18] sm:$0xff]
        %v5964 = vld [vmem:[%s8 + $0x20] sm:$0xff]
        %v5965 = vld [vmem:[%s8 + $0x28] sm:$0xff]
        %v5966 = vld [vmem:[%s8 + $0x30] sm:$0xff]
        %v5967 = vld [vmem:[%s8 + $0x38] sm:$0xff]
        %v5968 = vld [vmem:[%s8 + $0x40] sm:$0xff]
        %v5969 = vld [vmem:[%s8 + $0x48] sm:$0xff]
        %v5970 = vld [vmem:[%s8 + $0x50] sm:$0xff]
        %v5971 = vld [vmem:[%s8 + $0x58] sm:$0xff]
        %v5972 = vld [vmem:[%s8 + $0x60] sm:$0xff]
        %v5973 = vld [vmem:[%s8 + $0x68] sm:$0xff]
        %v5974 = vld [vmem:[%s8 + $0x70] sm:$0xff]
        %v5975 = vld [vmem:[%s8 + $0x78] sm:$0xff]
        %v5976 = vld [vmem:[%s8 + $0x80] sm:$0xff]
        %v5977 = vld [vmem:[%s8 + $0x88] sm:$0xff]
        %v5978 = vld [vmem:[%s8 + $0x90] sm:$0xff]
        %v5979 = vld [vmem:[%s8 + $0x98] sm:$0xff]
        %v5980 = vld [vmem:[%s8 + $0xa0] sm:$0xff]
        %v5981 = vld [vmem:[%s8 + $0xa8] sm:$0xff]
        %v5982 = vld [vmem:[%s8 + $0xb0] sm:$0xff]
        %v5983 = vld [vmem:[%s8 + $0xb8] sm:$0xff]
        %v5984 = vld [vmem:[%s8 + $0xc0] sm:$0xff]
        %v5985 = vld [vmem:[%s8 + $0xc8] sm:$0xff]
        %v5986 = vld [vmem:[%s8 + $0xd0] sm:$0xff]
        %v5987 = vld [vmem:[%s8 + $0xd8] sm:$0xff]
        %v5988 = vld [vmem:[%s8 + $0xe0] sm:$0xff]
        %v5989 = vld [vmem:[%s8 + $0xe8] sm:$0xff]
        %5991 = vset.pattern.permute.xlu0 0
        %5992 = vperm.xlu0 %5991, %v5960
        %v5993 = vpop.permute.xlu0 %5992
        %5996 = vset.pattern.permute.xlu0 0
        %5997 = vperm.xlu0 %5996, %v5961
        %v5998 = vpop.permute.xlu0 %5997
        %6001 = vset.pattern.permute.xlu0 0
        %6002 = vperm.xlu0 %6001, %v5962
        %v6003 = vpop.permute.xlu0 %6002
        %6006 = vset.pattern.permute.xlu0 0
        %6007 = vperm.xlu0 %6006, %v5963
        %v6008 = vpop.permute.xlu0 %6007
        %6011 = vset.pattern.permute.xlu0 0
        %6012 = vperm.xlu0 %6011, %v5964
        %v6013 = vpop.permute.xlu0 %6012
        %6016 = vset.pattern.permute.xlu0 0
        %6017 = vperm.xlu0 %6016, %v5965
        %v6018 = vpop.permute.xlu0 %6017
        %6021 = vset.pattern.permute.xlu0 0
        %6022 = vperm.xlu0 %6021, %v5966
        %v6023 = vpop.permute.xlu0 %6022
        %6026 = vset.pattern.permute.xlu0 0
        %6027 = vperm.xlu0 %6026, %v5967
        %v6028 = vpop.permute.xlu0 %6027
        %6031 = vset.pattern.permute.xlu0 0
        %6032 = vperm.xlu0 %6031, %v5968
        %v6033 = vpop.permute.xlu0 %6032
        %6036 = vset.pattern.permute.xlu0 0
        %6037 = vperm.xlu0 %6036, %v5969
        %v6038 = vpop.permute.xlu0 %6037
        %6041 = vset.pattern.permute.xlu0 0
        %6042 = vperm.xlu0 %6041, %v5970
        %v6043 = vpop.permute.xlu0 %6042
        %6046 = vset.pattern.permute.xlu0 0
        %6047 = vperm.xlu0 %6046, %v5971
        %v6048 = vpop.permute.xlu0 %6047
        %6051 = vset.pattern.permute.xlu0 0
        %6052 = vperm.xlu0 %6051, %v5972
        %v6053 = vpop.permute.xlu0 %6052
        %6056 = vset.pattern.permute.xlu0 0
        %6057 = vperm.xlu0 %6056, %v5973
        %v6058 = vpop.permute.xlu0 %6057
        %6061 = vset.pattern.permute.xlu0 0
        %6062 = vperm.xlu0 %6061, %v5974
        %v6063 = vpop.permute.xlu0 %6062
        %6066 = vset.pattern.permute.xlu0 0
        %6067 = vperm.xlu0 %6066, %v5975
        %v6068 = vpop.permute.xlu0 %6067
        %6071 = vset.pattern.permute.xlu0 0
        %6072 = vperm.xlu0 %6071, %v5976
        %v6073 = vpop.permute.xlu0 %6072
        %6076 = vset.pattern.permute.xlu0 0
        %6077 = vperm.xlu0 %6076, %v5977
        %v6078 = vpop.permute.xlu0 %6077
        %6081 = vset.pattern.permute.xlu0 0
        %6082 = vperm.xlu0 %6081, %v5978
        %v6083 = vpop.permute.xlu0 %6082
        %6086 = vset.pattern.permute.xlu0 0
        %6087 = vperm.xlu0 %6086, %v5979
        %v6088 = vpop.permute.xlu0 %6087
        %6091 = vset.pattern.permute.xlu0 0
        %6092 = vperm.xlu0 %6091, %v5980
        %v6093 = vpop.permute.xlu0 %6092
        %6096 = vset.pattern.permute.xlu0 0
        %6097 = vperm.xlu0 %6096, %v5981
        %v6098 = vpop.permute.xlu0 %6097
        %6101 = vset.pattern.permute.xlu0 0
        %6102 = vperm.xlu0 %6101, %v5982
        %v6103 = vpop.permute.xlu0 %6102
        %6106 = vset.pattern.permute.xlu0 0
        %6107 = vperm.xlu0 %6106, %v5983
        %v6108 = vpop.permute.xlu0 %6107
        %6111 = vset.pattern.permute.xlu0 0
        %6112 = vperm.xlu0 %6111, %v5984
        %v6113 = vpop.permute.xlu0 %6112
        %6116 = vset.pattern.permute.xlu0 0
        %6117 = vperm.xlu0 %6116, %v5985
        %v6118 = vpop.permute.xlu0 %6117
        %6121 = vset.pattern.permute.xlu0 0
        %6122 = vperm.xlu0 %6121, %v5986
        %v6123 = vpop.permute.xlu0 %6122
        %6126 = vset.pattern.permute.xlu0 0
        %6127 = vperm.xlu0 %6126, %v5987
        %v6128 = vpop.permute.xlu0 %6127
        %6131 = vset.pattern.permute.xlu0 0
        %6132 = vperm.xlu0 %6131, %v5988
        %v6133 = vpop.permute.xlu0 %6132
        %6136 = vset.pattern.permute.xlu0 0
        %6137 = vperm.xlu0 %6136, %v5989
        %v6138 = vpop.permute.xlu0 %6137
        %v6141 = vsel %vm1930, %v5872, 0
        %v6144 = vsel %vm1930, %v5875, 0
        %v6147 = vsel %vm1930, %v5878, 0
        %v6150 = vsel %vm1930, %v5881, 0
        %v6153 = vsel %vm1930, %v5884, 0
        %v6156 = vsel %vm1930, %v5887, 0
        %v6159 = vsel %vm1930, %v5890, 0
        %v6162 = vsel %vm1930, %v5893, 0
        %v6165 = vsel %vm1930, %v5896, 0
        %v6168 = vsel %vm1930, %v5899, 0
        %v6171 = vsel %vm1930, %v5902, 0
        %v6174 = vsel %vm1930, %v5905, 0
        %v6177 = vsel %vm1930, %v5908, 0
        %v6180 = vsel %vm1930, %v5911, 0
        %v6183 = vsel %vm1930, %v5914, 0
        %v6186 = vsel %vm1930, %v5917, 0
        %v6189 = vsel %vm1930, %v5920, 0
        %v6192 = vsel %vm1930, %v5923, 0
        %v6195 = vsel %vm1930, %v5926, 0
        %v6198 = vsel %vm1930, %v5929, 0
        %v6201 = vsel %vm1930, %v5932, 0
        %v6204 = vsel %vm1930, %v5935, 0
        %v6207 = vsel %vm1930, %v5938, 0
        %v6210 = vsel %vm1930, %v5941, 0
        %v6213 = vsel %vm1930, %v5944, 0
        %v6216 = vsel %vm1930, %v5947, 0
        %v6219 = vsel %vm1930, %v5950, 0
        %v6222 = vsel %vm1930, %v5953, 0
        %v6225 = vsel %vm1930, %v5956, 0
        %v6228 = vsel %vm1930, %v5959, 0
        %6230 = vmatprep.subr.mxu0 0.0
        %6231 = vmatpush1.msra.mxu0 %v5750
        %6232 = vmatprep.subr.mxu0 0.0
        %6233 = vmatpush1.msra.mxu0 %v5751
        %6234 = vmatprep.subr.mxu0 0.0
        %6235 = vmatpush1.msra.mxu0 %v5752
        %6236 = vmatprep.subr.mxu0 0.0
        %6237 = vmatpush1.msra.mxu0 %v5753
        %6238 = vmatprep.subr.mxu0 0.0
        %6239 = vmatpush1.msra.mxu0 %v5754
        %6240 = vmatprep.subr.mxu0 0.0
        %6241 = vmatpush1.msra.mxu0 %v5755
        %6242 = vmatprep.subr.mxu0 0.0
        %6243 = vmatpush1.msra.mxu0 %v5756
        %6244 = vmatprep.subr.mxu0 0.0
        %6245 = vmatpush1.msra.mxu0 %v5757
        %6246 = vmatprep.subr.mxu0 0.0
        %6247 = vmatpush1.msra.mxu0 %v5758
        %6248 = vmatprep.subr.mxu0 0.0
        %6249 = vmatpush1.msra.mxu0 %v5759
        %6250 = vmatprep.subr.mxu0 0.0
        %6251 = vmatpush1.msra.mxu0 %v5760
        %6252 = vmatprep.subr.mxu0 0.0
        %6253 = vmatpush1.msra.mxu0 %v5761
        %6254 = vmatprep.subr.mxu0 0.0
        %6255 = vmatpush1.msra.mxu0 %v5762
        %6256 = vmatprep.subr.mxu0 0.0
        %6257 = vmatpush1.msra.mxu0 %v5763
        %6258 = vmatprep.subr.mxu0 0.0
        %6259 = vmatpush1.msra.mxu0 %v5764
        %6260 = vmatprep.subr.mxu0 0.0
        %6261 = vmatpush1.msra.mxu0 %v5781
        %6262 = vmatprep.subr.mxu0 0.0
        %6263 = vmatpush1.msra.mxu0 %v5783
        %6264 = vmatprep.subr.mxu0 0.0
        %6265 = vmatpush1.msra.mxu0 %v5785
        %6266 = vmatprep.subr.mxu0 0.0
        %6267 = vmatpush1.msra.mxu0 %v5787
        %6268 = vmatprep.subr.mxu0 0.0
        %6269 = vmatpush1.msra.mxu0 %v5789
        %6270 = vmatprep.subr.mxu0 0.0
        %6271 = vmatpush1.msra.mxu0 %v5791
        %6272 = vmatprep.subr.mxu0 0.0
        %6273 = vmatpush1.msra.mxu0 %v5793
        %6274 = vmatprep.subr.mxu0 0.0
        %6275 = vmatpush1.msra.mxu0 %v5795
        %6276 = vmatprep.subr.mxu0 0.0
        %6277 = vmatpush1.msra.mxu0 %v5797
        %6278 = vmatprep.subr.mxu0 0.0
        %6279 = vmatpush1.msra.mxu0 %v5799
        %6280 = vmatprep.subr.mxu0 0.0
        %6281 = vmatpush1.msra.mxu0 %v5801
        %6282 = vmatprep.subr.mxu0 0.0
        %6283 = vmatpush1.msra.mxu0 %v5803
        %6284 = vmatprep.subr.mxu0 0.0
        %6285 = vmatpush1.msra.mxu0 %v5805
        %6286 = vmatprep.subr.mxu0 0.0
        %6287 = vmatpush1.msra.mxu0 %v5807
        %6288 = vmatprep.subr.mxu0 0.0
        %6289 = vmatpush1.msra.mxu0 %v5809
        %6290 = vmatprep.subr.mxu0 0.0
        %6291 = vmatpush1.msra.mxu0 %v5826
        %6292 = vmatprep.subr.mxu0 0.0
        %6293 = vmatpush1.msra.mxu0 %v5828
        %6294 = vmatprep.mubr.f32.mxu0 %v5871
        %6295 = vmatmul.mubr.f32.gmra.mrb[0].mxu0 %v5870
        %v6296 = vpop.f32.mrb[0].mxu0
        %v6297 = vadd.f32 %v5993, %v6296
        %v6298 = vpop.f32.mrb[0].mxu0
        %6299 = vmatprep.mubr.f32.mxu0 %v5874
        %6300 = vmatmul.mubr.f32.gmra.mrb[0].mxu0 %v5873
        %v6301 = vpop.f32.mrb[0].mxu0
        %v6302 = vadd.f32 %v5998, %v6301
        %v6303 = vpop.f32.mrb[0].mxu0
        %6304 = vmatprep.mubr.f32.mxu0 %v5877
        %6305 = vmatmul.mubr.f32.gmra.mrb[0].mxu0 %v5876
        %v6306 = vpop.f32.mrb[0].mxu0
        %v6307 = vadd.f32 %v6003, %v6306
        %v6308 = vpop.f32.mrb[0].mxu0
        %6309 = vmatprep.mubr.f32.mxu0 %v5880
        %6310 = vmatmul.mubr.f32.gmra.mrb[0].mxu0 %v5879
        %v6311 = vpop.f32.mrb[0].mxu0
        %v6312 = vadd.f32 %v6008, %v6311
        %v6313 = vpop.f32.mrb[0].mxu0
        %6314 = vmatprep.mubr.f32.mxu0 %v5883
        %6315 = vmatmul.mubr.f32.gmra.mrb[0].mxu0 %v5882
        %v6316 = vpop.f32.mrb[0].mxu0
        %v6317 = vadd.f32 %v6013, %v6316
        %v6318 = vpop.f32.mrb[0].mxu0
        %6319 = vmatprep.mubr.f32.mxu0 %v5886
        %6320 = vmatmul.mubr.f32.gmra.mrb[0].mxu0 %v5885
        %v6321 = vpop.f32.mrb[0].mxu0
        %v6322 = vadd.f32 %v6018, %v6321
        %v6323 = vpop.f32.mrb[0].mxu0
        %6324 = vmatprep.mubr.f32.mxu0 %v5889
        %6325 = vmatmul.mubr.f32.gmra.mrb[0].mxu0 %v5888
        %v6326 = vpop.f32.mrb[0].mxu0
        %v6327 = vadd.f32 %v6023, %v6326
        %v6328 = vpop.f32.mrb[0].mxu0
        %6329 = vmatprep.mubr.f32.mxu0 %v5892
        %6330 = vmatmul.mubr.f32.gmra.mrb[0].mxu0 %v5891
        %v6331 = vpop.f32.mrb[0].mxu0
        %v6332 = vadd.f32 %v6028, %v6331
        %v6333 = vpop.f32.mrb[0].mxu0
        %6334 = vmatprep.mubr.f32.mxu0 %v5895
        %6335 = vmatmul.mubr.f32.gmra.mrb[0].mxu0 %v5894
        %v6336 = vpop.f32.mrb[0].mxu0
        %v6337 = vadd.f32 %v6033, %v6336
        %v6338 = vpop.f32.mrb[0].mxu0
        %6339 = vmatprep.mubr.f32.mxu0 %v5898
        %6340 = vmatmul.mubr.f32.gmra.mrb[0].mxu0 %v5897
        %v6341 = vpop.f32.mrb[0].mxu0
        %v6342 = vadd.f32 %v6038, %v6341
        %v6343 = vpop.f32.mrb[0].mxu0
        %6344 = vmatprep.mubr.f32.mxu0 %v5901
        %6345 = vmatmul.mubr.f32.gmra.mrb[0].mxu0 %v5900
        %v6346 = vpop.f32.mrb[0].mxu0
        %v6347 = vadd.f32 %v6043, %v6346
        %v6348 = vpop.f32.mrb[0].mxu0
        %6349 = vmatprep.mubr.f32.mxu0 %v5904
        %6350 = vmatmul.mubr.f32.gmra.mrb[0].mxu0 %v5903
        %v6351 = vpop.f32.mrb[0].mxu0
        %v6352 = vadd.f32 %v6048, %v6351
        %v6353 = vpop.f32.mrb[0].mxu0
        %6354 = vmatprep.mubr.f32.mxu0 %v5907
        %6355 = vmatmul.mubr.f32.gmra.mrb[0].mxu0 %v5906
        %v6356 = vpop.f32.mrb[0].mxu0
        %v6357 = vadd.f32 %v6053, %v6356
        %v6358 = vpop.f32.mrb[0].mxu0
        %6359 = vmatprep.mubr.f32.mxu0 %v5910
        %6360 = vmatmul.mubr.f32.gmra.mrb[0].mxu0 %v5909
        %v6361 = vpop.f32.mrb[0].mxu0
        %v6362 = vadd.f32 %v6058, %v6361
        %v6363 = vpop.f32.mrb[0].mxu0
        %6364 = vmatprep.mubr.f32.mxu0 %v5913
        %6365 = vmatmul.mubr.f32.gmra.mrb[0].mxu0 %v5912
        %v6366 = vpop.f32.mrb[0].mxu0
        %v6367 = vadd.f32 %v6063, %v6366
        %v6368 = vpop.f32.mrb[0].mxu0
        %6369 = vmatprep.mubr.f32.mxu0 %v5916
        %6370 = vmatmul.mubr.f32.gmra.mrb[0].mxu0 %v5915
        %v6371 = vpop.f32.mrb[0].mxu0
        %v6372 = vadd.f32 %v6068, %v6371
        %v6373 = vpop.f32.mrb[0].mxu0
        %6374 = vmatprep.mubr.f32.mxu0 %v5919
        %6375 = vmatmul.mubr.f32.gmra.mrb[0].mxu0 %v5918
        %v6376 = vpop.f32.mrb[0].mxu0
        %v6377 = vadd.f32 %v6073, %v6376
        %v6378 = vpop.f32.mrb[0].mxu0
        %6379 = vmatprep.mubr.f32.mxu0 %v5922
        %6380 = vmatmul.mubr.f32.gmra.mrb[0].mxu0 %v5921
        %v6381 = vpop.f32.mrb[0].mxu0
        %v6382 = vadd.f32 %v6078, %v6381
        %v6383 = vpop.f32.mrb[0].mxu0
        %6384 = vmatprep.mubr.f32.mxu0 %v5925
        %6385 = vmatmul.mubr.f32.gmra.mrb[0].mxu0 %v5924
        %v6386 = vpop.f32.mrb[0].mxu0
        %v6387 = vadd.f32 %v6083, %v6386
        %v6388 = vpop.f32.mrb[0].mxu0
        %6389 = vmatprep.mubr.f32.mxu0 %v5928
        %6390 = vmatmul.mubr.f32.gmra.mrb[0].mxu0 %v5927
        %v6391 = vpop.f32.mrb[0].mxu0
        %v6392 = vadd.f32 %v6088, %v6391
        %v6393 = vpop.f32.mrb[0].mxu0
        %6394 = vmatprep.mubr.f32.mxu0 %v5931
        %6395 = vmatmul.mubr.f32.gmra.mrb[0].mxu0 %v5930
        %v6396 = vpop.f32.mrb[0].mxu0
        %v6397 = vadd.f32 %v6093, %v6396
        %v6398 = vpop.f32.mrb[0].mxu0
        %6399 = vmatprep.mubr.f32.mxu0 %v5934
        %6400 = vmatmul.mubr.f32.gmra.mrb[0].mxu0 %v5933
        %v6401 = vpop.f32.mrb[0].mxu0
        %v6402 = vadd.f32 %v6098, %v6401
        %v6403 = vpop.f32.mrb[0].mxu0
        %6404 = vmatprep.mubr.f32.mxu0 %v5937
        %6405 = vmatmul.mubr.f32.gmra.mrb[0].mxu0 %v5936
        %v6406 = vpop.f32.mrb[0].mxu0
        %v6407 = vadd.f32 %v6103, %v6406
        %v6408 = vpop.f32.mrb[0].mxu0
        %6409 = vmatprep.mubr.f32.mxu0 %v5940
        %6410 = vmatmul.mubr.f32.gmra.mrb[0].mxu0 %v5939
        %v6411 = vpop.f32.mrb[0].mxu0
        %v6412 = vadd.f32 %v6108, %v6411
        %v6413 = vpop.f32.mrb[0].mxu0
        %6414 = vmatprep.mubr.f32.mxu0 %v5943
        %6415 = vmatmul.mubr.f32.gmra.mrb[0].mxu0 %v5942
        %v6416 = vpop.f32.mrb[0].mxu0
        %v6417 = vadd.f32 %v6113, %v6416
        %v6418 = vpop.f32.mrb[0].mxu0
        %6419 = vmatprep.mubr.f32.mxu0 %v5946
        %6420 = vmatmul.mubr.f32.gmra.mrb[0].mxu0 %v5945
        %v6421 = vpop.f32.mrb[0].mxu0
        %v6422 = vadd.f32 %v6118, %v6421
        %v6423 = vpop.f32.mrb[0].mxu0
        %6424 = vmatprep.mubr.f32.mxu0 %v5949
        %6425 = vmatmul.mubr.f32.gmra.mrb[0].mxu0 %v5948
        %v6426 = vpop.f32.mrb[0].mxu0
        %v6427 = vadd.f32 %v6123, %v6426
        %v6428 = vpop.f32.mrb[0].mxu0
        %6429 = vmatprep.mubr.f32.mxu0 %v5952
        %6430 = vmatmul.mubr.f32.gmra.mrb[0].mxu0 %v5951
        %v6431 = vpop.f32.mrb[0].mxu0
        %v6432 = vadd.f32 %v6128, %v6431
        %v6433 = vpop.f32.mrb[0].mxu0
        %6434 = vmatprep.mubr.f32.mxu0 %v5955
        %6435 = vmatmul.mubr.f32.gmra.mrb[0].mxu0 %v5954
        %v6436 = vpop.f32.mrb[0].mxu0
        %v6437 = vadd.f32 %v6133, %v6436
        %v6438 = vpop.f32.mrb[0].mxu0
        %6439 = vmatprep.mubr.f32.mxu0 %v5958
        %6440 = vmatmul.mubr.f32.gmra.mrb[0].mxu0 %v5957
        %v6441 = vpop.f32.mrb[0].mxu0
        %v6442 = vadd.f32 %v6138, %v6441
        %v6443 = vpop.f32.mrb[0].mxu0
        %6444 = vdwg.mxu0
        %6445 = vmatprep.subr.mxu0 0.0
        %6446 = vmatpush1.msra.mxu0 %v5830
        %6447 = vmatprep.subr.mxu0 0.0
        %6448 = vmatpush1.msra.mxu0 %v5832
        %6449 = vmatprep.subr.mxu0 0.0
        %6450 = vmatpush1.msra.mxu0 %v5834
        %6451 = vmatprep.subr.mxu0 0.0
        %6452 = vmatpush1.msra.mxu0 %v5836
        %6453 = vmatprep.subr.mxu0 0.0
        %6454 = vmatpush1.msra.mxu0 %v5838
        %6455 = vmatprep.subr.mxu0 0.0
        %6456 = vmatpush1.msra.mxu0 %v5840
        %6457 = vmatprep.subr.mxu0 0.0
        %6458 = vmatpush1.msra.mxu0 %v5842
        %6459 = vmatprep.subr.mxu0 0.0
        %6460 = vmatpush1.msra.mxu0 %v5844
        %6461 = vmatprep.subr.mxu0 0.0
        %6462 = vmatpush1.msra.mxu0 %v5846
        %6463 = vmatprep.subr.mxu0 0.0
        %6464 = vmatpush1.msra.mxu0 %v5848
        %6465 = vmatprep.subr.mxu0 0.0
        %6466 = vmatpush1.msra.mxu0 %v5850
        %6467 = vmatprep.subr.mxu0 0.0
        %6468 = vmatpush1.msra.mxu0 %v5852
        %6469 = vmatprep.subr.mxu0 0.0
        %6470 = vmatpush1.msra.mxu0 %v5854
        %6471 = vmatprep.subr.mxu0 0.0
        %6472 = vmatpush1.msra.mxu0 0.0
        %6473 = vmatprep.subr.mxu0 0.0
        %6474 = vmatpush1.msra.mxu0 0.0
        %6475 = vmatprep.subr.mxu0 0.0
        %6476 = vmatpush1.msra.mxu0 0.0
        %6477 = vmatprep.subr.mxu0 0.0
        %6478 = vmatpush1.msra.mxu0 0.0
        %6479 = vmatprep.subr.mxu0 0.0
        %6480 = vmatpush1.msra.mxu0 0.0
        %6481 = vmatprep.subr.mxu0 0.0
        %6482 = vmatpush1.msra.mxu0 0.0
        %6483 = vmatprep.subr.mxu0 0.0
        %6484 = vmatpush1.msra.mxu0 0.0
        %6485 = vmatprep.subr.mxu0 0.0
        %6486 = vmatpush1.msra.mxu0 0.0
        %6487 = vmatprep.subr.mxu0 0.0
        %6488 = vmatpush1.msra.mxu0 0.0
        %6489 = vmatprep.subr.mxu0 0.0
        %6490 = vmatpush1.msra.mxu0 0.0
        %6491 = vmatprep.subr.mxu0 0.0
        %6492 = vmatpush1.msra.mxu0 0.0
        %6493 = vmatprep.subr.mxu0 0.0
        %6494 = vmatpush1.msra.mxu0 0.0
        %6495 = vmatprep.subr.mxu0 0.0
        %6496 = vmatpush1.msra.mxu0 0.0
        %6497 = vmatprep.subr.mxu0 0.0
        %6498 = vmatpush1.msra.mxu0 0.0
        %6499 = vmatprep.subr.mxu0 0.0
        %6500 = vmatpush1.msra.mxu0 0.0
        %6501 = vmatprep.subr.mxu0 0.0
        %6502 = vmatpush1.msra.mxu0 0.0
        %6503 = vmatprep.subr.mxu0 0.0
        %6504 = vmatpush1.msra.mxu0 0.0
        %6505 = vmatprep.subr.mxu0 0.0
        %6506 = vmatpush1.msra.mxu0 0.0
        %6507 = vmatprep.subr.mxu0 0.0
        %6508 = vmatpush1.msra.mxu0 0.0
        %6509 = vmatprep.mubr.f32.mxu0 0.0
        %6510 = vmatmul.mubr.f32.gmra.mrb[0].mxu0 %v6141
        %v6511 = vpop.f32.mrb[0].mxu0
        %v6512 = vadd.f32 %v6297, %v6511
        %v6513 = vpop.f32.mrb[0].mxu0
        %6514 = vmatprep.mubr.f32.mxu0 0.0
        %6515 = vmatmul.mubr.f32.gmra.mrb[0].mxu0 %v6144
        %v6516 = vpop.f32.mrb[0].mxu0
        %v6517 = vadd.f32 %v6302, %v6516
        %v6518 = vpop.f32.mrb[0].mxu0
        %6519 = vmatprep.mubr.f32.mxu0 0.0
        %6520 = vmatmul.mubr.f32.gmra.mrb[0].mxu0 %v6147
        %v6521 = vpop.f32.mrb[0].mxu0
        %v6522 = vadd.f32 %v6307, %v6521
        %v6523 = vpop.f32.mrb[0].mxu0
        %6524 = vmatprep.mubr.f32.mxu0 0.0
        %6525 = vmatmul.mubr.f32.gmra.mrb[0].mxu0 %v6150
        %v6526 = vpop.f32.mrb[0].mxu0
        %v6527 = vadd.f32 %v6312, %v6526
        %v6528 = vpop.f32.mrb[0].mxu0
        %6529 = vmatprep.mubr.f32.mxu0 0.0
        %6530 = vmatmul.mubr.f32.gmra.mrb[0].mxu0 %v6153
        %v6531 = vpop.f32.mrb[0].mxu0
        %v6532 = vadd.f32 %v6317, %v6531
        %v6533 = vpop.f32.mrb[0].mxu0
        %6534 = vmatprep.mubr.f32.mxu0 0.0
        %6535 = vmatmul.mubr.f32.gmra.mrb[0].mxu0 %v6156
        %v6536 = vpop.f32.mrb[0].mxu0
        %v6537 = vadd.f32 %v6322, %v6536
        %v6538 = vpop.f32.mrb[0].mxu0
        %6539 = vmatprep.mubr.f32.mxu0 0.0
        %6540 = vmatmul.mubr.f32.gmra.mrb[0].mxu0 %v6159
        %v6541 = vpop.f32.mrb[0].mxu0
        %v6542 = vadd.f32 %v6327, %v6541
        %v6543 = vpop.f32.mrb[0].mxu0
        %6544 = vmatprep.mubr.f32.mxu0 0.0
        %6545 = vmatmul.mubr.f32.gmra.mrb[0].mxu0 %v6162
        %v6546 = vpop.f32.mrb[0].mxu0
        %v6547 = vadd.f32 %v6332, %v6546
        %v6548 = vpop.f32.mrb[0].mxu0
        %6549 = vmatprep.mubr.f32.mxu0 0.0
        %6550 = vmatmul.mubr.f32.gmra.mrb[0].mxu0 %v6165
        %v6551 = vpop.f32.mrb[0].mxu0
        %v6552 = vadd.f32 %v6337, %v6551
        %v6553 = vpop.f32.mrb[0].mxu0
        %6554 = vmatprep.mubr.f32.mxu0 0.0
        %6555 = vmatmul.mubr.f32.gmra.mrb[0].mxu0 %v6168
        %v6556 = vpop.f32.mrb[0].mxu0
        %v6557 = vadd.f32 %v6342, %v6556
        %v6558 = vpop.f32.mrb[0].mxu0
        %6559 = vmatprep.mubr.f32.mxu0 0.0
        %6560 = vmatmul.mubr.f32.gmra.mrb[0].mxu0 %v6171
        %v6561 = vpop.f32.mrb[0].mxu0
        %v6562 = vadd.f32 %v6347, %v6561
        %v6563 = vpop.f32.mrb[0].mxu0
        %6564 = vmatprep.mubr.f32.mxu0 0.0
        %6565 = vmatmul.mubr.f32.gmra.mrb[0].mxu0 %v6174
        %v6566 = vpop.f32.mrb[0].mxu0
        %v6567 = vadd.f32 %v6352, %v6566
        %v6568 = vpop.f32.mrb[0].mxu0
        %6569 = vmatprep.mubr.f32.mxu0 0.0
        %6570 = vmatmul.mubr.f32.gmra.mrb[0].mxu0 %v6177
        %v6571 = vpop.f32.mrb[0].mxu0
        %v6572 = vadd.f32 %v6357, %v6571
        %v6573 = vpop.f32.mrb[0].mxu0
        %6574 = vmatprep.mubr.f32.mxu0 0.0
        %6575 = vmatmul.mubr.f32.gmra.mrb[0].mxu0 %v6180
        %v6576 = vpop.f32.mrb[0].mxu0
        %v6577 = vadd.f32 %v6362, %v6576
        %v6578 = vpop.f32.mrb[0].mxu0
        %6579 = vmatprep.mubr.f32.mxu0 0.0
        %6580 = vmatmul.mubr.f32.gmra.mrb[0].mxu0 %v6183
        %v6581 = vpop.f32.mrb[0].mxu0
        %v6582 = vadd.f32 %v6367, %v6581
        %v6583 = vpop.f32.mrb[0].mxu0
        %6584 = vmatprep.mubr.f32.mxu0 0.0
        %6585 = vmatmul.mubr.f32.gmra.mrb[0].mxu0 %v6186
        %v6586 = vpop.f32.mrb[0].mxu0
        %v6587 = vadd.f32 %v6372, %v6586
        %v6588 = vpop.f32.mrb[0].mxu0
        %6589 = vmatprep.mubr.f32.mxu0 0.0
        %6590 = vmatmul.mubr.f32.gmra.mrb[0].mxu0 %v6189
        %v6591 = vpop.f32.mrb[0].mxu0
        %v6592 = vadd.f32 %v6377, %v6591
        %v6593 = vpop.f32.mrb[0].mxu0
        %6594 = vmatprep.mubr.f32.mxu0 0.0
        %6595 = vmatmul.mubr.f32.gmra.mrb[0].mxu0 %v6192
        %v6596 = vpop.f32.mrb[0].mxu0
        %v6597 = vadd.f32 %v6382, %v6596
        %v6598 = vpop.f32.mrb[0].mxu0
        %6599 = vmatprep.mubr.f32.mxu0 0.0
        %6600 = vmatmul.mubr.f32.gmra.mrb[0].mxu0 %v6195
        %v6601 = vpop.f32.mrb[0].mxu0
        %v6602 = vadd.f32 %v6387, %v6601
        %v6603 = vpop.f32.mrb[0].mxu0
        %6604 = vmatprep.mubr.f32.mxu0 0.0
        %6605 = vmatmul.mubr.f32.gmra.mrb[0].mxu0 %v6198
        %v6606 = vpop.f32.mrb[0].mxu0
        %v6607 = vadd.f32 %v6392, %v6606
        %v6608 = vpop.f32.mrb[0].mxu0
        %6609 = vmatprep.mubr.f32.mxu0 0.0
        %6610 = vmatmul.mubr.f32.gmra.mrb[0].mxu0 %v6201
        %v6611 = vpop.f32.mrb[0].mxu0
        %v6612 = vadd.f32 %v6397, %v6611
        %v6613 = vpop.f32.mrb[0].mxu0
        %6614 = vmatprep.mubr.f32.mxu0 0.0
        %6615 = vmatmul.mubr.f32.gmra.mrb[0].mxu0 %v6204
        %v6616 = vpop.f32.mrb[0].mxu0
        %v6617 = vadd.f32 %v6402, %v6616
        %v6618 = vpop.f32.mrb[0].mxu0
        %6619 = vmatprep.mubr.f32.mxu0 0.0
        %6620 = vmatmul.mubr.f32.gmra.mrb[0].mxu0 %v6207
        %v6621 = vpop.f32.mrb[0].mxu0
        %v6622 = vadd.f32 %v6407, %v6621
        %v6623 = vpop.f32.mrb[0].mxu0
        %6624 = vmatprep.mubr.f32.mxu0 0.0
        %6625 = vmatmul.mubr.f32.gmra.mrb[0].mxu0 %v6210
        %v6626 = vpop.f32.mrb[0].mxu0
        %v6627 = vadd.f32 %v6412, %v6626
        %v6628 = vpop.f32.mrb[0].mxu0
        %6629 = vmatprep.mubr.f32.mxu0 0.0
        %6630 = vmatmul.mubr.f32.gmra.mrb[0].mxu0 %v6213
        %v6631 = vpop.f32.mrb[0].mxu0
        %v6632 = vadd.f32 %v6417, %v6631
        %v6633 = vpop.f32.mrb[0].mxu0
        %6634 = vmatprep.mubr.f32.mxu0 0.0
        %6635 = vmatmul.mubr.f32.gmra.mrb[0].mxu0 %v6216
        %v6636 = vpop.f32.mrb[0].mxu0
        %v6637 = vadd.f32 %v6422, %v6636
        %v6638 = vpop.f32.mrb[0].mxu0
        %6639 = vmatprep.mubr.f32.mxu0 0.0
        %6640 = vmatmul.mubr.f32.gmra.mrb[0].mxu0 %v6219
        %v6641 = vpop.f32.mrb[0].mxu0
        %v6642 = vadd.f32 %v6427, %v6641
        %v6643 = vpop.f32.mrb[0].mxu0
        %6644 = vmatprep.mubr.f32.mxu0 0.0
        %6645 = vmatmul.mubr.f32.gmra.mrb[0].mxu0 %v6222
        %v6646 = vpop.f32.mrb[0].mxu0
        %v6647 = vadd.f32 %v6432, %v6646
        %v6648 = vpop.f32.mrb[0].mxu0
        %6649 = vmatprep.mubr.f32.mxu0 0.0
        %6650 = vmatmul.mubr.f32.gmra.mrb[0].mxu0 %v6225
        %v6651 = vpop.f32.mrb[0].mxu0
        %v6652 = vadd.f32 %v6437, %v6651
        %v6653 = vpop.f32.mrb[0].mxu0
        %6654 = vmatprep.mubr.f32.mxu0 0.0
        %6655 = vmatmul.mubr.f32.gmra.mrb[0].mxu0 %v6228
        %v6656 = vpop.f32.mrb[0].mxu0
        %v6657 = vadd.f32 %v6442, %v6656
        %v6658 = vpop.f32.mrb[0].mxu0
        %6659 = vdwg.mxu0
        %v6660 = vmax.f32 %v6512, 0.0
        %v6661 = vmax.f32 %v6517, 0.0
        %v6662 = vmax.f32 %v6522, 0.0
        %v6663 = vmax.f32 %v6527, 0.0
        %v6664 = vmax.f32 %v6532, 0.0
        %v6665 = vmax.f32 %v6537, 0.0
        %v6666 = vmax.f32 %v6542, 0.0
        %v6667 = vmax.f32 %v6547, 0.0
        %v6668 = vmax.f32 %v6552, 0.0
        %v6669 = vmax.f32 %v6557, 0.0
        %v6670 = vmax.f32 %v6562, 0.0
        %v6671 = vmax.f32 %v6567, 0.0
        %v6672 = vmax.f32 %v6572, 0.0
        %v6673 = vmax.f32 %v6577, 0.0
        %v6674 = vmax.f32 %v6582, 0.0
        %v6675 = vmax.f32 %v6587, 0.0
        %v6676 = vmax.f32 %v6592, 0.0
        %v6677 = vmax.f32 %v6597, 0.0
        %v6678 = vmax.f32 %v6602, 0.0
        %v6679 = vmax.f32 %v6607, 0.0
        %v6680 = vmax.f32 %v6612, 0.0
        %v6681 = vmax.f32 %v6617, 0.0
        %v6682 = vmax.f32 %v6622, 0.0
        %v6683 = vmax.f32 %v6627, 0.0
        %v6684 = vmax.f32 %v6632, 0.0
        %v6685 = vmax.f32 %v6637, 0.0
        %v6686 = vmax.f32 %v6642, 0.0
        %v6687 = vmax.f32 %v6647, 0.0
        %v6688 = vmax.f32 %v6652, 0.0
        %v6689 = vmax.f32 %v6657, 0.0
        %v6690 = vld [vmem:[%s16] sm:$0xff]
        %v6691 = vld [vmem:[%s16 + $0x8] sm:$0xff]
        %v6692 = vld [vmem:[%s16 + $0x10] sm:$0xff]
        %v6693 = vld [vmem:[%s16 + $0x18] sm:$0x7]
        %v6695 = vsel %vm2485, %v6660, 0
        %v6698 = vsel %vm2485, %v6661, 0
        %v6701 = vsel %vm2485, %v6662, 0
        %v6704 = vsel %vm2485, %v6663, 0
        %v6707 = vsel %vm2485, %v6664, 0
        %v6710 = vsel %vm2485, %v6665, 0
        %v6713 = vsel %vm2485, %v6666, 0
        %v6716 = vsel %vm2485, %v6667, 0
        %v6719 = vsel %vm2485, %v6668, 0
        %v6722 = vsel %vm2485, %v6669, 0
        %v6725 = vsel %vm2485, %v6670, 0
        %v6728 = vsel %vm2485, %v6671, 0
        %v6731 = vsel %vm2485, %v6672, 0
        %v6734 = vsel %vm2485, %v6673, 0
        %v6737 = vsel %vm2485, %v6674, 0
        %v6740 = vsel %vm2485, %v6675, 0
        %v6743 = vsel %vm2485, %v6676, 0
        %v6746 = vsel %vm2485, %v6677, 0
        %v6749 = vsel %vm2485, %v6678, 0
        %v6752 = vsel %vm2485, %v6679, 0
        %v6755 = vsel %vm2485, %v6680, 0
        %v6758 = vsel %vm2485, %v6681, 0
        %v6761 = vsel %vm2485, %v6682, 0
        %v6764 = vsel %vm2485, %v6683, 0
        %v6767 = vsel %vm2485, %v6684, 0
        %v6770 = vsel %vm2485, %v6685, 0
        %v6773 = vsel %vm2485, %v6686, 0
        %v6776 = vsel %vm2485, %v6687, 0
        %v6779 = vsel %vm2485, %v6688, 0
        %v6782 = vsel %vm2485, %v6689, 0
        %v6785 = vsel %vm2576, %v6693, 0
        %6787 = vmatprep.subr.mxu0 0.0
        %6788 = vmatpush1.msra.mxu0 %v6690
        %6789 = vmatprep.subr.mxu0 0.0
        %6790 = vmatpush1.msra.mxu0 %v6691
        %6791 = vmatprep.subr.mxu0 0.0
        %6792 = vmatpush1.msra.mxu0 %v6692
        %6793 = vmatprep.subr.mxu0 0.0
        %6794 = vmatpush1.msra.mxu0 %v6785
        %6795 = vmatprep.subr.mxu0 0.0
        %6796 = vmatpush1.msra.mxu0 0.0
        %6797 = vmatprep.subr.mxu0 0.0
        %6798 = vmatpush1.msra.mxu0 0.0
        %6799 = vmatprep.subr.mxu0 0.0
        %6800 = vmatpush1.msra.mxu0 0.0
        %6801 = vmatprep.subr.mxu0 0.0
        %6802 = vmatpush1.msra.mxu0 0.0
        %6803 = vmatprep.subr.mxu0 0.0
        %6804 = vmatpush1.msra.mxu0 0.0
        %6805 = vmatprep.subr.mxu0 0.0
        %6806 = vmatpush1.msra.mxu0 0.0
        %6807 = vmatprep.subr.mxu0 0.0
        %6808 = vmatpush1.msra.mxu0 0.0
        %6809 = vmatprep.subr.mxu0 0.0
        %6810 = vmatpush1.msra.mxu0 0.0
        %6811 = vmatprep.subr.mxu0 0.0
        %6812 = vmatpush1.msra.mxu0 0.0
        %6813 = vmatprep.subr.mxu0 0.0
        %6814 = vmatpush1.msra.mxu0 0.0
        %6815 = vmatprep.subr.mxu0 0.0
        %6816 = vmatpush1.msra.mxu0 0.0
        %6817 = vmatprep.subr.mxu0 0.0
        %6818 = vmatpush1.msra.mxu0 0.0
        %6819 = vmatprep.subr.mxu0 0.0
        %6820 = vmatpush1.msra.mxu0 0.0
        %6821 = vmatprep.subr.mxu0 0.0
        %6822 = vmatpush1.msra.mxu0 0.0
        %6823 = vmatprep.subr.mxu0 0.0
        %6824 = vmatpush1.msra.mxu0 0.0
        %6825 = vmatprep.subr.mxu0 0.0
        %6826 = vmatpush1.msra.mxu0 0.0
        %6827 = vmatprep.subr.mxu0 0.0
        %6828 = vmatpush1.msra.mxu0 0.0
        %6829 = vmatprep.subr.mxu0 0.0
        %6830 = vmatpush1.msra.mxu0 0.0
        %6831 = vmatprep.subr.mxu0 0.0
        %6832 = vmatpush1.msra.mxu0 0.0
        %6833 = vmatprep.subr.mxu0 0.0
        %6834 = vmatpush1.msra.mxu0 0.0
        %6835 = vmatprep.subr.mxu0 0.0
        %6836 = vmatpush1.msra.mxu0 0.0
        %6837 = vmatprep.subr.mxu0 0.0
        %6838 = vmatpush1.msra.mxu0 0.0
        %6839 = vmatprep.subr.mxu0 0.0
        %6840 = vmatpush1.msra.mxu0 0.0
        %6841 = vmatprep.subr.mxu0 0.0
        %6842 = vmatpush1.msra.mxu0 0.0
        %6843 = vmatprep.subr.mxu0 0.0
        %6844 = vmatpush1.msra.mxu0 0.0
        %6845 = vmatprep.subr.mxu0 0.0
        %6846 = vmatpush1.msra.mxu0 0.0
        %6847 = vmatprep.subr.mxu0 0.0
        %6848 = vmatpush1.msra.mxu0 0.0
        %6849 = vmatprep.subr.mxu0 0.0
        %6850 = vmatpush1.msra.mxu0 0.0
        %6851 = vmatprep.mubr.f32.mxu0 0.0
        %6852 = vmatmul.mubr.f32.gmra.mrb[0].mxu0 %v6695
        %v6853 = vpop.f32.mrb[0].mxu0
        %v6854 = vadd.f32 0.0, %v6853
        %v6855 = vpop.f32.mrb[0].mxu0
        %6856 = vmatprep.mubr.f32.mxu0 0.0
        %6857 = vmatmul.mubr.f32.gmra.mrb[0].mxu0 %v6698
        %v6858 = vpop.f32.mrb[0].mxu0
        %v6859 = vadd.f32 0.0, %v6858
        %v6860 = vpop.f32.mrb[0].mxu0
        %6861 = vmatprep.mubr.f32.mxu0 0.0
        %6862 = vmatmul.mubr.f32.gmra.mrb[0].mxu0 %v6701
        %v6863 = vpop.f32.mrb[0].mxu0
        %v6864 = vadd.f32 0.0, %v6863
        %v6865 = vpop.f32.mrb[0].mxu0
        %6866 = vmatprep.mubr.f32.mxu0 0.0
        %6867 = vmatmul.mubr.f32.gmra.mrb[0].mxu0 %v6704
        %v6868 = vpop.f32.mrb[0].mxu0
        %v6869 = vadd.f32 0.0, %v6868
        %v6870 = vpop.f32.mrb[0].mxu0
        %6871 = vmatprep.mubr.f32.mxu0 0.0
        %6872 = vmatmul.mubr.f32.gmra.mrb[0].mxu0 %v6707
        %v6873 = vpop.f32.mrb[0].mxu0
        %v6874 = vadd.f32 0.0, %v6873
        %v6875 = vpop.f32.mrb[0].mxu0
        %6876 = vmatprep.mubr.f32.mxu0 0.0
        %6877 = vmatmul.mubr.f32.gmra.mrb[0].mxu0 %v6710
        %v6878 = vpop.f32.mrb[0].mxu0
        %v6879 = vadd.f32 0.0, %v6878
        %v6880 = vpop.f32.mrb[0].mxu0
        %6881 = vmatprep.mubr.f32.mxu0 0.0
        %6882 = vmatmul.mubr.f32.gmra.mrb[0].mxu0 %v6713
        %v6883 = vpop.f32.mrb[0].mxu0
        %v6884 = vadd.f32 0.0, %v6883
        %v6885 = vpop.f32.mrb[0].mxu0
        %6886 = vmatprep.mubr.f32.mxu0 0.0
        %6887 = vmatmul.mubr.f32.gmra.mrb[0].mxu0 %v6716
        %v6888 = vpop.f32.mrb[0].mxu0
        %v6889 = vadd.f32 0.0, %v6888
        %v6890 = vpop.f32.mrb[0].mxu0
        %6891 = vmatprep.mubr.f32.mxu0 0.0
        %6892 = vmatmul.mubr.f32.gmra.mrb[0].mxu0 %v6719
        %v6893 = vpop.f32.mrb[0].mxu0
        %v6894 = vadd.f32 0.0, %v6893
        %v6895 = vpop.f32.mrb[0].mxu0
        %6896 = vmatprep.mubr.f32.mxu0 0.0
        %6897 = vmatmul.mubr.f32.gmra.mrb[0].mxu0 %v6722
        %v6898 = vpop.f32.mrb[0].mxu0
        %v6899 = vadd.f32 0.0, %v6898
        %v6900 = vpop.f32.mrb[0].mxu0
        %6901 = vmatprep.mubr.f32.mxu0 0.0
        %6902 = vmatmul.mubr.f32.gmra.mrb[0].mxu0 %v6725
        %v6903 = vpop.f32.mrb[0].mxu0
        %v6904 = vadd.f32 0.0, %v6903
        %v6905 = vpop.f32.mrb[0].mxu0
        %6906 = vmatprep.mubr.f32.mxu0 0.0
        %6907 = vmatmul.mubr.f32.gmra.mrb[0].mxu0 %v6728
        %v6908 = vpop.f32.mrb[0].mxu0
        %v6909 = vadd.f32 0.0, %v6908
        %v6910 = vpop.f32.mrb[0].mxu0
        %6911 = vmatprep.mubr.f32.mxu0 0.0
        %6912 = vmatmul.mubr.f32.gmra.mrb[0].mxu0 %v6731
        %v6913 = vpop.f32.mrb[0].mxu0
        %v6914 = vadd.f32 0.0, %v6913
        %v6915 = vpop.f32.mrb[0].mxu0
        %6916 = vmatprep.mubr.f32.mxu0 0.0
        %6917 = vmatmul.mubr.f32.gmra.mrb[0].mxu0 %v6734
        %v6918 = vpop.f32.mrb[0].mxu0
        %v6919 = vadd.f32 0.0, %v6918
        %v6920 = vpop.f32.mrb[0].mxu0
        %6921 = vmatprep.mubr.f32.mxu0 0.0
        %6922 = vmatmul.mubr.f32.gmra.mrb[0].mxu0 %v6737
        %v6923 = vpop.f32.mrb[0].mxu0
        %v6924 = vadd.f32 0.0, %v6923
        %v6925 = vpop.f32.mrb[0].mxu0
        %6926 = vmatprep.mubr.f32.mxu0 0.0
        %6927 = vmatmul.mubr.f32.gmra.mrb[0].mxu0 %v6740
        %v6928 = vpop.f32.mrb[0].mxu0
        %v6929 = vadd.f32 0.0, %v6928
        %v6930 = vpop.f32.mrb[0].mxu0
        %6931 = vmatprep.mubr.f32.mxu0 0.0
        %6932 = vmatmul.mubr.f32.gmra.mrb[0].mxu0 %v6743
        %v6933 = vpop.f32.mrb[0].mxu0
        %v6934 = vadd.f32 0.0, %v6933
        %v6935 = vpop.f32.mrb[0].mxu0
        %6936 = vmatprep.mubr.f32.mxu0 0.0
        %6937 = vmatmul.mubr.f32.gmra.mrb[0].mxu0 %v6746
        %v6938 = vpop.f32.mrb[0].mxu0
        %v6939 = vadd.f32 0.0, %v6938
        %v6940 = vpop.f32.mrb[0].mxu0
        %6941 = vmatprep.mubr.f32.mxu0 0.0
        %6942 = vmatmul.mubr.f32.gmra.mrb[0].mxu0 %v6749
        %v6943 = vpop.f32.mrb[0].mxu0
        %v6944 = vadd.f32 0.0, %v6943
        %v6945 = vpop.f32.mrb[0].mxu0
        %6946 = vmatprep.mubr.f32.mxu0 0.0
        %6947 = vmatmul.mubr.f32.gmra.mrb[0].mxu0 %v6752
        %v6948 = vpop.f32.mrb[0].mxu0
        %v6949 = vadd.f32 0.0, %v6948
        %v6950 = vpop.f32.mrb[0].mxu0
        %6951 = vmatprep.mubr.f32.mxu0 0.0
        %6952 = vmatmul.mubr.f32.gmra.mrb[0].mxu0 %v6755
        %v6953 = vpop.f32.mrb[0].mxu0
        %v6954 = vadd.f32 0.0, %v6953
        %v6955 = vpop.f32.mrb[0].mxu0
        %6956 = vmatprep.mubr.f32.mxu0 0.0
        %6957 = vmatmul.mubr.f32.gmra.mrb[0].mxu0 %v6758
        %v6958 = vpop.f32.mrb[0].mxu0
        %v6959 = vadd.f32 0.0, %v6958
        %v6960 = vpop.f32.mrb[0].mxu0
        %6961 = vmatprep.mubr.f32.mxu0 0.0
        %6962 = vmatmul.mubr.f32.gmra.mrb[0].mxu0 %v6761
        %v6963 = vpop.f32.mrb[0].mxu0
        %v6964 = vadd.f32 0.0, %v6963
        %v6965 = vpop.f32.mrb[0].mxu0
        %6966 = vmatprep.mubr.f32.mxu0 0.0
        %6967 = vmatmul.mubr.f32.gmra.mrb[0].mxu0 %v6764
        %v6968 = vpop.f32.mrb[0].mxu0
        %v6969 = vadd.f32 0.0, %v6968
        %v6970 = vpop.f32.mrb[0].mxu0
        %6971 = vmatprep.mubr.f32.mxu0 0.0
        %6972 = vmatmul.mubr.f32.gmra.mrb[0].mxu0 %v6767
        %v6973 = vpop.f32.mrb[0].mxu0
        %v6974 = vadd.f32 0.0, %v6973
        %v6975 = vpop.f32.mrb[0].mxu0
        %6976 = vmatprep.mubr.f32.mxu0 0.0
        %6977 = vmatmul.mubr.f32.gmra.mrb[0].mxu0 %v6770
        %v6978 = vpop.f32.mrb[0].mxu0
        %v6979 = vadd.f32 0.0, %v6978
        %v6980 = vpop.f32.mrb[0].mxu0
        %6981 = vmatprep.mubr.f32.mxu0 0.0
        %6982 = vmatmul.mubr.f32.gmra.mrb[0].mxu0 %v6773
        %v6983 = vpop.f32.mrb[0].mxu0
        %v6984 = vadd.f32 0.0, %v6983
        %v6985 = vpop.f32.mrb[0].mxu0
        %6986 = vmatprep.mubr.f32.mxu0 0.0
        %6987 = vmatmul.mubr.f32.gmra.mrb[0].mxu0 %v6776
        %v6988 = vpop.f32.mrb[0].mxu0
        %v6989 = vadd.f32 0.0, %v6988
        %v6990 = vpop.f32.mrb[0].mxu0
        %6991 = vmatprep.mubr.f32.mxu0 0.0
        %6992 = vmatmul.mubr.f32.gmra.mrb[0].mxu0 %v6779
        %v6993 = vpop.f32.mrb[0].mxu0
        %v6994 = vadd.f32 0.0, %v6993
        %v6995 = vpop.f32.mrb[0].mxu0
        %6996 = vmatprep.mubr.f32.mxu0 0.0
        %6997 = vmatmul.mubr.f32.gmra.mrb[0].mxu0 %v6782
        %v6998 = vpop.f32.mrb[0].mxu0
        %v6999 = vadd.f32 0.0, %v6998
        %v7000 = vpop.f32.mrb[0].mxu0
        %7001 = vdwg.mxu0
        %7032 = vrot.lane.b32.xlu0 %v6854, 127
        %v7033 = vpop.permute.xlu0 %7032
        %7034 = vrot.lane.b32.xlu0 %v6859, 127
        %v7035 = vpop.permute.xlu0 %7034
        %7036 = vrot.lane.b32.xlu0 %v6864, 127
        %v7037 = vpop.permute.xlu0 %7036
        %7038 = vrot.lane.b32.xlu0 %v6869, 127
        %v7039 = vpop.permute.xlu0 %7038
        %7040 = vrot.lane.b32.xlu0 %v6874, 127
        %v7041 = vpop.permute.xlu0 %7040
        %7042 = vrot.lane.b32.xlu0 %v6879, 127
        %v7043 = vpop.permute.xlu0 %7042
        %7044 = vrot.lane.b32.xlu0 %v6884, 127
        %v7045 = vpop.permute.xlu0 %7044
        %7046 = vrot.lane.b32.xlu0 %v6889, 127
        %v7047 = vpop.permute.xlu0 %7046
        %7048 = vrot.lane.b32.xlu0 %v6894, 127
        %v7049 = vpop.permute.xlu0 %7048
        %7050 = vrot.lane.b32.xlu0 %v6899, 127
        %v7051 = vpop.permute.xlu0 %7050
        %7052 = vrot.lane.b32.xlu0 %v6904, 127
        %v7053 = vpop.permute.xlu0 %7052
        %7054 = vrot.lane.b32.xlu0 %v6909, 127
        %v7055 = vpop.permute.xlu0 %7054
        %7056 = vrot.lane.b32.xlu0 %v6914, 127
        %v7057 = vpop.permute.xlu0 %7056
        %7058 = vrot.lane.b32.xlu0 %v6919, 127
        %v7059 = vpop.permute.xlu0 %7058
        %7060 = vrot.lane.b32.xlu0 %v6924, 127
        %v7061 = vpop.permute.xlu0 %7060
        %7062 = vrot.lane.b32.xlu0 %v6929, 127
        %v7063 = vpop.permute.xlu0 %7062
        %7064 = vrot.lane.b32.xlu0 %v6934, 127
        %v7065 = vpop.permute.xlu0 %7064
        %7066 = vrot.lane.b32.xlu0 %v6939, 127
        %v7067 = vpop.permute.xlu0 %7066
        %7068 = vrot.lane.b32.xlu0 %v6944, 127
        %v7069 = vpop.permute.xlu0 %7068
        %7070 = vrot.lane.b32.xlu0 %v6949, 127
        %v7071 = vpop.permute.xlu0 %7070
        %7072 = vrot.lane.b32.xlu0 %v6954, 127
        %v7073 = vpop.permute.xlu0 %7072
        %7074 = vrot.lane.b32.xlu0 %v6959, 127
        %v7075 = vpop.permute.xlu0 %7074
        %7076 = vrot.lane.b32.xlu0 %v6964, 127
        %v7077 = vpop.permute.xlu0 %7076
        %7078 = vrot.lane.b32.xlu0 %v6969, 127
        %v7079 = vpop.permute.xlu0 %7078
        %7080 = vrot.lane.b32.xlu0 %v6974, 127
        %v7081 = vpop.permute.xlu0 %7080
        %7082 = vrot.lane.b32.xlu0 %v6979, 127
        %v7083 = vpop.permute.xlu0 %7082
        %7084 = vrot.lane.b32.xlu0 %v6984, 127
        %v7085 = vpop.permute.xlu0 %7084
        %7086 = vrot.lane.b32.xlu0 %v6989, 127
        %v7087 = vpop.permute.xlu0 %7086
        %7088 = vrot.lane.b32.xlu0 %v6994, 127
        %v7089 = vpop.permute.xlu0 %7088
        %7090 = vrot.lane.b32.xlu0 %v6999, 127
        %v7091 = vpop.permute.xlu0 %7090
        %7122 = vrot.lane.b32.xlu0 %v6854, 126
        %v7123 = vpop.permute.xlu0 %7122
        %7124 = vrot.lane.b32.xlu0 %v6859, 126
        %v7125 = vpop.permute.xlu0 %7124
        %7126 = vrot.lane.b32.xlu0 %v6864, 126
        %v7127 = vpop.permute.xlu0 %7126
        %7128 = vrot.lane.b32.xlu0 %v6869, 126
        %v7129 = vpop.permute.xlu0 %7128
        %7130 = vrot.lane.b32.xlu0 %v6874, 126
        %v7131 = vpop.permute.xlu0 %7130
        %7132 = vrot.lane.b32.xlu0 %v6879, 126
        %v7133 = vpop.permute.xlu0 %7132
        %7134 = vrot.lane.b32.xlu0 %v6884, 126
        %v7135 = vpop.permute.xlu0 %7134
        %7136 = vrot.lane.b32.xlu0 %v6889, 126
        %v7137 = vpop.permute.xlu0 %7136
        %7138 = vrot.lane.b32.xlu0 %v6894, 126
        %v7139 = vpop.permute.xlu0 %7138
        %7140 = vrot.lane.b32.xlu0 %v6899, 126
        %v7141 = vpop.permute.xlu0 %7140
        %7142 = vrot.lane.b32.xlu0 %v6904, 126
        %v7143 = vpop.permute.xlu0 %7142
        %7144 = vrot.lane.b32.xlu0 %v6909, 126
        %v7145 = vpop.permute.xlu0 %7144
        %7146 = vrot.lane.b32.xlu0 %v6914, 126
        %v7147 = vpop.permute.xlu0 %7146
        %7148 = vrot.lane.b32.xlu0 %v6919, 126
        %v7149 = vpop.permute.xlu0 %7148
        %7150 = vrot.lane.b32.xlu0 %v6924, 126
        %v7151 = vpop.permute.xlu0 %7150
        %7152 = vrot.lane.b32.xlu0 %v6929, 126
        %v7153 = vpop.permute.xlu0 %7152
        %7154 = vrot.lane.b32.xlu0 %v6934, 126
        %v7155 = vpop.permute.xlu0 %7154
        %7156 = vrot.lane.b32.xlu0 %v6939, 126
        %v7157 = vpop.permute.xlu0 %7156
        %7158 = vrot.lane.b32.xlu0 %v6944, 126
        %v7159 = vpop.permute.xlu0 %7158
        %7160 = vrot.lane.b32.xlu0 %v6949, 126
        %v7161 = vpop.permute.xlu0 %7160
        %7162 = vrot.lane.b32.xlu0 %v6954, 126
        %v7163 = vpop.permute.xlu0 %7162
        %7164 = vrot.lane.b32.xlu0 %v6959, 126
        %v7165 = vpop.permute.xlu0 %7164
        %7166 = vrot.lane.b32.xlu0 %v6964, 126
        %v7167 = vpop.permute.xlu0 %7166
        %7168 = vrot.lane.b32.xlu0 %v6969, 126
        %v7169 = vpop.permute.xlu0 %7168
        %7170 = vrot.lane.b32.xlu0 %v6974, 126
        %v7171 = vpop.permute.xlu0 %7170
        %7172 = vrot.lane.b32.xlu0 %v6979, 126
        %v7173 = vpop.permute.xlu0 %7172
        %7174 = vrot.lane.b32.xlu0 %v6984, 126
        %v7175 = vpop.permute.xlu0 %7174
        %7176 = vrot.lane.b32.xlu0 %v6989, 126
        %v7177 = vpop.permute.xlu0 %7176
        %7178 = vrot.lane.b32.xlu0 %v6994, 126
        %v7179 = vpop.permute.xlu0 %7178
        %7180 = vrot.lane.b32.xlu0 %v6999, 126
        %v7181 = vpop.permute.xlu0 %7180
        %v7212 = vld [vmem:[%s9] sm:$0xff]
        %v7213 = vld [vmem:[%s9 + $0x8] sm:$0xff]
        %v7214 = vld [vmem:[%s9 + $0x10] sm:$0xff]
        %v7215 = vld [vmem:[%s9 + $0x18] sm:$0xff]
        %v7216 = vld [vmem:[%s9 + $0x20] sm:$0xff]
        %v7217 = vld [vmem:[%s9 + $0x28] sm:$0xff]
        %v7218 = vld [vmem:[%s9 + $0x30] sm:$0xff]
        %v7219 = vld [vmem:[%s9 + $0x38] sm:$0xff]
        %v7220 = vld [vmem:[%s9 + $0x40] sm:$0xff]
        %v7221 = vld [vmem:[%s9 + $0x48] sm:$0xff]
        %v7222 = vld [vmem:[%s9 + $0x50] sm:$0xff]
        %v7223 = vld [vmem:[%s9 + $0x58] sm:$0xff]
        %v7224 = vld [vmem:[%s9 + $0x60] sm:$0xff]
        %v7225 = vld [vmem:[%s9 + $0x68] sm:$0xff]
        %v7226 = vld [vmem:[%s9 + $0x70] sm:$0xff]
        %v7227 = vld [vmem:[%s9 + $0x78] sm:$0xff]
        %v7228 = vld [vmem:[%s9 + $0x80] sm:$0xff]
        %v7229 = vld [vmem:[%s9 + $0x88] sm:$0xff]
        %v7230 = vld [vmem:[%s9 + $0x90] sm:$0xff]
        %v7231 = vld [vmem:[%s9 + $0x98] sm:$0xff]
        %v7232 = vld [vmem:[%s9 + $0xa0] sm:$0xff]
        %v7233 = vld [vmem:[%s9 + $0xa8] sm:$0xff]
        %v7234 = vld [vmem:[%s9 + $0xb0] sm:$0xff]
        %v7235 = vld [vmem:[%s9 + $0xb8] sm:$0xff]
        %v7236 = vld [vmem:[%s9 + $0xc0] sm:$0xff]
        %v7237 = vld [vmem:[%s9 + $0xc8] sm:$0xff]
        %v7238 = vld [vmem:[%s9 + $0xd0] sm:$0xff]
        %v7239 = vld [vmem:[%s9 + $0xd8] sm:$0xff]
        %v7240 = vld [vmem:[%s9 + $0xe0] sm:$0xff]
        %v7241 = vld [vmem:[%s9 + $0xe8] sm:$0xff]
        %v7242 = vld [vmem:[%s9 + $0xf0] sm:$0xff]
        %v7243 = vld [vmem:[%s9 + $0xf8] sm:$0xff]
        %v7244 = vld [vmem:[%s9 + $0x100] sm:$0xff]
        %v7245 = vld [vmem:[%s9 + $0x108] sm:$0xff]
        %v7246 = vld [vmem:[%s9 + $0x110] sm:$0xff]
        %v7247 = vld [vmem:[%s9 + $0x118] sm:$0xff]
        %v7248 = vld [vmem:[%s9 + $0x120] sm:$0xff]
        %v7249 = vld [vmem:[%s9 + $0x128] sm:$0xff]
        %v7250 = vld [vmem:[%s9 + $0x130] sm:$0xff]
        %v7251 = vld [vmem:[%s9 + $0x138] sm:$0xff]
        %v7252 = vld [vmem:[%s9 + $0x140] sm:$0xff]
        %v7253 = vld [vmem:[%s9 + $0x148] sm:$0xff]
        %v7254 = vld [vmem:[%s9 + $0x150] sm:$0xff]
        %v7255 = vld [vmem:[%s9 + $0x158] sm:$0xff]
        %v7256 = vld [vmem:[%s9 + $0x160] sm:$0xff]
        %v7257 = vld [vmem:[%s9 + $0x168] sm:$0xff]
        %v7258 = vld [vmem:[%s9 + $0x170] sm:$0xff]
        %v7259 = vld [vmem:[%s9 + $0x178] sm:$0xff]
        %v7260 = vld [vmem:[%s9 + $0x180] sm:$0xff]
        %v7261 = vld [vmem:[%s9 + $0x188] sm:$0xff]
        %v7262 = vld [vmem:[%s9 + $0x190] sm:$0xff]
        %v7263 = vld [vmem:[%s9 + $0x198] sm:$0xff]
        %v7264 = vld [vmem:[%s9 + $0x1a0] sm:$0xff]
        %v7265 = vld [vmem:[%s9 + $0x1a8] sm:$0xff]
        %v7266 = vld [vmem:[%s9 + $0x1b0] sm:$0xff]
        %v7267 = vld [vmem:[%s9 + $0x1b8] sm:$0xff]
        %v7268 = vld [vmem:[%s9 + $0x1c0] sm:$0xff]
        %v7269 = vld [vmem:[%s9 + $0x1c8] sm:$0xff]
        %v7270 = vld [vmem:[%s9 + $0x1d0] sm:$0xff]
        %v7271 = vld [vmem:[%s9 + $0x1d8] sm:$0xff]
        %v7272 = vld [vmem:[%s9 + $0x1e0] sm:$0xff]
        %v7273 = vld [vmem:[%s9 + $0x1e8] sm:$0xff]
        %v7274 = vld [vmem:[%s9 + $0x1f0] sm:$0xff]
        %v7275 = vld [vmem:[%s9 + $0x1f8] sm:$0xff]
        %v7276 = vld [vmem:[%s9 + $0x200] sm:$0xff]
        %v7277 = vld [vmem:[%s9 + $0x208] sm:$0xff]
        %v7278 = vld [vmem:[%s9 + $0x210] sm:$0xff]
        %v7279 = vld [vmem:[%s9 + $0x218] sm:$0xff]
        %v7280 = vld [vmem:[%s9 + $0x220] sm:$0xff]
        %v7281 = vld [vmem:[%s9 + $0x228] sm:$0xff]
        %v7282 = vld [vmem:[%s9 + $0x230] sm:$0xff]
        %v7283 = vld [vmem:[%s9 + $0x238] sm:$0xff]
        %v7284 = vld [vmem:[%s9 + $0x240] sm:$0xff]
        %v7285 = vld [vmem:[%s9 + $0x248] sm:$0xff]
        %v7286 = vld [vmem:[%s9 + $0x250] sm:$0xff]
        %v7287 = vld [vmem:[%s9 + $0x258] sm:$0xff]
        %v7288 = vld [vmem:[%s9 + $0x260] sm:$0xff]
        %v7289 = vld [vmem:[%s9 + $0x268] sm:$0xff]
        %v7290 = vld [vmem:[%s9 + $0x270] sm:$0xff]
        %v7291 = vld [vmem:[%s9 + $0x278] sm:$0xff]
        %v7292 = vld [vmem:[%s9 + $0x280] sm:$0xff]
        %v7293 = vld [vmem:[%s9 + $0x288] sm:$0xff]
        %v7294 = vld [vmem:[%s9 + $0x290] sm:$0xff]
        %v7295 = vld [vmem:[%s9 + $0x298] sm:$0xff]
        %v7296 = vld [vmem:[%s9 + $0x2a0] sm:$0xff]
        %v7297 = vld [vmem:[%s9 + $0x2a8] sm:$0xff]
        %v7298 = vld [vmem:[%s9 + $0x2b0] sm:$0xff]
        %v7299 = vld [vmem:[%s9 + $0x2b8] sm:$0xff]
        %v7300 = vld [vmem:[%s9 + $0x2c0] sm:$0xff]
        %v7301 = vld [vmem:[%s9 + $0x2c8] sm:$0xff]
        %v7302 = vld [vmem:[%s10] sm:$0xff]
        %v7303 = vld [vmem:[%s10 + $0x8] sm:$0xff]
        %v7304 = vld [vmem:[%s10 + $0x10] sm:$0xff]
        %v7305 = vld [vmem:[%s10 + $0x18] sm:$0xff]
        %v7306 = vld [vmem:[%s10 + $0x20] sm:$0xff]
        %v7307 = vld [vmem:[%s10 + $0x28] sm:$0xff]
        %v7308 = vld [vmem:[%s10 + $0x30] sm:$0xff]
        %v7309 = vld [vmem:[%s10 + $0x38] sm:$0xff]
        %v7310 = vld [vmem:[%s10 + $0x40] sm:$0xff]
        %v7311 = vld [vmem:[%s10 + $0x48] sm:$0xff]
        %v7312 = vld [vmem:[%s10 + $0x50] sm:$0xff]
        %v7313 = vld [vmem:[%s10 + $0x58] sm:$0xff]
        %v7314 = vld [vmem:[%s10 + $0x60] sm:$0xff]
        %v7315 = vld [vmem:[%s10 + $0x68] sm:$0xff]
        %v7316 = vld [vmem:[%s10 + $0x70] sm:$0xff]
        %7318 = vset.pattern.permute.xlu0 0
        %7319 = vperm.xlu0 %7318, %v7302
        %v7320 = vpop.permute.xlu0 %7319
        %7323 = vset.pattern.permute.xlu0 0
        %7324 = vperm.xlu0 %7323, %v7303
        %v7325 = vpop.permute.xlu0 %7324
        %7328 = vset.pattern.permute.xlu0 0
        %7329 = vperm.xlu0 %7328, %v7304
        %v7330 = vpop.permute.xlu0 %7329
        %7333 = vset.pattern.permute.xlu0 0
        %7334 = vperm.xlu0 %7333, %v7305
        %v7335 = vpop.permute.xlu0 %7334
        %7338 = vset.pattern.permute.xlu0 0
        %7339 = vperm.xlu0 %7338, %v7306
        %v7340 = vpop.permute.xlu0 %7339
        %7343 = vset.pattern.permute.xlu0 0
        %7344 = vperm.xlu0 %7343, %v7307
        %v7345 = vpop.permute.xlu0 %7344
        %7348 = vset.pattern.permute.xlu0 0
        %7349 = vperm.xlu0 %7348, %v7308
        %v7350 = vpop.permute.xlu0 %7349
        %7353 = vset.pattern.permute.xlu0 0
        %7354 = vperm.xlu0 %7353, %v7309
        %v7355 = vpop.permute.xlu0 %7354
        %7358 = vset.pattern.permute.xlu0 0
        %7359 = vperm.xlu0 %7358, %v7310
        %v7360 = vpop.permute.xlu0 %7359
        %7363 = vset.pattern.permute.xlu0 0
        %7364 = vperm.xlu0 %7363, %v7311
        %v7365 = vpop.permute.xlu0 %7364
        %7368 = vset.pattern.permute.xlu0 0
        %7369 = vperm.xlu0 %7368, %v7312
        %v7370 = vpop.permute.xlu0 %7369
        %7373 = vset.pattern.permute.xlu0 0
        %7374 = vperm.xlu0 %7373, %v7313
        %v7375 = vpop.permute.xlu0 %7374
        %7378 = vset.pattern.permute.xlu0 0
        %7379 = vperm.xlu0 %7378, %v7314
        %v7380 = vpop.permute.xlu0 %7379
        %7383 = vset.pattern.permute.xlu0 0
        %7384 = vperm.xlu0 %7383, %v7315
        %v7385 = vpop.permute.xlu0 %7384
        %7388 = vset.pattern.permute.xlu0 0
        %7389 = vperm.xlu0 %7388, %v7316
        %v7390 = vpop.permute.xlu0 %7389
        %v7393 = vsel %vm3185, %v7217, 0
        %v7396 = vsel %vm3185, %v7223, 0
        %v7399 = vsel %vm3185, %v7229, 0
        %v7402 = vsel %vm3185, %v7235, 0
        %v7405 = vsel %vm3185, %v7241, 0
        %v7408 = vsel %vm3185, %v7247, 0
        %v7411 = vsel %vm3185, %v7253, 0
        %v7414 = vsel %vm3185, %v7259, 0
        %v7417 = vsel %vm3185, %v7265, 0
        %v7420 = vsel %vm3185, %v7271, 0
        %v7423 = vsel %vm3185, %v7277, 0
        %v7426 = vsel %vm3185, %v7283, 0
        %v7429 = vsel %vm3185, %v7289, 0
        %v7432 = vsel %vm3185, %v7295, 0
        %v7435 = vsel %vm3185, %v7301, 0
        %7437 = vmatprep.subr.mxu0 0.0
        %7438 = vmatpush1.msra.mxu0 %v6854
        %7439 = vmatprep.subr.mxu0 0.0
        %7440 = vmatpush1.msra.mxu0 %v6859
        %7441 = vmatprep.subr.mxu0 0.0
        %7442 = vmatpush1.msra.mxu0 %v6864
        %7443 = vmatprep.subr.mxu0 0.0
        %7444 = vmatpush1.msra.mxu0 %v6869
        %7445 = vmatprep.subr.mxu0 0.0
        %7446 = vmatpush1.msra.mxu0 %v6874
        %7447 = vmatprep.subr.mxu0 0.0
        %7448 = vmatpush1.msra.mxu0 %v6879
        %7449 = vmatprep.subr.mxu0 0.0
        %7450 = vmatpush1.msra.mxu0 %v6884
        %7451 = vmatprep.subr.mxu0 0.0
        %7452 = vmatpush1.msra.mxu0 %v6889
        %7453 = vmatprep.subr.mxu0 0.0
        %7454 = vmatpush1.msra.mxu0 %v6894
        %7455 = vmatprep.subr.mxu0 0.0
        %7456 = vmatpush1.msra.mxu0 %v6899
        %7457 = vmatprep.subr.mxu0 0.0
        %7458 = vmatpush1.msra.mxu0 %v6904
        %7459 = vmatprep.subr.mxu0 0.0
        %7460 = vmatpush1.msra.mxu0 %v6909
        %7461 = vmatprep.subr.mxu0 0.0
        %7462 = vmatpush1.msra.mxu0 %v6914
        %7463 = vmatprep.subr.mxu0 0.0
        %7464 = vmatpush1.msra.mxu0 %v6919
        %7465 = vmatprep.subr.mxu0 0.0
        %7466 = vmatpush1.msra.mxu0 %v6924
        %7467 = vmatprep.subr.mxu0 0.0
        %7468 = vmatpush1.msra.mxu0 %v6929
        %7469 = vmatprep.subr.mxu0 0.0
        %7470 = vmatpush1.msra.mxu0 %v6934
        %7471 = vmatprep.subr.mxu0 0.0
        %7472 = vmatpush1.msra.mxu0 %v6939
        %7473 = vmatprep.subr.mxu0 0.0
        %7474 = vmatpush1.msra.mxu0 %v6944
        %7475 = vmatprep.subr.mxu0 0.0
        %7476 = vmatpush1.msra.mxu0 %v6949
        %7477 = vmatprep.subr.mxu0 0.0
        %7478 = vmatpush1.msra.mxu0 %v6954
        %7479 = vmatprep.subr.mxu0 0.0
        %7480 = vmatpush1.msra.mxu0 %v6959
        %7481 = vmatprep.subr.mxu0 0.0
        %7482 = vmatpush1.msra.mxu0 %v6964
        %7483 = vmatprep.subr.mxu0 0.0
        %7484 = vmatpush1.msra.mxu0 %v6969
        %7485 = vmatprep.subr.mxu0 0.0
        %7486 = vmatpush1.msra.mxu0 %v6974
        %7487 = vmatprep.subr.mxu0 0.0
        %7488 = vmatpush1.msra.mxu0 %v6979
        %7489 = vmatprep.subr.mxu0 0.0
        %7490 = vmatpush1.msra.mxu0 %v6984
        %7491 = vmatprep.subr.mxu0 0.0
        %7492 = vmatpush1.msra.mxu0 %v6989
        %7493 = vmatprep.subr.mxu0 0.0
        %7494 = vmatpush1.msra.mxu0 %v6994
        %7495 = vmatprep.subr.mxu0 0.0
        %7496 = vmatpush1.msra.mxu0 %v6999
        %7497 = vmatprep.subr.mxu0 0.0
        %7498 = vmatpush1.msra.mxu0 %v7033
        %7499 = vmatprep.subr.mxu0 0.0
        %7500 = vmatpush1.msra.mxu0 %v7035
        %7501 = vmatprep.mubr.f32.mxu0 %v7213
        %7502 = vmatmul.mubr.f32.gmra.mrb[0].mxu0 %v7212
        %v7503 = vpop.f32.mrb[0].mxu0
        %v7504 = vadd.f32 %v7320, %v7503
        %v7505 = vpop.f32.mrb[0].mxu0
        %7506 = vmatprep.mubr.f32.mxu0 %v7219
        %7507 = vmatmul.mubr.f32.gmra.mrb[0].mxu0 %v7218
        %v7508 = vpop.f32.mrb[0].mxu0
        %v7509 = vadd.f32 %v7325, %v7508
        %v7510 = vpop.f32.mrb[0].mxu0
        %7511 = vmatprep.mubr.f32.mxu0 %v7225
        %7512 = vmatmul.mubr.f32.gmra.mrb[0].mxu0 %v7224
        %v7513 = vpop.f32.mrb[0].mxu0
        %v7514 = vadd.f32 %v7330, %v7513
        %v7515 = vpop.f32.mrb[0].mxu0
        %7516 = vmatprep.mubr.f32.mxu0 %v7231
        %7517 = vmatmul.mubr.f32.gmra.mrb[0].mxu0 %v7230
        %v7518 = vpop.f32.mrb[0].mxu0
        %v7519 = vadd.f32 %v7335, %v7518
        %v7520 = vpop.f32.mrb[0].mxu0
        %7521 = vmatprep.mubr.f32.mxu0 %v7237
        %7522 = vmatmul.mubr.f32.gmra.mrb[0].mxu0 %v7236
        %v7523 = vpop.f32.mrb[0].mxu0
        %v7524 = vadd.f32 %v7340, %v7523
        %v7525 = vpop.f32.mrb[0].mxu0
        %7526 = vmatprep.mubr.f32.mxu0 %v7243
        %7527 = vmatmul.mubr.f32.gmra.mrb[0].mxu0 %v7242
        %v7528 = vpop.f32.mrb[0].mxu0
        %v7529 = vadd.f32 %v7345, %v7528
        %v7530 = vpop.f32.mrb[0].mxu0
        %7531 = vmatprep.mubr.f32.mxu0 %v7249
        %7532 = vmatmul.mubr.f32.gmra.mrb[0].mxu0 %v7248
        %v7533 = vpop.f32.mrb[0].mxu0
        %v7534 = vadd.f32 %v7350, %v7533
        %v7535 = vpop.f32.mrb[0].mxu0
        %7536 = vmatprep.mubr.f32.mxu0 %v7255
        %7537 = vmatmul.mubr.f32.gmra.mrb[0].mxu0 %v7254
        %v7538 = vpop.f32.mrb[0].mxu0
        %v7539 = vadd.f32 %v7355, %v7538
        %v7540 = vpop.f32.mrb[0].mxu0
        %7541 = vmatprep.mubr.f32.mxu0 %v7261
        %7542 = vmatmul.mubr.f32.gmra.mrb[0].mxu0 %v7260
        %v7543 = vpop.f32.mrb[0].mxu0
        %v7544 = vadd.f32 %v7360, %v7543
        %v7545 = vpop.f32.mrb[0].mxu0
        %7546 = vmatprep.mubr.f32.mxu0 %v7267
        %7547 = vmatmul.mubr.f32.gmra.mrb[0].mxu0 %v7266
        %v7548 = vpop.f32.mrb[0].mxu0
        %v7549 = vadd.f32 %v7365, %v7548
        %v7550 = vpop.f32.mrb[0].mxu0
        %7551 = vmatprep.mubr.f32.mxu0 %v7273
        %7552 = vmatmul.mubr.f32.gmra.mrb[0].mxu0 %v7272
        %v7553 = vpop.f32.mrb[0].mxu0
        %v7554 = vadd.f32 %v7370, %v7553
        %v7555 = vpop.f32.mrb[0].mxu0
        %7556 = vmatprep.mubr.f32.mxu0 %v7279
        %7557 = vmatmul.mubr.f32.gmra.mrb[0].mxu0 %v7278
        %v7558 = vpop.f32.mrb[0].mxu0
        %v7559 = vadd.f32 %v7375, %v7558
        %v7560 = vpop.f32.mrb[0].mxu0
        %7561 = vmatprep.mubr.f32.mxu0 %v7285
        %7562 = vmatmul.mubr.f32.gmra.mrb[0].mxu0 %v7284
        %v7563 = vpop.f32.mrb[0].mxu0
        %v7564 = vadd.f32 %v7380, %v7563
        %v7565 = vpop.f32.mrb[0].mxu0
        %7566 = vmatprep.mubr.f32.mxu0 %v7291
        %7567 = vmatmul.mubr.f32.gmra.mrb[0].mxu0 %v7290
        %v7568 = vpop.f32.mrb[0].mxu0
        %v7569 = vadd.f32 %v7385, %v7568
        %v7570 = vpop.f32.mrb[0].mxu0
        %7571 = vmatprep.mubr.f32.mxu0 %v7297
        %7572 = vmatmul.mubr.f32.gmra.mrb[0].mxu0 %v7296
        %v7573 = vpop.f32.mrb[0].mxu0
        %v7574 = vadd.f32 %v7390, %v7573
        %v7575 = vpop.f32.mrb[0].mxu0
        %7576 = vdwg.mxu0
        %7577 = vmatprep.subr.mxu0 0.0
        %7578 = vmatpush1.msra.mxu0 %v7037
        %7579 = vmatprep.subr.mxu0 0.0
        %7580 = vmatpush1.msra.mxu0 %v7039
        %7581 = vmatprep.subr.mxu0 0.0
        %7582 = vmatpush1.msra.mxu0 %v7041
        %7583 = vmatprep.subr.mxu0 0.0
        %7584 = vmatpush1.msra.mxu0 %v7043
        %7585 = vmatprep.subr.mxu0 0.0
        %7586 = vmatpush1.msra.mxu0 %v7045
        %7587 = vmatprep.subr.mxu0 0.0
        %7588 = vmatpush1.msra.mxu0 %v7047
        %7589 = vmatprep.subr.mxu0 0.0
        %7590 = vmatpush1.msra.mxu0 %v7049
        %7591 = vmatprep.subr.mxu0 0.0
        %7592 = vmatpush1.msra.mxu0 %v7051
        %7593 = vmatprep.subr.mxu0 0.0
        %7594 = vmatpush1.msra.mxu0 %v7053
        %7595 = vmatprep.subr.mxu0 0.0
        %7596 = vmatpush1.msra.mxu0 %v7055
        %7597 = vmatprep.subr.mxu0 0.0
        %7598 = vmatpush1.msra.mxu0 %v7057
        %7599 = vmatprep.subr.mxu0 0.0
        %7600 = vmatpush1.msra.mxu0 %v7059
        %7601 = vmatprep.subr.mxu0 0.0
        %7602 = vmatpush1.msra.mxu0 %v7061
        %7603 = vmatprep.subr.mxu0 0.0
        %7604 = vmatpush1.msra.mxu0 %v7063
        %7605 = vmatprep.subr.mxu0 0.0
        %7606 = vmatpush1.msra.mxu0 %v7065
        %7607 = vmatprep.subr.mxu0 0.0
        %7608 = vmatpush1.msra.mxu0 %v7067
        %7609 = vmatprep.subr.mxu0 0.0
        %7610 = vmatpush1.msra.mxu0 %v7069
        %7611 = vmatprep.subr.mxu0 0.0
        %7612 = vmatpush1.msra.mxu0 %v7071
        %7613 = vmatprep.subr.mxu0 0.0
        %7614 = vmatpush1.msra.mxu0 %v7073
        %7615 = vmatprep.subr.mxu0 0.0
        %7616 = vmatpush1.msra.mxu0 %v7075
        %7617 = vmatprep.subr.mxu0 0.0
        %7618 = vmatpush1.msra.mxu0 %v7077
        %7619 = vmatprep.subr.mxu0 0.0
        %7620 = vmatpush1.msra.mxu0 %v7079
        %7621 = vmatprep.subr.mxu0 0.0
        %7622 = vmatpush1.msra.mxu0 %v7081
        %7623 = vmatprep.subr.mxu0 0.0
        %7624 = vmatpush1.msra.mxu0 %v7083
        %7625 = vmatprep.subr.mxu0 0.0
        %7626 = vmatpush1.msra.mxu0 %v7085
        %7627 = vmatprep.subr.mxu0 0.0
        %7628 = vmatpush1.msra.mxu0 %v7087
        %7629 = vmatprep.subr.mxu0 0.0
        %7630 = vmatpush1.msra.mxu0 %v7089
        %7631 = vmatprep.subr.mxu0 0.0
        %7632 = vmatpush1.msra.mxu0 %v7091
        %7633 = vmatprep.subr.mxu0 0.0
        %7634 = vmatpush1.msra.mxu0 %v7123
        %7635 = vmatprep.subr.mxu0 0.0
        %7636 = vmatpush1.msra.mxu0 %v7125
        %7637 = vmatprep.subr.mxu0 0.0
        %7638 = vmatpush1.msra.mxu0 %v7127
        %7639 = vmatprep.subr.mxu0 0.0
        %7640 = vmatpush1.msra.mxu0 %v7129
        %7641 = vmatprep.mubr.f32.mxu0 %v7215
        %7642 = vmatmul.mubr.f32.gmra.mrb[0].mxu0 %v7214
        %v7643 = vpop.f32.mrb[0].mxu0
        %v7644 = vadd.f32 %v7504, %v7643
        %v7645 = vpop.f32.mrb[0].mxu0
        %7646 = vmatprep.mubr.f32.mxu0 %v7221
        %7647 = vmatmul.mubr.f32.gmra.mrb[0].mxu0 %v7220
        %v7648 = vpop.f32.mrb[0].mxu0
        %v7649 = vadd.f32 %v7509, %v7648
        %v7650 = vpop.f32.mrb[0].mxu0
        %7651 = vmatprep.mubr.f32.mxu0 %v7227
        %7652 = vmatmul.mubr.f32.gmra.mrb[0].mxu0 %v7226
        %v7653 = vpop.f32.mrb[0].mxu0
        %v7654 = vadd.f32 %v7514, %v7653
        %v7655 = vpop.f32.mrb[0].mxu0
        %7656 = vmatprep.mubr.f32.mxu0 %v7233
        %7657 = vmatmul.mubr.f32.gmra.mrb[0].mxu0 %v7232
        %v7658 = vpop.f32.mrb[0].mxu0
        %v7659 = vadd.f32 %v7519, %v7658
        %v7660 = vpop.f32.mrb[0].mxu0
        %7661 = vmatprep.mubr.f32.mxu0 %v7239
        %7662 = vmatmul.mubr.f32.gmra.mrb[0].mxu0 %v7238
        %v7663 = vpop.f32.mrb[0].mxu0
        %v7664 = vadd.f32 %v7524, %v7663
        %v7665 = vpop.f32.mrb[0].mxu0
        %7666 = vmatprep.mubr.f32.mxu0 %v7245
        %7667 = vmatmul.mubr.f32.gmra.mrb[0].mxu0 %v7244
        %v7668 = vpop.f32.mrb[0].mxu0
        %v7669 = vadd.f32 %v7529, %v7668
        %v7670 = vpop.f32.mrb[0].mxu0
        %7671 = vmatprep.mubr.f32.mxu0 %v7251
        %7672 = vmatmul.mubr.f32.gmra.mrb[0].mxu0 %v7250
        %v7673 = vpop.f32.mrb[0].mxu0
        %v7674 = vadd.f32 %v7534, %v7673
        %v7675 = vpop.f32.mrb[0].mxu0
        %7676 = vmatprep.mubr.f32.mxu0 %v7257
        %7677 = vmatmul.mubr.f32.gmra.mrb[0].mxu0 %v7256
        %v7678 = vpop.f32.mrb[0].mxu0
        %v7679 = vadd.f32 %v7539, %v7678
        %v7680 = vpop.f32.mrb[0].mxu0
        %7681 = vmatprep.mubr.f32.mxu0 %v7263
        %7682 = vmatmul.mubr.f32.gmra.mrb[0].mxu0 %v7262
        %v7683 = vpop.f32.mrb[0].mxu0
        %v7684 = vadd.f32 %v7544, %v7683
        %v7685 = vpop.f32.mrb[0].mxu0
        %7686 = vmatprep.mubr.f32.mxu0 %v7269
        %7687 = vmatmul.mubr.f32.gmra.mrb[0].mxu0 %v7268
        %v7688 = vpop.f32.mrb[0].mxu0
        %v7689 = vadd.f32 %v7549, %v7688
        %v7690 = vpop.f32.mrb[0].mxu0
        %7691 = vmatprep.mubr.f32.mxu0 %v7275
        %7692 = vmatmul.mubr.f32.gmra.mrb[0].mxu0 %v7274
        %v7693 = vpop.f32.mrb[0].mxu0
        %v7694 = vadd.f32 %v7554, %v7693
        %v7695 = vpop.f32.mrb[0].mxu0
        %7696 = vmatprep.mubr.f32.mxu0 %v7281
        %7697 = vmatmul.mubr.f32.gmra.mrb[0].mxu0 %v7280
        %v7698 = vpop.f32.mrb[0].mxu0
        %v7699 = vadd.f32 %v7559, %v7698
        %v7700 = vpop.f32.mrb[0].mxu0
        %7701 = vmatprep.mubr.f32.mxu0 %v7287
        %7702 = vmatmul.mubr.f32.gmra.mrb[0].mxu0 %v7286
        %v7703 = vpop.f32.mrb[0].mxu0
        %v7704 = vadd.f32 %v7564, %v7703
        %v7705 = vpop.f32.mrb[0].mxu0
        %7706 = vmatprep.mubr.f32.mxu0 %v7293
        %7707 = vmatmul.mubr.f32.gmra.mrb[0].mxu0 %v7292
        %v7708 = vpop.f32.mrb[0].mxu0
        %v7709 = vadd.f32 %v7569, %v7708
        %v7710 = vpop.f32.mrb[0].mxu0
        %7711 = vmatprep.mubr.f32.mxu0 %v7299
        %7712 = vmatmul.mubr.f32.gmra.mrb[0].mxu0 %v7298
        %v7713 = vpop.f32.mrb[0].mxu0
        %v7714 = vadd.f32 %v7574, %v7713
        %v7715 = vpop.f32.mrb[0].mxu0
        %7716 = vdwg.mxu0
        %7717 = vmatprep.subr.mxu0 0.0
        %7718 = vmatpush1.msra.mxu0 %v7131
        %7719 = vmatprep.subr.mxu0 0.0
        %7720 = vmatpush1.msra.mxu0 %v7133
        %7721 = vmatprep.subr.mxu0 0.0
        %7722 = vmatpush1.msra.mxu0 %v7135
        %7723 = vmatprep.subr.mxu0 0.0
        %7724 = vmatpush1.msra.mxu0 %v7137
        %7725 = vmatprep.subr.mxu0 0.0
        %7726 = vmatpush1.msra.mxu0 %v7139
        %7727 = vmatprep.subr.mxu0 0.0
        %7728 = vmatpush1.msra.mxu0 %v7141
        %7729 = vmatprep.subr.mxu0 0.0
        %7730 = vmatpush1.msra.mxu0 %v7143
        %7731 = vmatprep.subr.mxu0 0.0
        %7732 = vmatpush1.msra.mxu0 %v7145
        %7733 = vmatprep.subr.mxu0 0.0
        %7734 = vmatpush1.msra.mxu0 %v7147
        %7735 = vmatprep.subr.mxu0 0.0
        %7736 = vmatpush1.msra.mxu0 %v7149
        %7737 = vmatprep.subr.mxu0 0.0
        %7738 = vmatpush1.msra.mxu0 %v7151
        %7739 = vmatprep.subr.mxu0 0.0
        %7740 = vmatpush1.msra.mxu0 %v7153
        %7741 = vmatprep.subr.mxu0 0.0
        %7742 = vmatpush1.msra.mxu0 %v7155
        %7743 = vmatprep.subr.mxu0 0.0
        %7744 = vmatpush1.msra.mxu0 %v7157
        %7745 = vmatprep.subr.mxu0 0.0
        %7746 = vmatpush1.msra.mxu0 %v7159
        %7747 = vmatprep.subr.mxu0 0.0
        %7748 = vmatpush1.msra.mxu0 %v7161
        %7749 = vmatprep.subr.mxu0 0.0
        %7750 = vmatpush1.msra.mxu0 %v7163
        %7751 = vmatprep.subr.mxu0 0.0
        %7752 = vmatpush1.msra.mxu0 %v7165
        %7753 = vmatprep.subr.mxu0 0.0
        %7754 = vmatpush1.msra.mxu0 %v7167
        %7755 = vmatprep.subr.mxu0 0.0
        %7756 = vmatpush1.msra.mxu0 %v7169
        %7757 = vmatprep.subr.mxu0 0.0
        %7758 = vmatpush1.msra.mxu0 %v7171
        %7759 = vmatprep.subr.mxu0 0.0
        %7760 = vmatpush1.msra.mxu0 %v7173
        %7761 = vmatprep.subr.mxu0 0.0
        %7762 = vmatpush1.msra.mxu0 %v7175
        %7763 = vmatprep.subr.mxu0 0.0
        %7764 = vmatpush1.msra.mxu0 %v7177
        %7765 = vmatprep.subr.mxu0 0.0
        %7766 = vmatpush1.msra.mxu0 %v7179
        %7767 = vmatprep.subr.mxu0 0.0
        %7768 = vmatpush1.msra.mxu0 %v7181
        %7769 = vmatprep.subr.mxu0 0.0
        %7770 = vmatpush1.msra.mxu0 0.0
        %7771 = vmatprep.subr.mxu0 0.0
        %7772 = vmatpush1.msra.mxu0 0.0
        %7773 = vmatprep.subr.mxu0 0.0
        %7774 = vmatpush1.msra.mxu0 0.0
        %7775 = vmatprep.subr.mxu0 0.0
        %7776 = vmatpush1.msra.mxu0 0.0
        %7777 = vmatprep.subr.mxu0 0.0
        %7778 = vmatpush1.msra.mxu0 0.0
        %7779 = vmatprep.subr.mxu0 0.0
        %7780 = vmatpush1.msra.mxu0 0.0
        %7781 = vmatprep.mubr.f32.mxu0 %v7393
        %7782 = vmatmul.mubr.f32.gmra.mrb[0].mxu0 %v7216
        %v7783 = vpop.f32.mrb[0].mxu0
        %v7784 = vadd.f32 %v7644, %v7783
        %v7785 = vpop.f32.mrb[0].mxu0
        %7786 = vmatprep.mubr.f32.mxu0 %v7396
        %7787 = vmatmul.mubr.f32.gmra.mrb[0].mxu0 %v7222
        %v7788 = vpop.f32.mrb[0].mxu0
        %v7789 = vadd.f32 %v7649, %v7788
        %v7790 = vpop.f32.mrb[0].mxu0
        %7791 = vmatprep.mubr.f32.mxu0 %v7399
        %7792 = vmatmul.mubr.f32.gmra.mrb[0].mxu0 %v7228
        %v7793 = vpop.f32.mrb[0].mxu0
        %v7794 = vadd.f32 %v7654, %v7793
        %v7795 = vpop.f32.mrb[0].mxu0
        %7796 = vmatprep.mubr.f32.mxu0 %v7402
        %7797 = vmatmul.mubr.f32.gmra.mrb[0].mxu0 %v7234
        %v7798 = vpop.f32.mrb[0].mxu0
        %v7799 = vadd.f32 %v7659, %v7798
        %v7800 = vpop.f32.mrb[0].mxu0
        %7801 = vmatprep.mubr.f32.mxu0 %v7405
        %7802 = vmatmul.mubr.f32.gmra.mrb[0].mxu0 %v7240
        %v7803 = vpop.f32.mrb[0].mxu0
        %v7804 = vadd.f32 %v7664, %v7803
        %v7805 = vpop.f32.mrb[0].mxu0
        %7806 = vmatprep.mubr.f32.mxu0 %v7408
        %7807 = vmatmul.mubr.f32.gmra.mrb[0].mxu0 %v7246
        %v7808 = vpop.f32.mrb[0].mxu0
        %v7809 = vadd.f32 %v7669, %v7808
        %v7810 = vpop.f32.mrb[0].mxu0
        %7811 = vmatprep.mubr.f32.mxu0 %v7411
        %7812 = vmatmul.mubr.f32.gmra.mrb[0].mxu0 %v7252
        %v7813 = vpop.f32.mrb[0].mxu0
        %v7814 = vadd.f32 %v7674, %v7813
        %v7815 = vpop.f32.mrb[0].mxu0
        %7816 = vmatprep.mubr.f32.mxu0 %v7414
        %7817 = vmatmul.mubr.f32.gmra.mrb[0].mxu0 %v7258
        %v7818 = vpop.f32.mrb[0].mxu0
        %v7819 = vadd.f32 %v7679, %v7818
        %v7820 = vpop.f32.mrb[0].mxu0
        %7821 = vmatprep.mubr.f32.mxu0 %v7417
        %7822 = vmatmul.mubr.f32.gmra.mrb[0].mxu0 %v7264
        %v7823 = vpop.f32.mrb[0].mxu0
        %v7824 = vadd.f32 %v7684, %v7823
        %v7825 = vpop.f32.mrb[0].mxu0
        %7826 = vmatprep.mubr.f32.mxu0 %v7420
        %7827 = vmatmul.mubr.f32.gmra.mrb[0].mxu0 %v7270
        %v7828 = vpop.f32.mrb[0].mxu0
        %v7829 = vadd.f32 %v7689, %v7828
        %v7830 = vpop.f32.mrb[0].mxu0
        %7831 = vmatprep.mubr.f32.mxu0 %v7423
        %7832 = vmatmul.mubr.f32.gmra.mrb[0].mxu0 %v7276
        %v7833 = vpop.f32.mrb[0].mxu0
        %v7834 = vadd.f32 %v7694, %v7833
        %v7835 = vpop.f32.mrb[0].mxu0
        %7836 = vmatprep.mubr.f32.mxu0 %v7426
        %7837 = vmatmul.mubr.f32.gmra.mrb[0].mxu0 %v7282
        %v7838 = vpop.f32.mrb[0].mxu0
        %v7839 = vadd.f32 %v7699, %v7838
        %v7840 = vpop.f32.mrb[0].mxu0
        %7841 = vmatprep.mubr.f32.mxu0 %v7429
        %7842 = vmatmul.mubr.f32.gmra.mrb[0].mxu0 %v7288
        %v7843 = vpop.f32.mrb[0].mxu0
        %v7844 = vadd.f32 %v7704, %v7843
        %v7845 = vpop.f32.mrb[0].mxu0
        %7846 = vmatprep.mubr.f32.mxu0 %v7432
        %7847 = vmatmul.mubr.f32.gmra.mrb[0].mxu0 %v7294
        %v7848 = vpop.f32.mrb[0].mxu0
        %v7849 = vadd.f32 %v7709, %v7848
        %v7850 = vpop.f32.mrb[0].mxu0
        %7851 = vmatprep.mubr.f32.mxu0 %v7435
        %7852 = vmatmul.mubr.f32.gmra.mrb[0].mxu0 %v7300
        %v7853 = vpop.f32.mrb[0].mxu0
        %v7854 = vadd.f32 %v7714, %v7853
        %v7855 = vpop.f32.mrb[0].mxu0
        %7856 = vdwg.mxu0
        %v7857 = vmax.f32 %v7784, 0.0
        %v7858 = vmax.f32 %v7789, 0.0
        %v7859 = vmax.f32 %v7794, 0.0
        %v7860 = vmax.f32 %v7799, 0.0
        %v7861 = vmax.f32 %v7804, 0.0
        %v7862 = vmax.f32 %v7809, 0.0
        %v7863 = vmax.f32 %v7814, 0.0
        %v7864 = vmax.f32 %v7819, 0.0
        %v7865 = vmax.f32 %v7824, 0.0
        %v7866 = vmax.f32 %v7829, 0.0
        %v7867 = vmax.f32 %v7834, 0.0
        %v7868 = vmax.f32 %v7839, 0.0
        %v7869 = vmax.f32 %v7844, 0.0
        %v7870 = vmax.f32 %v7849, 0.0
        %v7871 = vmax.f32 %v7854, 0.0
        %v7872 = vld [vmem:[%s11] sm:$0xff]
        %v7873 = vld [vmem:[%s11 + $0x8] sm:$0xff]
        %v7874 = vld [vmem:[%s11 + $0x10] sm:$0xff]
        %v7875 = vld [vmem:[%s11 + $0x18] sm:$0xff]
        %v7876 = vld [vmem:[%s11 + $0x20] sm:$0xff]
        %v7877 = vld [vmem:[%s11 + $0x28] sm:$0xff]
        %v7878 = vld [vmem:[%s11 + $0x30] sm:$0xff]
        %v7879 = vld [vmem:[%s11 + $0x38] sm:$0xff]
        %v7880 = vld [vmem:[%s12] sm:$0xff]
        %v7881 = vld [vmem:[%s12 + $0x8] sm:$0xff]
        %v7882 = vld [vmem:[%s12 + $0x10] sm:$0xff]
        %v7883 = vld [vmem:[%s12 + $0x18] sm:$0xff]
        %v7884 = vld [vmem:[%s12 + $0x20] sm:$0xff]
        %v7885 = vld [vmem:[%s12 + $0x28] sm:$0xff]
        %v7886 = vld [vmem:[%s12 + $0x30] sm:$0xff]
        %v7887 = vld [vmem:[%s12 + $0x38] sm:$0xff]
        %7889 = vset.pattern.permute.xlu0 0
        %7890 = vperm.xlu0 %7889, %v7880
        %v7891 = vpop.permute.xlu0 %7890
        %7894 = vset.pattern.permute.xlu0 0
        %7895 = vperm.xlu0 %7894, %v7881
        %v7896 = vpop.permute.xlu0 %7895
        %7899 = vset.pattern.permute.xlu0 0
        %7900 = vperm.xlu0 %7899, %v7882
        %v7901 = vpop.permute.xlu0 %7900
        %7904 = vset.pattern.permute.xlu0 0
        %7905 = vperm.xlu0 %7904, %v7883
        %v7906 = vpop.permute.xlu0 %7905
        %7909 = vset.pattern.permute.xlu0 0
        %7910 = vperm.xlu0 %7909, %v7884
        %v7911 = vpop.permute.xlu0 %7910
        %7914 = vset.pattern.permute.xlu0 0
        %7915 = vperm.xlu0 %7914, %v7885
        %v7916 = vpop.permute.xlu0 %7915
        %7919 = vset.pattern.permute.xlu0 0
        %7920 = vperm.xlu0 %7919, %v7886
        %v7921 = vpop.permute.xlu0 %7920
        %7924 = vset.pattern.permute.xlu0 0
        %7925 = vperm.xlu0 %7924, %v7887
        %v7926 = vpop.permute.xlu0 %7925
        %v7929 = vsel %vm3722, %v7872, 0
        %v7932 = vsel %vm3722, %v7873, 0
        %v7935 = vsel %vm3722, %v7874, 0
        %v7938 = vsel %vm3722, %v7875, 0
        %v7941 = vsel %vm3722, %v7876, 0
        %v7944 = vsel %vm3722, %v7877, 0
        %v7947 = vsel %vm3722, %v7878, 0
        %v7950 = vsel %vm3722, %v7879, 0
        %7952 = vmatprep.subr.mxu0 0.0
        %7953 = vmatpush1.msra.mxu0 %v7857
        %7954 = vmatprep.subr.mxu0 0.0
        %7955 = vmatpush1.msra.mxu0 %v7858
        %7956 = vmatprep.subr.mxu0 0.0
        %7957 = vmatpush1.msra.mxu0 %v7859
        %7958 = vmatprep.subr.mxu0 0.0
        %7959 = vmatpush1.msra.mxu0 %v7860
        %7960 = vmatprep.subr.mxu0 0.0
        %7961 = vmatpush1.msra.mxu0 %v7861
        %7962 = vmatprep.subr.mxu0 0.0
        %7963 = vmatpush1.msra.mxu0 %v7862
        %7964 = vmatprep.subr.mxu0 0.0
        %7965 = vmatpush1.msra.mxu0 %v7863
        %7966 = vmatprep.subr.mxu0 0.0
        %7967 = vmatpush1.msra.mxu0 %v7864
        %7968 = vmatprep.subr.mxu0 0.0
        %7969 = vmatpush1.msra.mxu0 %v7865
        %7970 = vmatprep.subr.mxu0 0.0
        %7971 = vmatpush1.msra.mxu0 %v7866
        %7972 = vmatprep.subr.mxu0 0.0
        %7973 = vmatpush1.msra.mxu0 %v7867
        %7974 = vmatprep.subr.mxu0 0.0
        %7975 = vmatpush1.msra.mxu0 %v7868
        %7976 = vmatprep.subr.mxu0 0.0
        %7977 = vmatpush1.msra.mxu0 %v7869
        %7978 = vmatprep.subr.mxu0 0.0
        %7979 = vmatpush1.msra.mxu0 %v7870
        %7980 = vmatprep.subr.mxu0 0.0
        %7981 = vmatpush1.msra.mxu0 %v7871
        %7982 = vmatprep.subr.mxu0 0.0
        %7983 = vmatpush1.msra.mxu0 0.0
        %7984 = vmatprep.subr.mxu0 0.0
        %7985 = vmatpush1.msra.mxu0 0.0
        %7986 = vmatprep.subr.mxu0 0.0
        %7987 = vmatpush1.msra.mxu0 0.0
        %7988 = vmatprep.subr.mxu0 0.0
        %7989 = vmatpush1.msra.mxu0 0.0
        %7990 = vmatprep.subr.mxu0 0.0
        %7991 = vmatpush1.msra.mxu0 0.0
        %7992 = vmatprep.subr.mxu0 0.0
        %7993 = vmatpush1.msra.mxu0 0.0
        %7994 = vmatprep.subr.mxu0 0.0
        %7995 = vmatpush1.msra.mxu0 0.0
        %7996 = vmatprep.subr.mxu0 0.0
        %7997 = vmatpush1.msra.mxu0 0.0
        %7998 = vmatprep.subr.mxu0 0.0
        %7999 = vmatpush1.msra.mxu0 0.0
        %8000 = vmatprep.subr.mxu0 0.0
        %8001 = vmatpush1.msra.mxu0 0.0
        %8002 = vmatprep.subr.mxu0 0.0
        %8003 = vmatpush1.msra.mxu0 0.0
        %8004 = vmatprep.subr.mxu0 0.0
        %8005 = vmatpush1.msra.mxu0 0.0
        %8006 = vmatprep.subr.mxu0 0.0
        %8007 = vmatpush1.msra.mxu0 0.0
        %8008 = vmatprep.subr.mxu0 0.0
        %8009 = vmatpush1.msra.mxu0 0.0
        %8010 = vmatprep.subr.mxu0 0.0
        %8011 = vmatpush1.msra.mxu0 0.0
        %8012 = vmatprep.subr.mxu0 0.0
        %8013 = vmatpush1.msra.mxu0 0.0
        %8014 = vmatprep.subr.mxu0 0.0
        %8015 = vmatpush1.msra.mxu0 0.0
        %8016 = vmatprep.mubr.f32.mxu0 0.0
        %8017 = vmatmul.mubr.f32.gmra.mrb[0].mxu0 %v7929
        %v8018 = vpop.f32.mrb[0].mxu0
        %v8019 = vadd.f32 %v7891, %v8018
        %v8020 = vpop.f32.mrb[0].mxu0
        %8021 = vmatprep.mubr.f32.mxu0 0.0
        %8022 = vmatmul.mubr.f32.gmra.mrb[0].mxu0 %v7932
        %v8023 = vpop.f32.mrb[0].mxu0
        %v8024 = vadd.f32 %v7896, %v8023
        %v8025 = vpop.f32.mrb[0].mxu0
        %8026 = vmatprep.mubr.f32.mxu0 0.0
        %8027 = vmatmul.mubr.f32.gmra.mrb[0].mxu0 %v7935
        %v8028 = vpop.f32.mrb[0].mxu0
        %v8029 = vadd.f32 %v7901, %v8028
        %v8030 = vpop.f32.mrb[0].mxu0
        %8031 = vmatprep.mubr.f32.mxu0 0.0
        %8032 = vmatmul.mubr.f32.gmra.mrb[0].mxu0 %v7938
        %v8033 = vpop.f32.mrb[0].mxu0
        %v8034 = vadd.f32 %v7906, %v8033
        %v8035 = vpop.f32.mrb[0].mxu0
        %8036 = vmatprep.mubr.f32.mxu0 0.0
        %8037 = vmatmul.mubr.f32.gmra.mrb[0].mxu0 %v7941
        %v8038 = vpop.f32.mrb[0].mxu0
        %v8039 = vadd.f32 %v7911, %v8038
        %v8040 = vpop.f32.mrb[0].mxu0
        %8041 = vmatprep.mubr.f32.mxu0 0.0
        %8042 = vmatmul.mubr.f32.gmra.mrb[0].mxu0 %v7944
        %v8043 = vpop.f32.mrb[0].mxu0
        %v8044 = vadd.f32 %v7916, %v8043
        %v8045 = vpop.f32.mrb[0].mxu0
        %8046 = vmatprep.mubr.f32.mxu0 0.0
        %8047 = vmatmul.mubr.f32.gmra.mrb[0].mxu0 %v7947
        %v8048 = vpop.f32.mrb[0].mxu0
        %v8049 = vadd.f32 %v7921, %v8048
        %v8050 = vpop.f32.mrb[0].mxu0
        %8051 = vmatprep.mubr.f32.mxu0 0.0
        %8052 = vmatmul.mubr.f32.gmra.mrb[0].mxu0 %v7950
        %v8053 = vpop.f32.mrb[0].mxu0
        %v8054 = vadd.f32 %v7926, %v8053
        %v8055 = vpop.f32.mrb[0].mxu0
        %8056 = vdwg.mxu0
        %v8057 = vmax.f32 %v8019, 0.0
        %v8058 = vmax.f32 %v8024, 0.0
        %v8059 = vmax.f32 %v8029, 0.0
        %v8060 = vmax.f32 %v8034, 0.0
        %v8061 = vmax.f32 %v8039, 0.0
        %v8062 = vmax.f32 %v8044, 0.0
        %v8063 = vmax.f32 %v8049, 0.0
        %v8064 = vmax.f32 %v8054, 0.0
        %v8065 = vld [vmem:[#allocation7] sm:$0xff]
        %v8066 = vld [vmem:[#allocation7 + $0x8] sm:$0xff]
        %v8067 = vld [vmem:[#allocation7 + $0x10] sm:$0xff]
        %v8068 = vld [vmem:[#allocation7 + $0x18] sm:$0xff]
        %v8069 = vld [vmem:[#allocation7 + $0x20] sm:$0xff]
        %v8070 = vld [vmem:[#allocation7 + $0x28] sm:$0xff]
        %v8071 = vld [vmem:[#allocation7 + $0x30] sm:$0xff]
        %v8072 = vld [vmem:[#allocation7 + $0x38] sm:$0xff]
        %v8073 = vld [vmem:[%s14] sm:$0xff]
        %v8074 = vld [vmem:[%s14 + $0x8] sm:$0xff]
        %v8075 = vld [vmem:[%s14 + $0x10] sm:$0xff]
        %v8076 = vld [vmem:[%s14 + $0x18] sm:$0xff]
        %v8077 = vld [vmem:[%s14 + $0x20] sm:$0xff]
        %v8078 = vld [vmem:[%s14 + $0x28] sm:$0xff]
        %v8079 = vld [vmem:[%s14 + $0x30] sm:$0xff]
        %v8080 = vld [vmem:[%s14 + $0x38] sm:$0xff]
        %8082 = vset.pattern.permute.xlu0 0
        %8083 = vperm.xlu0 %8082, %v8073
        %v8084 = vpop.permute.xlu0 %8083
        %8087 = vset.pattern.permute.xlu0 0
        %8088 = vperm.xlu0 %8087, %v8074
        %v8089 = vpop.permute.xlu0 %8088
        %8092 = vset.pattern.permute.xlu0 0
        %8093 = vperm.xlu0 %8092, %v8075
        %v8094 = vpop.permute.xlu0 %8093
        %8097 = vset.pattern.permute.xlu0 0
        %8098 = vperm.xlu0 %8097, %v8076
        %v8099 = vpop.permute.xlu0 %8098
        %8102 = vset.pattern.permute.xlu0 0
        %8103 = vperm.xlu0 %8102, %v8077
        %v8104 = vpop.permute.xlu0 %8103
        %8107 = vset.pattern.permute.xlu0 0
        %8108 = vperm.xlu0 %8107, %v8078
        %v8109 = vpop.permute.xlu0 %8108
        %8112 = vset.pattern.permute.xlu0 0
        %8113 = vperm.xlu0 %8112, %v8079
        %v8114 = vpop.permute.xlu0 %8113
        %8117 = vset.pattern.permute.xlu0 0
        %8118 = vperm.xlu0 %8117, %v8080
        %v8119 = vpop.permute.xlu0 %8118
        %v8122 = vsel %vm1354, %v8065, 0
        %v8125 = vsel %vm1354, %v8066, 0
        %v8128 = vsel %vm1354, %v8067, 0
        %v8131 = vsel %vm1354, %v8068, 0
        %v8134 = vsel %vm1354, %v8069, 0
        %v8137 = vsel %vm1354, %v8070, 0
        %v8140 = vsel %vm1354, %v8071, 0
        %v8143 = vsel %vm1354, %v8072, 0
        %8145 = vmatprep.subr.mxu0 0.0
        %8146 = vmatpush1.msra.mxu0 %v8057
        %8147 = vmatprep.subr.mxu0 0.0
        %8148 = vmatpush1.msra.mxu0 %v8058
        %8149 = vmatprep.subr.mxu0 0.0
        %8150 = vmatpush1.msra.mxu0 %v8059
        %8151 = vmatprep.subr.mxu0 0.0
        %8152 = vmatpush1.msra.mxu0 %v8060
        %8153 = vmatprep.subr.mxu0 0.0
        %8154 = vmatpush1.msra.mxu0 %v8061
        %8155 = vmatprep.subr.mxu0 0.0
        %8156 = vmatpush1.msra.mxu0 %v8062
        %8157 = vmatprep.subr.mxu0 0.0
        %8158 = vmatpush1.msra.mxu0 %v8063
        %8159 = vmatprep.subr.mxu0 0.0
        %8160 = vmatpush1.msra.mxu0 %v8064
        %8161 = vmatprep.subr.mxu0 0.0
        %8162 = vmatpush1.msra.mxu0 0.0
        %8163 = vmatprep.subr.mxu0 0.0
        %8164 = vmatpush1.msra.mxu0 0.0
        %8165 = vmatprep.subr.mxu0 0.0
        %8166 = vmatpush1.msra.mxu0 0.0
        %8167 = vmatprep.subr.mxu0 0.0
        %8168 = vmatpush1.msra.mxu0 0.0
        %8169 = vmatprep.subr.mxu0 0.0
        %8170 = vmatpush1.msra.mxu0 0.0
        %8171 = vmatprep.subr.mxu0 0.0
        %8172 = vmatpush1.msra.mxu0 0.0
        %8173 = vmatprep.subr.mxu0 0.0
        %8174 = vmatpush1.msra.mxu0 0.0
        %8175 = vmatprep.subr.mxu0 0.0
        %8176 = vmatpush1.msra.mxu0 0.0
        %8177 = vmatprep.subr.mxu0 0.0
        %8178 = vmatpush1.msra.mxu0 0.0
        %8179 = vmatprep.subr.mxu0 0.0
        %8180 = vmatpush1.msra.mxu0 0.0
        %8181 = vmatprep.subr.mxu0 0.0
        %8182 = vmatpush1.msra.mxu0 0.0
        %8183 = vmatprep.subr.mxu0 0.0
        %8184 = vmatpush1.msra.mxu0 0.0
        %8185 = vmatprep.subr.mxu0 0.0
        %8186 = vmatpush1.msra.mxu0 0.0
        %8187 = vmatprep.subr.mxu0 0.0
        %8188 = vmatpush1.msra.mxu0 0.0
        %8189 = vmatprep.subr.mxu0 0.0
        %8190 = vmatpush1.msra.mxu0 0.0
        %8191 = vmatprep.subr.mxu0 0.0
        %8192 = vmatpush1.msra.mxu0 0.0
        %8193 = vmatprep.subr.mxu0 0.0
        %8194 = vmatpush1.msra.mxu0 0.0
        %8195 = vmatprep.subr.mxu0 0.0
        %8196 = vmatpush1.msra.mxu0 0.0
        %8197 = vmatprep.subr.mxu0 0.0
        %8198 = vmatpush1.msra.mxu0 0.0
        %8199 = vmatprep.subr.mxu0 0.0
        %8200 = vmatpush1.msra.mxu0 0.0
        %8201 = vmatprep.subr.mxu0 0.0
        %8202 = vmatpush1.msra.mxu0 0.0
        %8203 = vmatprep.subr.mxu0 0.0
        %8204 = vmatpush1.msra.mxu0 0.0
        %8205 = vmatprep.subr.mxu0 0.0
        %8206 = vmatpush1.msra.mxu0 0.0
        %8207 = vmatprep.subr.mxu0 0.0
        %8208 = vmatpush1.msra.mxu0 0.0
        %8209 = vmatprep.mubr.f32.mxu0 0.0
        %8210 = vmatmul.mubr.f32.gmra.mrb[0].mxu0 %v8122
        %v8211 = vpop.f32.mrb[0].mxu0
        %v8212 = vadd.f32 %v8084, %v8211
        %v8213 = vpop.f32.mrb[0].mxu0
        %8214 = vmatprep.mubr.f32.mxu0 0.0
        %8215 = vmatmul.mubr.f32.gmra.mrb[0].mxu0 %v8125
        %v8216 = vpop.f32.mrb[0].mxu0
        %v8217 = vadd.f32 %v8089, %v8216
        %v8218 = vpop.f32.mrb[0].mxu0
        %8219 = vmatprep.mubr.f32.mxu0 0.0
        %8220 = vmatmul.mubr.f32.gmra.mrb[0].mxu0 %v8128
        %v8221 = vpop.f32.mrb[0].mxu0
        %v8222 = vadd.f32 %v8094, %v8221
        %v8223 = vpop.f32.mrb[0].mxu0
        %8224 = vmatprep.mubr.f32.mxu0 0.0
        %8225 = vmatmul.mubr.f32.gmra.mrb[0].mxu0 %v8131
        %v8226 = vpop.f32.mrb[0].mxu0
        %v8227 = vadd.f32 %v8099, %v8226
        %v8228 = vpop.f32.mrb[0].mxu0
        %8229 = vmatprep.mubr.f32.mxu0 0.0
        %8230 = vmatmul.mubr.f32.gmra.mrb[0].mxu0 %v8134
        %v8231 = vpop.f32.mrb[0].mxu0
        %v8232 = vadd.f32 %v8104, %v8231
        %v8233 = vpop.f32.mrb[0].mxu0
        %8234 = vmatprep.mubr.f32.mxu0 0.0
        %8235 = vmatmul.mubr.f32.gmra.mrb[0].mxu0 %v8137
        %v8236 = vpop.f32.mrb[0].mxu0
        %v8237 = vadd.f32 %v8109, %v8236
        %v8238 = vpop.f32.mrb[0].mxu0
        %8239 = vmatprep.mubr.f32.mxu0 0.0
        %8240 = vmatmul.mubr.f32.gmra.mrb[0].mxu0 %v8140
        %v8241 = vpop.f32.mrb[0].mxu0
        %v8242 = vadd.f32 %v8114, %v8241
        %v8243 = vpop.f32.mrb[0].mxu0
        %8244 = vmatprep.mubr.f32.mxu0 0.0
        %8245 = vmatmul.mubr.f32.gmra.mrb[0].mxu0 %v8143
        %v8246 = vpop.f32.mrb[0].mxu0
        %v8247 = vadd.f32 %v8119, %v8246
        %v8248 = vpop.f32.mrb[0].mxu0
        %8249 = vdwg.mxu0
        %v8250 = vmax.f32 %v8212, 0.0
        %v8251 = vmax.f32 %v8217, 0.0
        %v8252 = vmax.f32 %v8222, 0.0
        %v8253 = vmax.f32 %v8227, 0.0
        %v8254 = vmax.f32 %v8232, 0.0
        %v8255 = vmax.f32 %v8237, 0.0
        %v8256 = vmax.f32 %v8242, 0.0
        %v8257 = vmax.f32 %v8247, 0.0
        %v8258 = vld [vmem:[%s17] sm:$0xff]
        %v8259 = vld [vmem:[%s17 + $0x8] sm:$0xff]
        %v8260 = vld [vmem:[%s17 + $0x10] sm:$0xf]
        %v8261 = vld [vmem:[%s4056] sm:$0xff]
        %v8262 = vld [vmem:[%s4056 + $0x8] sm:$0xff]
        %v8263 = vld [vmem:[%s4056 + $0x10] sm:$0xf]
        %8272 = vrot.lane.b32.xlu0 %v8250, 127
        %v8273 = vpop.permute.xlu0 %8272
        %8274 = vrot.lane.b32.xlu0 %v8251, 127
        %v8275 = vpop.permute.xlu0 %8274
        %8276 = vrot.lane.b32.xlu0 %v8252, 127
        %v8277 = vpop.permute.xlu0 %8276
        %8278 = vrot.lane.b32.xlu0 %v8253, 127
        %v8279 = vpop.permute.xlu0 %8278
        %8280 = vrot.lane.b32.xlu0 %v8254, 127
        %v8281 = vpop.permute.xlu0 %8280
        %8282 = vrot.lane.b32.xlu0 %v8255, 127
        %v8283 = vpop.permute.xlu0 %8282
        %8284 = vrot.lane.b32.xlu0 %v8256, 127
        %v8285 = vpop.permute.xlu0 %8284
        %8286 = vrot.lane.b32.xlu0 %v8257, 127
        %v8287 = vpop.permute.xlu0 %8286
        %v8297 = vsel %vm1354, %v8261, 0
        %v8300 = vsel %vm1354, %v8262, 0
        %v8303 = vsel %vm1354, %v8263, 0
        %8305 = vmatprep.subr.mxu0 0.0
        %8306 = vmatpush1.msra.mxu0 %v8273
        %8307 = vmatprep.subr.mxu0 0.0
        %8308 = vmatpush1.msra.mxu0 %v8275
        %8309 = vmatprep.subr.mxu0 0.0
        %8310 = vmatpush1.msra.mxu0 %v8277
        %8311 = vmatprep.subr.mxu0 0.0
        %8312 = vmatpush1.msra.mxu0 %v8279
        %8313 = vmatprep.subr.mxu0 0.0
        %8314 = vmatpush1.msra.mxu0 %v8281
        %8315 = vmatprep.subr.mxu0 0.0
        %8316 = vmatpush1.msra.mxu0 %v8283
        %8317 = vmatprep.subr.mxu0 0.0
        %8318 = vmatpush1.msra.mxu0 %v8285
        %8319 = vmatprep.subr.mxu0 0.0
        %8320 = vmatpush1.msra.mxu0 %v8287
        %8321 = vmatprep.subr.mxu0 0.0
        %8322 = vmatpush1.msra.mxu0 0.0
        %8323 = vmatprep.subr.mxu0 0.0
        %8324 = vmatpush1.msra.mxu0 0.0
        %8325 = vmatprep.subr.mxu0 0.0
        %8326 = vmatpush1.msra.mxu0 0.0
        %8327 = vmatprep.subr.mxu0 0.0
        %8328 = vmatpush1.msra.mxu0 0.0
        %8329 = vmatprep.subr.mxu0 0.0
        %8330 = vmatpush1.msra.mxu0 0.0
        %8331 = vmatprep.subr.mxu0 0.0
        %8332 = vmatpush1.msra.mxu0 0.0
        %8333 = vmatprep.subr.mxu0 0.0
        %8334 = vmatpush1.msra.mxu0 0.0
        %8335 = vmatprep.subr.mxu0 0.0
        %8336 = vmatpush1.msra.mxu0 0.0
        %8337 = vmatprep.subr.mxu0 0.0
        %8338 = vmatpush1.msra.mxu0 0.0
        %8339 = vmatprep.subr.mxu0 0.0
        %8340 = vmatpush1.msra.mxu0 0.0
        %8341 = vmatprep.subr.mxu0 0.0
        %8342 = vmatpush1.msra.mxu0 0.0
        %8343 = vmatprep.subr.mxu0 0.0
        %8344 = vmatpush1.msra.mxu0 0.0
        %8345 = vmatprep.subr.mxu0 0.0
        %8346 = vmatpush1.msra.mxu0 0.0
        %8347 = vmatprep.subr.mxu0 0.0
        %8348 = vmatpush1.msra.mxu0 0.0
        %8349 = vmatprep.subr.mxu0 0.0
        %8350 = vmatpush1.msra.mxu0 0.0
        %8351 = vmatprep.subr.mxu0 0.0
        %8352 = vmatpush1.msra.mxu0 0.0
        %8353 = vmatprep.subr.mxu0 0.0
        %8354 = vmatpush1.msra.mxu0 0.0
        %8355 = vmatprep.subr.mxu0 0.0
        %8356 = vmatpush1.msra.mxu0 0.0
        %8357 = vmatprep.subr.mxu0 0.0
        %8358 = vmatpush1.msra.mxu0 0.0
        %8359 = vmatprep.subr.mxu0 0.0
        %8360 = vmatpush1.msra.mxu0 0.0
        %8361 = vmatprep.subr.mxu0 0.0
        %8362 = vmatpush1.msra.mxu0 0.0
        %8363 = vmatprep.subr.mxu0 0.0
        %8364 = vmatpush1.msra.mxu0 0.0
        %8365 = vmatprep.subr.mxu0 0.0
        %8366 = vmatpush1.msra.mxu0 0.0
        %8367 = vmatprep.subr.mxu0 0.0
        %8368 = vmatpush1.msra.mxu0 0.0
        %8369 = vmatprep.mubr.f32.mxu0 0.0
        %8370 = vmatmul.mubr.f32.gmra.mrb[0].mxu0 %v8297
        %v8371 = vpop.f32.mrb[0].mxu0
        %v8372 = vadd.f32 0.0, %v8371
        %v8373 = vpop.f32.mrb[0].mxu0
        %8374 = vmatprep.mubr.f32.mxu0 0.0
        %8375 = vmatmul.mubr.f32.gmra.mrb[0].mxu0 %v8300
        %v8376 = vpop.f32.mrb[0].mxu0
        %v8377 = vadd.f32 0.0, %v8376
        %v8378 = vpop.f32.mrb[0].mxu0
        %8379 = vmatprep.mubr.f32.mxu0 0.0
        %8380 = vmatmul.mubr.f32.gmra.mrb[0].mxu0 %v8303
        %v8381 = vpop.f32.mrb[0].mxu0
        %v8382 = vadd.f32 0.0, %v8381
        %v8383 = vpop.f32.mrb[0].mxu0
        %8384 = vdwg.mxu0
        %v8386 = vsel %vm1354, %v8258, 0
        %v8389 = vsel %vm1354, %v8259, 0
        %v8392 = vsel %vm1354, %v8260, 0
        %8394 = vmatprep.subr.mxu0 0.0
        %8395 = vmatpush1.msra.mxu0 %v8250
        %8396 = vmatprep.subr.mxu0 0.0
        %8397 = vmatpush1.msra.mxu0 %v8251
        %8398 = vmatprep.subr.mxu0 0.0
        %8399 = vmatpush1.msra.mxu0 %v8252
        %8400 = vmatprep.subr.mxu0 0.0
        %8401 = vmatpush1.msra.mxu0 %v8253
        %8402 = vmatprep.subr.mxu0 0.0
        %8403 = vmatpush1.msra.mxu0 %v8254
        %8404 = vmatprep.subr.mxu0 0.0
        %8405 = vmatpush1.msra.mxu0 %v8255
        %8406 = vmatprep.subr.mxu0 0.0
        %8407 = vmatpush1.msra.mxu0 %v8256
        %8408 = vmatprep.subr.mxu0 0.0
        %8409 = vmatpush1.msra.mxu0 %v8257
        %8410 = vmatprep.subr.mxu0 0.0
        %8411 = vmatpush1.msra.mxu0 0.0
        %8412 = vmatprep.subr.mxu0 0.0
        %8413 = vmatpush1.msra.mxu0 0.0
        %8414 = vmatprep.subr.mxu0 0.0
        %8415 = vmatpush1.msra.mxu0 0.0
        %8416 = vmatprep.subr.mxu0 0.0
        %8417 = vmatpush1.msra.mxu0 0.0
        %8418 = vmatprep.subr.mxu0 0.0
        %8419 = vmatpush1.msra.mxu0 0.0
        %8420 = vmatprep.subr.mxu0 0.0
        %8421 = vmatpush1.msra.mxu0 0.0
        %8422 = vmatprep.subr.mxu0 0.0
        %8423 = vmatpush1.msra.mxu0 0.0
        %8424 = vmatprep.subr.mxu0 0.0
        %8425 = vmatpush1.msra.mxu0 0.0
        %8426 = vmatprep.subr.mxu0 0.0
        %8427 = vmatpush1.msra.mxu0 0.0
        %8428 = vmatprep.subr.mxu0 0.0
        %8429 = vmatpush1.msra.mxu0 0.0
        %8430 = vmatprep.subr.mxu0 0.0
        %8431 = vmatpush1.msra.mxu0 0.0
        %8432 = vmatprep.subr.mxu0 0.0
        %8433 = vmatpush1.msra.mxu0 0.0
        %8434 = vmatprep.subr.mxu0 0.0
        %8435 = vmatpush1.msra.mxu0 0.0
        %8436 = vmatprep.subr.mxu0 0.0
        %8437 = vmatpush1.msra.mxu0 0.0
        %8438 = vmatprep.subr.mxu0 0.0
        %8439 = vmatpush1.msra.mxu0 0.0
        %8440 = vmatprep.subr.mxu0 0.0
        %8441 = vmatpush1.msra.mxu0 0.0
        %8442 = vmatprep.subr.mxu0 0.0
        %8443 = vmatpush1.msra.mxu0 0.0
        %8444 = vmatprep.subr.mxu0 0.0
        %8445 = vmatpush1.msra.mxu0 0.0
        %8446 = vmatprep.subr.mxu0 0.0
        %8447 = vmatpush1.msra.mxu0 0.0
        %8448 = vmatprep.subr.mxu0 0.0
        %8449 = vmatpush1.msra.mxu0 0.0
        %8450 = vmatprep.subr.mxu0 0.0
        %8451 = vmatpush1.msra.mxu0 0.0
        %8452 = vmatprep.subr.mxu0 0.0
        %8453 = vmatpush1.msra.mxu0 0.0
        %8454 = vmatprep.subr.mxu0 0.0
        %8455 = vmatpush1.msra.mxu0 0.0
        %8456 = vmatprep.subr.mxu0 0.0
        %8457 = vmatpush1.msra.mxu0 0.0
        %8458 = vmatprep.mubr.f32.mxu0 0.0
        %8459 = vmatmul.mubr.f32.gmra.mrb[0].mxu0 %v8386
        %v8460 = vpop.f32.mrb[0].mxu0
        %v8461 = vadd.f32 %v8372, %v8460
        %v8462 = vpop.f32.mrb[0].mxu0
        %8463 = vmatprep.mubr.f32.mxu0 0.0
        %8464 = vmatmul.mubr.f32.gmra.mrb[0].mxu0 %v8389
        %v8465 = vpop.f32.mrb[0].mxu0
        %v8466 = vadd.f32 %v8377, %v8465
        %v8467 = vpop.f32.mrb[0].mxu0
        %8468 = vmatprep.mubr.f32.mxu0 0.0
        %8469 = vmatmul.mubr.f32.gmra.mrb[0].mxu0 %v8392
        %v8470 = vpop.f32.mrb[0].mxu0
        %v8471 = vadd.f32 %v8382, %v8470
        %v8472 = vpop.f32.mrb[0].mxu0
        %8473 = vdwg.mxu0
        %v8474 = vld [vmem:[%s4270] sm:$0xff]
        %v8475 = vld [vmem:[%s4270 + $0x8] sm:$0xff]
        %v8476 = vld [vmem:[%s4270 + $0x10] sm:$0xf]
        %8477 = vrot.lane.b32.xlu0 %v8250, 126
        %v8478 = vpop.permute.xlu0 %8477
        %8479 = vrot.lane.b32.xlu0 %v8251, 126
        %v8480 = vpop.permute.xlu0 %8479
        %8481 = vrot.lane.b32.xlu0 %v8252, 126
        %v8482 = vpop.permute.xlu0 %8481
        %8483 = vrot.lane.b32.xlu0 %v8253, 126
        %v8484 = vpop.permute.xlu0 %8483
        %8485 = vrot.lane.b32.xlu0 %v8254, 126
        %v8486 = vpop.permute.xlu0 %8485
        %8487 = vrot.lane.b32.xlu0 %v8255, 126
        %v8488 = vpop.permute.xlu0 %8487
        %8489 = vrot.lane.b32.xlu0 %v8256, 126
        %v8490 = vpop.permute.xlu0 %8489
        %8491 = vrot.lane.b32.xlu0 %v8257, 126
        %v8492 = vpop.permute.xlu0 %8491
        %v8502 = vsel %vm1354, %v8474, 0
        %v8505 = vsel %vm1354, %v8475, 0
        %v8508 = vsel %vm1354, %v8476, 0
        %8510 = vmatprep.subr.mxu0 0.0
        %8511 = vmatpush1.msra.mxu0 %v8478
        %8512 = vmatprep.subr.mxu0 0.0
        %8513 = vmatpush1.msra.mxu0 %v8480
        %8514 = vmatprep.subr.mxu0 0.0
        %8515 = vmatpush1.msra.mxu0 %v8482
        %8516 = vmatprep.subr.mxu0 0.0
        %8517 = vmatpush1.msra.mxu0 %v8484
        %8518 = vmatprep.subr.mxu0 0.0
        %8519 = vmatpush1.msra.mxu0 %v8486
        %8520 = vmatprep.subr.mxu0 0.0
        %8521 = vmatpush1.msra.mxu0 %v8488
        %8522 = vmatprep.subr.mxu0 0.0
        %8523 = vmatpush1.msra.mxu0 %v8490
        %8524 = vmatprep.subr.mxu0 0.0
        %8525 = vmatpush1.msra.mxu0 %v8492
        %8526 = vmatprep.subr.mxu0 0.0
        %8527 = vmatpush1.msra.mxu0 0.0
        %8528 = vmatprep.subr.mxu0 0.0
        %8529 = vmatpush1.msra.mxu0 0.0
        %8530 = vmatprep.subr.mxu0 0.0
        %8531 = vmatpush1.msra.mxu0 0.0
        %8532 = vmatprep.subr.mxu0 0.0
        %8533 = vmatpush1.msra.mxu0 0.0
        %8534 = vmatprep.subr.mxu0 0.0
        %8535 = vmatpush1.msra.mxu0 0.0
        %8536 = vmatprep.subr.mxu0 0.0
        %8537 = vmatpush1.msra.mxu0 0.0
        %8538 = vmatprep.subr.mxu0 0.0
        %8539 = vmatpush1.msra.mxu0 0.0
        %8540 = vmatprep.subr.mxu0 0.0
        %8541 = vmatpush1.msra.mxu0 0.0
        %8542 = vmatprep.subr.mxu0 0.0
        %8543 = vmatpush1.msra.mxu0 0.0
        %8544 = vmatprep.subr.mxu0 0.0
        %8545 = vmatpush1.msra.mxu0 0.0
        %8546 = vmatprep.subr.mxu0 0.0
        %8547 = vmatpush1.msra.mxu0 0.0
        %8548 = vmatprep.subr.mxu0 0.0
        %8549 = vmatpush1.msra.mxu0 0.0
        %8550 = vmatprep.subr.mxu0 0.0
        %8551 = vmatpush1.msra.mxu0 0.0
        %8552 = vmatprep.subr.mxu0 0.0
        %8553 = vmatpush1.msra.mxu0 0.0
        %8554 = vmatprep.subr.mxu0 0.0
        %8555 = vmatpush1.msra.mxu0 0.0
        %8556 = vmatprep.subr.mxu0 0.0
        %8557 = vmatpush1.msra.mxu0 0.0
        %8558 = vmatprep.subr.mxu0 0.0
        %8559 = vmatpush1.msra.mxu0 0.0
        %8560 = vmatprep.subr.mxu0 0.0
        %8561 = vmatpush1.msra.mxu0 0.0
        %8562 = vmatprep.subr.mxu0 0.0
        %8563 = vmatpush1.msra.mxu0 0.0
        %8564 = vmatprep.subr.mxu0 0.0
        %8565 = vmatpush1.msra.mxu0 0.0
        %8566 = vmatprep.subr.mxu0 0.0
        %8567 = vmatpush1.msra.mxu0 0.0
        %8568 = vmatprep.subr.mxu0 0.0
        %8569 = vmatpush1.msra.mxu0 0.0
        %8570 = vmatprep.subr.mxu0 0.0
        %8571 = vmatpush1.msra.mxu0 0.0
        %8572 = vmatprep.subr.mxu0 0.0
        %8573 = vmatpush1.msra.mxu0 0.0
        %8574 = vmatprep.mubr.f32.mxu0 0.0
        %8575 = vmatmul.mubr.f32.gmra.mrb[0].mxu0 %v8502
        %v8576 = vpop.f32.mrb[0].mxu0
        %v8577 = vadd.f32 0.0, %v8576
        %v8578 = vpop.f32.mrb[0].mxu0
        %8579 = vmatprep.mubr.f32.mxu0 0.0
        %8580 = vmatmul.mubr.f32.gmra.mrb[0].mxu0 %v8505
        %v8581 = vpop.f32.mrb[0].mxu0
        %v8582 = vadd.f32 0.0, %v8581
        %v8583 = vpop.f32.mrb[0].mxu0
        %8584 = vmatprep.mubr.f32.mxu0 0.0
        %8585 = vmatmul.mubr.f32.gmra.mrb[0].mxu0 %v8508
        %v8586 = vpop.f32.mrb[0].mxu0
        %v8587 = vadd.f32 0.0, %v8586
        %v8588 = vpop.f32.mrb[0].mxu0
        %8589 = vdwg.mxu0
        %v8590 = vadd.f32 %v8461, %v8577
        %v8591 = vadd.f32 %v8466, %v8582
        %v8592 = vadd.f32 %v8471, %v8587
        %v8593 = vld [vmem:[%s4390] sm:$0xff]
        %v8594 = vld [vmem:[%s4390 + $0x8] sm:$0xff]
        %v8595 = vld [vmem:[%s4390 + $0x10] sm:$0xf]
        %8596 = vrot.lane.b32.xlu0 %v8250, 125
        %v8597 = vpop.permute.xlu0 %8596
        %8598 = vrot.lane.b32.xlu0 %v8251, 125
        %v8599 = vpop.permute.xlu0 %8598
        %8600 = vrot.lane.b32.xlu0 %v8252, 125
        %v8601 = vpop.permute.xlu0 %8600
        %8602 = vrot.lane.b32.xlu0 %v8253, 125
        %v8603 = vpop.permute.xlu0 %8602
        %8604 = vrot.lane.b32.xlu0 %v8254, 125
        %v8605 = vpop.permute.xlu0 %8604
        %8606 = vrot.lane.b32.xlu0 %v8255, 125
        %v8607 = vpop.permute.xlu0 %8606
        %8608 = vrot.lane.b32.xlu0 %v8256, 125
        %v8609 = vpop.permute.xlu0 %8608
        %8610 = vrot.lane.b32.xlu0 %v8257, 125
        %v8611 = vpop.permute.xlu0 %8610
        %v8621 = vsel %vm1354, %v8593, 0
        %v8624 = vsel %vm1354, %v8594, 0
        %v8627 = vsel %vm1354, %v8595, 0
        %8629 = vmatprep.subr.mxu0 0.0
        %8630 = vmatpush1.msra.mxu0 %v8597
        %8631 = vmatprep.subr.mxu0 0.0
        %8632 = vmatpush1.msra.mxu0 %v8599
        %8633 = vmatprep.subr.mxu0 0.0
        %8634 = vmatpush1.msra.mxu0 %v8601
        %8635 = vmatprep.subr.mxu0 0.0
        %8636 = vmatpush1.msra.mxu0 %v8603
        %8637 = vmatprep.subr.mxu0 0.0
        %8638 = vmatpush1.msra.mxu0 %v8605
        %8639 = vmatprep.subr.mxu0 0.0
        %8640 = vmatpush1.msra.mxu0 %v8607
        %8641 = vmatprep.subr.mxu0 0.0
        %8642 = vmatpush1.msra.mxu0 %v8609
        %8643 = vmatprep.subr.mxu0 0.0
        %8644 = vmatpush1.msra.mxu0 %v8611
        %8645 = vmatprep.subr.mxu0 0.0
        %8646 = vmatpush1.msra.mxu0 0.0
        %8647 = vmatprep.subr.mxu0 0.0
        %8648 = vmatpush1.msra.mxu0 0.0
        %8649 = vmatprep.subr.mxu0 0.0
        %8650 = vmatpush1.msra.mxu0 0.0
        %8651 = vmatprep.subr.mxu0 0.0
        %8652 = vmatpush1.msra.mxu0 0.0
        %8653 = vmatprep.subr.mxu0 0.0
        %8654 = vmatpush1.msra.mxu0 0.0
        %8655 = vmatprep.subr.mxu0 0.0
        %8656 = vmatpush1.msra.mxu0 0.0
        %8657 = vmatprep.subr.mxu0 0.0
        %8658 = vmatpush1.msra.mxu0 0.0
        %8659 = vmatprep.subr.mxu0 0.0
        %8660 = vmatpush1.msra.mxu0 0.0
        %8661 = vmatprep.subr.mxu0 0.0
        %8662 = vmatpush1.msra.mxu0 0.0
        %8663 = vmatprep.subr.mxu0 0.0
        %8664 = vmatpush1.msra.mxu0 0.0
        %8665 = vmatprep.subr.mxu0 0.0
        %8666 = vmatpush1.msra.mxu0 0.0
        %8667 = vmatprep.subr.mxu0 0.0
        %8668 = vmatpush1.msra.mxu0 0.0
        %8669 = vmatprep.subr.mxu0 0.0
        %8670 = vmatpush1.msra.mxu0 0.0
        %8671 = vmatprep.subr.mxu0 0.0
        %8672 = vmatpush1.msra.mxu0 0.0
        %8673 = vmatprep.subr.mxu0 0.0
        %8674 = vmatpush1.msra.mxu0 0.0
        %8675 = vmatprep.subr.mxu0 0.0
        %8676 = vmatpush1.msra.mxu0 0.0
        %8677 = vmatprep.subr.mxu0 0.0
        %8678 = vmatpush1.msra.mxu0 0.0
        %8679 = vmatprep.subr.mxu0 0.0
        %8680 = vmatpush1.msra.mxu0 0.0
        %8681 = vmatprep.subr.mxu0 0.0
        %8682 = vmatpush1.msra.mxu0 0.0
        %8683 = vmatprep.subr.mxu0 0.0
        %8684 = vmatpush1.msra.mxu0 0.0
        %8685 = vmatprep.subr.mxu0 0.0
        %8686 = vmatpush1.msra.mxu0 0.0
        %8687 = vmatprep.subr.mxu0 0.0
        %8688 = vmatpush1.msra.mxu0 0.0
        %8689 = vmatprep.subr.mxu0 0.0
        %8690 = vmatpush1.msra.mxu0 0.0
        %8691 = vmatprep.subr.mxu0 0.0
        %8692 = vmatpush1.msra.mxu0 0.0
        %8693 = vmatprep.mubr.f32.mxu0 0.0
        %8694 = vmatmul.mubr.f32.gmra.mrb[0].mxu0 %v8621
        %v8695 = vpop.f32.mrb[0].mxu0
        %v8696 = vadd.f32 0.0, %v8695
        %v8697 = vpop.f32.mrb[0].mxu0
        %8698 = vmatprep.mubr.f32.mxu0 0.0
        %8699 = vmatmul.mubr.f32.gmra.mrb[0].mxu0 %v8624
        %v8700 = vpop.f32.mrb[0].mxu0
        %v8701 = vadd.f32 0.0, %v8700
        %v8702 = vpop.f32.mrb[0].mxu0
        %8703 = vmatprep.mubr.f32.mxu0 0.0
        %8704 = vmatmul.mubr.f32.gmra.mrb[0].mxu0 %v8627
        %v8705 = vpop.f32.mrb[0].mxu0
        %v8706 = vadd.f32 0.0, %v8705
        %v8707 = vpop.f32.mrb[0].mxu0
        %8708 = vdwg.mxu0
        %v8709 = vadd.f32 %v8590, %v8696
        %v8710 = vadd.f32 %v8591, %v8701
        %v8711 = vadd.f32 %v8592, %v8706
        %v8712 = vld [vmem:[%s4510] sm:$0xff]
        %v8713 = vld [vmem:[%s4510 + $0x8] sm:$0xff]
        %v8714 = vld [vmem:[%s4510 + $0x10] sm:$0xf]
        %8715 = vrot.lane.b32.xlu0 %v8250, 124
        %v8716 = vpop.permute.xlu0 %8715
        %8717 = vrot.lane.b32.xlu0 %v8251, 124
        %v8718 = vpop.permute.xlu0 %8717
        %8719 = vrot.lane.b32.xlu0 %v8252, 124
        %v8720 = vpop.permute.xlu0 %8719
        %8721 = vrot.lane.b32.xlu0 %v8253, 124
        %v8722 = vpop.permute.xlu0 %8721
        %8723 = vrot.lane.b32.xlu0 %v8254, 124
        %v8724 = vpop.permute.xlu0 %8723
        %8725 = vrot.lane.b32.xlu0 %v8255, 124
        %v8726 = vpop.permute.xlu0 %8725
        %8727 = vrot.lane.b32.xlu0 %v8256, 124
        %v8728 = vpop.permute.xlu0 %8727
        %8729 = vrot.lane.b32.xlu0 %v8257, 124
        %v8730 = vpop.permute.xlu0 %8729
        %v8740 = vsel %vm1354, %v8712, 0
        %v8743 = vsel %vm1354, %v8713, 0
        %v8746 = vsel %vm1354, %v8714, 0
        %8748 = vmatprep.subr.mxu0 0.0
        %8749 = vmatpush1.msra.mxu0 %v8716
        %8750 = vmatprep.subr.mxu0 0.0
        %8751 = vmatpush1.msra.mxu0 %v8718
        %8752 = vmatprep.subr.mxu0 0.0
        %8753 = vmatpush1.msra.mxu0 %v8720
        %8754 = vmatprep.subr.mxu0 0.0
        %8755 = vmatpush1.msra.mxu0 %v8722
        %8756 = vmatprep.subr.mxu0 0.0
        %8757 = vmatpush1.msra.mxu0 %v8724
        %8758 = vmatprep.subr.mxu0 0.0
        %8759 = vmatpush1.msra.mxu0 %v8726
        %8760 = vmatprep.subr.mxu0 0.0
        %8761 = vmatpush1.msra.mxu0 %v8728
        %8762 = vmatprep.subr.mxu0 0.0
        %8763 = vmatpush1.msra.mxu0 %v8730
        %8764 = vmatprep.subr.mxu0 0.0
        %8765 = vmatpush1.msra.mxu0 0.0
        %8766 = vmatprep.subr.mxu0 0.0
        %8767 = vmatpush1.msra.mxu0 0.0
        %8768 = vmatprep.subr.mxu0 0.0
        %8769 = vmatpush1.msra.mxu0 0.0
        %8770 = vmatprep.subr.mxu0 0.0
        %8771 = vmatpush1.msra.mxu0 0.0
        %8772 = vmatprep.subr.mxu0 0.0
        %8773 = vmatpush1.msra.mxu0 0.0
        %8774 = vmatprep.subr.mxu0 0.0
        %8775 = vmatpush1.msra.mxu0 0.0
        %8776 = vmatprep.subr.mxu0 0.0
        %8777 = vmatpush1.msra.mxu0 0.0
        %8778 = vmatprep.subr.mxu0 0.0
        %8779 = vmatpush1.msra.mxu0 0.0
        %8780 = vmatprep.subr.mxu0 0.0
        %8781 = vmatpush1.msra.mxu0 0.0
        %8782 = vmatprep.subr.mxu0 0.0
        %8783 = vmatpush1.msra.mxu0 0.0
        %8784 = vmatprep.subr.mxu0 0.0
        %8785 = vmatpush1.msra.mxu0 0.0
        %8786 = vmatprep.subr.mxu0 0.0
        %8787 = vmatpush1.msra.mxu0 0.0
        %8788 = vmatprep.subr.mxu0 0.0
        %8789 = vmatpush1.msra.mxu0 0.0
        %8790 = vmatprep.subr.mxu0 0.0
        %8791 = vmatpush1.msra.mxu0 0.0
        %8792 = vmatprep.subr.mxu0 0.0
        %8793 = vmatpush1.msra.mxu0 0.0
        %8794 = vmatprep.subr.mxu0 0.0
        %8795 = vmatpush1.msra.mxu0 0.0
        %8796 = vmatprep.subr.mxu0 0.0
        %8797 = vmatpush1.msra.mxu0 0.0
        %8798 = vmatprep.subr.mxu0 0.0
        %8799 = vmatpush1.msra.mxu0 0.0
        %8800 = vmatprep.subr.mxu0 0.0
        %8801 = vmatpush1.msra.mxu0 0.0
        %8802 = vmatprep.subr.mxu0 0.0
        %8803 = vmatpush1.msra.mxu0 0.0
        %8804 = vmatprep.subr.mxu0 0.0
        %8805 = vmatpush1.msra.mxu0 0.0
        %8806 = vmatprep.subr.mxu0 0.0
        %8807 = vmatpush1.msra.mxu0 0.0
        %8808 = vmatprep.subr.mxu0 0.0
        %8809 = vmatpush1.msra.mxu0 0.0
        %8810 = vmatprep.subr.mxu0 0.0
        %8811 = vmatpush1.msra.mxu0 0.0
        %8812 = vmatprep.mubr.f32.mxu0 0.0
        %8813 = vmatmul.mubr.f32.gmra.mrb[0].mxu0 %v8740
        %v8814 = vpop.f32.mrb[0].mxu0
        %v8815 = vadd.f32 0.0, %v8814
        %v8816 = vpop.f32.mrb[0].mxu0
        %8817 = vmatprep.mubr.f32.mxu0 0.0
        %8818 = vmatmul.mubr.f32.gmra.mrb[0].mxu0 %v8743
        %v8819 = vpop.f32.mrb[0].mxu0
        %v8820 = vadd.f32 0.0, %v8819
        %v8821 = vpop.f32.mrb[0].mxu0
        %8822 = vmatprep.mubr.f32.mxu0 0.0
        %8823 = vmatmul.mubr.f32.gmra.mrb[0].mxu0 %v8746
        %v8824 = vpop.f32.mrb[0].mxu0
        %v8825 = vadd.f32 0.0, %v8824
        %v8826 = vpop.f32.mrb[0].mxu0
        %8827 = vdwg.mxu0
        %v8828 = vadd.f32 %v8709, %v8815
        %v8829 = vadd.f32 %v8710, %v8820
        %v8830 = vadd.f32 %v8711, %v8825
        %v8831 = vld [vmem:[%s4630] sm:$0xff]
        %v8832 = vld [vmem:[%s4630 + $0x8] sm:$0xff]
        %v8833 = vld [vmem:[%s4630 + $0x10] sm:$0xf]
        %8834 = vrot.lane.b32.xlu0 %v8250, 123
        %v8835 = vpop.permute.xlu0 %8834
        %8836 = vrot.lane.b32.xlu0 %v8251, 123
        %v8837 = vpop.permute.xlu0 %8836
        %8838 = vrot.lane.b32.xlu0 %v8252, 123
        %v8839 = vpop.permute.xlu0 %8838
        %8840 = vrot.lane.b32.xlu0 %v8253, 123
        %v8841 = vpop.permute.xlu0 %8840
        %8842 = vrot.lane.b32.xlu0 %v8254, 123
        %v8843 = vpop.permute.xlu0 %8842
        %8844 = vrot.lane.b32.xlu0 %v8255, 123
        %v8845 = vpop.permute.xlu0 %8844
        %8846 = vrot.lane.b32.xlu0 %v8256, 123
        %v8847 = vpop.permute.xlu0 %8846
        %8848 = vrot.lane.b32.xlu0 %v8257, 123
        %v8849 = vpop.permute.xlu0 %8848
        %v8859 = vsel %vm1354, %v8831, 0
        %v8862 = vsel %vm1354, %v8832, 0
        %v8865 = vsel %vm1354, %v8833, 0
        %8867 = vmatprep.subr.mxu0 0.0
        %8868 = vmatpush1.msra.mxu0 %v8835
        %8869 = vmatprep.subr.mxu0 0.0
        %8870 = vmatpush1.msra.mxu0 %v8837
        %8871 = vmatprep.subr.mxu0 0.0
        %8872 = vmatpush1.msra.mxu0 %v8839
        %8873 = vmatprep.subr.mxu0 0.0
        %8874 = vmatpush1.msra.mxu0 %v8841
        %8875 = vmatprep.subr.mxu0 0.0
        %8876 = vmatpush1.msra.mxu0 %v8843
        %8877 = vmatprep.subr.mxu0 0.0
        %8878 = vmatpush1.msra.mxu0 %v8845
        %8879 = vmatprep.subr.mxu0 0.0
        %8880 = vmatpush1.msra.mxu0 %v8847
        %8881 = vmatprep.subr.mxu0 0.0
        %8882 = vmatpush1.msra.mxu0 %v8849
        %8883 = vmatprep.subr.mxu0 0.0
        %8884 = vmatpush1.msra.mxu0 0.0
        %8885 = vmatprep.subr.mxu0 0.0
        %8886 = vmatpush1.msra.mxu0 0.0
        %8887 = vmatprep.subr.mxu0 0.0
        %8888 = vmatpush1.msra.mxu0 0.0
        %8889 = vmatprep.subr.mxu0 0.0
        %8890 = vmatpush1.msra.mxu0 0.0
        %8891 = vmatprep.subr.mxu0 0.0
        %8892 = vmatpush1.msra.mxu0 0.0
        %8893 = vmatprep.subr.mxu0 0.0
        %8894 = vmatpush1.msra.mxu0 0.0
        %8895 = vmatprep.subr.mxu0 0.0
        %8896 = vmatpush1.msra.mxu0 0.0
        %8897 = vmatprep.subr.mxu0 0.0
        %8898 = vmatpush1.msra.mxu0 0.0
        %8899 = vmatprep.subr.mxu0 0.0
        %8900 = vmatpush1.msra.mxu0 0.0
        %8901 = vmatprep.subr.mxu0 0.0
        %8902 = vmatpush1.msra.mxu0 0.0
        %8903 = vmatprep.subr.mxu0 0.0
        %8904 = vmatpush1.msra.mxu0 0.0
        %8905 = vmatprep.subr.mxu0 0.0
        %8906 = vmatpush1.msra.mxu0 0.0
        %8907 = vmatprep.subr.mxu0 0.0
        %8908 = vmatpush1.msra.mxu0 0.0
        %8909 = vmatprep.subr.mxu0 0.0
        %8910 = vmatpush1.msra.mxu0 0.0
        %8911 = vmatprep.subr.mxu0 0.0
        %8912 = vmatpush1.msra.mxu0 0.0
        %8913 = vmatprep.subr.mxu0 0.0
        %8914 = vmatpush1.msra.mxu0 0.0
        %8915 = vmatprep.subr.mxu0 0.0
        %8916 = vmatpush1.msra.mxu0 0.0
        %8917 = vmatprep.subr.mxu0 0.0
        %8918 = vmatpush1.msra.mxu0 0.0
        %8919 = vmatprep.subr.mxu0 0.0
        %8920 = vmatpush1.msra.mxu0 0.0
        %8921 = vmatprep.subr.mxu0 0.0
        %8922 = vmatpush1.msra.mxu0 0.0
        %8923 = vmatprep.subr.mxu0 0.0
        %8924 = vmatpush1.msra.mxu0 0.0
        %8925 = vmatprep.subr.mxu0 0.0
        %8926 = vmatpush1.msra.mxu0 0.0
        %8927 = vmatprep.subr.mxu0 0.0
        %8928 = vmatpush1.msra.mxu0 0.0
        %8929 = vmatprep.subr.mxu0 0.0
        %8930 = vmatpush1.msra.mxu0 0.0
        %8931 = vmatprep.mubr.f32.mxu0 0.0
        %8932 = vmatmul.mubr.f32.gmra.mrb[0].mxu0 %v8859
        %v8933 = vpop.f32.mrb[0].mxu0
        %v8934 = vadd.f32 0.0, %v8933
        %v8935 = vpop.f32.mrb[0].mxu0
        %8936 = vmatprep.mubr.f32.mxu0 0.0
        %8937 = vmatmul.mubr.f32.gmra.mrb[0].mxu0 %v8862
        %v8938 = vpop.f32.mrb[0].mxu0
        %v8939 = vadd.f32 0.0, %v8938
        %v8940 = vpop.f32.mrb[0].mxu0
        %8941 = vmatprep.mubr.f32.mxu0 0.0
        %8942 = vmatmul.mubr.f32.gmra.mrb[0].mxu0 %v8865
        %v8943 = vpop.f32.mrb[0].mxu0
        %v8944 = vadd.f32 0.0, %v8943
        %v8945 = vpop.f32.mrb[0].mxu0
        %8946 = vdwg.mxu0
        %v8947 = vadd.f32 %v8828, %v8934
        %v8948 = vadd.f32 %v8829, %v8939
        %v8949 = vadd.f32 %v8830, %v8944
        %v8950 = vld [vmem:[%s4750] sm:$0xff]
        %v8951 = vld [vmem:[%s4750 + $0x8] sm:$0xff]
        %v8952 = vld [vmem:[%s4750 + $0x10] sm:$0xf]
        %8953 = vrot.lane.b32.xlu0 %v8250, 122
        %v8954 = vpop.permute.xlu0 %8953
        %8955 = vrot.lane.b32.xlu0 %v8251, 122
        %v8956 = vpop.permute.xlu0 %8955
        %8957 = vrot.lane.b32.xlu0 %v8252, 122
        %v8958 = vpop.permute.xlu0 %8957
        %8959 = vrot.lane.b32.xlu0 %v8253, 122
        %v8960 = vpop.permute.xlu0 %8959
        %8961 = vrot.lane.b32.xlu0 %v8254, 122
        %v8962 = vpop.permute.xlu0 %8961
        %8963 = vrot.lane.b32.xlu0 %v8255, 122
        %v8964 = vpop.permute.xlu0 %8963
        %8965 = vrot.lane.b32.xlu0 %v8256, 122
        %v8966 = vpop.permute.xlu0 %8965
        %8967 = vrot.lane.b32.xlu0 %v8257, 122
        %v8968 = vpop.permute.xlu0 %8967
        %v8978 = vsel %vm1354, %v8950, 0
        %v8981 = vsel %vm1354, %v8951, 0
        %v8984 = vsel %vm1354, %v8952, 0
        %8986 = vmatprep.subr.mxu0 0.0
        %8987 = vmatpush1.msra.mxu0 %v8954
        %8988 = vmatprep.subr.mxu0 0.0
        %8989 = vmatpush1.msra.mxu0 %v8956
        %8990 = vmatprep.subr.mxu0 0.0
        %8991 = vmatpush1.msra.mxu0 %v8958
        %8992 = vmatprep.subr.mxu0 0.0
        %8993 = vmatpush1.msra.mxu0 %v8960
        %8994 = vmatprep.subr.mxu0 0.0
        %8995 = vmatpush1.msra.mxu0 %v8962
        %8996 = vmatprep.subr.mxu0 0.0
        %8997 = vmatpush1.msra.mxu0 %v8964
        %8998 = vmatprep.subr.mxu0 0.0
        %8999 = vmatpush1.msra.mxu0 %v8966
        %9000 = vmatprep.subr.mxu0 0.0
        %9001 = vmatpush1.msra.mxu0 %v8968
        %9002 = vmatprep.subr.mxu0 0.0
        %9003 = vmatpush1.msra.mxu0 0.0
        %9004 = vmatprep.subr.mxu0 0.0
        %9005 = vmatpush1.msra.mxu0 0.0
        %9006 = vmatprep.subr.mxu0 0.0
        %9007 = vmatpush1.msra.mxu0 0.0
        %9008 = vmatprep.subr.mxu0 0.0
        %9009 = vmatpush1.msra.mxu0 0.0
        %9010 = vmatprep.subr.mxu0 0.0
        %9011 = vmatpush1.msra.mxu0 0.0
        %9012 = vmatprep.subr.mxu0 0.0
        %9013 = vmatpush1.msra.mxu0 0.0
        %9014 = vmatprep.subr.mxu0 0.0
        %9015 = vmatpush1.msra.mxu0 0.0
        %9016 = vmatprep.subr.mxu0 0.0
        %9017 = vmatpush1.msra.mxu0 0.0
        %9018 = vmatprep.subr.mxu0 0.0
        %9019 = vmatpush1.msra.mxu0 0.0
        %9020 = vmatprep.subr.mxu0 0.0
        %9021 = vmatpush1.msra.mxu0 0.0
        %9022 = vmatprep.subr.mxu0 0.0
        %9023 = vmatpush1.msra.mxu0 0.0
        %9024 = vmatprep.subr.mxu0 0.0
        %9025 = vmatpush1.msra.mxu0 0.0
        %9026 = vmatprep.subr.mxu0 0.0
        %9027 = vmatpush1.msra.mxu0 0.0
        %9028 = vmatprep.subr.mxu0 0.0
        %9029 = vmatpush1.msra.mxu0 0.0
        %9030 = vmatprep.subr.mxu0 0.0
        %9031 = vmatpush1.msra.mxu0 0.0
        %9032 = vmatprep.subr.mxu0 0.0
        %9033 = vmatpush1.msra.mxu0 0.0
        %9034 = vmatprep.subr.mxu0 0.0
        %9035 = vmatpush1.msra.mxu0 0.0
        %9036 = vmatprep.subr.mxu0 0.0
        %9037 = vmatpush1.msra.mxu0 0.0
        %9038 = vmatprep.subr.mxu0 0.0
        %9039 = vmatpush1.msra.mxu0 0.0
        %9040 = vmatprep.subr.mxu0 0.0
        %9041 = vmatpush1.msra.mxu0 0.0
        %9042 = vmatprep.subr.mxu0 0.0
        %9043 = vmatpush1.msra.mxu0 0.0
        %9044 = vmatprep.subr.mxu0 0.0
        %9045 = vmatpush1.msra.mxu0 0.0
        %9046 = vmatprep.subr.mxu0 0.0
        %9047 = vmatpush1.msra.mxu0 0.0
        %9048 = vmatprep.subr.mxu0 0.0
        %9049 = vmatpush1.msra.mxu0 0.0
        %9050 = vmatprep.mubr.f32.mxu0 0.0
        %9051 = vmatmul.mubr.f32.gmra.mrb[0].mxu0 %v8978
        %v9052 = vpop.f32.mrb[0].mxu0
        %v9053 = vadd.f32 0.0, %v9052
        %v9054 = vpop.f32.mrb[0].mxu0
        %9055 = vmatprep.mubr.f32.mxu0 0.0
        %9056 = vmatmul.mubr.f32.gmra.mrb[0].mxu0 %v8981
        %v9057 = vpop.f32.mrb[0].mxu0
        %v9058 = vadd.f32 0.0, %v9057
        %v9059 = vpop.f32.mrb[0].mxu0
        %9060 = vmatprep.mubr.f32.mxu0 0.0
        %9061 = vmatmul.mubr.f32.gmra.mrb[0].mxu0 %v8984
        %v9062 = vpop.f32.mrb[0].mxu0
        %v9063 = vadd.f32 0.0, %v9062
        %v9064 = vpop.f32.mrb[0].mxu0
        %9065 = vdwg.mxu0
        %v9066 = vadd.f32 %v8947, %v9053
        %v9067 = vadd.f32 %v8948, %v9058
        %v9068 = vadd.f32 %v8949, %v9063
        %v9069 = vld [vmem:[%s18] sm:$0xff]
        %v9070 = vld [vmem:[%s18 + $0x8] sm:$0xff]
        %v9071 = vld [vmem:[%s18 + $0x10] sm:$0xf]
        %v9072 = vadd.f32 %v9066, %v9069
        %v9073 = vadd.f32 %v9067, %v9070
        %v9074 = vadd.f32 %v9068, %v9071
        %9078 = vrot.lane.b32.xlu0 %v9072, 1
        %v9079 = vpop.permute.xlu0 %9078
        %9080 = vrot.lane.b32.xlu0 %v9073, 1
        %v9081 = vpop.permute.xlu0 %9080
        %9082 = vrot.lane.b32.xlu0 %v9074, 1
        %v9083 = vpop.permute.xlu0 %9082
        %vm9087 = vcmask 15368
        %9088 = vst.msk [vmem:[%s668] sm:$0xff] %vm9087, %v9079
        %9089 = vst.msk [vmem:[%s668 + $0x8] sm:$0xff] %vm9087, %v9081
        %vm9090 = vcmask 11272
        %9091 = vst.msk [vmem:[%s668 + $0x10] sm:$0xf] %vm9090, %v9083
        %p9092 = scmp.lt.s32.totalorder %s35, 1
        %s9093 = scalar_select %p9092, %s35, 1
        %s9094 = smul.addr %s9093, 3
        %s9095 = smul.addr %s9094, 8
        %s9096 = scalar_lea.vmem %s19, %s9095
        // Predicated region
        $region113: #{tpu_custom_call.1} parent=95 // pred_check
          %p9097 = pneg %p457
        $region114: #{tpu_custom_call.1} parent=95 // pred_check_branch
          %9099 = sbr.rel (%p9097) target = $region116
        $region115: #{tpu_custom_call.1} parent=95 // pred_region
          _
        $region116: #{tpu_custom_call.1} parent=95 // pred_fallthru
          _
      $region96: #{tpu_custom_call.1} parent=5 // pred_fallthru
        _
      %p9100 = scmp.le.s32.totalorder 2, %s30
      // Predicated region
      $region117: #{tpu_custom_call.1} parent=5 // pred_check
        %p9101 = pneg %p9100
      $region118: #{tpu_custom_call.1} parent=5 // pred_check_branch
        %9103 = sbr.rel (%p9101) target = $region120
      $region119: #{tpu_custom_call.1} parent=5 // pred_region
        %s9104 = ssub.s32 %s30, 2
        // Predicated region
        $region121: #{tpu_custom_call.1} parent=119 // pred_check
          %p9105 = pneg %p463
        $region122: #{tpu_custom_call.1} parent=119 // pred_check_branch
          %9107 = sbr.rel (%p9105) target = $region124
        $region123: #{tpu_custom_call.1} parent=119 // pred_region
          %p9108 = scmp.lt.s32.totalorder %s36, 1
          %s9109 = scalar_select %p9108, %s36, 1
          %s9110 = smul.addr %s9109, 3
          %s9111 = smul.addr %s9110, 8
          %s9112 = scalar_lea.vmem %s19, %s9111
        $region124: #{tpu_custom_call.1} parent=119 // pred_fallthru
          _
      $region120: #{tpu_custom_call.1} parent=5 // pred_fallthru
        _
    $region6: #{tpu_custom_call.1} parent=1 // loop_footer
      %s34 = sadd.s32 1, %s30
    $region7: #{tpu_custom_call.1} parent=1 // loop_footer_branch
      %29 = sbr.rel target = $region3
    $region8: #{tpu_custom_call.1} parent=1 // loop_exit
      _
    %9113 = vsyncpa [#allocation3], 1
    %s9114 = scalar_lea.sflag [#allocation3], 1
    %9115 = vsyncpa %s9114, 1
    %9116 = vsyncpa [#allocation5], 1
    %9117 = vsyncpa [#allocation8], 1

</llo_original>
